<compile_context>
chip_gen: v7x
topology: tpu7x:2x2x1
jax: 0.10.0
libtpu: 0.0.40
codegen_flags: <defaults>
</compile_context>

<pallas_src>
import functools

import jax
import jax.numpy as jnp
from jax import lax
from jax.experimental import pallas as pl
from jax.experimental.pallas import tpu as pltpu

LANE = 128          # lane-pad channel / K dims to a multiple of this (dense MXU, unmasked vst)
_IN_EPS = 1e-5      # PyTorch InstanceNorm2d default


def _round_up(x, m):
    return ((x + m - 1) // m) * m


def _pick_tile_m(m_total, coutp, budget=128 * 1024):
    """Largest divisor of m_total whose f32 accumulator fits `budget` (prefer multiples of 8)."""
    cap = max(1, budget // (coutp * 4))
    if m_total <= cap:
        return m_total
    best8, best = 0, 1
    for cand in range(1, cap + 1):
        if m_total % cand == 0:
            best = cand
            if cand % 8 == 0:
                best8 = cand
    return best8 if best8 else best


# ----------------------------------------------------------------------------
# Fused Pallas kernel: lane-packed matmul (+bias) (+InstanceNorm) (+act) (+residual)
# ----------------------------------------------------------------------------
def _conv_block_kernel(*refs, tile_m, nht, norm, act, has_res):
    """refs = patches, weight, bias, [residual], out, [sum_scratch, ssq_scratch].

    patches : (1, tile_m, Kp) bf16   lane-packed im2col tile (K = kh*kw*Cin_real, padded)
    weight  : (Kp, Coutp)     bf16   pre-transposed / padded weight slab (resident)
    bias    : (1, Coutp)      f32
    residual: (1, M, Coutp)   bf16   (ResBlock skip, resident; optional)
    out     : (1, M, Coutp)   bf16   resident across the row-tile grid axis
    """
    x_ref, w_ref, b_ref = refs[0], refs[1], refs[2]
    idx = 3
    res_ref = None
    if has_res:
        res_ref = refs[idx]
        idx += 1
    o_ref = refs[idx]
    idx += 1
    use_stats = norm and nht > 1
    if use_stats:
        sum_ref, ssq_ref = refs[idx], refs[idx + 1]

    t = pl.program_id(1)
    row0 = t * tile_m
    if tile_m % 8 == 0:
        row0 = pl.multiple_of(row0, 8)

    # Single MXU pass over the lane-packed taps, f32 accumulation, fused bias add.
    acc = jnp.dot(x_ref[0], w_ref[...], preferred_element_type=jnp.float32) + b_ref[...]

    def _activate(y):
        if act == "relu":
            return jnp.maximum(y, 0.0)
        if act == "tanh":
            return jnp.tanh(y)
        return y

    if not norm:
        y = _activate(acc)
        if has_res:
            y = y + res_ref[0, pl.ds(row0, tile_m), :].astype(jnp.float32)
        o_ref[0, pl.ds(row0, tile_m), :] = y.astype(o_ref.dtype)

    elif nht == 1:
        # Whole image in this tile -> inline f32 InstanceNorm (no bf16 round trip at all).
        mean = jnp.mean(acc, axis=0, keepdims=True)
        yc = acc - mean
        var = jnp.mean(yc * yc, axis=0, keepdims=True)
        y = yc * lax.rsqrt(var + _IN_EPS)
        y = _activate(y)
        if has_res:
            y = y + res_ref[0, :, :].astype(jnp.float32)
        o_ref[0, :, :] = y.astype(o_ref.dtype)

    else:
        # Streamed stats: store the pre-norm tile (one contiguous vst), accumulate f32 sum and
        # sum-of-squares into small VMEM scratch, normalize chunk-by-chunk on the last tile.
        o_ref[0, pl.ds(row0, tile_m), :] = acc.astype(o_ref.dtype)

        @pl.when(t == 0)
        def _init():
            sum_ref[...] = jnp.zeros_like(sum_ref)
            ssq_ref[...] = jnp.zeros_like(ssq_ref)

        sum_ref[...] += jnp.sum(acc, axis=0, keepdims=True)
        ssq_ref[...] += jnp.sum(acc * acc, axis=0, keepdims=True)

        @pl.when(t == nht - 1)
        def _finalize():
            inv_n = 1.0 / float(nht * tile_m)
            mean = sum_ref[...] * inv_n
            var = jnp.maximum(ssq_ref[...] * inv_n - mean * mean, 0.0)
            scale = lax.rsqrt(var + _IN_EPS)
            for r in range(nht):                       # static unroll, small f32 chunks
                sl = pl.ds(r * tile_m, tile_m)
                y = (o_ref[0, sl, :].astype(jnp.float32) - mean) * scale
                y = _activate(y)
                if has_res:
                    y = y + res_ref[0, sl, :].astype(jnp.float32)
                o_ref[0, sl, :] = y.astype(o_ref.dtype)


# ----------------------------------------------------------------------------
# Layer wrapper: merge concat sources, lane-pack taps, then one fused pallas_call
# ----------------------------------------------------------------------------
def _apply_layer_pallas(lp, sources, residual=None):
    k, s, p = lp["k"], lp["stride"], lp["k"] // 2
    splits = lp["splits"]

    # Merge concat sources: take each source's real channels, pack into one buffer.
    xs = [src[..., :c] for src, c in zip(sources, splits)]
    x = xs[0] if len(xs) == 1 else jnp.concatenate(xs, axis=-1)

    if lp["upsample"]:
        # TODO(synk): nearest-2x upsample materialized in HBM rather than fused into indexing.
        x = jnp.repeat(jnp.repeat(x, 2, axis=1), 2, axis=2)

    n, h, w, cin = x.shape
    ho, wo = h // s, w // s
    xp = jnp.pad(x, ((0, 0), (p, p), (p, p), (0, 0)))

    # Tap packing: kh*kw shifted (strided) windows of the real channels, concatenated on lanes.
    taps = []
    for di in range(k):
        for dj in range(k):
            taps.append(lax.slice(
                xp, (0, di, dj, 0),
                (n, di + (ho - 1) * s + 1, dj + (wo - 1) * s + 1, cin),
                (1, s, s, 1)))
    kdim = k * k * cin
    kp = lp["kp"]
    patches = jnp.concatenate(taps, axis=-1)
    patches = jnp.pad(patches, ((0, 0), (0, 0), (0, 0), (0, kp - kdim)))
    m_total = ho * wo
    patches = patches.astype(jnp.bfloat16).reshape(n, m_total, kp)

    coutp = lp["coutp"]
    tile_m = _pick_tile_m(m_total, coutp)
    nht = m_total // tile_m
    norm = lp["norm"]
    use_stats = norm and nht > 1
    has_res = residual is not None

    inputs = [patches, lp["w_k"], lp["b_k"]]
    in_specs = [
        pl.BlockSpec((1, tile_m, kp), lambda b, t: (b, t, 0)),
        pl.BlockSpec((kp, coutp), lambda b, t: (0, 0)),
        pl.BlockSpec((1, coutp), lambda b, t: (0, 0)),
    ]
    res_bytes = 0
    if has_res:
        rc = residual.shape[-1]
        if rc < coutp:
            residual = jnp.pad(residual, ((0, 0), (0, 0), (0, 0), (0, coutp - rc)))
        elif rc > coutp:
            residual = residual[..., :coutp]
        res_flat = residual.astype(jnp.bfloat16).reshape(n, m_total, coutp)
        inputs.append(res_flat)
        in_specs.append(pl.BlockSpec((1, m_total, coutp), lambda b, t: (b, 0, 0)))
        res_bytes = 2 * m_total * coutp * 2

    scratch_shapes = []
    if use_stats:
        scratch_shapes = [pltpu.VMEM((1, coutp), jnp.float32),
                          pltpu.VMEM((1, coutp), jnp.float32)]

    # Per-layer VMEM plan (double-buffered input tiles + resident output + weights + residual).
    vmem_bytes = (2 * tile_m * kp * 2
                  + 2 * m_total * coutp * 2
                  + kp * coutp * 2 + coutp * 4
                  + res_bytes + 8 * coutp * 4)
    vmem_limit = int(min(max(2 * vmem_bytes + (4 << 20), 16 << 20), 100 << 20))

    kernel = functools.partial(
        _conv_block_kernel, tile_m=tile_m, nht=nht, norm=norm, act=lp["act"], has_res=has_res)

    out = pl.pallas_call(
        kernel,
        grid=(n, nht),
        in_specs=in_specs,
        out_specs=pl.BlockSpec((1, m_total, coutp), lambda b, t: (b, 0, 0)),
        out_shape=jax.ShapeDtypeStruct((n, m_total, coutp), jnp.bfloat16),
        scratch_shapes=scratch_shapes,
        compiler_params=pltpu.CompilerParams(
            dimension_semantics=("parallel", "arbitrary"),
            vmem_limit_bytes=vmem_limit),
    )(*inputs)
    return out.reshape(n, ho, wo, coutp)


# ----------------------------------------------------------------------------
# Pure-JAX reference (raw f32 weights) for correctness checking
# ----------------------------------------------------------------------------
def _apply_layer_reference(lp, sources, residual=None):
    x = sources[0] if len(sources) == 1 else jnp.concatenate(sources, axis=-1)
    if lp["upsample"]:
        x = jnp.repeat(jnp.repeat(x, 2, axis=1), 2, axis=2)
    k, s, p = lp["k"], lp["stride"], lp["k"] // 2
    w = jnp.transpose(lp["w_raw"], (2, 3, 1, 0))                      # OIHW -> HWIO
    y = lax.conv_general_dilated(
        x, w, window_strides=(s, s), padding=((p, p), (p, p)),
        dimension_numbers=("NHWC", "HWIO", "NHWC"))
    y = y + lp["b_raw"].reshape(1, 1, 1, -1)
    if lp["norm"]:
        mean = jnp.mean(y, axis=(1, 2), keepdims=True)
        var = jnp.mean(jnp.square(y - mean), axis=(1, 2), keepdims=True)
        y = (y - mean) * lax.rsqrt(var + _IN_EPS)
    if lp["act"] == "relu":
        y = jnp.maximum(y, 0.0)
    elif lp["act"] == "tanh":
        y = jnp.tanh(y)
    if residual is not None:
        y = y + residual
    return y


# ----------------------------------------------------------------------------
# Shared Unet wiring (identical for the Pallas path and the reference path)
# ----------------------------------------------------------------------------
def _run_unet(params, x, apply_layer):
    feats = []
    x = apply_layer(params["init"], [x])
    feats.append(x)
    for lp in params["enc"]:
        x = apply_layer(lp, [x])
        feats.append(x)

    x = feats[-1]
    for p1, p2 in params["blocks"]:
        h = apply_layer(p1, [x])
        x = apply_layer(p2, [h], residual=x)

    dec_feats = feats[:-1]                       # enc_outputs[:-1] in the PyTorch module
    srcs = [x]
    for i, lp in enumerate(params["dec_former"]):
        y = apply_layer(lp, srcs)
        srcs = [dec_feats[-i - 1], y]            # torch.cat([enc_outputs[-i-1], x], dim=1)
    for j, lp in enumerate(params["dec_latter"]):
        y = apply_layer(lp, srcs)
        srcs = [dec_feats[params["cutoffs"] - j - 1], y]
    return apply_layer(params["final"], srcs)


def generator_forward(params, x_nchw):
    x = jnp.transpose(x_nchw, (0, 2, 3, 1)).astype(jnp.bfloat16)      # NCHW -> NHWC
    y = _run_unet(params, x, _apply_layer_pallas)
    y = y[..., : params["final"]["cout"]].astype(jnp.float32)
    return jnp.transpose(y, (0, 3, 1, 2))                             # NHWC -> NCHW


def reference_forward(params, x_nchw):
    x = jnp.transpose(x_nchw, (0, 2, 3, 1))
    y = _run_unet(params, x, _apply_layer_reference)
    return jnp.transpose(y, (0, 3, 1, 2))


# ----------------------------------------------------------------------------
# Parameter building / one-time kernel-layout preparation (outside jit)
# ----------------------------------------------------------------------------
def _make_layer(key, splits, cout, k, stride, upsample, norm, act):
    cin = int(sum(splits))
    kw_, kb = jax.random.split(key)
    fan_in = cin * k * k
    w = jax.random.normal(kw_, (cout, cin, k, k), jnp.float32) / jnp.sqrt(float(fan_in))
    b = 0.01 * jax.random.normal(kb, (cout,), jnp.float32)
    return {"w_raw": w, "b_raw": b, "splits": tuple(int(c) for c in splits),
            "cout": int(cout), "k": int(k), "stride": int(stride),
            "upsample": bool(upsample), "norm": bool(norm), "act": act}


def _prepare_layer(lp):
    """Pre-transpose / tap-pack / lane-pad the weights once (outside jit), in bf16."""
    k, cout = lp["k"], lp["cout"]
    cin = int(sum(lp["splits"]))
    coutp = _round_up(cout, LANE)
    kdim = k * k * cin
    kp = _round_up(kdim, LANE)
    # (cout, cin, kh, kw) -> (kh, kw, cin, cout) -> (kh*kw*cin, cout): matches (di, dj, c) packing.
    w = jnp.transpose(lp["w_raw"], (2, 3, 1, 0)).reshape(kdim, cout)
    w_pad = jnp.zeros((kp, coutp), jnp.float32).at[:kdim, :cout].set(w)
    bias = jnp.zeros((1, coutp), jnp.float32).at[0, :cout].set(lp["b_raw"])
    out = dict(lp)
    out["w_k"] = w_pad.astype(jnp.bfloat16)
    out["b_k"] = bias
    out["coutp"] = coutp
    out["kp"] = kp
    return out


def build_generator_params(key, in_c, out_c, basic_c, cutoffs, layers_num, blocks_num, activate):
    assert 1 <= cutoffs < layers_num
    n_layers = 2 + 2 * layers_num + 2 * blocks_num
    kit = iter(jax.random.split(key, n_layers))
    bott = basic_c * 2 ** cutoffs

    params = {"cutoffs": cutoffs}
    params["init"] = _prepare_layer(_make_layer(next(kit), [in_c], basic_c, 7, 1, False, True, "relu"))

    enc = []
    for i in range(layers_num):
        cin = basic_c * 2 ** i if i < cutoffs else bott
        cout = basic_c * 2 ** (i + 1) if i < cutoffs else bott
        enc.append(_prepare_layer(_make_layer(next(kit), [cin], cout, 3, 2, False, True, "relu")))
    params["enc"] = enc

    blocks = []
    for _ in range(blocks_num):
        p1 = _prepare_layer(_make_layer(next(kit), [bott], bott, 3, 1, False, True, "relu"))
        p2 = _prepare_layer(_make_layer(next(kit), [bott], bott, 3, 1, False, True, None))
        blocks.append((p1, p2))
    params["blocks"] = blocks

    former = []
    for i in range(layers_num - cutoffs):
        splits = [bott] if i == 0 else [bott, bott]
        former.append(_prepare_layer(_make_layer(next(kit), splits, bott, 3, 1, True, True, "relu")))
    params["dec_former"] = former

    latter = []
    for j in range(cutoffs):
        c_half = basic_c * 2 ** (cutoffs - j)
        cout = basic_c * 2 ** (cutoffs - j - 1)
        latter.append(_prepare_layer(_make_layer(next(kit), [c_half, c_half], cout, 3, 1, True, True, "relu")))
    params["dec_latter"] = latter

    params["final"] = _prepare_layer(
        _make_layer(next(kit), [basic_c, basic_c], out_c, 7, 1, False, False, activate))
    return params


# ----------------------------------------------------------------------------
if __name__ == "__main__":
    # UnetGenerator(in_c=3, out_c=3, basic_c=4, cutoffs=2, layers_num=3, blocks_num=2,
    #               activate='tanh'); input NCHW (2, 3, 32, 32).
    in_c, out_c, basic_c, cutoffs, layers_num, blocks_num = 3, 3, 4, 2, 3, 2

    key = jax.random.PRNGKey(0)
    kpar, kinp = jax.random.split(key)
    params = build_generator_params(kpar, in_c, out_c, basic_c, cutoffs, layers_num, blocks_num,
                                    activate="tanh")
    x = jax.random.normal(kinp, (2, in_c, 32, 32), jnp.float32)

    fwd = jax.jit(lambda inp: generator_forward(params, inp))
    y = fwd(x)
    jax.block_until_ready(y)

    assert y.shape == (2, out_c, 32, 32), y.shape
    assert bool(jnp.all(jnp.isfinite(y)))
    assert bool(jnp.all(jnp.abs(y) <= 1.0 + 1e-3))          # tanh output range

    # Pure-JAX reference (f32) — loose tolerance accounts for bf16 weights / activations.
    y_ref = reference_forward(params, x)
    max_err = float(jnp.max(jnp.abs(y.astype(jnp.float32) - y_ref)))
    assert max_err < 0.25, f"max |pallas - reference| = {max_err}"

    print("KERNEL_OK")
</pallas_src>

<mosaic_0001>
module attributes {stable_mosaic.version = 11 : i64} {
  func.func @_conv_block_kernel(%arg0: i32, %arg1: i32, %arg2: memref<1x256x256xbf16, #tpu.memory_space<vmem>>, %arg3: memref<256x128xbf16, #tpu.memory_space<vmem>>, %arg4: memref<1x128xf32, #tpu.memory_space<vmem>>, %arg5: memref<1x1024x128xbf16, #tpu.memory_space<vmem>>, %arg6: memref<1x128xf32, #tpu.memory_space<vmem>>, %arg7: memref<1x128xf32, #tpu.memory_space<vmem>>) attributes {dimension_semantics = [#tpu.dimension_semantics<parallel>, #tpu.dimension_semantics<arbitrary>], iteration_bounds = array<i64: 2, 4>, scalar_prefetch = 0 : i64, scratch_operands = 2 : i64, tpu.core_type = #tpu.core_type<tc>, window_params = [{transform_indices = @transform_0, window_bounds = array<i64: 1, 256, 256>}, {pipeline_mode = #tpu.pipeline_mode<synchronous>, transform_indices = @transform_1, window_bounds = array<i64: 256, 128>}, {pipeline_mode = #tpu.pipeline_mode<synchronous>, transform_indices = @transform_2, window_bounds = array<i64: 1, 128>}, {transform_indices = @transform_3, window_bounds = array<i64: 1, 1024, 128>}]} {
    %c256_i32 = arith.constant 256 : i32
    %0 = arith.muli %arg1, %c256_i32 : i32
    %1 = tpu.assume_multiple %0, 8 : i32
    %c0 = arith.constant 0 : index
    %c0_0 = arith.constant 0 : index
    %c0_1 = arith.constant 0 : index
    %2 = vector.load %arg2[%c0, %c0_0, %c0_1] : memref<1x256x256xbf16, #tpu.memory_space<vmem>>, vector<1x256x256xbf16>
    %3 = vector.shape_cast %2 : vector<1x256x256xbf16> to vector<256x256xbf16>
    %c0_2 = arith.constant 0 : index
    %c0_3 = arith.constant 0 : index
    %4 = vector.load %arg3[%c0_2, %c0_3] : memref<256x128xbf16, #tpu.memory_space<vmem>>, vector<256x128xbf16>
    %cst = arith.constant dense<0.000000e+00> : vector<256x128xf32>
    %5 = tpu.matmul %3, %4, %cst {dimension_numbers = #tpu.dot_dimension_numbers<[1], [0], [0], [1], [0, 0, 1, 1], [], []>} : vector<256x256xbf16>, vector<256x128xbf16>, vector<256x128xf32> -> vector<256x128xf32>
    %c0_4 = arith.constant 0 : index
    %c0_5 = arith.constant 0 : index
    %6 = vector.load %arg4[%c0_4, %c0_5] : memref<1x128xf32, #tpu.memory_space<vmem>>, vector<1x128xf32>
    %7 = vector.broadcast %6 : vector<1x128xf32> to vector<256x128xf32>
    %8 = arith.addf %5, %7 : vector<256x128xf32>
    %9 = arith.truncf %8 : vector<256x128xf32> to vector<256x128xbf16>
    %c0_6 = arith.constant 0 : index
    %10 = arith.index_cast %1 : i32 to index
    %c0_7 = arith.constant 0 : index
    %11 = vector.load %arg5[%c0_6, %10, %c0_7] : memref<1x1024x128xbf16, #tpu.memory_space<vmem>>, vector<1x256x128xbf16>
    %12 = vector.shape_cast %11 : vector<1x256x128xbf16> to vector<256x128xbf16>
    %13 = vector.shape_cast %9 : vector<256x128xbf16> to vector<1x256x128xbf16>
    tpu.vector_store %arg5[%c0_6, %10, %c0_7], %13 {strides = array<i32>} : memref<1x1024x128xbf16, #tpu.memory_space<vmem>>, vector<1x256x128xbf16>,
    %c0_i32 = arith.constant 0 : i32
    %14 = arith.cmpi eq, %arg1, %c0_i32 : i32
    %15 = arith.extui %14 : i1 to i32
    %c0_i32_8 = arith.constant 0 : i32
    %16 = arith.cmpi ne, %15, %c0_i32_8 : i32
    scf.if %16 {
      %cst_20 = arith.constant 0.000000e+00 : f32
      %31 = vector.broadcast %cst_20 : f32 to vector<1x128xf32>
      %c0_21 = arith.constant 0 : index
      %c0_22 = arith.constant 0 : index
      %32 = vector.load %arg6[%c0_21, %c0_22] : memref<1x128xf32, #tpu.memory_space<vmem>>, vector<1x128xf32>
      tpu.vector_store %arg6[%c0_21, %c0_22], %31 {strides = array<i32>} : memref<1x128xf32, #tpu.memory_space<vmem>>, vector<1x128xf32>,
      %cst_23 = arith.constant 0.000000e+00 : f32
      %33 = vector.broadcast %cst_23 : f32 to vector<1x128xf32>
      %c0_24 = arith.constant 0 : index
      %c0_25 = arith.constant 0 : index
      %34 = vector.load %arg7[%c0_24, %c0_25] : memref<1x128xf32, #tpu.memory_space<vmem>>, vector<1x128xf32>
      tpu.vector_store %arg7[%c0_24, %c0_25], %33 {strides = array<i32>} : memref<1x128xf32, #tpu.memory_space<vmem>>, vector<1x128xf32>,
    } else {
    }
    %c0_9 = arith.constant 0 : index
    %c0_10 = arith.constant 0 : index
    %17 = vector.load %arg6[%c0_9, %c0_10] : memref<1x128xf32, #tpu.memory_space<vmem>>, vector<1x128xf32>
    %cst_11 = arith.constant dense<0.000000e+00> : vector<128xf32>
    %18 = vector.multi_reduction <add>, %8, %cst_11 [0] : vector<256x128xf32> to vector<128xf32>
    %19 = vector.shape_cast %18 : vector<128xf32> to vector<1x128xf32>
    %20 = arith.addf %17, %19 : vector<1x128xf32>
    %c0_12 = arith.constant 0 : index
    %c0_13 = arith.constant 0 : index
    %21 = vector.load %arg6[%c0_12, %c0_13] : memref<1x128xf32, #tpu.memory_space<vmem>>, vector<1x128xf32>
    tpu.vector_store %arg6[%c0_12, %c0_13], %20 {strides = array<i32>} : memref<1x128xf32, #tpu.memory_space<vmem>>, vector<1x128xf32>,
    %c0_14 = arith.constant 0 : index
    %c0_15 = arith.constant 0 : index
    %22 = vector.load %arg7[%c0_14, %c0_15] : memref<1x128xf32, #tpu.memory_space<vmem>>, vector<1x128xf32>
    %23 = arith.mulf %8, %8 : vector<256x128xf32>
    %cst_16 = arith.constant dense<0.000000e+00> : vector<128xf32>
    %24 = vector.multi_reduction <add>, %23, %cst_16 [0] : vector<256x128xf32> to vector<128xf32>
    %25 = vector.shape_cast %24 : vector<128xf32> to vector<1x128xf32>
    %26 = arith.addf %22, %25 : vector<1x128xf32>
    %c0_17 = arith.constant 0 : index
    %c0_18 = arith.constant 0 : index
    %27 = vector.load %arg7[%c0_17, %c0_18] : memref<1x128xf32, #tpu.memory_space<vmem>>, vector<1x128xf32>
    tpu.vector_store %arg7[%c0_17, %c0_18], %26 {strides = array<i32>} : memref<1x128xf32, #tpu.memory_space<vmem>>, vector<1x128xf32>,
    %c3_i32 = arith.constant 3 : i32
    %28 = arith.cmpi eq, %arg1, %c3_i32 : i32
    %29 = arith.extui %28 : i1 to i32
    %c0_i32_19 = arith.constant 0 : i32
    %30 = arith.cmpi ne, %29, %c0_i32_19 : i32
    scf.if %30 {
      %c0_20 = arith.constant 0 : index
      %c0_21 = arith.constant 0 : index
      %31 = vector.load %arg6[%c0_20, %c0_21] : memref<1x128xf32, #tpu.memory_space<vmem>>, vector<1x128xf32>
      %cst_22 = arith.constant 9.765625E-4 : f32
      %32 = vector.broadcast %cst_22 : f32 to vector<1x128xf32>
      %33 = arith.mulf %31, %32 : vector<1x128xf32>
      %c0_23 = arith.constant 0 : index
      %c0_24 = arith.constant 0 : index
      %34 = vector.load %arg7[%c0_23, %c0_24] : memref<1x128xf32, #tpu.memory_space<vmem>>, vector<1x128xf32>
      %cst_25 = arith.constant 9.765625E-4 : f32
      %35 = vector.broadcast %cst_25 : f32 to vector<1x128xf32>
      %36 = arith.mulf %34, %35 : vector<1x128xf32>
      %37 = arith.mulf %33, %33 : vector<1x128xf32>
      %38 = arith.subf %36, %37 : vector<1x128xf32>
      %cst_26 = arith.constant 0.000000e+00 : f32
      %39 = vector.broadcast %cst_26 : f32 to vector<1x128xf32>
      %40 = arith.maximumf %38, %39 : vector<1x128xf32>
      %cst_27 = arith.constant 9.99999974E-6 : f32
      %41 = vector.broadcast %cst_27 : f32 to vector<1x128xf32>
      %42 = arith.addf %40, %41 : vector<1x128xf32>
      %43 = math.rsqrt %42 : vector<1x128xf32>
      %c0_28 = arith.constant 0 : index
      %c0_29 = arith.constant 0 : index
      %c0_30 = arith.constant 0 : index
      %44 = vector.load %arg5[%c0_28, %c0_29, %c0_30] : memref<1x1024x128xbf16, #tpu.memory_space<vmem>>, vector<1x256x128xbf16>
      %45 = vector.shape_cast %44 : vector<1x256x128xbf16> to vector<256x128xbf16>
      %46 = arith.extf %45 : vector<256x128xbf16> to vector<256x128xf32>
      %47 = vector.broadcast %33 : vector<1x128xf32> to vector<256x128xf32>
      %48 = arith.subf %46, %47 : vector<256x128xf32>
      %49 = vector.broadcast %43 : vector<1x128xf32> to vector<256x128xf32>
      %50 = arith.mulf %48, %49 : vector<256x128xf32>
      %cst_31 = arith.constant 0.000000e+00 : f32
      %51 = vector.broadcast %cst_31 : f32 to vector<256x128xf32>
      %52 = arith.maximumf %50, %51 : vector<256x128xf32>
      %53 = arith.truncf %52 : vector<256x128xf32> to vector<256x128xbf16>
      %c0_32 = arith.constant 0 : index
      %c0_33 = arith.constant 0 : index
      %c0_34 = arith.constant 0 : index
      %54 = vector.load %arg5[%c0_32, %c0_33, %c0_34] : memref<1x1024x128xbf16, #tpu.memory_space<vmem>>, vector<1x256x128xbf16>
      %55 = vector.shape_cast %54 : vector<1x256x128xbf16> to vector<256x128xbf16>
      %56 = vector.shape_cast %53 : vector<256x128xbf16> to vector<1x256x128xbf16>
      tpu.vector_store %arg5[%c0_32, %c0_33, %c0_34], %56 {strides = array<i32>} : memref<1x1024x128xbf16, #tpu.memory_space<vmem>>, vector<1x256x128xbf16>,
      %c0_35 = arith.constant 0 : index
      %c256 = arith.constant 256 : index
      %c0_36 = arith.constant 0 : index
      %57 = vector.load %arg5[%c0_35, %c256, %c0_36] : memref<1x1024x128xbf16, #tpu.memory_space<vmem>>, vector<1x256x128xbf16>
      %58 = vector.shape_cast %57 : vector<1x256x128xbf16> to vector<256x128xbf16>
      %59 = arith.extf %58 : vector<256x128xbf16> to vector<256x128xf32>
      %60 = vector.broadcast %33 : vector<1x128xf32> to vector<256x128xf32>
      %61 = arith.subf %59, %60 : vector<256x128xf32>
      %62 = vector.broadcast %43 : vector<1x128xf32> to vector<256x128xf32>
      %63 = arith.mulf %61, %62 : vector<256x128xf32>
      %cst_37 = arith.constant 0.000000e+00 : f32
      %64 = vector.broadcast %cst_37 : f32 to vector<256x128xf32>
      %65 = arith.maximumf %63, %64 : vector<256x128xf32>
      %66 = arith.truncf %65 : vector<256x128xf32> to vector<256x128xbf16>
      %c0_38 = arith.constant 0 : index
      %c256_39 = arith.constant 256 : index
      %c0_40 = arith.constant 0 : index
      %67 = vector.load %arg5[%c0_38, %c256_39, %c0_40] : memref<1x1024x128xbf16, #tpu.memory_space<vmem>>, vector<1x256x128xbf16>
      %68 = vector.shape_cast %67 : vector<1x256x128xbf16> to vector<256x128xbf16>
      %69 = vector.shape_cast %66 : vector<256x128xbf16> to vector<1x256x128xbf16>
      tpu.vector_store %arg5[%c0_38, %c256_39, %c0_40], %69 {strides = array<i32>} : memref<1x1024x128xbf16, #tpu.memory_space<vmem>>, vector<1x256x128xbf16>,
      %c0_41 = arith.constant 0 : index
      %c512 = arith.constant 512 : index
      %c0_42 = arith.constant 0 : index
      %70 = vector.load %arg5[%c0_41, %c512, %c0_42] : memref<1x1024x128xbf16, #tpu.memory_space<vmem>>, vector<1x256x128xbf16>
      %71 = vector.shape_cast %70 : vector<1x256x128xbf16> to vector<256x128xbf16>
      %72 = arith.extf %71 : vector<256x128xbf16> to vector<256x128xf32>
      %73 = vector.broadcast %33 : vector<1x128xf32> to vector<256x128xf32>
      %74 = arith.subf %72, %73 : vector<256x128xf32>
      %75 = vector.broadcast %43 : vector<1x128xf32> to vector<256x128xf32>
      %76 = arith.mulf %74, %75 : vector<256x128xf32>
      %cst_43 = arith.constant 0.000000e+00 : f32
      %77 = vector.broadcast %cst_43 : f32 to vector<256x128xf32>
      %78 = arith.maximumf %76, %77 : vector<256x128xf32>
      %79 = arith.truncf %78 : vector<256x128xf32> to vector<256x128xbf16>
      %c0_44 = arith.constant 0 : index
      %c512_45 = arith.constant 512 : index
      %c0_46 = arith.constant 0 : index
      %80 = vector.load %arg5[%c0_44, %c512_45, %c0_46] : memref<1x1024x128xbf16, #tpu.memory_space<vmem>>, vector<1x256x128xbf16>
      %81 = vector.shape_cast %80 : vector<1x256x128xbf16> to vector<256x128xbf16>
      %82 = vector.shape_cast %79 : vector<256x128xbf16> to vector<1x256x128xbf16>
      tpu.vector_store %arg5[%c0_44, %c512_45, %c0_46], %82 {strides = array<i32>} : memref<1x1024x128xbf16, #tpu.memory_space<vmem>>, vector<1x256x128xbf16>,
      %c0_47 = arith.constant 0 : index
      %c768 = arith.constant 768 : index
      %c0_48 = arith.constant 0 : index
      %83 = vector.load %arg5[%c0_47, %c768, %c0_48] : memref<1x1024x128xbf16, #tpu.memory_space<vmem>>, vector<1x256x128xbf16>
      %84 = vector.shape_cast %83 : vector<1x256x128xbf16> to vector<256x128xbf16>
      %85 = arith.extf %84 : vector<256x128xbf16> to vector<256x128xf32>
      %86 = vector.broadcast %33 : vector<1x128xf32> to vector<256x128xf32>
      %87 = arith.subf %85, %86 : vector<256x128xf32>
      %88 = vector.broadcast %43 : vector<1x128xf32> to vector<256x128xf32>
      %89 = arith.mulf %87, %88 : vector<256x128xf32>
      %cst_49 = arith.constant 0.000000e+00 : f32
      %90 = vector.broadcast %cst_49 : f32 to vector<256x128xf32>
      %91 = arith.maximumf %89, %90 : vector<256x128xf32>
      %92 = arith.truncf %91 : vector<256x128xf32> to vector<256x128xbf16>
      %c0_50 = arith.constant 0 : index
      %c768_51 = arith.constant 768 : index
      %c0_52 = arith.constant 0 : index
      %93 = vector.load %arg5[%c0_50, %c768_51, %c0_52] : memref<1x1024x128xbf16, #tpu.memory_space<vmem>>, vector<1x256x128xbf16>
      %94 = vector.shape_cast %93 : vector<1x256x128xbf16> to vector<256x128xbf16>
      %95 = vector.shape_cast %92 : vector<256x128xbf16> to vector<1x256x128xbf16>
      tpu.vector_store %arg5[%c0_50, %c768_51, %c0_52], %95 {strides = array<i32>} : memref<1x1024x128xbf16, #tpu.memory_space<vmem>>, vector<1x256x128xbf16>,
    } else {
    }
    return
  }
  func.func @transform_0(%arg0: i32, %arg1: i32) -> (i32, i32, i32) {
    %c0_i32 = arith.constant 0 : i32
    %c0_i32_0 = arith.constant 0 : i32
    return %arg0, %arg1, %c0_i32 : i32, i32, i32
  }
  func.func @transform_1(%arg0: i32, %arg1: i32) -> (i32, i32) {
    %c0_i32 = arith.constant 0 : i32
    %c0_i32_0 = arith.constant 0 : i32
    %c0_i32_1 = arith.constant 0 : i32
    return %c0_i32, %c0_i32_0 : i32, i32
  }
  func.func @transform_2(%arg0: i32, %arg1: i32) -> (i32, i32) {
    %c0_i32 = arith.constant 0 : i32
    %c0_i32_0 = arith.constant 0 : i32
    %c0_i32_1 = arith.constant 0 : i32
    return %c0_i32, %c0_i32_0 : i32, i32
  }
  func.func @transform_3(%arg0: i32, %arg1: i32) -> (i32, i32, i32) {
    %c0_i32 = arith.constant 0 : i32
    %c0_i32_0 = arith.constant 0 : i32
    %c0_i32_1 = arith.constant 0 : i32
    return %arg0, %c0_i32, %c0_i32_0 : i32, i32, i32
  }
}

module attributes {stable_mosaic.version = 11 : i64} {
  func.func @_conv_block_kernel(%arg0: i32, %arg1: i32, %arg2: memref<1x256x128xbf16, #tpu.memory_space<vmem>>, %arg3: memref<128x128xbf16, #tpu.memory_space<vmem>>, %arg4: memref<1x128xf32, #tpu.memory_space<vmem>>, %arg5: memref<1x256x128xbf16, #tpu.memory_space<vmem>>) attributes {dimension_semantics = [#tpu.dimension_semantics<parallel>, #tpu.dimension_semantics<arbitrary>], iteration_bounds = array<i64: 2, 1>, scalar_prefetch = 0 : i64, scratch_operands = 0 : i64, tpu.core_type = #tpu.core_type<tc>, window_params = [{transform_indices = @transform_0, window_bounds = array<i64: 1, 256, 128>}, {pipeline_mode = #tpu.pipeline_mode<synchronous>, transform_indices = @transform_1, window_bounds = array<i64: 128, 128>}, {pipeline_mode = #tpu.pipeline_mode<synchronous>, transform_indices = @transform_2, window_bounds = array<i64: 1, 128>}, {transform_indices = @transform_3, window_bounds = array<i64: 1, 256, 128>}]} {
    %c0 = arith.constant 0 : index
    %c0_0 = arith.constant 0 : index
    %c0_1 = arith.constant 0 : index
    %0 = vector.load %arg2[%c0, %c0_0, %c0_1] : memref<1x256x128xbf16, #tpu.memory_space<vmem>>, vector<1x256x128xbf16>
    %1 = vector.shape_cast %0 : vector<1x256x128xbf16> to vector<256x128xbf16>
    %c0_2 = arith.constant 0 : index
    %c0_3 = arith.constant 0 : index
    %2 = vector.load %arg3[%c0_2, %c0_3] : memref<128x128xbf16, #tpu.memory_space<vmem>>, vector<128x128xbf16>
    %cst = arith.constant dense<0.000000e+00> : vector<256x128xf32>
    %3 = tpu.matmul %1, %2, %cst {dimension_numbers = #tpu.dot_dimension_numbers<[1], [0], [0], [1], [0, 0, 1, 1], [], []>} : vector<256x128xbf16>, vector<128x128xbf16>, vector<256x128xf32> -> vector<256x128xf32>
    %c0_4 = arith.constant 0 : index
    %c0_5 = arith.constant 0 : index
    %4 = vector.load %arg4[%c0_4, %c0_5] : memref<1x128xf32, #tpu.memory_space<vmem>>, vector<1x128xf32>
    %5 = vector.broadcast %4 : vector<1x128xf32> to vector<256x128xf32>
    %6 = arith.addf %3, %5 : vector<256x128xf32>
    %cst_6 = arith.constant dense<0.000000e+00> : vector<128xf32>
    %7 = vector.multi_reduction <add>, %6, %cst_6 [0] : vector<256x128xf32> to vector<128xf32>
    %8 = vector.shape_cast %7 : vector<128xf32> to vector<1x128xf32>
    %cst_7 = arith.constant 2.560000e+02 : f32
    %9 = vector.broadcast %cst_7 : f32 to vector<1x128xf32>
    %10 = arith.divf %8, %9 : vector<1x128xf32>
    %11 = vector.broadcast %10 : vector<1x128xf32> to vector<256x128xf32>
    %12 = arith.subf %6, %11 : vector<256x128xf32>
    %13 = arith.mulf %12, %12 : vector<256x128xf32>
    %cst_8 = arith.constant dense<0.000000e+00> : vector<128xf32>
    %14 = vector.multi_reduction <add>, %13, %cst_8 [0] : vector<256x128xf32> to vector<128xf32>
    %15 = vector.shape_cast %14 : vector<128xf32> to vector<1x128xf32>
    %cst_9 = arith.constant 2.560000e+02 : f32
    %16 = vector.broadcast %cst_9 : f32 to vector<1x128xf32>
    %17 = arith.divf %15, %16 : vector<1x128xf32>
    %cst_10 = arith.constant 9.99999974E-6 : f32
    %18 = vector.broadcast %cst_10 : f32 to vector<1x128xf32>
    %19 = arith.addf %17, %18 : vector<1x128xf32>
    %20 = math.rsqrt %19 : vector<1x128xf32>
    %21 = vector.broadcast %20 : vector<1x128xf32> to vector<256x128xf32>
    %22 = arith.mulf %12, %21 : vector<256x128xf32>
    %cst_11 = arith.constant 0.000000e+00 : f32
    %23 = vector.broadcast %cst_11 : f32 to vector<256x128xf32>
    %24 = arith.maximumf %22, %23 : vector<256x128xf32>
    %25 = arith.truncf %24 : vector<256x128xf32> to vector<256x128xbf16>
    %c0_12 = arith.constant 0 : index
    %c0_13 = arith.constant 0 : index
    %c0_14 = arith.constant 0 : index
    %26 = vector.load %arg5[%c0_12, %c0_13, %c0_14] : memref<1x256x128xbf16, #tpu.memory_space<vmem>>, vector<1x256x128xbf16>
    %27 = vector.shape_cast %26 : vector<1x256x128xbf16> to vector<256x128xbf16>
    %28 = vector.shape_cast %25 : vector<256x128xbf16> to vector<1x256x128xbf16>
    tpu.vector_store %arg5[%c0_12, %c0_13, %c0_14], %28 {strides = array<i32>} : memref<1x256x128xbf16, #tpu.memory_space<vmem>>, vector<1x256x128xbf16>,
    return
  }
  func.func @transform_0(%arg0: i32, %arg1: i32) -> (i32, i32, i32) {
    %c0_i32 = arith.constant 0 : i32
    %c0_i32_0 = arith.constant 0 : i32
    return %arg0, %arg1, %c0_i32 : i32, i32, i32
  }
  func.func @transform_1(%arg0: i32, %arg1: i32) -> (i32, i32) {
    %c0_i32 = arith.constant 0 : i32
    %c0_i32_0 = arith.constant 0 : i32
    %c0_i32_1 = arith.constant 0 : i32
    return %c0_i32, %c0_i32_0 : i32, i32
  }
  func.func @transform_2(%arg0: i32, %arg1: i32) -> (i32, i32) {
    %c0_i32 = arith.constant 0 : i32
    %c0_i32_0 = arith.constant 0 : i32
    %c0_i32_1 = arith.constant 0 : i32
    return %c0_i32, %c0_i32_0 : i32, i32
  }
  func.func @transform_3(%arg0: i32, %arg1: i32) -> (i32, i32, i32) {
    %c0_i32 = arith.constant 0 : i32
    %c0_i32_0 = arith.constant 0 : i32
    %c0_i32_1 = arith.constant 0 : i32
    return %arg0, %c0_i32, %c0_i32_0 : i32, i32, i32
  }
}

module attributes {stable_mosaic.version = 11 : i64} {
  func.func @_conv_block_kernel(%arg0: i32, %arg1: i32, %arg2: memref<1x64x128xbf16, #tpu.memory_space<vmem>>, %arg3: memref<128x128xbf16, #tpu.memory_space<vmem>>, %arg4: memref<1x128xf32, #tpu.memory_space<vmem>>, %arg5: memref<1x64x128xbf16, #tpu.memory_space<vmem>>) attributes {dimension_semantics = [#tpu.dimension_semantics<parallel>, #tpu.dimension_semantics<arbitrary>], iteration_bounds = array<i64: 2, 1>, scalar_prefetch = 0 : i64, scratch_operands = 0 : i64, tpu.core_type = #tpu.core_type<tc>, window_params = [{transform_indices = @transform_0, window_bounds = array<i64: 1, 64, 128>}, {pipeline_mode = #tpu.pipeline_mode<synchronous>, transform_indices = @transform_1, window_bounds = array<i64: 128, 128>}, {pipeline_mode = #tpu.pipeline_mode<synchronous>, transform_indices = @transform_2, window_bounds = array<i64: 1, 128>}, {transform_indices = @transform_3, window_bounds = array<i64: 1, 64, 128>}]} {
    %c0 = arith.constant 0 : index
    %c0_0 = arith.constant 0 : index
    %c0_1 = arith.constant 0 : index
    %0 = vector.load %arg2[%c0, %c0_0, %c0_1] : memref<1x64x128xbf16, #tpu.memory_space<vmem>>, vector<1x64x128xbf16>
    %1 = vector.shape_cast %0 : vector<1x64x128xbf16> to vector<64x128xbf16>
    %c0_2 = arith.constant 0 : index
    %c0_3 = arith.constant 0 : index
    %2 = vector.load %arg3[%c0_2, %c0_3] : memref<128x128xbf16, #tpu.memory_space<vmem>>, vector<128x128xbf16>
    %cst = arith.constant dense<0.000000e+00> : vector<64x128xf32>
    %3 = tpu.matmul %1, %2, %cst {dimension_numbers = #tpu.dot_dimension_numbers<[1], [0], [0], [1], [0, 0, 1, 1], [], []>} : vector<64x128xbf16>, vector<128x128xbf16>, vector<64x128xf32> -> vector<64x128xf32>
    %c0_4 = arith.constant 0 : index
    %c0_5 = arith.constant 0 : index
    %4 = vector.load %arg4[%c0_4, %c0_5] : memref<1x128xf32, #tpu.memory_space<vmem>>, vector<1x128xf32>
    %5 = vector.broadcast %4 : vector<1x128xf32> to vector<64x128xf32>
    %6 = arith.addf %3, %5 : vector<64x128xf32>
    %cst_6 = arith.constant dense<0.000000e+00> : vector<128xf32>
    %7 = vector.multi_reduction <add>, %6, %cst_6 [0] : vector<64x128xf32> to vector<128xf32>
    %8 = vector.shape_cast %7 : vector<128xf32> to vector<1x128xf32>
    %cst_7 = arith.constant 6.400000e+01 : f32
    %9 = vector.broadcast %cst_7 : f32 to vector<1x128xf32>
    %10 = arith.divf %8, %9 : vector<1x128xf32>
    %11 = vector.broadcast %10 : vector<1x128xf32> to vector<64x128xf32>
    %12 = arith.subf %6, %11 : vector<64x128xf32>
    %13 = arith.mulf %12, %12 : vector<64x128xf32>
    %cst_8 = arith.constant dense<0.000000e+00> : vector<128xf32>
    %14 = vector.multi_reduction <add>, %13, %cst_8 [0] : vector<64x128xf32> to vector<128xf32>
    %15 = vector.shape_cast %14 : vector<128xf32> to vector<1x128xf32>
    %cst_9 = arith.constant 6.400000e+01 : f32
    %16 = vector.broadcast %cst_9 : f32 to vector<1x128xf32>
    %17 = arith.divf %15, %16 : vector<1x128xf32>
    %cst_10 = arith.constant 9.99999974E-6 : f32
    %18 = vector.broadcast %cst_10 : f32 to vector<1x128xf32>
    %19 = arith.addf %17, %18 : vector<1x128xf32>
    %20 = math.rsqrt %19 : vector<1x128xf32>
    %21 = vector.broadcast %20 : vector<1x128xf32> to vector<64x128xf32>
    %22 = arith.mulf %12, %21 : vector<64x128xf32>
    %cst_11 = arith.constant 0.000000e+00 : f32
    %23 = vector.broadcast %cst_11 : f32 to vector<64x128xf32>
    %24 = arith.maximumf %22, %23 : vector<64x128xf32>
    %25 = arith.truncf %24 : vector<64x128xf32> to vector<64x128xbf16>
    %c0_12 = arith.constant 0 : index
    %c0_13 = arith.constant 0 : index
    %c0_14 = arith.constant 0 : index
    %26 = vector.load %arg5[%c0_12, %c0_13, %c0_14] : memref<1x64x128xbf16, #tpu.memory_space<vmem>>, vector<1x64x128xbf16>
    %27 = vector.shape_cast %26 : vector<1x64x128xbf16> to vector<64x128xbf16>
    %28 = vector.shape_cast %25 : vector<64x128xbf16> to vector<1x64x128xbf16>
    tpu.vector_store %arg5[%c0_12, %c0_13, %c0_14], %28 {strides = array<i32>} : memref<1x64x128xbf16, #tpu.memory_space<vmem>>, vector<1x64x128xbf16>,
    return
  }
  func.func @transform_0(%arg0: i32, %arg1: i32) -> (i32, i32, i32) {
    %c0_i32 = arith.constant 0 : i32
    %c0_i32_0 = arith.constant 0 : i32
    return %arg0, %arg1, %c0_i32 : i32, i32, i32
  }
  func.func @transform_1(%arg0: i32, %arg1: i32) -> (i32, i32) {
    %c0_i32 = arith.constant 0 : i32
    %c0_i32_0 = arith.constant 0 : i32
    %c0_i32_1 = arith.constant 0 : i32
    return %c0_i32, %c0_i32_0 : i32, i32
  }
  func.func @transform_2(%arg0: i32, %arg1: i32) -> (i32, i32) {
    %c0_i32 = arith.constant 0 : i32
    %c0_i32_0 = arith.constant 0 : i32
    %c0_i32_1 = arith.constant 0 : i32
    return %c0_i32, %c0_i32_0 : i32, i32
  }
  func.func @transform_3(%arg0: i32, %arg1: i32) -> (i32, i32, i32) {
    %c0_i32 = arith.constant 0 : i32
    %c0_i32_0 = arith.constant 0 : i32
    %c0_i32_1 = arith.constant 0 : i32
    return %arg0, %c0_i32, %c0_i32_0 : i32, i32, i32
  }
}

module attributes {stable_mosaic.version = 11 : i64} {
  func.func @_conv_block_kernel(%arg0: i32, %arg1: i32, %arg2: memref<1x16x256xbf16, #tpu.memory_space<vmem>>, %arg3: memref<256x128xbf16, #tpu.memory_space<vmem>>, %arg4: memref<1x128xf32, #tpu.memory_space<vmem>>, %arg5: memref<1x16x128xbf16, #tpu.memory_space<vmem>>) attributes {dimension_semantics = [#tpu.dimension_semantics<parallel>, #tpu.dimension_semantics<arbitrary>], iteration_bounds = array<i64: 2, 1>, scalar_prefetch = 0 : i64, scratch_operands = 0 : i64, tpu.core_type = #tpu.core_type<tc>, window_params = [{transform_indices = @transform_0, window_bounds = array<i64: 1, 16, 256>}, {pipeline_mode = #tpu.pipeline_mode<synchronous>, transform_indices = @transform_1, window_bounds = array<i64: 256, 128>}, {pipeline_mode = #tpu.pipeline_mode<synchronous>, transform_indices = @transform_2, window_bounds = array<i64: 1, 128>}, {transform_indices = @transform_3, window_bounds = array<i64: 1, 16, 128>}]} {
    %c0 = arith.constant 0 : index
    %c0_0 = arith.constant 0 : index
    %c0_1 = arith.constant 0 : index
    %0 = vector.load %arg2[%c0, %c0_0, %c0_1] : memref<1x16x256xbf16, #tpu.memory_space<vmem>>, vector<1x16x256xbf16>
    %1 = vector.shape_cast %0 : vector<1x16x256xbf16> to vector<16x256xbf16>
    %c0_2 = arith.constant 0 : index
    %c0_3 = arith.constant 0 : index
    %2 = vector.load %arg3[%c0_2, %c0_3] : memref<256x128xbf16, #tpu.memory_space<vmem>>, vector<256x128xbf16>
    %cst = arith.constant dense<0.000000e+00> : vector<16x128xf32>
    %3 = tpu.matmul %1, %2, %cst {dimension_numbers = #tpu.dot_dimension_numbers<[1], [0], [0], [1], [0, 0, 1, 1], [], []>} : vector<16x256xbf16>, vector<256x128xbf16>, vector<16x128xf32> -> vector<16x128xf32>
    %c0_4 = arith.constant 0 : index
    %c0_5 = arith.constant 0 : index
    %4 = vector.load %arg4[%c0_4, %c0_5] : memref<1x128xf32, #tpu.memory_space<vmem>>, vector<1x128xf32>
    %5 = vector.broadcast %4 : vector<1x128xf32> to vector<16x128xf32>
    %6 = arith.addf %3, %5 : vector<16x128xf32>
    %cst_6 = arith.constant dense<0.000000e+00> : vector<128xf32>
    %7 = vector.multi_reduction <add>, %6, %cst_6 [0] : vector<16x128xf32> to vector<128xf32>
    %8 = vector.shape_cast %7 : vector<128xf32> to vector<1x128xf32>
    %cst_7 = arith.constant 1.600000e+01 : f32
    %9 = vector.broadcast %cst_7 : f32 to vector<1x128xf32>
    %10 = arith.divf %8, %9 : vector<1x128xf32>
    %11 = vector.broadcast %10 : vector<1x128xf32> to vector<16x128xf32>
    %12 = arith.subf %6, %11 : vector<16x128xf32>
    %13 = arith.mulf %12, %12 : vector<16x128xf32>
    %cst_8 = arith.constant dense<0.000000e+00> : vector<128xf32>
    %14 = vector.multi_reduction <add>, %13, %cst_8 [0] : vector<16x128xf32> to vector<128xf32>
    %15 = vector.shape_cast %14 : vector<128xf32> to vector<1x128xf32>
    %cst_9 = arith.constant 1.600000e+01 : f32
    %16 = vector.broadcast %cst_9 : f32 to vector<1x128xf32>
    %17 = arith.divf %15, %16 : vector<1x128xf32>
    %cst_10 = arith.constant 9.99999974E-6 : f32
    %18 = vector.broadcast %cst_10 : f32 to vector<1x128xf32>
    %19 = arith.addf %17, %18 : vector<1x128xf32>
    %20 = math.rsqrt %19 : vector<1x128xf32>
    %21 = vector.broadcast %20 : vector<1x128xf32> to vector<16x128xf32>
    %22 = arith.mulf %12, %21 : vector<16x128xf32>
    %cst_11 = arith.constant 0.000000e+00 : f32
    %23 = vector.broadcast %cst_11 : f32 to vector<16x128xf32>
    %24 = arith.maximumf %22, %23 : vector<16x128xf32>
    %25 = arith.truncf %24 : vector<16x128xf32> to vector<16x128xbf16>
    %c0_12 = arith.constant 0 : index
    %c0_13 = arith.constant 0 : index
    %c0_14 = arith.constant 0 : index
    %26 = vector.load %arg5[%c0_12, %c0_13, %c0_14] : memref<1x16x128xbf16, #tpu.memory_space<vmem>>, vector<1x16x128xbf16>
    %27 = vector.shape_cast %26 : vector<1x16x128xbf16> to vector<16x128xbf16>
    %28 = vector.shape_cast %25 : vector<16x128xbf16> to vector<1x16x128xbf16>
    tpu.vector_store %arg5[%c0_12, %c0_13, %c0_14], %28 {strides = array<i32>} : memref<1x16x128xbf16, #tpu.memory_space<vmem>>, vector<1x16x128xbf16>,
    return
  }
  func.func @transform_0(%arg0: i32, %arg1: i32) -> (i32, i32, i32) {
    %c0_i32 = arith.constant 0 : i32
    %c0_i32_0 = arith.constant 0 : i32
    return %arg0, %arg1, %c0_i32 : i32, i32, i32
  }
  func.func @transform_1(%arg0: i32, %arg1: i32) -> (i32, i32) {
    %c0_i32 = arith.constant 0 : i32
    %c0_i32_0 = arith.constant 0 : i32
    %c0_i32_1 = arith.constant 0 : i32
    return %c0_i32, %c0_i32_0 : i32, i32
  }
  func.func @transform_2(%arg0: i32, %arg1: i32) -> (i32, i32) {
    %c0_i32 = arith.constant 0 : i32
    %c0_i32_0 = arith.constant 0 : i32
    %c0_i32_1 = arith.constant 0 : i32
    return %c0_i32, %c0_i32_0 : i32, i32
  }
  func.func @transform_3(%arg0: i32, %arg1: i32) -> (i32, i32, i32) {
    %c0_i32 = arith.constant 0 : i32
    %c0_i32_0 = arith.constant 0 : i32
    %c0_i32_1 = arith.constant 0 : i32
    return %arg0, %c0_i32, %c0_i32_0 : i32, i32, i32
  }
}

module attributes {stable_mosaic.version = 11 : i64} {
  func.func @_conv_block_kernel(%arg0: i32, %arg1: i32, %arg2: memref<1x16x256xbf16, #tpu.memory_space<vmem>>, %arg3: memref<256x128xbf16, #tpu.memory_space<vmem>>, %arg4: memref<1x128xf32, #tpu.memory_space<vmem>>, %arg5: memref<1x16x128xbf16, #tpu.memory_space<vmem>>, %arg6: memref<1x16x128xbf16, #tpu.memory_space<vmem>>) attributes {dimension_semantics = [#tpu.dimension_semantics<parallel>, #tpu.dimension_semantics<arbitrary>], iteration_bounds = array<i64: 2, 1>, scalar_prefetch = 0 : i64, scratch_operands = 0 : i64, tpu.core_type = #tpu.core_type<tc>, window_params = [{transform_indices = @transform_0, window_bounds = array<i64: 1, 16, 256>}, {pipeline_mode = #tpu.pipeline_mode<synchronous>, transform_indices = @transform_1, window_bounds = array<i64: 256, 128>}, {pipeline_mode = #tpu.pipeline_mode<synchronous>, transform_indices = @transform_2, window_bounds = array<i64: 1, 128>}, {transform_indices = @transform_3, window_bounds = array<i64: 1, 16, 128>}, {transform_indices = @transform_4, window_bounds = array<i64: 1, 16, 128>}]} {
    %c0 = arith.constant 0 : index
    %c0_0 = arith.constant 0 : index
    %c0_1 = arith.constant 0 : index
    %0 = vector.load %arg2[%c0, %c0_0, %c0_1] : memref<1x16x256xbf16, #tpu.memory_space<vmem>>, vector<1x16x256xbf16>
    %1 = vector.shape_cast %0 : vector<1x16x256xbf16> to vector<16x256xbf16>
    %c0_2 = arith.constant 0 : index
    %c0_3 = arith.constant 0 : index
    %2 = vector.load %arg3[%c0_2, %c0_3] : memref<256x128xbf16, #tpu.memory_space<vmem>>, vector<256x128xbf16>
    %cst = arith.constant dense<0.000000e+00> : vector<16x128xf32>
    %3 = tpu.matmul %1, %2, %cst {dimension_numbers = #tpu.dot_dimension_numbers<[1], [0], [0], [1], [0, 0, 1, 1], [], []>} : vector<16x256xbf16>, vector<256x128xbf16>, vector<16x128xf32> -> vector<16x128xf32>
    %c0_4 = arith.constant 0 : index
    %c0_5 = arith.constant 0 : index
    %4 = vector.load %arg4[%c0_4, %c0_5] : memref<1x128xf32, #tpu.memory_space<vmem>>, vector<1x128xf32>
    %5 = vector.broadcast %4 : vector<1x128xf32> to vector<16x128xf32>
    %6 = arith.addf %3, %5 : vector<16x128xf32>
    %cst_6 = arith.constant dense<0.000000e+00> : vector<128xf32>
    %7 = vector.multi_reduction <add>, %6, %cst_6 [0] : vector<16x128xf32> to vector<128xf32>
    %8 = vector.shape_cast %7 : vector<128xf32> to vector<1x128xf32>
    %cst_7 = arith.constant 1.600000e+01 : f32
    %9 = vector.broadcast %cst_7 : f32 to vector<1x128xf32>
    %10 = arith.divf %8, %9 : vector<1x128xf32>
    %11 = vector.broadcast %10 : vector<1x128xf32> to vector<16x128xf32>
    %12 = arith.subf %6, %11 : vector<16x128xf32>
    %13 = arith.mulf %12, %12 : vector<16x128xf32>
    %cst_8 = arith.constant dense<0.000000e+00> : vector<128xf32>
    %14 = vector.multi_reduction <add>, %13, %cst_8 [0] : vector<16x128xf32> to vector<128xf32>
    %15 = vector.shape_cast %14 : vector<128xf32> to vector<1x128xf32>
    %cst_9 = arith.constant 1.600000e+01 : f32
    %16 = vector.broadcast %cst_9 : f32 to vector<1x128xf32>
    %17 = arith.divf %15, %16 : vector<1x128xf32>
    %cst_10 = arith.constant 9.99999974E-6 : f32
    %18 = vector.broadcast %cst_10 : f32 to vector<1x128xf32>
    %19 = arith.addf %17, %18 : vector<1x128xf32>
    %20 = math.rsqrt %19 : vector<1x128xf32>
    %21 = vector.broadcast %20 : vector<1x128xf32> to vector<16x128xf32>
    %22 = arith.mulf %12, %21 : vector<16x128xf32>
    %c0_11 = arith.constant 0 : index
    %c0_12 = arith.constant 0 : index
    %c0_13 = arith.constant 0 : index
    %23 = vector.load %arg5[%c0_11, %c0_12, %c0_13] : memref<1x16x128xbf16, #tpu.memory_space<vmem>>, vector<1x16x128xbf16>
    %24 = vector.shape_cast %23 : vector<1x16x128xbf16> to vector<16x128xbf16>
    %25 = arith.extf %24 : vector<16x128xbf16> to vector<16x128xf32>
    %26 = arith.addf %22, %25 : vector<16x128xf32>
    %27 = arith.truncf %26 : vector<16x128xf32> to vector<16x128xbf16>
    %c0_14 = arith.constant 0 : index
    %c0_15 = arith.constant 0 : index
    %c0_16 = arith.constant 0 : index
    %28 = vector.load %arg6[%c0_14, %c0_15, %c0_16] : memref<1x16x128xbf16, #tpu.memory_space<vmem>>, vector<1x16x128xbf16>
    %29 = vector.shape_cast %28 : vector<1x16x128xbf16> to vector<16x128xbf16>
    %30 = vector.shape_cast %27 : vector<16x128xbf16> to vector<1x16x128xbf16>
    tpu.vector_store %arg6[%c0_14, %c0_15, %c0_16], %30 {strides = array<i32>} : memref<1x16x128xbf16, #tpu.memory_space<vmem>>, vector<1x16x128xbf16>,
    return
  }
  func.func @transform_0(%arg0: i32, %arg1: i32) -> (i32, i32, i32) {
    %c0_i32 = arith.constant 0 : i32
    %c0_i32_0 = arith.constant 0 : i32
    return %arg0, %arg1, %c0_i32 : i32, i32, i32
  }
  func.func @transform_1(%arg0: i32, %arg1: i32) -> (i32, i32) {
    %c0_i32 = arith.constant 0 : i32
    %c0_i32_0 = arith.constant 0 : i32
    %c0_i32_1 = arith.constant 0 : i32
    return %c0_i32, %c0_i32_0 : i32, i32
  }
  func.func @transform_2(%arg0: i32, %arg1: i32) -> (i32, i32) {
    %c0_i32 = arith.constant 0 : i32
    %c0_i32_0 = arith.constant 0 : i32
    %c0_i32_1 = arith.constant 0 : i32
    return %c0_i32, %c0_i32_0 : i32, i32
  }
  func.func @transform_3(%arg0: i32, %arg1: i32) -> (i32, i32, i32) {
    %c0_i32 = arith.constant 0 : i32
    %c0_i32_0 = arith.constant 0 : i32
    %c0_i32_1 = arith.constant 0 : i32
    return %arg0, %c0_i32, %c0_i32_0 : i32, i32, i32
  }
  func.func @transform_4(%arg0: i32, %arg1: i32) -> (i32, i32, i32) {
    %c0_i32 = arith.constant 0 : i32
    %c0_i32_0 = arith.constant 0 : i32
    %c0_i32_1 = arith.constant 0 : i32
    return %arg0, %c0_i32, %c0_i32_0 : i32, i32, i32
  }
}

module attributes {stable_mosaic.version = 11 : i64} {
  func.func @_conv_block_kernel(%arg0: i32, %arg1: i32, %arg2: memref<1x64x256xbf16, #tpu.memory_space<vmem>>, %arg3: memref<256x128xbf16, #tpu.memory_space<vmem>>, %arg4: memref<1x128xf32, #tpu.memory_space<vmem>>, %arg5: memref<1x64x128xbf16, #tpu.memory_space<vmem>>) attributes {dimension_semantics = [#tpu.dimension_semantics<parallel>, #tpu.dimension_semantics<arbitrary>], iteration_bounds = array<i64: 2, 1>, scalar_prefetch = 0 : i64, scratch_operands = 0 : i64, tpu.core_type = #tpu.core_type<tc>, window_params = [{transform_indices = @transform_0, window_bounds = array<i64: 1, 64, 256>}, {pipeline_mode = #tpu.pipeline_mode<synchronous>, transform_indices = @transform_1, window_bounds = array<i64: 256, 128>}, {pipeline_mode = #tpu.pipeline_mode<synchronous>, transform_indices = @transform_2, window_bounds = array<i64: 1, 128>}, {transform_indices = @transform_3, window_bounds = array<i64: 1, 64, 128>}]} {
    %c0 = arith.constant 0 : index
    %c0_0 = arith.constant 0 : index
    %c0_1 = arith.constant 0 : index
    %0 = vector.load %arg2[%c0, %c0_0, %c0_1] : memref<1x64x256xbf16, #tpu.memory_space<vmem>>, vector<1x64x256xbf16>
    %1 = vector.shape_cast %0 : vector<1x64x256xbf16> to vector<64x256xbf16>
    %c0_2 = arith.constant 0 : index
    %c0_3 = arith.constant 0 : index
    %2 = vector.load %arg3[%c0_2, %c0_3] : memref<256x128xbf16, #tpu.memory_space<vmem>>, vector<256x128xbf16>
    %cst = arith.constant dense<0.000000e+00> : vector<64x128xf32>
    %3 = tpu.matmul %1, %2, %cst {dimension_numbers = #tpu.dot_dimension_numbers<[1], [0], [0], [1], [0, 0, 1, 1], [], []>} : vector<64x256xbf16>, vector<256x128xbf16>, vector<64x128xf32> -> vector<64x128xf32>
    %c0_4 = arith.constant 0 : index
    %c0_5 = arith.constant 0 : index
    %4 = vector.load %arg4[%c0_4, %c0_5] : memref<1x128xf32, #tpu.memory_space<vmem>>, vector<1x128xf32>
    %5 = vector.broadcast %4 : vector<1x128xf32> to vector<64x128xf32>
    %6 = arith.addf %3, %5 : vector<64x128xf32>
    %cst_6 = arith.constant dense<0.000000e+00> : vector<128xf32>
    %7 = vector.multi_reduction <add>, %6, %cst_6 [0] : vector<64x128xf32> to vector<128xf32>
    %8 = vector.shape_cast %7 : vector<128xf32> to vector<1x128xf32>
    %cst_7 = arith.constant 6.400000e+01 : f32
    %9 = vector.broadcast %cst_7 : f32 to vector<1x128xf32>
    %10 = arith.divf %8, %9 : vector<1x128xf32>
    %11 = vector.broadcast %10 : vector<1x128xf32> to vector<64x128xf32>
    %12 = arith.subf %6, %11 : vector<64x128xf32>
    %13 = arith.mulf %12, %12 : vector<64x128xf32>
    %cst_8 = arith.constant dense<0.000000e+00> : vector<128xf32>
    %14 = vector.multi_reduction <add>, %13, %cst_8 [0] : vector<64x128xf32> to vector<128xf32>
    %15 = vector.shape_cast %14 : vector<128xf32> to vector<1x128xf32>
    %cst_9 = arith.constant 6.400000e+01 : f32
    %16 = vector.broadcast %cst_9 : f32 to vector<1x128xf32>
    %17 = arith.divf %15, %16 : vector<1x128xf32>
    %cst_10 = arith.constant 9.99999974E-6 : f32
    %18 = vector.broadcast %cst_10 : f32 to vector<1x128xf32>
    %19 = arith.addf %17, %18 : vector<1x128xf32>
    %20 = math.rsqrt %19 : vector<1x128xf32>
    %21 = vector.broadcast %20 : vector<1x128xf32> to vector<64x128xf32>
    %22 = arith.mulf %12, %21 : vector<64x128xf32>
    %cst_11 = arith.constant 0.000000e+00 : f32
    %23 = vector.broadcast %cst_11 : f32 to vector<64x128xf32>
    %24 = arith.maximumf %22, %23 : vector<64x128xf32>
    %25 = arith.truncf %24 : vector<64x128xf32> to vector<64x128xbf16>
    %c0_12 = arith.constant 0 : index
    %c0_13 = arith.constant 0 : index
    %c0_14 = arith.constant 0 : index
    %26 = vector.load %arg5[%c0_12, %c0_13, %c0_14] : memref<1x64x128xbf16, #tpu.memory_space<vmem>>, vector<1x64x128xbf16>
    %27 = vector.shape_cast %26 : vector<1x64x128xbf16> to vector<64x128xbf16>
    %28 = vector.shape_cast %25 : vector<64x128xbf16> to vector<1x64x128xbf16>
    tpu.vector_store %arg5[%c0_12, %c0_13, %c0_14], %28 {strides = array<i32>} : memref<1x64x128xbf16, #tpu.memory_space<vmem>>, vector<1x64x128xbf16>,
    return
  }
  func.func @transform_0(%arg0: i32, %arg1: i32) -> (i32, i32, i32) {
    %c0_i32 = arith.constant 0 : i32
    %c0_i32_0 = arith.constant 0 : i32
    return %arg0, %arg1, %c0_i32 : i32, i32, i32
  }
  func.func @transform_1(%arg0: i32, %arg1: i32) -> (i32, i32) {
    %c0_i32 = arith.constant 0 : i32
    %c0_i32_0 = arith.constant 0 : i32
    %c0_i32_1 = arith.constant 0 : i32
    return %c0_i32, %c0_i32_0 : i32, i32
  }
  func.func @transform_2(%arg0: i32, %arg1: i32) -> (i32, i32) {
    %c0_i32 = arith.constant 0 : i32
    %c0_i32_0 = arith.constant 0 : i32
    %c0_i32_1 = arith.constant 0 : i32
    return %c0_i32, %c0_i32_0 : i32, i32
  }
  func.func @transform_3(%arg0: i32, %arg1: i32) -> (i32, i32, i32) {
    %c0_i32 = arith.constant 0 : i32
    %c0_i32_0 = arith.constant 0 : i32
    %c0_i32_1 = arith.constant 0 : i32
    return %arg0, %c0_i32, %c0_i32_0 : i32, i32, i32
  }
}

module attributes {stable_mosaic.version = 11 : i64} {
  func.func @_conv_block_kernel(%arg0: i32, %arg1: i32, %arg2: memref<1x256x384xbf16, #tpu.memory_space<vmem>>, %arg3: memref<384x128xbf16, #tpu.memory_space<vmem>>, %arg4: memref<1x128xf32, #tpu.memory_space<vmem>>, %arg5: memref<1x256x128xbf16, #tpu.memory_space<vmem>>) attributes {dimension_semantics = [#tpu.dimension_semantics<parallel>, #tpu.dimension_semantics<arbitrary>], iteration_bounds = array<i64: 2, 1>, scalar_prefetch = 0 : i64, scratch_operands = 0 : i64, tpu.core_type = #tpu.core_type<tc>, window_params = [{transform_indices = @transform_0, window_bounds = array<i64: 1, 256, 384>}, {pipeline_mode = #tpu.pipeline_mode<synchronous>, transform_indices = @transform_1, window_bounds = array<i64: 384, 128>}, {pipeline_mode = #tpu.pipeline_mode<synchronous>, transform_indices = @transform_2, window_bounds = array<i64: 1, 128>}, {transform_indices = @transform_3, window_bounds = array<i64: 1, 256, 128>}]} {
    %c0 = arith.constant 0 : index
    %c0_0 = arith.constant 0 : index
    %c0_1 = arith.constant 0 : index
    %0 = vector.load %arg2[%c0, %c0_0, %c0_1] : memref<1x256x384xbf16, #tpu.memory_space<vmem>>, vector<1x256x384xbf16>
    %1 = vector.shape_cast %0 : vector<1x256x384xbf16> to vector<256x384xbf16>
    %c0_2 = arith.constant 0 : index
    %c0_3 = arith.constant 0 : index
    %2 = vector.load %arg3[%c0_2, %c0_3] : memref<384x128xbf16, #tpu.memory_space<vmem>>, vector<384x128xbf16>
    %cst = arith.constant dense<0.000000e+00> : vector<256x128xf32>
    %3 = tpu.matmul %1, %2, %cst {dimension_numbers = #tpu.dot_dimension_numbers<[1], [0], [0], [1], [0, 0, 1, 1], [], []>} : vector<256x384xbf16>, vector<384x128xbf16>, vector<256x128xf32> -> vector<256x128xf32>
    %c0_4 = arith.constant 0 : index
    %c0_5 = arith.constant 0 : index
    %4 = vector.load %arg4[%c0_4, %c0_5] : memref<1x128xf32, #tpu.memory_space<vmem>>, vector<1x128xf32>
    %5 = vector.broadcast %4 : vector<1x128xf32> to vector<256x128xf32>
    %6 = arith.addf %3, %5 : vector<256x128xf32>
    %cst_6 = arith.constant dense<0.000000e+00> : vector<128xf32>
    %7 = vector.multi_reduction <add>, %6, %cst_6 [0] : vector<256x128xf32> to vector<128xf32>
    %8 = vector.shape_cast %7 : vector<128xf32> to vector<1x128xf32>
    %cst_7 = arith.constant 2.560000e+02 : f32
    %9 = vector.broadcast %cst_7 : f32 to vector<1x128xf32>
    %10 = arith.divf %8, %9 : vector<1x128xf32>
    %11 = vector.broadcast %10 : vector<1x128xf32> to vector<256x128xf32>
    %12 = arith.subf %6, %11 : vector<256x128xf32>
    %13 = arith.mulf %12, %12 : vector<256x128xf32>
    %cst_8 = arith.constant dense<0.000000e+00> : vector<128xf32>
    %14 = vector.multi_reduction <add>, %13, %cst_8 [0] : vector<256x128xf32> to vector<128xf32>
    %15 = vector.shape_cast %14 : vector<128xf32> to vector<1x128xf32>
    %cst_9 = arith.constant 2.560000e+02 : f32
    %16 = vector.broadcast %cst_9 : f32 to vector<1x128xf32>
    %17 = arith.divf %15, %16 : vector<1x128xf32>
    %cst_10 = arith.constant 9.99999974E-6 : f32
    %18 = vector.broadcast %cst_10 : f32 to vector<1x128xf32>
    %19 = arith.addf %17, %18 : vector<1x128xf32>
    %20 = math.rsqrt %19 : vector<1x128xf32>
    %21 = vector.broadcast %20 : vector<1x128xf32> to vector<256x128xf32>
    %22 = arith.mulf %12, %21 : vector<256x128xf32>
    %cst_11 = arith.constant 0.000000e+00 : f32
    %23 = vector.broadcast %cst_11 : f32 to vector<256x128xf32>
    %24 = arith.maximumf %22, %23 : vector<256x128xf32>
    %25 = arith.truncf %24 : vector<256x128xf32> to vector<256x128xbf16>
    %c0_12 = arith.constant 0 : index
    %c0_13 = arith.constant 0 : index
    %c0_14 = arith.constant 0 : index
    %26 = vector.load %arg5[%c0_12, %c0_13, %c0_14] : memref<1x256x128xbf16, #tpu.memory_space<vmem>>, vector<1x256x128xbf16>
    %27 = vector.shape_cast %26 : vector<1x256x128xbf16> to vector<256x128xbf16>
    %28 = vector.shape_cast %25 : vector<256x128xbf16> to vector<1x256x128xbf16>
    tpu.vector_store %arg5[%c0_12, %c0_13, %c0_14], %28 {strides = array<i32>} : memref<1x256x128xbf16, #tpu.memory_space<vmem>>, vector<1x256x128xbf16>,
    return
  }
  func.func @transform_0(%arg0: i32, %arg1: i32) -> (i32, i32, i32) {
    %c0_i32 = arith.constant 0 : i32
    %c0_i32_0 = arith.constant 0 : i32
    return %arg0, %arg1, %c0_i32 : i32, i32, i32
  }
  func.func @transform_1(%arg0: i32, %arg1: i32) -> (i32, i32) {
    %c0_i32 = arith.constant 0 : i32
    %c0_i32_0 = arith.constant 0 : i32
    %c0_i32_1 = arith.constant 0 : i32
    return %c0_i32, %c0_i32_0 : i32, i32
  }
  func.func @transform_2(%arg0: i32, %arg1: i32) -> (i32, i32) {
    %c0_i32 = arith.constant 0 : i32
    %c0_i32_0 = arith.constant 0 : i32
    %c0_i32_1 = arith.constant 0 : i32
    return %c0_i32, %c0_i32_0 : i32, i32
  }
  func.func @transform_3(%arg0: i32, %arg1: i32) -> (i32, i32, i32) {
    %c0_i32 = arith.constant 0 : i32
    %c0_i32_0 = arith.constant 0 : i32
    %c0_i32_1 = arith.constant 0 : i32
    return %arg0, %c0_i32, %c0_i32_0 : i32, i32, i32
  }
}

module attributes {stable_mosaic.version = 11 : i64} {
  func.func @_conv_block_kernel(%arg0: i32, %arg1: i32, %arg2: memref<1x256x512xbf16, #tpu.memory_space<vmem>>, %arg3: memref<512x128xbf16, #tpu.memory_space<vmem>>, %arg4: memref<1x128xf32, #tpu.memory_space<vmem>>, %arg5: memref<1x1024x128xbf16, #tpu.memory_space<vmem>>) attributes {dimension_semantics = [#tpu.dimension_semantics<parallel>, #tpu.dimension_semantics<arbitrary>], iteration_bounds = array<i64: 2, 4>, scalar_prefetch = 0 : i64, scratch_operands = 0 : i64, tpu.core_type = #tpu.core_type<tc>, window_params = [{transform_indices = @transform_0, window_bounds = array<i64: 1, 256, 512>}, {pipeline_mode = #tpu.pipeline_mode<synchronous>, transform_indices = @transform_1, window_bounds = array<i64: 512, 128>}, {pipeline_mode = #tpu.pipeline_mode<synchronous>, transform_indices = @transform_2, window_bounds = array<i64: 1, 128>}, {transform_indices = @transform_3, window_bounds = array<i64: 1, 1024, 128>}]} {
    %c256_i32 = arith.constant 256 : i32
    %0 = arith.muli %arg1, %c256_i32 : i32
    %1 = tpu.assume_multiple %0, 8 : i32
    %c0 = arith.constant 0 : index
    %c0_0 = arith.constant 0 : index
    %c0_1 = arith.constant 0 : index
    %2 = vector.load %arg2[%c0, %c0_0, %c0_1] : memref<1x256x512xbf16, #tpu.memory_space<vmem>>, vector<1x256x512xbf16>
    %3 = vector.shape_cast %2 : vector<1x256x512xbf16> to vector<256x512xbf16>
    %c0_2 = arith.constant 0 : index
    %c0_3 = arith.constant 0 : index
    %4 = vector.load %arg3[%c0_2, %c0_3] : memref<512x128xbf16, #tpu.memory_space<vmem>>, vector<512x128xbf16>
    %cst = arith.constant dense<0.000000e+00> : vector<256x128xf32>
    %5 = tpu.matmul %3, %4, %cst {dimension_numbers = #tpu.dot_dimension_numbers<[1], [0], [0], [1], [0, 0, 1, 1], [], []>} : vector<256x512xbf16>, vector<512x128xbf16>, vector<256x128xf32> -> vector<256x128xf32>
    %c0_4 = arith.constant 0 : index
    %c0_5 = arith.constant 0 : index
    %6 = vector.load %arg4[%c0_4, %c0_5] : memref<1x128xf32, #tpu.memory_space<vmem>>, vector<1x128xf32>
    %7 = vector.broadcast %6 : vector<1x128xf32> to vector<256x128xf32>
    %8 = arith.addf %5, %7 : vector<256x128xf32>
    %9 = math.tanh %8 : vector<256x128xf32>
    %10 = arith.truncf %9 : vector<256x128xf32> to vector<256x128xbf16>
    %c0_6 = arith.constant 0 : index
    %11 = arith.index_cast %1 : i32 to index
    %c0_7 = arith.constant 0 : index
    %12 = vector.load %arg5[%c0_6, %11, %c0_7] : memref<1x1024x128xbf16, #tpu.memory_space<vmem>>, vector<1x256x128xbf16>
    %13 = vector.shape_cast %12 : vector<1x256x128xbf16> to vector<256x128xbf16>
    %14 = vector.shape_cast %10 : vector<256x128xbf16> to vector<1x256x128xbf16>
    tpu.vector_store %arg5[%c0_6, %11, %c0_7], %14 {strides = array<i32>} : memref<1x1024x128xbf16, #tpu.memory_space<vmem>>, vector<1x256x128xbf16>,
    return
  }
  func.func @transform_0(%arg0: i32, %arg1: i32) -> (i32, i32, i32) {
    %c0_i32 = arith.constant 0 : i32
    %c0_i32_0 = arith.constant 0 : i32
    return %arg0, %arg1, %c0_i32 : i32, i32, i32
  }
  func.func @transform_1(%arg0: i32, %arg1: i32) -> (i32, i32) {
    %c0_i32 = arith.constant 0 : i32
    %c0_i32_0 = arith.constant 0 : i32
    %c0_i32_1 = arith.constant 0 : i32
    return %c0_i32, %c0_i32_0 : i32, i32
  }
  func.func @transform_2(%arg0: i32, %arg1: i32) -> (i32, i32) {
    %c0_i32 = arith.constant 0 : i32
    %c0_i32_0 = arith.constant 0 : i32
    %c0_i32_1 = arith.constant 0 : i32
    return %c0_i32, %c0_i32_0 : i32, i32
  }
  func.func @transform_3(%arg0: i32, %arg1: i32) -> (i32, i32, i32) {
    %c0_i32 = arith.constant 0 : i32
    %c0_i32_0 = arith.constant 0 : i32
    %c0_i32_1 = arith.constant 0 : i32
    return %arg0, %c0_i32, %c0_i32_0 : i32, i32, i32
  }
}

</mosaic_0001>

<llo_original>
// kernel: _lambda_.12
$region0: #{_lambda_.12}
  #allocation0 [shape = 'u32[]', space=smem, size = 0x4, offset = 0x4, fixed_abs, tag = 'smem constant byte address 0x4 - core index']
  #allocation1 [shape = 'u32[144,128]{1,0:T(1,128)}', space=vmem, size = 0x12000, scoped, tag = 'internal scratch']
  #allocation2 [shape = 'f32[1,128]{1,0:T(1,128)}', space=vmem, size = 0x200, scoped, tag = 'scratch operand']
  #allocation3 [shape = 'f32[1,128]{1,0:T(1,128)}', space=vmem, size = 0x200, scoped, tag = 'scratch operand']
  %s0 = inlined_call_operand.vmem [shape: bf16[2,1024,256], index: 0, kind: input, shape index: {}]
  %s1 = inlined_call_operand.vmem [shape: bf16[256,128], index: 1, kind: input, shape index: {}]
  %s2 = inlined_call_operand.vmem [shape: f32[1,128], index: 2, kind: input, shape index: {}]
  %s3 = inlined_call_operand.vmem [shape: bf16[2,1024,128], index: 3, kind: output, shape index: {}]
  %s4 = sld [smem:[#allocation0]]
  $region53: #{_lambda_.12} parent=0
    _
  %s6 = ssub.s32 1, %s4
  %s7 = scalar_select 0, %s6, %s4
  loop: start=0, step=1, limit=10
  $region2: #{_lambda_.12} parent=0 // loop_pre_header
    _
  $region3: #{_lambda_.12} parent=0 // loop_header
    %s9 = sphi 0, %s13
    %p10 = scmp.ge.s32.totalorder %s9, 10
    %s16 = sphi 0, %s28
    %s17 = sphi 0, %s24
    %s18 = sphi 0, %s16
    %s19 = sphi 0, %s17
    %s20 = sphi 0, %s18
    %s21 = sphi 0, %s19
    %s33 = sphi 0, %s35
    %s36 = sphi 0, %s33
    %s37 = sphi 0, %s36
    %s53 = sphi 0, %s37
    %s57 = sphi 0, %s57
    %s59 = sphi 0, %s57
    %s60 = sphi 0, %s59
    %s74 = sphi 0, %s60
    %s78 = sphi 0, %s78
    %s80 = sphi 0, %s78
    %s81 = sphi 0, %s80
    %s95 = sphi 0, %s81
    %s101 = sphi 0, %s103
    %s104 = sphi 0, %s101
    %s105 = sphi 0, %s104
    %s121 = sphi 0, %s105
  $region4: #{_lambda_.12} parent=0 // loop_header_branch
    %12 = sbr.rel (%p10) target = $region8
  $region5: #{_lambda_.12} parent=0 // loop_body
    %s14 = ssub.s32 %s9, 1
    %s15 = ssub.s32 %s9, 2
    %s22 = sadd.s32 1, %s17
    %p23 = scmp.ge.s32.totalorder %s22, 4
    %s24 = scalar_select %p23, 0, %s22
    %s25 = sadd.s32 1, %s16
    %s26 = scalar_select %p23, %s25, %s16
    %p27 = scmp.ge.s32.totalorder %s26, 2
    %s28 = scalar_select %p27, 0, %s26
    %s29 = ssub.s32 %s16, %s28
    %s30 = ssub.s32 %s17, %s24
    %s31 = sor.u32 %s29, %s30
    %p32 = scmp.eq.s32.totalorder %s31, 0
    %s34 = sadd.s32 %s33, 1
    %s35 = scalar_select %p32, %s33, %s34
    %p38 = pneg %p32
    %p39 = scmp.eq.s32.totalorder %s9, 7
    %p40 = por %p38, %p39
    %p41 = scmp.ne.s32.totalorder %s33, %s36
    %p42 = scmp.eq.s32.totalorder %s9, 0
    %p43 = por %p41, %p42
    %p44 = scmp.ne.s32.totalorder %s33, %s36
    %p45 = scmp.eq.s32.totalorder %s14, 7
    %p46 = por %p44, %p45
    %p47 = scmp.ne.s32.totalorder %s36, %s37
    %p48 = scmp.eq.s32.totalorder %s14, 0
    %p49 = por %p47, %p48
    %p50 = scmp.ne.s32.totalorder %s36, %s37
    %p51 = scmp.eq.s32.totalorder %s15, 7
    %p52 = por %p50, %p51
    %p54 = scmp.ne.s32.totalorder %s37, %s53
    %p55 = scmp.eq.s32.totalorder %s15, 0
    %p56 = por %p54, %p55
    %s58 = sadd.s32 %s57, 1
    %p61 = scmp.eq.s32.totalorder %s9, 7
    %p62 = scmp.ne.s32.totalorder %s57, %s59
    %p63 = scmp.eq.s32.totalorder %s9, 0
    %p64 = por %p62, %p63
    %p65 = scmp.ne.s32.totalorder %s57, %s59
    %p66 = scmp.eq.s32.totalorder %s14, 7
    %p67 = por %p65, %p66
    %p68 = scmp.ne.s32.totalorder %s59, %s60
    %p69 = scmp.eq.s32.totalorder %s14, 0
    %p70 = por %p68, %p69
    %p71 = scmp.ne.s32.totalorder %s59, %s60
    %p72 = scmp.eq.s32.totalorder %s15, 7
    %p73 = por %p71, %p72
    %p75 = scmp.ne.s32.totalorder %s60, %s74
    %p76 = scmp.eq.s32.totalorder %s15, 0
    %p77 = por %p75, %p76
    %s79 = sadd.s32 %s78, 1
    %p82 = scmp.eq.s32.totalorder %s9, 7
    %p83 = scmp.ne.s32.totalorder %s78, %s80
    %p84 = scmp.eq.s32.totalorder %s9, 0
    %p85 = por %p83, %p84
    %p86 = scmp.ne.s32.totalorder %s78, %s80
    %p87 = scmp.eq.s32.totalorder %s14, 7
    %p88 = por %p86, %p87
    %p89 = scmp.ne.s32.totalorder %s80, %s81
    %p90 = scmp.eq.s32.totalorder %s14, 0
    %p91 = por %p89, %p90
    %p92 = scmp.ne.s32.totalorder %s80, %s81
    %p93 = scmp.eq.s32.totalorder %s15, 7
    %p94 = por %p92, %p93
    %p96 = scmp.ne.s32.totalorder %s81, %s95
    %p97 = scmp.eq.s32.totalorder %s15, 0
    %p98 = por %p96, %p97
    %s99 = ssub.s32 %s16, %s28
    %p100 = scmp.eq.s32.totalorder %s99, 0
    %s102 = sadd.s32 %s101, 1
    %s103 = scalar_select %p100, %s101, %s102
    %p106 = pneg %p100
    %p107 = scmp.eq.s32.totalorder %s9, 7
    %p108 = por %p106, %p107
    %p109 = scmp.ne.s32.totalorder %s101, %s104
    %p110 = scmp.eq.s32.totalorder %s9, 0
    %p111 = por %p109, %p110
    %p112 = scmp.ne.s32.totalorder %s101, %s104
    %p113 = scmp.eq.s32.totalorder %s14, 7
    %p114 = por %p112, %p113
    %p115 = scmp.ne.s32.totalorder %s104, %s105
    %p116 = scmp.eq.s32.totalorder %s14, 0
    %p117 = por %p115, %p116
    %p118 = scmp.ne.s32.totalorder %s104, %s105
    %p119 = scmp.eq.s32.totalorder %s15, 7
    %p120 = por %p118, %p119
    %p122 = scmp.ne.s32.totalorder %s105, %s121
    %p123 = scmp.eq.s32.totalorder %s15, 0
    %p124 = por %p122, %p123
    %p125 = scmp.le.s32.totalorder 1, %s9
    %p126 = scmp.lt.s32.totalorder %s9, 9
    %p127 = pnand %p125, %p126
    %p128 = pneg %p127
    // Predicated region
    $region9: #{_lambda_.12} parent=5 // pred_check
      _
    $region10: #{_lambda_.12} parent=5 // pred_check_branch
      %130 = sbr.rel (%p127) target = $region12
    $region11: #{_lambda_.12} parent=5 // pred_region
      %s131 = ssub.s32 %s9, 1
      // Predicated region
      $region13: #{_lambda_.12} parent=11 // pred_check
        %p132 = pneg %p70
      $region14: #{_lambda_.12} parent=11 // pred_check_branch
        %134 = sbr.rel (%p132) target = $region16
      $region15: #{_lambda_.12} parent=11 // pred_region
        _
      $region16: #{_lambda_.12} parent=11 // pred_fallthru
        _
      // Predicated region
      $region17: #{_lambda_.12} parent=11 // pred_check
        %p135 = pneg %p91
      $region18: #{_lambda_.12} parent=11 // pred_check_branch
        %137 = sbr.rel (%p135) target = $region20
      $region19: #{_lambda_.12} parent=11 // pred_region
        _
      $region20: #{_lambda_.12} parent=11 // pred_fallthru
        _
    $region12: #{_lambda_.12} parent=5 // pred_fallthru
      _
    %p138 = scmp.lt.s32.totalorder %s9, 8
    // Predicated region
    $region21: #{_lambda_.12} parent=5 // pred_check
      %p139 = pneg %p138
    $region22: #{_lambda_.12} parent=5 // pred_check_branch
      %141 = sbr.rel (%p139) target = $region24
    $region23: #{_lambda_.12} parent=5 // pred_region
      // Predicated region
      $region25: #{_lambda_.12} parent=23 // pred_check
        %p142 = pneg %p43
      $region26: #{_lambda_.12} parent=23 // pred_check_branch
        %144 = sbr.rel (%p142) target = $region28
      $region27: #{_lambda_.12} parent=23 // pred_region
        %s145 = smul.u32 32, %s17
        %p146 = scmp.lt.s32.totalorder %s16, 1
        %s147 = scalar_select %p146, %s16, 1
        %p148 = scmp.lt.s32.totalorder %s145, 127
        %s149 = scalar_select %p148, %s145, 127
        %s150 = smul.addr %s149, 2
        %s151 = smul.addr %s147, 256
        %s152 = sadd.s32 %s150, %s151
        %s153 = smul.addr %s152, 4
        %s154 = scalar_lea.vmem %s0, %s153
        %s155 = smul.u32 32, %s17
      $region28: #{_lambda_.12} parent=23 // pred_fallthru
        _
    $region24: #{_lambda_.12} parent=5 // pred_fallthru
      _
    %p156 = scmp.le.s32.totalorder 1, %s9
    %p157 = scmp.lt.s32.totalorder %s9, 9
    %p158 = pnand %p156, %p157
    %p159 = pneg %p158
    // Predicated region
    $region29: #{_lambda_.12} parent=5 // pred_check
      _
    $region30: #{_lambda_.12} parent=5 // pred_check_branch
      %161 = sbr.rel (%p158) target = $region32
    $region31: #{_lambda_.12} parent=5 // pred_region
      %s162 = ssub.s32 %s9, 1
      %s163 = smul.u32 32, %s19
      %p164 = scmp.lt.s32.totalorder %s18, 1
      %s165 = scalar_select %p164, %s18, 1
      %p166 = scmp.lt.s32.totalorder %s163, 127
      %s167 = scalar_select %p166, %s163, 127
      %s168 = smul.addr %s167, 2
      %s169 = smul.addr %s165, 256
      %s170 = sadd.s32 %s168, %s169
      %s171 = smul.addr %s170, 4
      %s172 = scalar_lea.vmem %s0, %s171
      %p173 = pneg %p49
      %p174 = pneg %p46
      %p175 = pneg %p70
      %p176 = pneg %p67
      %p177 = pneg %p91
      %p178 = pneg %p88
      %p179 = pneg %p117
      %p180 = pneg %p114
      %p181 = scmp.lt.s32.totalorder %s18, 1
      %s182 = scalar_select %p181, %s18, 1
      %s183 = smul.addr %s182, 128
      %s184 = smul.addr %s183, 4
      %s185 = scalar_lea.vmem %s3, %s184
      %s186 = smul.u32 32, %s19
      %p187 = scmp.lt.s32.totalorder %s18, 1
      %s188 = scalar_select %p187, %s18, 1
      %p189 = scmp.lt.s32.totalorder %s186, 127
      %s190 = scalar_select %p189, %s186, 127
      %s191 = smul.addr %s190, 2
      %s192 = smul.addr %s188, 256
      %s193 = sadd.s32 %s191, %s192
      %s194 = smul.addr %s193, 4
      %s195 = scalar_lea.vmem %s0, %s194
      %s196 = smul.u32 32, %s19
      %p197 = scmp.lt.s32.totalorder %s18, 1
      %s198 = scalar_select %p197, %s18, 1
      %s199 = smul.addr %s198, 128
      %s200 = smul.addr %s199, 4
      %s201 = scalar_lea.vmem %s3, %s200
      %s203 = smul.u32 %s19, 256
      %v204 = vld [vmem:[%s195] sm:$0xff]
      %v205 = vld [vmem:[%s195 + $0x8] sm:$0xff]
      %v206 = vld [vmem:[%s195 + $0x10] sm:$0xff]
      %v207 = vld [vmem:[%s195 + $0x18] sm:$0xff]
      %v208 = vld [vmem:[%s195 + $0x20] sm:$0xff]
      %v209 = vld [vmem:[%s195 + $0x28] sm:$0xff]
      %v210 = vld [vmem:[%s195 + $0x30] sm:$0xff]
      %v211 = vld [vmem:[%s195 + $0x38] sm:$0xff]
      %v212 = vld [vmem:[%s195 + $0x40] sm:$0xff]
      %v213 = vld [vmem:[%s195 + $0x48] sm:$0xff]
      %v214 = vld [vmem:[%s195 + $0x50] sm:$0xff]
      %v215 = vld [vmem:[%s195 + $0x58] sm:$0xff]
      %v216 = vld [vmem:[%s195 + $0x60] sm:$0xff]
      %v217 = vld [vmem:[%s195 + $0x68] sm:$0xff]
      %v218 = vld [vmem:[%s195 + $0x70] sm:$0xff]
      %v219 = vld [vmem:[%s195 + $0x78] sm:$0xff]
      %v220 = vld [vmem:[%s195 + $0x80] sm:$0xff]
      %v221 = vld [vmem:[%s195 + $0x88] sm:$0xff]
      %v222 = vld [vmem:[%s195 + $0x90] sm:$0xff]
      %v223 = vld [vmem:[%s195 + $0x98] sm:$0xff]
      %v224 = vld [vmem:[%s195 + $0xa0] sm:$0xff]
      %v225 = vld [vmem:[%s195 + $0xa8] sm:$0xff]
      %v226 = vld [vmem:[%s195 + $0xb0] sm:$0xff]
      %v227 = vld [vmem:[%s195 + $0xb8] sm:$0xff]
      %v228 = vld [vmem:[%s195 + $0xc0] sm:$0xff]
      %v229 = vld [vmem:[%s195 + $0xc8] sm:$0xff]
      %v230 = vld [vmem:[%s195 + $0xd0] sm:$0xff]
      %v231 = vld [vmem:[%s195 + $0xd8] sm:$0xff]
      %v232 = vld [vmem:[%s195 + $0xe0] sm:$0xff]
      %v233 = vld [vmem:[%s195 + $0xe8] sm:$0xff]
      %v234 = vld [vmem:[%s195 + $0xf0] sm:$0xff]
      %v235 = vld [vmem:[%s195 + $0xf8] sm:$0xff]
      %v236 = vld [vmem:[%s1] sm:$0xf]
      %v237 = vld [vmem:[%s1 + $0x4] sm:$0xf]
      %v238 = vld [vmem:[%s1 + $0x8] sm:$0xf]
      %v239 = vld [vmem:[%s1 + $0xc] sm:$0xf]
      %v240 = vld [vmem:[%s1 + $0x10] sm:$0xf]
      %v241 = vld [vmem:[%s1 + $0x14] sm:$0xf]
      %v242 = vld [vmem:[%s1 + $0x18] sm:$0xf]
      %v243 = vld [vmem:[%s1 + $0x1c] sm:$0xf]
      %v244 = vld [vmem:[%s1 + $0x20] sm:$0xf]
      %v245 = vld [vmem:[%s1 + $0x24] sm:$0xf]
      %v246 = vld [vmem:[%s1 + $0x28] sm:$0xf]
      %v247 = vld [vmem:[%s1 + $0x2c] sm:$0xf]
      %v248 = vld [vmem:[%s1 + $0x30] sm:$0xf]
      %v249 = vld [vmem:[%s1 + $0x34] sm:$0xf]
      %v250 = vld [vmem:[%s1 + $0x38] sm:$0xf]
      %v251 = vld [vmem:[%s1 + $0x3c] sm:$0xf]
      %v252 = vld [vmem:[%s1 + $0x40] sm:$0xf]
      %v253 = vld [vmem:[%s1 + $0x44] sm:$0xf]
      %v254 = vld [vmem:[%s1 + $0x48] sm:$0xf]
      %v255 = vld [vmem:[%s1 + $0x4c] sm:$0xf]
      %v256 = vld [vmem:[%s1 + $0x50] sm:$0xf]
      %v257 = vld [vmem:[%s1 + $0x54] sm:$0xf]
      %v258 = vld [vmem:[%s1 + $0x58] sm:$0xf]
      %v259 = vld [vmem:[%s1 + $0x5c] sm:$0xf]
      %v260 = vld [vmem:[%s1 + $0x60] sm:$0xf]
      %v261 = vld [vmem:[%s1 + $0x64] sm:$0xf]
      %v262 = vld [vmem:[%s1 + $0x68] sm:$0xf]
      %v263 = vld [vmem:[%s1 + $0x6c] sm:$0xf]
      %v264 = vld [vmem:[%s1 + $0x70] sm:$0xf]
      %v265 = vld [vmem:[%s1 + $0x74] sm:$0xf]
      %v266 = vld [vmem:[%s1 + $0x78] sm:$0xf]
      %v267 = vld [vmem:[%s1 + $0x7c] sm:$0xf]
      %v268 = vld [vmem:[%s2] sm:$0x1]
      %v270 = vlaneseq
      %v271 = vshrl.u32 %v270, 7
      %v272 = vsub.s32 0, %v271
      %v273 = vrot.slane %v268, %v272
      %v307 = vunpack.c.l.b16 %v204
      %v308 = vunpack.c.h.b16 %v204
      %v309 = vunpack.c.l.b16 %v205
      %v310 = vunpack.c.h.b16 %v205
      %v311 = vunpack.c.l.b16 %v206
      %v312 = vunpack.c.h.b16 %v206
      %v313 = vunpack.c.l.b16 %v207
      %v314 = vunpack.c.h.b16 %v207
      %v315 = vunpack.c.l.b16 %v208
      %v316 = vunpack.c.h.b16 %v208
      %v317 = vunpack.c.l.b16 %v209
      %v318 = vunpack.c.h.b16 %v209
      %v319 = vunpack.c.l.b16 %v210
      %v320 = vunpack.c.h.b16 %v210
      %v321 = vunpack.c.l.b16 %v211
      %v322 = vunpack.c.h.b16 %v211
      %v323 = vunpack.c.l.b16 %v212
      %v324 = vunpack.c.h.b16 %v212
      %v325 = vunpack.c.l.b16 %v213
      %v326 = vunpack.c.h.b16 %v213
      %v327 = vunpack.c.l.b16 %v214
      %v328 = vunpack.c.h.b16 %v214
      %v329 = vunpack.c.l.b16 %v215
      %v330 = vunpack.c.h.b16 %v215
      %v331 = vunpack.c.l.b16 %v216
      %v332 = vunpack.c.h.b16 %v216
      %v333 = vunpack.c.l.b16 %v217
      %v334 = vunpack.c.h.b16 %v217
      %v335 = vunpack.c.l.b16 %v218
      %v336 = vunpack.c.h.b16 %v218
      %v337 = vunpack.c.l.b16 %v219
      %v338 = vunpack.c.h.b16 %v219
      %v339 = vunpack.c.l.b16 %v220
      %v340 = vunpack.c.h.b16 %v220
      %v341 = vunpack.c.l.b16 %v221
      %v342 = vunpack.c.h.b16 %v221
      %v343 = vunpack.c.l.b16 %v222
      %v344 = vunpack.c.h.b16 %v222
      %v345 = vunpack.c.l.b16 %v223
      %v346 = vunpack.c.h.b16 %v223
      %v347 = vunpack.c.l.b16 %v224
      %v348 = vunpack.c.h.b16 %v224
      %v349 = vunpack.c.l.b16 %v225
      %v350 = vunpack.c.h.b16 %v225
      %v351 = vunpack.c.l.b16 %v226
      %v352 = vunpack.c.h.b16 %v226
      %v353 = vunpack.c.l.b16 %v227
      %v354 = vunpack.c.h.b16 %v227
      %v355 = vunpack.c.l.b16 %v228
      %v356 = vunpack.c.h.b16 %v228
      %v357 = vunpack.c.l.b16 %v229
      %v358 = vunpack.c.h.b16 %v229
      %v359 = vunpack.c.l.b16 %v230
      %v360 = vunpack.c.h.b16 %v230
      %v361 = vunpack.c.l.b16 %v231
      %v362 = vunpack.c.h.b16 %v231
      %v363 = vunpack.c.l.b16 %v232
      %v364 = vunpack.c.h.b16 %v232
      %v365 = vunpack.c.l.b16 %v233
      %v366 = vunpack.c.h.b16 %v233
      %v367 = vunpack.c.l.b16 %v234
      %v368 = vunpack.c.h.b16 %v234
      %v369 = vunpack.c.l.b16 %v235
      %v370 = vunpack.c.h.b16 %v235
      %v371 = vpack.c.b16 %v309, %v307
      %v372 = vpack.c.b16 %v310, %v308
      %v373 = vpack.c.b16 %v313, %v311
      %v374 = vpack.c.b16 %v314, %v312
      %v375 = vpack.c.b16 %v317, %v315
      %v376 = vpack.c.b16 %v318, %v316
      %v377 = vpack.c.b16 %v321, %v319
      %v378 = vpack.c.b16 %v322, %v320
      %v379 = vpack.c.b16 %v325, %v323
      %v380 = vpack.c.b16 %v326, %v324
      %v381 = vpack.c.b16 %v329, %v327
      %v382 = vpack.c.b16 %v330, %v328
      %v383 = vpack.c.b16 %v333, %v331
      %v384 = vpack.c.b16 %v334, %v332
      %v385 = vpack.c.b16 %v337, %v335
      %v386 = vpack.c.b16 %v338, %v336
      %v387 = vpack.c.b16 %v341, %v339
      %v388 = vpack.c.b16 %v342, %v340
      %v389 = vpack.c.b16 %v345, %v343
      %v390 = vpack.c.b16 %v346, %v344
      %v391 = vpack.c.b16 %v349, %v347
      %v392 = vpack.c.b16 %v350, %v348
      %v393 = vpack.c.b16 %v353, %v351
      %v394 = vpack.c.b16 %v354, %v352
      %v395 = vpack.c.b16 %v357, %v355
      %v396 = vpack.c.b16 %v358, %v356
      %v397 = vpack.c.b16 %v361, %v359
      %v398 = vpack.c.b16 %v362, %v360
      %v399 = vpack.c.b16 %v365, %v363
      %v400 = vpack.c.b16 %v366, %v364
      %v401 = vpack.c.b16 %v369, %v367
      %v402 = vpack.c.b16 %v370, %v368
      %v467 = vunpack.c.l.b16 %v236
      %v468 = vunpack.c.l.b16 %v237
      %v469 = vunpack.c.l.b16 %v238
      %v470 = vunpack.c.l.b16 %v239
      %v471 = vunpack.c.l.b16 %v240
      %v472 = vunpack.c.l.b16 %v241
      %v473 = vunpack.c.l.b16 %v242
      %v474 = vunpack.c.l.b16 %v243
      %v475 = vunpack.c.l.b16 %v244
      %v476 = vunpack.c.l.b16 %v245
      %v477 = vunpack.c.l.b16 %v246
      %v478 = vunpack.c.l.b16 %v247
      %v479 = vunpack.c.l.b16 %v248
      %v480 = vunpack.c.l.b16 %v249
      %v481 = vunpack.c.l.b16 %v250
      %v482 = vunpack.c.l.b16 %v251
      %v483 = vunpack.c.l.b16 %v252
      %v484 = vunpack.c.l.b16 %v253
      %v485 = vunpack.c.l.b16 %v254
      %v486 = vunpack.c.l.b16 %v255
      %v487 = vunpack.c.l.b16 %v256
      %v488 = vunpack.c.l.b16 %v257
      %v489 = vunpack.c.l.b16 %v258
      %v490 = vunpack.c.l.b16 %v259
      %v491 = vunpack.c.l.b16 %v260
      %v492 = vunpack.c.l.b16 %v261
      %v493 = vunpack.c.l.b16 %v262
      %v494 = vunpack.c.l.b16 %v263
      %v495 = vunpack.c.l.b16 %v264
      %v496 = vunpack.c.l.b16 %v265
      %v497 = vunpack.c.l.b16 %v266
      %v498 = vunpack.c.l.b16 %v267
      %v499 = vpack.c.b16 %v468, %v467
      %v500 = vpack.c.b16 %v470, %v469
      %v501 = vpack.c.b16 %v472, %v471
      %v502 = vpack.c.b16 %v474, %v473
      %v503 = vpack.c.b16 %v476, %v475
      %v504 = vpack.c.b16 %v478, %v477
      %v505 = vpack.c.b16 %v480, %v479
      %v506 = vpack.c.b16 %v482, %v481
      %v507 = vpack.c.b16 %v484, %v483
      %v508 = vpack.c.b16 %v486, %v485
      %v509 = vpack.c.b16 %v488, %v487
      %v510 = vpack.c.b16 %v490, %v489
      %v511 = vpack.c.b16 %v492, %v491
      %v512 = vpack.c.b16 %v494, %v493
      %v513 = vpack.c.b16 %v496, %v495
      %v514 = vpack.c.b16 %v498, %v497
      %531 = vmatprep.subr.bf16.mxu0 0
      %532 = vmatpush1.bf16.msra.mxu0 %v499
      %533 = vmatprep.subr.bf16.mxu0 0
      %534 = vmatpush1.bf16.msra.mxu0 %v500
      %535 = vmatprep.subr.bf16.mxu0 0
      %536 = vmatpush1.bf16.msra.mxu0 %v501
      %537 = vmatprep.subr.bf16.mxu0 0
      %538 = vmatpush1.bf16.msra.mxu0 %v502
      %539 = vmatprep.subr.bf16.mxu0 0
      %540 = vmatpush1.bf16.msra.mxu0 %v503
      %541 = vmatprep.subr.bf16.mxu0 0
      %542 = vmatpush1.bf16.msra.mxu0 %v504
      %543 = vmatprep.subr.bf16.mxu0 0
      %544 = vmatpush1.bf16.msra.mxu0 %v505
      %545 = vmatprep.subr.bf16.mxu0 0
      %546 = vmatpush1.bf16.msra.mxu0 %v506
      %547 = vmatprep.subr.bf16.mxu0 0
      %548 = vmatpush1.bf16.msra.mxu0 %v507
      %549 = vmatprep.subr.bf16.mxu0 0
      %550 = vmatpush1.bf16.msra.mxu0 %v508
      %551 = vmatprep.subr.bf16.mxu0 0
      %552 = vmatpush1.bf16.msra.mxu0 %v509
      %553 = vmatprep.subr.bf16.mxu0 0
      %554 = vmatpush1.bf16.msra.mxu0 %v510
      %555 = vmatprep.subr.bf16.mxu0 0
      %556 = vmatpush1.bf16.msra.mxu0 %v511
      %557 = vmatprep.subr.bf16.mxu0 0
      %558 = vmatpush1.bf16.msra.mxu0 %v512
      %559 = vmatprep.subr.bf16.mxu0 0
      %560 = vmatpush1.bf16.msra.mxu0 %v513
      %561 = vmatprep.subr.bf16.mxu0 0
      %562 = vmatpush1.bf16.msra.mxu0 %v514
      %563 = vmatprep.mubr.bf16.mxu0 %v372
      %564 = vmatmul.mubr.bf16.gmra.mrb[0].mxu0 %v371
      %v565 = vpop.f32.mrb[0].mxu0
      %v566 = vadd.f32 %v273, %v565
      %v567 = vpop.f32.mrb[0].mxu0
      %v568 = vpop.f32.mrb[0].mxu0
      %v569 = vadd.f32 %v273, %v568
      %v570 = vpop.f32.mrb[0].mxu0
      %571 = vmatprep.mubr.bf16.mxu0 %v374
      %572 = vmatmul.mubr.bf16.gmra.mrb[0].mxu0 %v373
      %v573 = vpop.f32.mrb[0].mxu0
      %v574 = vadd.f32 %v273, %v573
      %v575 = vpop.f32.mrb[0].mxu0
      %v576 = vpop.f32.mrb[0].mxu0
      %v577 = vadd.f32 %v273, %v576
      %v578 = vpop.f32.mrb[0].mxu0
      %579 = vmatprep.mubr.bf16.mxu0 %v376
      %580 = vmatmul.mubr.bf16.gmra.mrb[0].mxu0 %v375
      %v581 = vpop.f32.mrb[0].mxu0
      %v582 = vadd.f32 %v273, %v581
      %v583 = vpop.f32.mrb[0].mxu0
      %v584 = vpop.f32.mrb[0].mxu0
      %v585 = vadd.f32 %v273, %v584
      %v586 = vpop.f32.mrb[0].mxu0
      %587 = vmatprep.mubr.bf16.mxu0 %v378
      %588 = vmatmul.mubr.bf16.gmra.mrb[0].mxu0 %v377
      %v589 = vpop.f32.mrb[0].mxu0
      %v590 = vadd.f32 %v273, %v589
      %v591 = vpop.f32.mrb[0].mxu0
      %v592 = vpop.f32.mrb[0].mxu0
      %v593 = vadd.f32 %v273, %v592
      %v594 = vpop.f32.mrb[0].mxu0
      %595 = vmatprep.mubr.bf16.mxu0 %v380
      %596 = vmatmul.mubr.bf16.gmra.mrb[0].mxu0 %v379
      %v597 = vpop.f32.mrb[0].mxu0
      %v598 = vadd.f32 %v273, %v597
      %v599 = vpop.f32.mrb[0].mxu0
      %v600 = vpop.f32.mrb[0].mxu0
      %v601 = vadd.f32 %v273, %v600
      %v602 = vpop.f32.mrb[0].mxu0
      %603 = vmatprep.mubr.bf16.mxu0 %v382
      %604 = vmatmul.mubr.bf16.gmra.mrb[0].mxu0 %v381
      %v605 = vpop.f32.mrb[0].mxu0
      %v606 = vadd.f32 %v273, %v605
      %v607 = vpop.f32.mrb[0].mxu0
      %v608 = vpop.f32.mrb[0].mxu0
      %v609 = vadd.f32 %v273, %v608
      %v610 = vpop.f32.mrb[0].mxu0
      %611 = vmatprep.mubr.bf16.mxu0 %v384
      %612 = vmatmul.mubr.bf16.gmra.mrb[0].mxu0 %v383
      %v613 = vpop.f32.mrb[0].mxu0
      %v614 = vadd.f32 %v273, %v613
      %v615 = vpop.f32.mrb[0].mxu0
      %v616 = vpop.f32.mrb[0].mxu0
      %v617 = vadd.f32 %v273, %v616
      %v618 = vpop.f32.mrb[0].mxu0
      %619 = vmatprep.mubr.bf16.mxu0 %v386
      %620 = vmatmul.mubr.bf16.gmra.mrb[0].mxu0 %v385
      %v621 = vpop.f32.mrb[0].mxu0
      %v622 = vadd.f32 %v273, %v621
      %v623 = vpop.f32.mrb[0].mxu0
      %v624 = vpop.f32.mrb[0].mxu0
      %v625 = vadd.f32 %v273, %v624
      %v626 = vpop.f32.mrb[0].mxu0
      %627 = vmatprep.mubr.bf16.mxu0 %v388
      %628 = vmatmul.mubr.bf16.gmra.mrb[0].mxu0 %v387
      %v629 = vpop.f32.mrb[0].mxu0
      %v630 = vadd.f32 %v273, %v629
      %v631 = vpop.f32.mrb[0].mxu0
      %v632 = vpop.f32.mrb[0].mxu0
      %v633 = vadd.f32 %v273, %v632
      %v634 = vpop.f32.mrb[0].mxu0
      %635 = vmatprep.mubr.bf16.mxu0 %v390
      %636 = vmatmul.mubr.bf16.gmra.mrb[0].mxu0 %v389
      %v637 = vpop.f32.mrb[0].mxu0
      %v638 = vadd.f32 %v273, %v637
      %v639 = vpop.f32.mrb[0].mxu0
      %v640 = vpop.f32.mrb[0].mxu0
      %v641 = vadd.f32 %v273, %v640
      %v642 = vpop.f32.mrb[0].mxu0
      %643 = vmatprep.mubr.bf16.mxu0 %v392
      %644 = vmatmul.mubr.bf16.gmra.mrb[0].mxu0 %v391
      %v645 = vpop.f32.mrb[0].mxu0
      %v646 = vadd.f32 %v273, %v645
      %v647 = vpop.f32.mrb[0].mxu0
      %v648 = vpop.f32.mrb[0].mxu0
      %v649 = vadd.f32 %v273, %v648
      %v650 = vpop.f32.mrb[0].mxu0
      %651 = vmatprep.mubr.bf16.mxu0 %v394
      %652 = vmatmul.mubr.bf16.gmra.mrb[0].mxu0 %v393
      %v653 = vpop.f32.mrb[0].mxu0
      %v654 = vadd.f32 %v273, %v653
      %v655 = vpop.f32.mrb[0].mxu0
      %v656 = vpop.f32.mrb[0].mxu0
      %v657 = vadd.f32 %v273, %v656
      %v658 = vpop.f32.mrb[0].mxu0
      %659 = vmatprep.mubr.bf16.mxu0 %v396
      %660 = vmatmul.mubr.bf16.gmra.mrb[0].mxu0 %v395
      %v661 = vpop.f32.mrb[0].mxu0
      %v662 = vadd.f32 %v273, %v661
      %v663 = vpop.f32.mrb[0].mxu0
      %v664 = vpop.f32.mrb[0].mxu0
      %v665 = vadd.f32 %v273, %v664
      %v666 = vpop.f32.mrb[0].mxu0
      %667 = vmatprep.mubr.bf16.mxu0 %v398
      %668 = vmatmul.mubr.bf16.gmra.mrb[0].mxu0 %v397
      %v669 = vpop.f32.mrb[0].mxu0
      %v670 = vadd.f32 %v273, %v669
      %v671 = vpop.f32.mrb[0].mxu0
      %v672 = vpop.f32.mrb[0].mxu0
      %v673 = vadd.f32 %v273, %v672
      %v674 = vpop.f32.mrb[0].mxu0
      %675 = vmatprep.mubr.bf16.mxu0 %v400
      %676 = vmatmul.mubr.bf16.gmra.mrb[0].mxu0 %v399
      %v677 = vpop.f32.mrb[0].mxu0
      %v678 = vadd.f32 %v273, %v677
      %v679 = vpop.f32.mrb[0].mxu0
      %v680 = vpop.f32.mrb[0].mxu0
      %v681 = vadd.f32 %v273, %v680
      %v682 = vpop.f32.mrb[0].mxu0
      %683 = vmatprep.mubr.bf16.mxu0 %v402
      %684 = vmatmul.mubr.bf16.gmra.mrb[0].mxu0 %v401
      %v685 = vpop.f32.mrb[0].mxu0
      %v686 = vadd.f32 %v273, %v685
      %v687 = vpop.f32.mrb[0].mxu0
      %v688 = vpop.f32.mrb[0].mxu0
      %v689 = vadd.f32 %v273, %v688
      %v690 = vpop.f32.mrb[0].mxu0
      %691 = vdwg.mxu0
      %v692 = vpack.c.bf16 %v569, %v566
      %v693 = vpack.c.bf16 %v577, %v574
      %v694 = vpack.c.bf16 %v585, %v582
      %v695 = vpack.c.bf16 %v593, %v590
      %v696 = vpack.c.bf16 %v601, %v598
      %v697 = vpack.c.bf16 %v609, %v606
      %v698 = vpack.c.bf16 %v617, %v614
      %v699 = vpack.c.bf16 %v625, %v622
      %v700 = vpack.c.bf16 %v633, %v630
      %v701 = vpack.c.bf16 %v641, %v638
      %v702 = vpack.c.bf16 %v649, %v646
      %v703 = vpack.c.bf16 %v657, %v654
      %v704 = vpack.c.bf16 %v665, %v662
      %v705 = vpack.c.bf16 %v673, %v670
      %v706 = vpack.c.bf16 %v681, %v678
      %v707 = vpack.c.bf16 %v689, %v686
      %v724 = vunpack.c.l.b16 %v692
      %v725 = vunpack.c.h.b16 %v692
      %v726 = vunpack.c.l.b16 %v693
      %v727 = vunpack.c.h.b16 %v693
      %v728 = vunpack.c.l.b16 %v694
      %v729 = vunpack.c.h.b16 %v694
      %v730 = vunpack.c.l.b16 %v695
      %v731 = vunpack.c.h.b16 %v695
      %v732 = vunpack.c.l.b16 %v696
      %v733 = vunpack.c.h.b16 %v696
      %v734 = vunpack.c.l.b16 %v697
      %v735 = vunpack.c.h.b16 %v697
      %v736 = vunpack.c.l.b16 %v698
      %v737 = vunpack.c.h.b16 %v698
      %v738 = vunpack.c.l.b16 %v699
      %v739 = vunpack.c.h.b16 %v699
      %v740 = vunpack.c.l.b16 %v700
      %v741 = vunpack.c.h.b16 %v700
      %v742 = vunpack.c.l.b16 %v701
      %v743 = vunpack.c.h.b16 %v701
      %v744 = vunpack.c.l.b16 %v702
      %v745 = vunpack.c.h.b16 %v702
      %v746 = vunpack.c.l.b16 %v703
      %v747 = vunpack.c.h.b16 %v703
      %v748 = vunpack.c.l.b16 %v704
      %v749 = vunpack.c.h.b16 %v704
      %v750 = vunpack.c.l.b16 %v705
      %v751 = vunpack.c.h.b16 %v705
      %v752 = vunpack.c.l.b16 %v706
      %v753 = vunpack.c.h.b16 %v706
      %v754 = vunpack.c.l.b16 %v707
      %v755 = vunpack.c.h.b16 %v707
      %v756 = vpack.c.b16 %v724, %v724
      %v757 = vpack.c.b16 %v725, %v725
      %v758 = vpack.c.b16 %v726, %v726
      %v759 = vpack.c.b16 %v727, %v727
      %v760 = vpack.c.b16 %v728, %v728
      %v761 = vpack.c.b16 %v729, %v729
      %v762 = vpack.c.b16 %v730, %v730
      %v763 = vpack.c.b16 %v731, %v731
      %v764 = vpack.c.b16 %v732, %v732
      %v765 = vpack.c.b16 %v733, %v733
      %v766 = vpack.c.b16 %v734, %v734
      %v767 = vpack.c.b16 %v735, %v735
      %v768 = vpack.c.b16 %v736, %v736
      %v769 = vpack.c.b16 %v737, %v737
      %v770 = vpack.c.b16 %v738, %v738
      %v771 = vpack.c.b16 %v739, %v739
      %v772 = vpack.c.b16 %v740, %v740
      %v773 = vpack.c.b16 %v741, %v741
      %v774 = vpack.c.b16 %v742, %v742
      %v775 = vpack.c.b16 %v743, %v743
      %v776 = vpack.c.b16 %v744, %v744
      %v777 = vpack.c.b16 %v745, %v745
      %v778 = vpack.c.b16 %v746, %v746
      %v779 = vpack.c.b16 %v747, %v747
      %v780 = vpack.c.b16 %v748, %v748
      %v781 = vpack.c.b16 %v749, %v749
      %v782 = vpack.c.b16 %v750, %v750
      %v783 = vpack.c.b16 %v751, %v751
      %v784 = vpack.c.b16 %v752, %v752
      %v785 = vpack.c.b16 %v753, %v753
      %v786 = vpack.c.b16 %v754, %v754
      %v787 = vpack.c.b16 %v755, %v755
      %s820 = sshra.s32 %s203, 3
      %s821 = sand.u32 %s203, 7
      %s822 = smul.addr %s820, 4
      %s823 = scalar_lea.vmem %s201, %s822
      %824 = vst [vmem:[%s823] sm:$0xf] %v756
      %825 = vst [vmem:[%s823 + $0x4] sm:$0xf] %v757
      %826 = vst [vmem:[%s823 + $0x8] sm:$0xf] %v758
      %827 = vst [vmem:[%s823 + $0xc] sm:$0xf] %v759
      %828 = vst [vmem:[%s823 + $0x10] sm:$0xf] %v760
      %829 = vst [vmem:[%s823 + $0x14] sm:$0xf] %v761
      %830 = vst [vmem:[%s823 + $0x18] sm:$0xf] %v762
      %831 = vst [vmem:[%s823 + $0x1c] sm:$0xf] %v763
      %832 = vst [vmem:[%s823 + $0x20] sm:$0xf] %v764
      %833 = vst [vmem:[%s823 + $0x24] sm:$0xf] %v765
      %834 = vst [vmem:[%s823 + $0x28] sm:$0xf] %v766
      %835 = vst [vmem:[%s823 + $0x2c] sm:$0xf] %v767
      %836 = vst [vmem:[%s823 + $0x30] sm:$0xf] %v768
      %837 = vst [vmem:[%s823 + $0x34] sm:$0xf] %v769
      %838 = vst [vmem:[%s823 + $0x38] sm:$0xf] %v770
      %839 = vst [vmem:[%s823 + $0x3c] sm:$0xf] %v771
      %840 = vst [vmem:[%s823 + $0x40] sm:$0xf] %v772
      %841 = vst [vmem:[%s823 + $0x44] sm:$0xf] %v773
      %842 = vst [vmem:[%s823 + $0x48] sm:$0xf] %v774
      %843 = vst [vmem:[%s823 + $0x4c] sm:$0xf] %v775
      %844 = vst [vmem:[%s823 + $0x50] sm:$0xf] %v776
      %845 = vst [vmem:[%s823 + $0x54] sm:$0xf] %v777
      %846 = vst [vmem:[%s823 + $0x58] sm:$0xf] %v778
      %847 = vst [vmem:[%s823 + $0x5c] sm:$0xf] %v779
      %848 = vst [vmem:[%s823 + $0x60] sm:$0xf] %v780
      %849 = vst [vmem:[%s823 + $0x64] sm:$0xf] %v781
      %850 = vst [vmem:[%s823 + $0x68] sm:$0xf] %v782
      %851 = vst [vmem:[%s823 + $0x6c] sm:$0xf] %v783
      %852 = vst [vmem:[%s823 + $0x70] sm:$0xf] %v784
      %853 = vst [vmem:[%s823 + $0x74] sm:$0xf] %v785
      %854 = vst [vmem:[%s823 + $0x78] sm:$0xf] %v786
      %855 = vst [vmem:[%s823 + $0x7c] sm:$0xf] %v787
      %p856 = scmp.eq.s32.totalorder %s19, 0
      // Predicated region
      $region33: #{_lambda_.12} parent=31 // pred_check
        %p857 = pneg %p856
      $region34: #{_lambda_.12} parent=31 // pred_check_branch
        %859 = sbr.rel (%p857) target = $region36
      $region35: #{_lambda_.12} parent=31 // pred_region
        %860 = vst [vmem:[#allocation2] sm:$0x1] 0.0
        %861 = vst [vmem:[#allocation3] sm:$0x1] 0.0
      $region36: #{_lambda_.12} parent=31 // pred_fallthru
        _
      %v862 = vld [vmem:[#allocation2] sm:$0x1]
      %v863 = vadd.f32 %v566, %v569
      %v864 = vadd.f32 %v863, %v574
      %v865 = vadd.f32 %v864, %v577
      %v866 = vadd.f32 %v865, %v582
      %v867 = vadd.f32 %v866, %v585
      %v868 = vadd.f32 %v867, %v590
      %v869 = vadd.f32 %v868, %v593
      %v870 = vadd.f32 %v869, %v598
      %v871 = vadd.f32 %v870, %v601
      %v872 = vadd.f32 %v871, %v606
      %v873 = vadd.f32 %v872, %v609
      %v874 = vadd.f32 %v873, %v614
      %v875 = vadd.f32 %v874, %v617
      %v876 = vadd.f32 %v875, %v622
      %v877 = vadd.f32 %v876, %v625
      %v878 = vadd.f32 %v877, %v630
      %v879 = vadd.f32 %v878, %v633
      %v880 = vadd.f32 %v879, %v638
      %v881 = vadd.f32 %v880, %v641
      %v882 = vadd.f32 %v881, %v646
      %v883 = vadd.f32 %v882, %v649
      %v884 = vadd.f32 %v883, %v654
      %v885 = vadd.f32 %v884, %v657
      %v886 = vadd.f32 %v885, %v662
      %v887 = vadd.f32 %v886, %v665
      %v888 = vadd.f32 %v887, %v670
      %v889 = vadd.f32 %v888, %v673
      %v890 = vadd.f32 %v889, %v678
      %v891 = vadd.f32 %v890, %v681
      %v892 = vadd.f32 %v891, %v686
      %v893 = vadd.f32 %v892, %v689
      %v894 = vrot.slane %v893, 4
      %v895 = vadd.f32 %v893, %v894
      %v896 = vrot.slane %v895, 2
      %v897 = vadd.f32 %v895, %v896
      %v898 = vrot.slane %v897, 1
      %v899 = vadd.f32 %v897, %v898
      %v900 = vadd.f32 %v862, %v899
      %901 = vst [vmem:[#allocation2] sm:$0x1] %v900
      %v902 = vld [vmem:[#allocation3] sm:$0x1]
      %v903 = vmul.f32 %v566, %v566
      %v904 = vmul.f32 %v569, %v569
      %v905 = vmul.f32 %v574, %v574
      %v906 = vmul.f32 %v577, %v577
      %v907 = vmul.f32 %v582, %v582
      %v908 = vmul.f32 %v585, %v585
      %v909 = vmul.f32 %v590, %v590
      %v910 = vmul.f32 %v593, %v593
      %v911 = vmul.f32 %v598, %v598
      %v912 = vmul.f32 %v601, %v601
      %v913 = vmul.f32 %v606, %v606
      %v914 = vmul.f32 %v609, %v609
      %v915 = vmul.f32 %v614, %v614
      %v916 = vmul.f32 %v617, %v617
      %v917 = vmul.f32 %v622, %v622
      %v918 = vmul.f32 %v625, %v625
      %v919 = vmul.f32 %v630, %v630
      %v920 = vmul.f32 %v633, %v633
      %v921 = vmul.f32 %v638, %v638
      %v922 = vmul.f32 %v641, %v641
      %v923 = vmul.f32 %v646, %v646
      %v924 = vmul.f32 %v649, %v649
      %v925 = vmul.f32 %v654, %v654
      %v926 = vmul.f32 %v657, %v657
      %v927 = vmul.f32 %v662, %v662
      %v928 = vmul.f32 %v665, %v665
      %v929 = vmul.f32 %v670, %v670
      %v930 = vmul.f32 %v673, %v673
      %v931 = vmul.f32 %v678, %v678
      %v932 = vmul.f32 %v681, %v681
      %v933 = vmul.f32 %v686, %v686
      %v934 = vmul.f32 %v689, %v689
      %v935 = vadd.f32 %v903, %v904
      %v936 = vadd.f32 %v935, %v905
      %v937 = vadd.f32 %v936, %v906
      %v938 = vadd.f32 %v937, %v907
      %v939 = vadd.f32 %v938, %v908
      %v940 = vadd.f32 %v939, %v909
      %v941 = vadd.f32 %v940, %v910
      %v942 = vadd.f32 %v941, %v911
      %v943 = vadd.f32 %v942, %v912
      %v944 = vadd.f32 %v943, %v913
      %v945 = vadd.f32 %v944, %v914
      %v946 = vadd.f32 %v945, %v915
      %v947 = vadd.f32 %v946, %v916
      %v948 = vadd.f32 %v947, %v917
      %v949 = vadd.f32 %v948, %v918
      %v950 = vadd.f32 %v949, %v919
      %v951 = vadd.f32 %v950, %v920
      %v952 = vadd.f32 %v951, %v921
      %v953 = vadd.f32 %v952, %v922
      %v954 = vadd.f32 %v953, %v923
      %v955 = vadd.f32 %v954, %v924
      %v956 = vadd.f32 %v955, %v925
      %v957 = vadd.f32 %v956, %v926
      %v958 = vadd.f32 %v957, %v927
      %v959 = vadd.f32 %v958, %v928
      %v960 = vadd.f32 %v959, %v929
      %v961 = vadd.f32 %v960, %v930
      %v962 = vadd.f32 %v961, %v931
      %v963 = vadd.f32 %v962, %v932
      %v964 = vadd.f32 %v963, %v933
      %v965 = vadd.f32 %v964, %v934
      %v966 = vrot.slane %v965, 4
      %v967 = vadd.f32 %v965, %v966
      %v968 = vrot.slane %v967, 2
      %v969 = vadd.f32 %v967, %v968
      %v970 = vrot.slane %v969, 1
      %v971 = vadd.f32 %v969, %v970
      %v972 = vadd.f32 %v902, %v971
      %973 = vst [vmem:[#allocation3] sm:$0x1] %v972
      %p974 = scmp.eq.s32.totalorder %s19, 3
      // Predicated region
      $region37: #{_lambda_.12} parent=31 // pred_check
        %p975 = pneg %p974
      $region38: #{_lambda_.12} parent=31 // pred_check_branch
        %977 = sbr.rel (%p975) target = $region40
      $region39: #{_lambda_.12} parent=31 // pred_region
        %v978 = vld [vmem:[#allocation2] sm:$0x1]
        %v979 = vmul.f32 %v978, 0.0009765625
        %v980 = vld [vmem:[#allocation3] sm:$0x1]
        %v981 = vmul.f32 %v980, 0.0009765625
        %v982 = vmul.f32 %v979, %v979
        %v983 = vsub.f32 %v981, %v982
        %v984 = vmax.f32 %v983, 0.0
        %v985 = vadd.f32 %v984, 1e-05
        %v986 = vrsqrt.pop %v985
        %v987 = vld [vmem:[%s201] sm:$0xf]
        %v988 = vld [vmem:[%s201 + $0x4] sm:$0xf]
        %v989 = vld [vmem:[%s201 + $0x8] sm:$0xf]
        %v990 = vld [vmem:[%s201 + $0xc] sm:$0xf]
        %v991 = vld [vmem:[%s201 + $0x10] sm:$0xf]
        %v992 = vld [vmem:[%s201 + $0x14] sm:$0xf]
        %v993 = vld [vmem:[%s201 + $0x18] sm:$0xf]
        %v994 = vld [vmem:[%s201 + $0x1c] sm:$0xf]
        %v995 = vld [vmem:[%s201 + $0x20] sm:$0xf]
        %v996 = vld [vmem:[%s201 + $0x24] sm:$0xf]
        %v997 = vld [vmem:[%s201 + $0x28] sm:$0xf]
        %v998 = vld [vmem:[%s201 + $0x2c] sm:$0xf]
        %v999 = vld [vmem:[%s201 + $0x30] sm:$0xf]
        %v1000 = vld [vmem:[%s201 + $0x34] sm:$0xf]
        %v1001 = vld [vmem:[%s201 + $0x38] sm:$0xf]
        %v1002 = vld [vmem:[%s201 + $0x3c] sm:$0xf]
        %v1003 = vld [vmem:[%s201 + $0x40] sm:$0xf]
        %v1004 = vld [vmem:[%s201 + $0x44] sm:$0xf]
        %v1005 = vld [vmem:[%s201 + $0x48] sm:$0xf]
        %v1006 = vld [vmem:[%s201 + $0x4c] sm:$0xf]
        %v1007 = vld [vmem:[%s201 + $0x50] sm:$0xf]
        %v1008 = vld [vmem:[%s201 + $0x54] sm:$0xf]
        %v1009 = vld [vmem:[%s201 + $0x58] sm:$0xf]
        %v1010 = vld [vmem:[%s201 + $0x5c] sm:$0xf]
        %v1011 = vld [vmem:[%s201 + $0x60] sm:$0xf]
        %v1012 = vld [vmem:[%s201 + $0x64] sm:$0xf]
        %v1013 = vld [vmem:[%s201 + $0x68] sm:$0xf]
        %v1014 = vld [vmem:[%s201 + $0x6c] sm:$0xf]
        %v1015 = vld [vmem:[%s201 + $0x70] sm:$0xf]
        %v1016 = vld [vmem:[%s201 + $0x74] sm:$0xf]
        %v1017 = vld [vmem:[%s201 + $0x78] sm:$0xf]
        %v1018 = vld [vmem:[%s201 + $0x7c] sm:$0xf]
        %v1019 = vunpack.c.l.bf16 %v987
        %v1020 = vunpack.c.l.bf16 %v988
        %v1021 = vunpack.c.l.bf16 %v989
        %v1022 = vunpack.c.l.bf16 %v990
        %v1023 = vunpack.c.l.bf16 %v991
        %v1024 = vunpack.c.l.bf16 %v992
        %v1025 = vunpack.c.l.bf16 %v993
        %v1026 = vunpack.c.l.bf16 %v994
        %v1027 = vunpack.c.l.bf16 %v995
        %v1028 = vunpack.c.l.bf16 %v996
        %v1029 = vunpack.c.l.bf16 %v997
        %v1030 = vunpack.c.l.bf16 %v998
        %v1031 = vunpack.c.l.bf16 %v999
        %v1032 = vunpack.c.l.bf16 %v1000
        %v1033 = vunpack.c.l.bf16 %v1001
        %v1034 = vunpack.c.l.bf16 %v1002
        %v1035 = vunpack.c.l.bf16 %v1003
        %v1036 = vunpack.c.l.bf16 %v1004
        %v1037 = vunpack.c.l.bf16 %v1005
        %v1038 = vunpack.c.l.bf16 %v1006
        %v1039 = vunpack.c.l.bf16 %v1007
        %v1040 = vunpack.c.l.bf16 %v1008
        %v1041 = vunpack.c.l.bf16 %v1009
        %v1042 = vunpack.c.l.bf16 %v1010
        %v1043 = vunpack.c.l.bf16 %v1011
        %v1044 = vunpack.c.l.bf16 %v1012
        %v1045 = vunpack.c.l.bf16 %v1013
        %v1046 = vunpack.c.l.bf16 %v1014
        %v1047 = vunpack.c.l.bf16 %v1015
        %v1048 = vunpack.c.l.bf16 %v1016
        %v1049 = vunpack.c.l.bf16 %v1017
        %v1050 = vunpack.c.l.bf16 %v1018
        %v1052 = vlaneseq
        %v1053 = vshrl.u32 %v1052, 7
        %v1054 = vsub.s32 0, %v1053
        %v1055 = vrot.slane %v979, %v1054
        %v1057 = vsub.f32 %v1019, %v1055
        %v1058 = vsub.f32 %v1020, %v1055
        %v1059 = vsub.f32 %v1021, %v1055
        %v1060 = vsub.f32 %v1022, %v1055
        %v1061 = vsub.f32 %v1023, %v1055
        %v1062 = vsub.f32 %v1024, %v1055
        %v1063 = vsub.f32 %v1025, %v1055
        %v1064 = vsub.f32 %v1026, %v1055
        %v1065 = vsub.f32 %v1027, %v1055
        %v1066 = vsub.f32 %v1028, %v1055
        %v1067 = vsub.f32 %v1029, %v1055
        %v1068 = vsub.f32 %v1030, %v1055
        %v1069 = vsub.f32 %v1031, %v1055
        %v1070 = vsub.f32 %v1032, %v1055
        %v1071 = vsub.f32 %v1033, %v1055
        %v1072 = vsub.f32 %v1034, %v1055
        %v1073 = vsub.f32 %v1035, %v1055
        %v1074 = vsub.f32 %v1036, %v1055
        %v1075 = vsub.f32 %v1037, %v1055
        %v1076 = vsub.f32 %v1038, %v1055
        %v1077 = vsub.f32 %v1039, %v1055
        %v1078 = vsub.f32 %v1040, %v1055
        %v1079 = vsub.f32 %v1041, %v1055
        %v1080 = vsub.f32 %v1042, %v1055
        %v1081 = vsub.f32 %v1043, %v1055
        %v1082 = vsub.f32 %v1044, %v1055
        %v1083 = vsub.f32 %v1045, %v1055
        %v1084 = vsub.f32 %v1046, %v1055
        %v1085 = vsub.f32 %v1047, %v1055
        %v1086 = vsub.f32 %v1048, %v1055
        %v1087 = vsub.f32 %v1049, %v1055
        %v1088 = vsub.f32 %v1050, %v1055
        %v1090 = vlaneseq
        %v1091 = vshrl.u32 %v1090, 7
        %v1092 = vsub.s32 0, %v1091
        %v1093 = vrot.slane %v986, %v1092
        %v1095 = vmul.f32 %v1057, %v1093
        %v1096 = vmul.f32 %v1058, %v1093
        %v1097 = vmul.f32 %v1059, %v1093
        %v1098 = vmul.f32 %v1060, %v1093
        %v1099 = vmul.f32 %v1061, %v1093
        %v1100 = vmul.f32 %v1062, %v1093
        %v1101 = vmul.f32 %v1063, %v1093
        %v1102 = vmul.f32 %v1064, %v1093
        %v1103 = vmul.f32 %v1065, %v1093
        %v1104 = vmul.f32 %v1066, %v1093
        %v1105 = vmul.f32 %v1067, %v1093
        %v1106 = vmul.f32 %v1068, %v1093
        %v1107 = vmul.f32 %v1069, %v1093
        %v1108 = vmul.f32 %v1070, %v1093
        %v1109 = vmul.f32 %v1071, %v1093
        %v1110 = vmul.f32 %v1072, %v1093
        %v1111 = vmul.f32 %v1073, %v1093
        %v1112 = vmul.f32 %v1074, %v1093
        %v1113 = vmul.f32 %v1075, %v1093
        %v1114 = vmul.f32 %v1076, %v1093
        %v1115 = vmul.f32 %v1077, %v1093
        %v1116 = vmul.f32 %v1078, %v1093
        %v1117 = vmul.f32 %v1079, %v1093
        %v1118 = vmul.f32 %v1080, %v1093
        %v1119 = vmul.f32 %v1081, %v1093
        %v1120 = vmul.f32 %v1082, %v1093
        %v1121 = vmul.f32 %v1083, %v1093
        %v1122 = vmul.f32 %v1084, %v1093
        %v1123 = vmul.f32 %v1085, %v1093
        %v1124 = vmul.f32 %v1086, %v1093
        %v1125 = vmul.f32 %v1087, %v1093
        %v1126 = vmul.f32 %v1088, %v1093
        %v1127 = vmax.f32 %v1095, 0.0
        %v1128 = vmax.f32 %v1096, 0.0
        %v1129 = vmax.f32 %v1097, 0.0
        %v1130 = vmax.f32 %v1098, 0.0
        %v1131 = vmax.f32 %v1099, 0.0
        %v1132 = vmax.f32 %v1100, 0.0
        %v1133 = vmax.f32 %v1101, 0.0
        %v1134 = vmax.f32 %v1102, 0.0
        %v1135 = vmax.f32 %v1103, 0.0
        %v1136 = vmax.f32 %v1104, 0.0
        %v1137 = vmax.f32 %v1105, 0.0
        %v1138 = vmax.f32 %v1106, 0.0
        %v1139 = vmax.f32 %v1107, 0.0
        %v1140 = vmax.f32 %v1108, 0.0
        %v1141 = vmax.f32 %v1109, 0.0
        %v1142 = vmax.f32 %v1110, 0.0
        %v1143 = vmax.f32 %v1111, 0.0
        %v1144 = vmax.f32 %v1112, 0.0
        %v1145 = vmax.f32 %v1113, 0.0
        %v1146 = vmax.f32 %v1114, 0.0
        %v1147 = vmax.f32 %v1115, 0.0
        %v1148 = vmax.f32 %v1116, 0.0
        %v1149 = vmax.f32 %v1117, 0.0
        %v1150 = vmax.f32 %v1118, 0.0
        %v1151 = vmax.f32 %v1119, 0.0
        %v1152 = vmax.f32 %v1120, 0.0
        %v1153 = vmax.f32 %v1121, 0.0
        %v1154 = vmax.f32 %v1122, 0.0
        %v1155 = vmax.f32 %v1123, 0.0
        %v1156 = vmax.f32 %v1124, 0.0
        %v1157 = vmax.f32 %v1125, 0.0
        %v1158 = vmax.f32 %v1126, 0.0
        %v1159 = vpack.c.bf16 %v1128, %v1127
        %v1160 = vpack.c.bf16 %v1130, %v1129
        %v1161 = vpack.c.bf16 %v1132, %v1131
        %v1162 = vpack.c.bf16 %v1134, %v1133
        %v1163 = vpack.c.bf16 %v1136, %v1135
        %v1164 = vpack.c.bf16 %v1138, %v1137
        %v1165 = vpack.c.bf16 %v1140, %v1139
        %v1166 = vpack.c.bf16 %v1142, %v1141
        %v1167 = vpack.c.bf16 %v1144, %v1143
        %v1168 = vpack.c.bf16 %v1146, %v1145
        %v1169 = vpack.c.bf16 %v1148, %v1147
        %v1170 = vpack.c.bf16 %v1150, %v1149
        %v1171 = vpack.c.bf16 %v1152, %v1151
        %v1172 = vpack.c.bf16 %v1154, %v1153
        %v1173 = vpack.c.bf16 %v1156, %v1155
        %v1174 = vpack.c.bf16 %v1158, %v1157
        %v1191 = vunpack.c.l.b16 %v1159
        %v1192 = vunpack.c.h.b16 %v1159
        %v1193 = vunpack.c.l.b16 %v1160
        %v1194 = vunpack.c.h.b16 %v1160
        %v1195 = vunpack.c.l.b16 %v1161
        %v1196 = vunpack.c.h.b16 %v1161
        %v1197 = vunpack.c.l.b16 %v1162
        %v1198 = vunpack.c.h.b16 %v1162
        %v1199 = vunpack.c.l.b16 %v1163
        %v1200 = vunpack.c.h.b16 %v1163
        %v1201 = vunpack.c.l.b16 %v1164
        %v1202 = vunpack.c.h.b16 %v1164
        %v1203 = vunpack.c.l.b16 %v1165
        %v1204 = vunpack.c.h.b16 %v1165
        %v1205 = vunpack.c.l.b16 %v1166
        %v1206 = vunpack.c.h.b16 %v1166
        %v1207 = vunpack.c.l.b16 %v1167
        %v1208 = vunpack.c.h.b16 %v1167
        %v1209 = vunpack.c.l.b16 %v1168
        %v1210 = vunpack.c.h.b16 %v1168
        %v1211 = vunpack.c.l.b16 %v1169
        %v1212 = vunpack.c.h.b16 %v1169
        %v1213 = vunpack.c.l.b16 %v1170
        %v1214 = vunpack.c.h.b16 %v1170
        %v1215 = vunpack.c.l.b16 %v1171
        %v1216 = vunpack.c.h.b16 %v1171
        %v1217 = vunpack.c.l.b16 %v1172
        %v1218 = vunpack.c.h.b16 %v1172
        %v1219 = vunpack.c.l.b16 %v1173
        %v1220 = vunpack.c.h.b16 %v1173
        %v1221 = vunpack.c.l.b16 %v1174
        %v1222 = vunpack.c.h.b16 %v1174
        %v1223 = vpack.c.b16 %v1191, %v1191
        %v1224 = vpack.c.b16 %v1192, %v1192
        %v1225 = vpack.c.b16 %v1193, %v1193
        %v1226 = vpack.c.b16 %v1194, %v1194
        %v1227 = vpack.c.b16 %v1195, %v1195
        %v1228 = vpack.c.b16 %v1196, %v1196
        %v1229 = vpack.c.b16 %v1197, %v1197
        %v1230 = vpack.c.b16 %v1198, %v1198
        %v1231 = vpack.c.b16 %v1199, %v1199
        %v1232 = vpack.c.b16 %v1200, %v1200
        %v1233 = vpack.c.b16 %v1201, %v1201
        %v1234 = vpack.c.b16 %v1202, %v1202
        %v1235 = vpack.c.b16 %v1203, %v1203
        %v1236 = vpack.c.b16 %v1204, %v1204
        %v1237 = vpack.c.b16 %v1205, %v1205
        %v1238 = vpack.c.b16 %v1206, %v1206
        %v1239 = vpack.c.b16 %v1207, %v1207
        %v1240 = vpack.c.b16 %v1208, %v1208
        %v1241 = vpack.c.b16 %v1209, %v1209
        %v1242 = vpack.c.b16 %v1210, %v1210
        %v1243 = vpack.c.b16 %v1211, %v1211
        %v1244 = vpack.c.b16 %v1212, %v1212
        %v1245 = vpack.c.b16 %v1213, %v1213
        %v1246 = vpack.c.b16 %v1214, %v1214
        %v1247 = vpack.c.b16 %v1215, %v1215
        %v1248 = vpack.c.b16 %v1216, %v1216
        %v1249 = vpack.c.b16 %v1217, %v1217
        %v1250 = vpack.c.b16 %v1218, %v1218
        %v1251 = vpack.c.b16 %v1219, %v1219
        %v1252 = vpack.c.b16 %v1220, %v1220
        %v1253 = vpack.c.b16 %v1221, %v1221
        %v1254 = vpack.c.b16 %v1222, %v1222
        %1287 = vst [vmem:[%s201] sm:$0xf] %v1223
        %1288 = vst [vmem:[%s201 + $0x4] sm:$0xf] %v1224
        %1289 = vst [vmem:[%s201 + $0x8] sm:$0xf] %v1225
        %1290 = vst [vmem:[%s201 + $0xc] sm:$0xf] %v1226
        %1291 = vst [vmem:[%s201 + $0x10] sm:$0xf] %v1227
        %1292 = vst [vmem:[%s201 + $0x14] sm:$0xf] %v1228
        %1293 = vst [vmem:[%s201 + $0x18] sm:$0xf] %v1229
        %1294 = vst [vmem:[%s201 + $0x1c] sm:$0xf] %v1230
        %1295 = vst [vmem:[%s201 + $0x20] sm:$0xf] %v1231
        %1296 = vst [vmem:[%s201 + $0x24] sm:$0xf] %v1232
        %1297 = vst [vmem:[%s201 + $0x28] sm:$0xf] %v1233
        %1298 = vst [vmem:[%s201 + $0x2c] sm:$0xf] %v1234
        %1299 = vst [vmem:[%s201 + $0x30] sm:$0xf] %v1235
        %1300 = vst [vmem:[%s201 + $0x34] sm:$0xf] %v1236
        %1301 = vst [vmem:[%s201 + $0x38] sm:$0xf] %v1237
        %1302 = vst [vmem:[%s201 + $0x3c] sm:$0xf] %v1238
        %1303 = vst [vmem:[%s201 + $0x40] sm:$0xf] %v1239
        %1304 = vst [vmem:[%s201 + $0x44] sm:$0xf] %v1240
        %1305 = vst [vmem:[%s201 + $0x48] sm:$0xf] %v1241
        %1306 = vst [vmem:[%s201 + $0x4c] sm:$0xf] %v1242
        %1307 = vst [vmem:[%s201 + $0x50] sm:$0xf] %v1243
        %1308 = vst [vmem:[%s201 + $0x54] sm:$0xf] %v1244
        %1309 = vst [vmem:[%s201 + $0x58] sm:$0xf] %v1245
        %1310 = vst [vmem:[%s201 + $0x5c] sm:$0xf] %v1246
        %1311 = vst [vmem:[%s201 + $0x60] sm:$0xf] %v1247
        %1312 = vst [vmem:[%s201 + $0x64] sm:$0xf] %v1248
        %1313 = vst [vmem:[%s201 + $0x68] sm:$0xf] %v1249
        %1314 = vst [vmem:[%s201 + $0x6c] sm:$0xf] %v1250
        %1315 = vst [vmem:[%s201 + $0x70] sm:$0xf] %v1251
        %1316 = vst [vmem:[%s201 + $0x74] sm:$0xf] %v1252
        %1317 = vst [vmem:[%s201 + $0x78] sm:$0xf] %v1253
        %1318 = vst [vmem:[%s201 + $0x7c] sm:$0xf] %v1254
        %v1319 = vld [vmem:[%s201 + $0x80] sm:$0xf]
        %v1320 = vld [vmem:[%s201 + $0x84] sm:$0xf]
        %v1321 = vld [vmem:[%s201 + $0x88] sm:$0xf]
        %v1322 = vld [vmem:[%s201 + $0x8c] sm:$0xf]
        %v1323 = vld [vmem:[%s201 + $0x90] sm:$0xf]
        %v1324 = vld [vmem:[%s201 + $0x94] sm:$0xf]
        %v1325 = vld [vmem:[%s201 + $0x98] sm:$0xf]
        %v1326 = vld [vmem:[%s201 + $0x9c] sm:$0xf]
        %v1327 = vld [vmem:[%s201 + $0xa0] sm:$0xf]
        %v1328 = vld [vmem:[%s201 + $0xa4] sm:$0xf]
        %v1329 = vld [vmem:[%s201 + $0xa8] sm:$0xf]
        %v1330 = vld [vmem:[%s201 + $0xac] sm:$0xf]
        %v1331 = vld [vmem:[%s201 + $0xb0] sm:$0xf]
        %v1332 = vld [vmem:[%s201 + $0xb4] sm:$0xf]
        %v1333 = vld [vmem:[%s201 + $0xb8] sm:$0xf]
        %v1334 = vld [vmem:[%s201 + $0xbc] sm:$0xf]
        %v1335 = vld [vmem:[%s201 + $0xc0] sm:$0xf]
        %v1336 = vld [vmem:[%s201 + $0xc4] sm:$0xf]
        %v1337 = vld [vmem:[%s201 + $0xc8] sm:$0xf]
        %v1338 = vld [vmem:[%s201 + $0xcc] sm:$0xf]
        %v1339 = vld [vmem:[%s201 + $0xd0] sm:$0xf]
        %v1340 = vld [vmem:[%s201 + $0xd4] sm:$0xf]
        %v1341 = vld [vmem:[%s201 + $0xd8] sm:$0xf]
        %v1342 = vld [vmem:[%s201 + $0xdc] sm:$0xf]
        %v1343 = vld [vmem:[%s201 + $0xe0] sm:$0xf]
        %v1344 = vld [vmem:[%s201 + $0xe4] sm:$0xf]
        %v1345 = vld [vmem:[%s201 + $0xe8] sm:$0xf]
        %v1346 = vld [vmem:[%s201 + $0xec] sm:$0xf]
        %v1347 = vld [vmem:[%s201 + $0xf0] sm:$0xf]
        %v1348 = vld [vmem:[%s201 + $0xf4] sm:$0xf]
        %v1349 = vld [vmem:[%s201 + $0xf8] sm:$0xf]
        %v1350 = vld [vmem:[%s201 + $0xfc] sm:$0xf]
        %v1351 = vunpack.c.l.bf16 %v1319
        %v1352 = vunpack.c.l.bf16 %v1320
        %v1353 = vunpack.c.l.bf16 %v1321
        %v1354 = vunpack.c.l.bf16 %v1322
        %v1355 = vunpack.c.l.bf16 %v1323
        %v1356 = vunpack.c.l.bf16 %v1324
        %v1357 = vunpack.c.l.bf16 %v1325
        %v1358 = vunpack.c.l.bf16 %v1326
        %v1359 = vunpack.c.l.bf16 %v1327
        %v1360 = vunpack.c.l.bf16 %v1328
        %v1361 = vunpack.c.l.bf16 %v1329
        %v1362 = vunpack.c.l.bf16 %v1330
        %v1363 = vunpack.c.l.bf16 %v1331
        %v1364 = vunpack.c.l.bf16 %v1332
        %v1365 = vunpack.c.l.bf16 %v1333
        %v1366 = vunpack.c.l.bf16 %v1334
        %v1367 = vunpack.c.l.bf16 %v1335
        %v1368 = vunpack.c.l.bf16 %v1336
        %v1369 = vunpack.c.l.bf16 %v1337
        %v1370 = vunpack.c.l.bf16 %v1338
        %v1371 = vunpack.c.l.bf16 %v1339
        %v1372 = vunpack.c.l.bf16 %v1340
        %v1373 = vunpack.c.l.bf16 %v1341
        %v1374 = vunpack.c.l.bf16 %v1342
        %v1375 = vunpack.c.l.bf16 %v1343
        %v1376 = vunpack.c.l.bf16 %v1344
        %v1377 = vunpack.c.l.bf16 %v1345
        %v1378 = vunpack.c.l.bf16 %v1346
        %v1379 = vunpack.c.l.bf16 %v1347
        %v1380 = vunpack.c.l.bf16 %v1348
        %v1381 = vunpack.c.l.bf16 %v1349
        %v1382 = vunpack.c.l.bf16 %v1350
        %v1383 = vsub.f32 %v1351, %v1055
        %v1384 = vsub.f32 %v1352, %v1055
        %v1385 = vsub.f32 %v1353, %v1055
        %v1386 = vsub.f32 %v1354, %v1055
        %v1387 = vsub.f32 %v1355, %v1055
        %v1388 = vsub.f32 %v1356, %v1055
        %v1389 = vsub.f32 %v1357, %v1055
        %v1390 = vsub.f32 %v1358, %v1055
        %v1391 = vsub.f32 %v1359, %v1055
        %v1392 = vsub.f32 %v1360, %v1055
        %v1393 = vsub.f32 %v1361, %v1055
        %v1394 = vsub.f32 %v1362, %v1055
        %v1395 = vsub.f32 %v1363, %v1055
        %v1396 = vsub.f32 %v1364, %v1055
        %v1397 = vsub.f32 %v1365, %v1055
        %v1398 = vsub.f32 %v1366, %v1055
        %v1399 = vsub.f32 %v1367, %v1055
        %v1400 = vsub.f32 %v1368, %v1055
        %v1401 = vsub.f32 %v1369, %v1055
        %v1402 = vsub.f32 %v1370, %v1055
        %v1403 = vsub.f32 %v1371, %v1055
        %v1404 = vsub.f32 %v1372, %v1055
        %v1405 = vsub.f32 %v1373, %v1055
        %v1406 = vsub.f32 %v1374, %v1055
        %v1407 = vsub.f32 %v1375, %v1055
        %v1408 = vsub.f32 %v1376, %v1055
        %v1409 = vsub.f32 %v1377, %v1055
        %v1410 = vsub.f32 %v1378, %v1055
        %v1411 = vsub.f32 %v1379, %v1055
        %v1412 = vsub.f32 %v1380, %v1055
        %v1413 = vsub.f32 %v1381, %v1055
        %v1414 = vsub.f32 %v1382, %v1055
        %v1415 = vmul.f32 %v1383, %v1093
        %v1416 = vmul.f32 %v1384, %v1093
        %v1417 = vmul.f32 %v1385, %v1093
        %v1418 = vmul.f32 %v1386, %v1093
        %v1419 = vmul.f32 %v1387, %v1093
        %v1420 = vmul.f32 %v1388, %v1093
        %v1421 = vmul.f32 %v1389, %v1093
        %v1422 = vmul.f32 %v1390, %v1093
        %v1423 = vmul.f32 %v1391, %v1093
        %v1424 = vmul.f32 %v1392, %v1093
        %v1425 = vmul.f32 %v1393, %v1093
        %v1426 = vmul.f32 %v1394, %v1093
        %v1427 = vmul.f32 %v1395, %v1093
        %v1428 = vmul.f32 %v1396, %v1093
        %v1429 = vmul.f32 %v1397, %v1093
        %v1430 = vmul.f32 %v1398, %v1093
        %v1431 = vmul.f32 %v1399, %v1093
        %v1432 = vmul.f32 %v1400, %v1093
        %v1433 = vmul.f32 %v1401, %v1093
        %v1434 = vmul.f32 %v1402, %v1093
        %v1435 = vmul.f32 %v1403, %v1093
        %v1436 = vmul.f32 %v1404, %v1093
        %v1437 = vmul.f32 %v1405, %v1093
        %v1438 = vmul.f32 %v1406, %v1093
        %v1439 = vmul.f32 %v1407, %v1093
        %v1440 = vmul.f32 %v1408, %v1093
        %v1441 = vmul.f32 %v1409, %v1093
        %v1442 = vmul.f32 %v1410, %v1093
        %v1443 = vmul.f32 %v1411, %v1093
        %v1444 = vmul.f32 %v1412, %v1093
        %v1445 = vmul.f32 %v1413, %v1093
        %v1446 = vmul.f32 %v1414, %v1093
        %v1447 = vmax.f32 %v1415, 0.0
        %v1448 = vmax.f32 %v1416, 0.0
        %v1449 = vmax.f32 %v1417, 0.0
        %v1450 = vmax.f32 %v1418, 0.0
        %v1451 = vmax.f32 %v1419, 0.0
        %v1452 = vmax.f32 %v1420, 0.0
        %v1453 = vmax.f32 %v1421, 0.0
        %v1454 = vmax.f32 %v1422, 0.0
        %v1455 = vmax.f32 %v1423, 0.0
        %v1456 = vmax.f32 %v1424, 0.0
        %v1457 = vmax.f32 %v1425, 0.0
        %v1458 = vmax.f32 %v1426, 0.0
        %v1459 = vmax.f32 %v1427, 0.0
        %v1460 = vmax.f32 %v1428, 0.0
        %v1461 = vmax.f32 %v1429, 0.0
        %v1462 = vmax.f32 %v1430, 0.0
        %v1463 = vmax.f32 %v1431, 0.0
        %v1464 = vmax.f32 %v1432, 0.0
        %v1465 = vmax.f32 %v1433, 0.0
        %v1466 = vmax.f32 %v1434, 0.0
        %v1467 = vmax.f32 %v1435, 0.0
        %v1468 = vmax.f32 %v1436, 0.0
        %v1469 = vmax.f32 %v1437, 0.0
        %v1470 = vmax.f32 %v1438, 0.0
        %v1471 = vmax.f32 %v1439, 0.0
        %v1472 = vmax.f32 %v1440, 0.0
        %v1473 = vmax.f32 %v1441, 0.0
        %v1474 = vmax.f32 %v1442, 0.0
        %v1475 = vmax.f32 %v1443, 0.0
        %v1476 = vmax.f32 %v1444, 0.0
        %v1477 = vmax.f32 %v1445, 0.0
        %v1478 = vmax.f32 %v1446, 0.0
        %v1479 = vpack.c.bf16 %v1448, %v1447
        %v1480 = vpack.c.bf16 %v1450, %v1449
        %v1481 = vpack.c.bf16 %v1452, %v1451
        %v1482 = vpack.c.bf16 %v1454, %v1453
        %v1483 = vpack.c.bf16 %v1456, %v1455
        %v1484 = vpack.c.bf16 %v1458, %v1457
        %v1485 = vpack.c.bf16 %v1460, %v1459
        %v1486 = vpack.c.bf16 %v1462, %v1461
        %v1487 = vpack.c.bf16 %v1464, %v1463
        %v1488 = vpack.c.bf16 %v1466, %v1465
        %v1489 = vpack.c.bf16 %v1468, %v1467
        %v1490 = vpack.c.bf16 %v1470, %v1469
        %v1491 = vpack.c.bf16 %v1472, %v1471
        %v1492 = vpack.c.bf16 %v1474, %v1473
        %v1493 = vpack.c.bf16 %v1476, %v1475
        %v1494 = vpack.c.bf16 %v1478, %v1477
        %v1511 = vunpack.c.l.b16 %v1479
        %v1512 = vunpack.c.h.b16 %v1479
        %v1513 = vunpack.c.l.b16 %v1480
        %v1514 = vunpack.c.h.b16 %v1480
        %v1515 = vunpack.c.l.b16 %v1481
        %v1516 = vunpack.c.h.b16 %v1481
        %v1517 = vunpack.c.l.b16 %v1482
        %v1518 = vunpack.c.h.b16 %v1482
        %v1519 = vunpack.c.l.b16 %v1483
        %v1520 = vunpack.c.h.b16 %v1483
        %v1521 = vunpack.c.l.b16 %v1484
        %v1522 = vunpack.c.h.b16 %v1484
        %v1523 = vunpack.c.l.b16 %v1485
        %v1524 = vunpack.c.h.b16 %v1485
        %v1525 = vunpack.c.l.b16 %v1486
        %v1526 = vunpack.c.h.b16 %v1486
        %v1527 = vunpack.c.l.b16 %v1487
        %v1528 = vunpack.c.h.b16 %v1487
        %v1529 = vunpack.c.l.b16 %v1488
        %v1530 = vunpack.c.h.b16 %v1488
        %v1531 = vunpack.c.l.b16 %v1489
        %v1532 = vunpack.c.h.b16 %v1489
        %v1533 = vunpack.c.l.b16 %v1490
        %v1534 = vunpack.c.h.b16 %v1490
        %v1535 = vunpack.c.l.b16 %v1491
        %v1536 = vunpack.c.h.b16 %v1491
        %v1537 = vunpack.c.l.b16 %v1492
        %v1538 = vunpack.c.h.b16 %v1492
        %v1539 = vunpack.c.l.b16 %v1493
        %v1540 = vunpack.c.h.b16 %v1493
        %v1541 = vunpack.c.l.b16 %v1494
        %v1542 = vunpack.c.h.b16 %v1494
        %v1543 = vpack.c.b16 %v1511, %v1511
        %v1544 = vpack.c.b16 %v1512, %v1512
        %v1545 = vpack.c.b16 %v1513, %v1513
        %v1546 = vpack.c.b16 %v1514, %v1514
        %v1547 = vpack.c.b16 %v1515, %v1515
        %v1548 = vpack.c.b16 %v1516, %v1516
        %v1549 = vpack.c.b16 %v1517, %v1517
        %v1550 = vpack.c.b16 %v1518, %v1518
        %v1551 = vpack.c.b16 %v1519, %v1519
        %v1552 = vpack.c.b16 %v1520, %v1520
        %v1553 = vpack.c.b16 %v1521, %v1521
        %v1554 = vpack.c.b16 %v1522, %v1522
        %v1555 = vpack.c.b16 %v1523, %v1523
        %v1556 = vpack.c.b16 %v1524, %v1524
        %v1557 = vpack.c.b16 %v1525, %v1525
        %v1558 = vpack.c.b16 %v1526, %v1526
        %v1559 = vpack.c.b16 %v1527, %v1527
        %v1560 = vpack.c.b16 %v1528, %v1528
        %v1561 = vpack.c.b16 %v1529, %v1529
        %v1562 = vpack.c.b16 %v1530, %v1530
        %v1563 = vpack.c.b16 %v1531, %v1531
        %v1564 = vpack.c.b16 %v1532, %v1532
        %v1565 = vpack.c.b16 %v1533, %v1533
        %v1566 = vpack.c.b16 %v1534, %v1534
        %v1567 = vpack.c.b16 %v1535, %v1535
        %v1568 = vpack.c.b16 %v1536, %v1536
        %v1569 = vpack.c.b16 %v1537, %v1537
        %v1570 = vpack.c.b16 %v1538, %v1538
        %v1571 = vpack.c.b16 %v1539, %v1539
        %v1572 = vpack.c.b16 %v1540, %v1540
        %v1573 = vpack.c.b16 %v1541, %v1541
        %v1574 = vpack.c.b16 %v1542, %v1542
        %1607 = vst [vmem:[%s201 + $0x80] sm:$0xf] %v1543
        %1608 = vst [vmem:[%s201 + $0x84] sm:$0xf] %v1544
        %1609 = vst [vmem:[%s201 + $0x88] sm:$0xf] %v1545
        %1610 = vst [vmem:[%s201 + $0x8c] sm:$0xf] %v1546
        %1611 = vst [vmem:[%s201 + $0x90] sm:$0xf] %v1547
        %1612 = vst [vmem:[%s201 + $0x94] sm:$0xf] %v1548
        %1613 = vst [vmem:[%s201 + $0x98] sm:$0xf] %v1549
        %1614 = vst [vmem:[%s201 + $0x9c] sm:$0xf] %v1550
        %1615 = vst [vmem:[%s201 + $0xa0] sm:$0xf] %v1551
        %1616 = vst [vmem:[%s201 + $0xa4] sm:$0xf] %v1552
        %1617 = vst [vmem:[%s201 + $0xa8] sm:$0xf] %v1553
        %1618 = vst [vmem:[%s201 + $0xac] sm:$0xf] %v1554
        %1619 = vst [vmem:[%s201 + $0xb0] sm:$0xf] %v1555
        %1620 = vst [vmem:[%s201 + $0xb4] sm:$0xf] %v1556
        %1621 = vst [vmem:[%s201 + $0xb8] sm:$0xf] %v1557
        %1622 = vst [vmem:[%s201 + $0xbc] sm:$0xf] %v1558
        %1623 = vst [vmem:[%s201 + $0xc0] sm:$0xf] %v1559
        %1624 = vst [vmem:[%s201 + $0xc4] sm:$0xf] %v1560
        %1625 = vst [vmem:[%s201 + $0xc8] sm:$0xf] %v1561
        %1626 = vst [vmem:[%s201 + $0xcc] sm:$0xf] %v1562
        %1627 = vst [vmem:[%s201 + $0xd0] sm:$0xf] %v1563
        %1628 = vst [vmem:[%s201 + $0xd4] sm:$0xf] %v1564
        %1629 = vst [vmem:[%s201 + $0xd8] sm:$0xf] %v1565
        %1630 = vst [vmem:[%s201 + $0xdc] sm:$0xf] %v1566
        %1631 = vst [vmem:[%s201 + $0xe0] sm:$0xf] %v1567
        %1632 = vst [vmem:[%s201 + $0xe4] sm:$0xf] %v1568
        %1633 = vst [vmem:[%s201 + $0xe8] sm:$0xf] %v1569
        %1634 = vst [vmem:[%s201 + $0xec] sm:$0xf] %v1570
        %1635 = vst [vmem:[%s201 + $0xf0] sm:$0xf] %v1571
        %1636 = vst [vmem:[%s201 + $0xf4] sm:$0xf] %v1572
        %1637 = vst [vmem:[%s201 + $0xf8] sm:$0xf] %v1573
        %1638 = vst [vmem:[%s201 + $0xfc] sm:$0xf] %v1574
        %v1639 = vld [vmem:[%s201 + $0x100] sm:$0xf]
        %v1640 = vld [vmem:[%s201 + $0x104] sm:$0xf]
        %v1641 = vld [vmem:[%s201 + $0x108] sm:$0xf]
        %v1642 = vld [vmem:[%s201 + $0x10c] sm:$0xf]
        %v1643 = vld [vmem:[%s201 + $0x110] sm:$0xf]
        %v1644 = vld [vmem:[%s201 + $0x114] sm:$0xf]
        %v1645 = vld [vmem:[%s201 + $0x118] sm:$0xf]
        %v1646 = vld [vmem:[%s201 + $0x11c] sm:$0xf]
        %v1647 = vld [vmem:[%s201 + $0x120] sm:$0xf]
        %v1648 = vld [vmem:[%s201 + $0x124] sm:$0xf]
        %v1649 = vld [vmem:[%s201 + $0x128] sm:$0xf]
        %v1650 = vld [vmem:[%s201 + $0x12c] sm:$0xf]
        %v1651 = vld [vmem:[%s201 + $0x130] sm:$0xf]
        %v1652 = vld [vmem:[%s201 + $0x134] sm:$0xf]
        %v1653 = vld [vmem:[%s201 + $0x138] sm:$0xf]
        %v1654 = vld [vmem:[%s201 + $0x13c] sm:$0xf]
        %v1655 = vld [vmem:[%s201 + $0x140] sm:$0xf]
        %v1656 = vld [vmem:[%s201 + $0x144] sm:$0xf]
        %v1657 = vld [vmem:[%s201 + $0x148] sm:$0xf]
        %v1658 = vld [vmem:[%s201 + $0x14c] sm:$0xf]
        %v1659 = vld [vmem:[%s201 + $0x150] sm:$0xf]
        %v1660 = vld [vmem:[%s201 + $0x154] sm:$0xf]
        %v1661 = vld [vmem:[%s201 + $0x158] sm:$0xf]
        %v1662 = vld [vmem:[%s201 + $0x15c] sm:$0xf]
        %v1663 = vld [vmem:[%s201 + $0x160] sm:$0xf]
        %v1664 = vld [vmem:[%s201 + $0x164] sm:$0xf]
        %v1665 = vld [vmem:[%s201 + $0x168] sm:$0xf]
        %v1666 = vld [vmem:[%s201 + $0x16c] sm:$0xf]
        %v1667 = vld [vmem:[%s201 + $0x170] sm:$0xf]
        %v1668 = vld [vmem:[%s201 + $0x174] sm:$0xf]
        %v1669 = vld [vmem:[%s201 + $0x178] sm:$0xf]
        %v1670 = vld [vmem:[%s201 + $0x17c] sm:$0xf]
        %v1671 = vunpack.c.l.bf16 %v1639
        %v1672 = vunpack.c.l.bf16 %v1640
        %v1673 = vunpack.c.l.bf16 %v1641
        %v1674 = vunpack.c.l.bf16 %v1642
        %v1675 = vunpack.c.l.bf16 %v1643
        %v1676 = vunpack.c.l.bf16 %v1644
        %v1677 = vunpack.c.l.bf16 %v1645
        %v1678 = vunpack.c.l.bf16 %v1646
        %v1679 = vunpack.c.l.bf16 %v1647
        %v1680 = vunpack.c.l.bf16 %v1648
        %v1681 = vunpack.c.l.bf16 %v1649
        %v1682 = vunpack.c.l.bf16 %v1650
        %v1683 = vunpack.c.l.bf16 %v1651
        %v1684 = vunpack.c.l.bf16 %v1652
        %v1685 = vunpack.c.l.bf16 %v1653
        %v1686 = vunpack.c.l.bf16 %v1654
        %v1687 = vunpack.c.l.bf16 %v1655
        %v1688 = vunpack.c.l.bf16 %v1656
        %v1689 = vunpack.c.l.bf16 %v1657
        %v1690 = vunpack.c.l.bf16 %v1658
        %v1691 = vunpack.c.l.bf16 %v1659
        %v1692 = vunpack.c.l.bf16 %v1660
        %v1693 = vunpack.c.l.bf16 %v1661
        %v1694 = vunpack.c.l.bf16 %v1662
        %v1695 = vunpack.c.l.bf16 %v1663
        %v1696 = vunpack.c.l.bf16 %v1664
        %v1697 = vunpack.c.l.bf16 %v1665
        %v1698 = vunpack.c.l.bf16 %v1666
        %v1699 = vunpack.c.l.bf16 %v1667
        %v1700 = vunpack.c.l.bf16 %v1668
        %v1701 = vunpack.c.l.bf16 %v1669
        %v1702 = vunpack.c.l.bf16 %v1670
        %v1703 = vsub.f32 %v1671, %v1055
        %v1704 = vsub.f32 %v1672, %v1055
        %v1705 = vsub.f32 %v1673, %v1055
        %v1706 = vsub.f32 %v1674, %v1055
        %v1707 = vsub.f32 %v1675, %v1055
        %v1708 = vsub.f32 %v1676, %v1055
        %v1709 = vsub.f32 %v1677, %v1055
        %v1710 = vsub.f32 %v1678, %v1055
        %v1711 = vsub.f32 %v1679, %v1055
        %v1712 = vsub.f32 %v1680, %v1055
        %v1713 = vsub.f32 %v1681, %v1055
        %v1714 = vsub.f32 %v1682, %v1055
        %v1715 = vsub.f32 %v1683, %v1055
        %v1716 = vsub.f32 %v1684, %v1055
        %v1717 = vsub.f32 %v1685, %v1055
        %v1718 = vsub.f32 %v1686, %v1055
        %v1719 = vsub.f32 %v1687, %v1055
        %v1720 = vsub.f32 %v1688, %v1055
        %v1721 = vsub.f32 %v1689, %v1055
        %v1722 = vsub.f32 %v1690, %v1055
        %v1723 = vsub.f32 %v1691, %v1055
        %v1724 = vsub.f32 %v1692, %v1055
        %v1725 = vsub.f32 %v1693, %v1055
        %v1726 = vsub.f32 %v1694, %v1055
        %v1727 = vsub.f32 %v1695, %v1055
        %v1728 = vsub.f32 %v1696, %v1055
        %v1729 = vsub.f32 %v1697, %v1055
        %v1730 = vsub.f32 %v1698, %v1055
        %v1731 = vsub.f32 %v1699, %v1055
        %v1732 = vsub.f32 %v1700, %v1055
        %v1733 = vsub.f32 %v1701, %v1055
        %v1734 = vsub.f32 %v1702, %v1055
        %v1735 = vmul.f32 %v1703, %v1093
        %v1736 = vmul.f32 %v1704, %v1093
        %v1737 = vmul.f32 %v1705, %v1093
        %v1738 = vmul.f32 %v1706, %v1093
        %v1739 = vmul.f32 %v1707, %v1093
        %v1740 = vmul.f32 %v1708, %v1093
        %v1741 = vmul.f32 %v1709, %v1093
        %v1742 = vmul.f32 %v1710, %v1093
        %v1743 = vmul.f32 %v1711, %v1093
        %v1744 = vmul.f32 %v1712, %v1093
        %v1745 = vmul.f32 %v1713, %v1093
        %v1746 = vmul.f32 %v1714, %v1093
        %v1747 = vmul.f32 %v1715, %v1093
        %v1748 = vmul.f32 %v1716, %v1093
        %v1749 = vmul.f32 %v1717, %v1093
        %v1750 = vmul.f32 %v1718, %v1093
        %v1751 = vmul.f32 %v1719, %v1093
        %v1752 = vmul.f32 %v1720, %v1093
        %v1753 = vmul.f32 %v1721, %v1093
        %v1754 = vmul.f32 %v1722, %v1093
        %v1755 = vmul.f32 %v1723, %v1093
        %v1756 = vmul.f32 %v1724, %v1093
        %v1757 = vmul.f32 %v1725, %v1093
        %v1758 = vmul.f32 %v1726, %v1093
        %v1759 = vmul.f32 %v1727, %v1093
        %v1760 = vmul.f32 %v1728, %v1093
        %v1761 = vmul.f32 %v1729, %v1093
        %v1762 = vmul.f32 %v1730, %v1093
        %v1763 = vmul.f32 %v1731, %v1093
        %v1764 = vmul.f32 %v1732, %v1093
        %v1765 = vmul.f32 %v1733, %v1093
        %v1766 = vmul.f32 %v1734, %v1093
        %v1767 = vmax.f32 %v1735, 0.0
        %v1768 = vmax.f32 %v1736, 0.0
        %v1769 = vmax.f32 %v1737, 0.0
        %v1770 = vmax.f32 %v1738, 0.0
        %v1771 = vmax.f32 %v1739, 0.0
        %v1772 = vmax.f32 %v1740, 0.0
        %v1773 = vmax.f32 %v1741, 0.0
        %v1774 = vmax.f32 %v1742, 0.0
        %v1775 = vmax.f32 %v1743, 0.0
        %v1776 = vmax.f32 %v1744, 0.0
        %v1777 = vmax.f32 %v1745, 0.0
        %v1778 = vmax.f32 %v1746, 0.0
        %v1779 = vmax.f32 %v1747, 0.0
        %v1780 = vmax.f32 %v1748, 0.0
        %v1781 = vmax.f32 %v1749, 0.0
        %v1782 = vmax.f32 %v1750, 0.0
        %v1783 = vmax.f32 %v1751, 0.0
        %v1784 = vmax.f32 %v1752, 0.0
        %v1785 = vmax.f32 %v1753, 0.0
        %v1786 = vmax.f32 %v1754, 0.0
        %v1787 = vmax.f32 %v1755, 0.0
        %v1788 = vmax.f32 %v1756, 0.0
        %v1789 = vmax.f32 %v1757, 0.0
        %v1790 = vmax.f32 %v1758, 0.0
        %v1791 = vmax.f32 %v1759, 0.0
        %v1792 = vmax.f32 %v1760, 0.0
        %v1793 = vmax.f32 %v1761, 0.0
        %v1794 = vmax.f32 %v1762, 0.0
        %v1795 = vmax.f32 %v1763, 0.0
        %v1796 = vmax.f32 %v1764, 0.0
        %v1797 = vmax.f32 %v1765, 0.0
        %v1798 = vmax.f32 %v1766, 0.0
        %v1799 = vpack.c.bf16 %v1768, %v1767
        %v1800 = vpack.c.bf16 %v1770, %v1769
        %v1801 = vpack.c.bf16 %v1772, %v1771
        %v1802 = vpack.c.bf16 %v1774, %v1773
        %v1803 = vpack.c.bf16 %v1776, %v1775
        %v1804 = vpack.c.bf16 %v1778, %v1777
        %v1805 = vpack.c.bf16 %v1780, %v1779
        %v1806 = vpack.c.bf16 %v1782, %v1781
        %v1807 = vpack.c.bf16 %v1784, %v1783
        %v1808 = vpack.c.bf16 %v1786, %v1785
        %v1809 = vpack.c.bf16 %v1788, %v1787
        %v1810 = vpack.c.bf16 %v1790, %v1789
        %v1811 = vpack.c.bf16 %v1792, %v1791
        %v1812 = vpack.c.bf16 %v1794, %v1793
        %v1813 = vpack.c.bf16 %v1796, %v1795
        %v1814 = vpack.c.bf16 %v1798, %v1797
        %v1831 = vunpack.c.l.b16 %v1799
        %v1832 = vunpack.c.h.b16 %v1799
        %v1833 = vunpack.c.l.b16 %v1800
        %v1834 = vunpack.c.h.b16 %v1800
        %v1835 = vunpack.c.l.b16 %v1801
        %v1836 = vunpack.c.h.b16 %v1801
        %v1837 = vunpack.c.l.b16 %v1802
        %v1838 = vunpack.c.h.b16 %v1802
        %v1839 = vunpack.c.l.b16 %v1803
        %v1840 = vunpack.c.h.b16 %v1803
        %v1841 = vunpack.c.l.b16 %v1804
        %v1842 = vunpack.c.h.b16 %v1804
        %v1843 = vunpack.c.l.b16 %v1805
        %v1844 = vunpack.c.h.b16 %v1805
        %v1845 = vunpack.c.l.b16 %v1806
        %v1846 = vunpack.c.h.b16 %v1806
        %v1847 = vunpack.c.l.b16 %v1807
        %v1848 = vunpack.c.h.b16 %v1807
        %v1849 = vunpack.c.l.b16 %v1808
        %v1850 = vunpack.c.h.b16 %v1808
        %v1851 = vunpack.c.l.b16 %v1809
        %v1852 = vunpack.c.h.b16 %v1809
        %v1853 = vunpack.c.l.b16 %v1810
        %v1854 = vunpack.c.h.b16 %v1810
        %v1855 = vunpack.c.l.b16 %v1811
        %v1856 = vunpack.c.h.b16 %v1811
        %v1857 = vunpack.c.l.b16 %v1812
        %v1858 = vunpack.c.h.b16 %v1812
        %v1859 = vunpack.c.l.b16 %v1813
        %v1860 = vunpack.c.h.b16 %v1813
        %v1861 = vunpack.c.l.b16 %v1814
        %v1862 = vunpack.c.h.b16 %v1814
        %v1863 = vpack.c.b16 %v1831, %v1831
        %v1864 = vpack.c.b16 %v1832, %v1832
        %v1865 = vpack.c.b16 %v1833, %v1833
        %v1866 = vpack.c.b16 %v1834, %v1834
        %v1867 = vpack.c.b16 %v1835, %v1835
        %v1868 = vpack.c.b16 %v1836, %v1836
        %v1869 = vpack.c.b16 %v1837, %v1837
        %v1870 = vpack.c.b16 %v1838, %v1838
        %v1871 = vpack.c.b16 %v1839, %v1839
        %v1872 = vpack.c.b16 %v1840, %v1840
        %v1873 = vpack.c.b16 %v1841, %v1841
        %v1874 = vpack.c.b16 %v1842, %v1842
        %v1875 = vpack.c.b16 %v1843, %v1843
        %v1876 = vpack.c.b16 %v1844, %v1844
        %v1877 = vpack.c.b16 %v1845, %v1845
        %v1878 = vpack.c.b16 %v1846, %v1846
        %v1879 = vpack.c.b16 %v1847, %v1847
        %v1880 = vpack.c.b16 %v1848, %v1848
        %v1881 = vpack.c.b16 %v1849, %v1849
        %v1882 = vpack.c.b16 %v1850, %v1850
        %v1883 = vpack.c.b16 %v1851, %v1851
        %v1884 = vpack.c.b16 %v1852, %v1852
        %v1885 = vpack.c.b16 %v1853, %v1853
        %v1886 = vpack.c.b16 %v1854, %v1854
        %v1887 = vpack.c.b16 %v1855, %v1855
        %v1888 = vpack.c.b16 %v1856, %v1856
        %v1889 = vpack.c.b16 %v1857, %v1857
        %v1890 = vpack.c.b16 %v1858, %v1858
        %v1891 = vpack.c.b16 %v1859, %v1859
        %v1892 = vpack.c.b16 %v1860, %v1860
        %v1893 = vpack.c.b16 %v1861, %v1861
        %v1894 = vpack.c.b16 %v1862, %v1862
        %1927 = vst [vmem:[%s201 + $0x100] sm:$0xf] %v1863
        %1928 = vst [vmem:[%s201 + $0x104] sm:$0xf] %v1864
        %1929 = vst [vmem:[%s201 + $0x108] sm:$0xf] %v1865
        %1930 = vst [vmem:[%s201 + $0x10c] sm:$0xf] %v1866
        %1931 = vst [vmem:[%s201 + $0x110] sm:$0xf] %v1867
        %1932 = vst [vmem:[%s201 + $0x114] sm:$0xf] %v1868
        %1933 = vst [vmem:[%s201 + $0x118] sm:$0xf] %v1869
        %1934 = vst [vmem:[%s201 + $0x11c] sm:$0xf] %v1870
        %1935 = vst [vmem:[%s201 + $0x120] sm:$0xf] %v1871
        %1936 = vst [vmem:[%s201 + $0x124] sm:$0xf] %v1872
        %1937 = vst [vmem:[%s201 + $0x128] sm:$0xf] %v1873
        %1938 = vst [vmem:[%s201 + $0x12c] sm:$0xf] %v1874
        %1939 = vst [vmem:[%s201 + $0x130] sm:$0xf] %v1875
        %1940 = vst [vmem:[%s201 + $0x134] sm:$0xf] %v1876
        %1941 = vst [vmem:[%s201 + $0x138] sm:$0xf] %v1877
        %1942 = vst [vmem:[%s201 + $0x13c] sm:$0xf] %v1878
        %1943 = vst [vmem:[%s201 + $0x140] sm:$0xf] %v1879
        %1944 = vst [vmem:[%s201 + $0x144] sm:$0xf] %v1880
        %1945 = vst [vmem:[%s201 + $0x148] sm:$0xf] %v1881
        %1946 = vst [vmem:[%s201 + $0x14c] sm:$0xf] %v1882
        %1947 = vst [vmem:[%s201 + $0x150] sm:$0xf] %v1883
        %1948 = vst [vmem:[%s201 + $0x154] sm:$0xf] %v1884
        %1949 = vst [vmem:[%s201 + $0x158] sm:$0xf] %v1885
        %1950 = vst [vmem:[%s201 + $0x15c] sm:$0xf] %v1886
        %1951 = vst [vmem:[%s201 + $0x160] sm:$0xf] %v1887
        %1952 = vst [vmem:[%s201 + $0x164] sm:$0xf] %v1888
        %1953 = vst [vmem:[%s201 + $0x168] sm:$0xf] %v1889
        %1954 = vst [vmem:[%s201 + $0x16c] sm:$0xf] %v1890
        %1955 = vst [vmem:[%s201 + $0x170] sm:$0xf] %v1891
        %1956 = vst [vmem:[%s201 + $0x174] sm:$0xf] %v1892
        %1957 = vst [vmem:[%s201 + $0x178] sm:$0xf] %v1893
        %1958 = vst [vmem:[%s201 + $0x17c] sm:$0xf] %v1894
        %v1959 = vld [vmem:[%s201 + $0x180] sm:$0xf]
        %v1960 = vld [vmem:[%s201 + $0x184] sm:$0xf]
        %v1961 = vld [vmem:[%s201 + $0x188] sm:$0xf]
        %v1962 = vld [vmem:[%s201 + $0x18c] sm:$0xf]
        %v1963 = vld [vmem:[%s201 + $0x190] sm:$0xf]
        %v1964 = vld [vmem:[%s201 + $0x194] sm:$0xf]
        %v1965 = vld [vmem:[%s201 + $0x198] sm:$0xf]
        %v1966 = vld [vmem:[%s201 + $0x19c] sm:$0xf]
        %v1967 = vld [vmem:[%s201 + $0x1a0] sm:$0xf]
        %v1968 = vld [vmem:[%s201 + $0x1a4] sm:$0xf]
        %v1969 = vld [vmem:[%s201 + $0x1a8] sm:$0xf]
        %v1970 = vld [vmem:[%s201 + $0x1ac] sm:$0xf]
        %v1971 = vld [vmem:[%s201 + $0x1b0] sm:$0xf]
        %v1972 = vld [vmem:[%s201 + $0x1b4] sm:$0xf]
        %v1973 = vld [vmem:[%s201 + $0x1b8] sm:$0xf]
        %v1974 = vld [vmem:[%s201 + $0x1bc] sm:$0xf]
        %v1975 = vld [vmem:[%s201 + $0x1c0] sm:$0xf]
        %v1976 = vld [vmem:[%s201 + $0x1c4] sm:$0xf]
        %v1977 = vld [vmem:[%s201 + $0x1c8] sm:$0xf]
        %v1978 = vld [vmem:[%s201 + $0x1cc] sm:$0xf]
        %v1979 = vld [vmem:[%s201 + $0x1d0] sm:$0xf]
        %v1980 = vld [vmem:[%s201 + $0x1d4] sm:$0xf]
        %v1981 = vld [vmem:[%s201 + $0x1d8] sm:$0xf]
        %v1982 = vld [vmem:[%s201 + $0x1dc] sm:$0xf]
        %v1983 = vld [vmem:[%s201 + $0x1e0] sm:$0xf]
        %v1984 = vld [vmem:[%s201 + $0x1e4] sm:$0xf]
        %v1985 = vld [vmem:[%s201 + $0x1e8] sm:$0xf]
        %v1986 = vld [vmem:[%s201 + $0x1ec] sm:$0xf]
        %v1987 = vld [vmem:[%s201 + $0x1f0] sm:$0xf]
        %v1988 = vld [vmem:[%s201 + $0x1f4] sm:$0xf]
        %v1989 = vld [vmem:[%s201 + $0x1f8] sm:$0xf]
        %v1990 = vld [vmem:[%s201 + $0x1fc] sm:$0xf]
        %v1991 = vunpack.c.l.bf16 %v1959
        %v1992 = vunpack.c.l.bf16 %v1960
        %v1993 = vunpack.c.l.bf16 %v1961
        %v1994 = vunpack.c.l.bf16 %v1962
        %v1995 = vunpack.c.l.bf16 %v1963
        %v1996 = vunpack.c.l.bf16 %v1964
        %v1997 = vunpack.c.l.bf16 %v1965
        %v1998 = vunpack.c.l.bf16 %v1966
        %v1999 = vunpack.c.l.bf16 %v1967
        %v2000 = vunpack.c.l.bf16 %v1968
        %v2001 = vunpack.c.l.bf16 %v1969
        %v2002 = vunpack.c.l.bf16 %v1970
        %v2003 = vunpack.c.l.bf16 %v1971
        %v2004 = vunpack.c.l.bf16 %v1972
        %v2005 = vunpack.c.l.bf16 %v1973
        %v2006 = vunpack.c.l.bf16 %v1974
        %v2007 = vunpack.c.l.bf16 %v1975
        %v2008 = vunpack.c.l.bf16 %v1976
        %v2009 = vunpack.c.l.bf16 %v1977
        %v2010 = vunpack.c.l.bf16 %v1978
        %v2011 = vunpack.c.l.bf16 %v1979
        %v2012 = vunpack.c.l.bf16 %v1980
        %v2013 = vunpack.c.l.bf16 %v1981
        %v2014 = vunpack.c.l.bf16 %v1982
        %v2015 = vunpack.c.l.bf16 %v1983
        %v2016 = vunpack.c.l.bf16 %v1984
        %v2017 = vunpack.c.l.bf16 %v1985
        %v2018 = vunpack.c.l.bf16 %v1986
        %v2019 = vunpack.c.l.bf16 %v1987
        %v2020 = vunpack.c.l.bf16 %v1988
        %v2021 = vunpack.c.l.bf16 %v1989
        %v2022 = vunpack.c.l.bf16 %v1990
        %v2023 = vsub.f32 %v1991, %v1055
        %v2024 = vsub.f32 %v1992, %v1055
        %v2025 = vsub.f32 %v1993, %v1055
        %v2026 = vsub.f32 %v1994, %v1055
        %v2027 = vsub.f32 %v1995, %v1055
        %v2028 = vsub.f32 %v1996, %v1055
        %v2029 = vsub.f32 %v1997, %v1055
        %v2030 = vsub.f32 %v1998, %v1055
        %v2031 = vsub.f32 %v1999, %v1055
        %v2032 = vsub.f32 %v2000, %v1055
        %v2033 = vsub.f32 %v2001, %v1055
        %v2034 = vsub.f32 %v2002, %v1055
        %v2035 = vsub.f32 %v2003, %v1055
        %v2036 = vsub.f32 %v2004, %v1055
        %v2037 = vsub.f32 %v2005, %v1055
        %v2038 = vsub.f32 %v2006, %v1055
        %v2039 = vsub.f32 %v2007, %v1055
        %v2040 = vsub.f32 %v2008, %v1055
        %v2041 = vsub.f32 %v2009, %v1055
        %v2042 = vsub.f32 %v2010, %v1055
        %v2043 = vsub.f32 %v2011, %v1055
        %v2044 = vsub.f32 %v2012, %v1055
        %v2045 = vsub.f32 %v2013, %v1055
        %v2046 = vsub.f32 %v2014, %v1055
        %v2047 = vsub.f32 %v2015, %v1055
        %v2048 = vsub.f32 %v2016, %v1055
        %v2049 = vsub.f32 %v2017, %v1055
        %v2050 = vsub.f32 %v2018, %v1055
        %v2051 = vsub.f32 %v2019, %v1055
        %v2052 = vsub.f32 %v2020, %v1055
        %v2053 = vsub.f32 %v2021, %v1055
        %v2054 = vsub.f32 %v2022, %v1055
        %v2055 = vmul.f32 %v2023, %v1093
        %v2056 = vmul.f32 %v2024, %v1093
        %v2057 = vmul.f32 %v2025, %v1093
        %v2058 = vmul.f32 %v2026, %v1093
        %v2059 = vmul.f32 %v2027, %v1093
        %v2060 = vmul.f32 %v2028, %v1093
        %v2061 = vmul.f32 %v2029, %v1093
        %v2062 = vmul.f32 %v2030, %v1093
        %v2063 = vmul.f32 %v2031, %v1093
        %v2064 = vmul.f32 %v2032, %v1093
        %v2065 = vmul.f32 %v2033, %v1093
        %v2066 = vmul.f32 %v2034, %v1093
        %v2067 = vmul.f32 %v2035, %v1093
        %v2068 = vmul.f32 %v2036, %v1093
        %v2069 = vmul.f32 %v2037, %v1093
        %v2070 = vmul.f32 %v2038, %v1093
        %v2071 = vmul.f32 %v2039, %v1093
        %v2072 = vmul.f32 %v2040, %v1093
        %v2073 = vmul.f32 %v2041, %v1093
        %v2074 = vmul.f32 %v2042, %v1093
        %v2075 = vmul.f32 %v2043, %v1093
        %v2076 = vmul.f32 %v2044, %v1093
        %v2077 = vmul.f32 %v2045, %v1093
        %v2078 = vmul.f32 %v2046, %v1093
        %v2079 = vmul.f32 %v2047, %v1093
        %v2080 = vmul.f32 %v2048, %v1093
        %v2081 = vmul.f32 %v2049, %v1093
        %v2082 = vmul.f32 %v2050, %v1093
        %v2083 = vmul.f32 %v2051, %v1093
        %v2084 = vmul.f32 %v2052, %v1093
        %v2085 = vmul.f32 %v2053, %v1093
        %v2086 = vmul.f32 %v2054, %v1093
        %v2087 = vmax.f32 %v2055, 0.0
        %v2088 = vmax.f32 %v2056, 0.0
        %v2089 = vmax.f32 %v2057, 0.0
        %v2090 = vmax.f32 %v2058, 0.0
        %v2091 = vmax.f32 %v2059, 0.0
        %v2092 = vmax.f32 %v2060, 0.0
        %v2093 = vmax.f32 %v2061, 0.0
        %v2094 = vmax.f32 %v2062, 0.0
        %v2095 = vmax.f32 %v2063, 0.0
        %v2096 = vmax.f32 %v2064, 0.0
        %v2097 = vmax.f32 %v2065, 0.0
        %v2098 = vmax.f32 %v2066, 0.0
        %v2099 = vmax.f32 %v2067, 0.0
        %v2100 = vmax.f32 %v2068, 0.0
        %v2101 = vmax.f32 %v2069, 0.0
        %v2102 = vmax.f32 %v2070, 0.0
        %v2103 = vmax.f32 %v2071, 0.0
        %v2104 = vmax.f32 %v2072, 0.0
        %v2105 = vmax.f32 %v2073, 0.0
        %v2106 = vmax.f32 %v2074, 0.0
        %v2107 = vmax.f32 %v2075, 0.0
        %v2108 = vmax.f32 %v2076, 0.0
        %v2109 = vmax.f32 %v2077, 0.0
        %v2110 = vmax.f32 %v2078, 0.0
        %v2111 = vmax.f32 %v2079, 0.0
        %v2112 = vmax.f32 %v2080, 0.0
        %v2113 = vmax.f32 %v2081, 0.0
        %v2114 = vmax.f32 %v2082, 0.0
        %v2115 = vmax.f32 %v2083, 0.0
        %v2116 = vmax.f32 %v2084, 0.0
        %v2117 = vmax.f32 %v2085, 0.0
        %v2118 = vmax.f32 %v2086, 0.0
        %v2119 = vpack.c.bf16 %v2088, %v2087
        %v2120 = vpack.c.bf16 %v2090, %v2089
        %v2121 = vpack.c.bf16 %v2092, %v2091
        %v2122 = vpack.c.bf16 %v2094, %v2093
        %v2123 = vpack.c.bf16 %v2096, %v2095
        %v2124 = vpack.c.bf16 %v2098, %v2097
        %v2125 = vpack.c.bf16 %v2100, %v2099
        %v2126 = vpack.c.bf16 %v2102, %v2101
        %v2127 = vpack.c.bf16 %v2104, %v2103
        %v2128 = vpack.c.bf16 %v2106, %v2105
        %v2129 = vpack.c.bf16 %v2108, %v2107
        %v2130 = vpack.c.bf16 %v2110, %v2109
        %v2131 = vpack.c.bf16 %v2112, %v2111
        %v2132 = vpack.c.bf16 %v2114, %v2113
        %v2133 = vpack.c.bf16 %v2116, %v2115
        %v2134 = vpack.c.bf16 %v2118, %v2117
        %v2151 = vunpack.c.l.b16 %v2119
        %v2152 = vunpack.c.h.b16 %v2119
        %v2153 = vunpack.c.l.b16 %v2120
        %v2154 = vunpack.c.h.b16 %v2120
        %v2155 = vunpack.c.l.b16 %v2121
        %v2156 = vunpack.c.h.b16 %v2121
        %v2157 = vunpack.c.l.b16 %v2122
        %v2158 = vunpack.c.h.b16 %v2122
        %v2159 = vunpack.c.l.b16 %v2123
        %v2160 = vunpack.c.h.b16 %v2123
        %v2161 = vunpack.c.l.b16 %v2124
        %v2162 = vunpack.c.h.b16 %v2124
        %v2163 = vunpack.c.l.b16 %v2125
        %v2164 = vunpack.c.h.b16 %v2125
        %v2165 = vunpack.c.l.b16 %v2126
        %v2166 = vunpack.c.h.b16 %v2126
        %v2167 = vunpack.c.l.b16 %v2127
        %v2168 = vunpack.c.h.b16 %v2127
        %v2169 = vunpack.c.l.b16 %v2128
        %v2170 = vunpack.c.h.b16 %v2128
        %v2171 = vunpack.c.l.b16 %v2129
        %v2172 = vunpack.c.h.b16 %v2129
        %v2173 = vunpack.c.l.b16 %v2130
        %v2174 = vunpack.c.h.b16 %v2130
        %v2175 = vunpack.c.l.b16 %v2131
        %v2176 = vunpack.c.h.b16 %v2131
        %v2177 = vunpack.c.l.b16 %v2132
        %v2178 = vunpack.c.h.b16 %v2132
        %v2179 = vunpack.c.l.b16 %v2133
        %v2180 = vunpack.c.h.b16 %v2133
        %v2181 = vunpack.c.l.b16 %v2134
        %v2182 = vunpack.c.h.b16 %v2134
        %v2183 = vpack.c.b16 %v2151, %v2151
        %v2184 = vpack.c.b16 %v2152, %v2152
        %v2185 = vpack.c.b16 %v2153, %v2153
        %v2186 = vpack.c.b16 %v2154, %v2154
        %v2187 = vpack.c.b16 %v2155, %v2155
        %v2188 = vpack.c.b16 %v2156, %v2156
        %v2189 = vpack.c.b16 %v2157, %v2157
        %v2190 = vpack.c.b16 %v2158, %v2158
        %v2191 = vpack.c.b16 %v2159, %v2159
        %v2192 = vpack.c.b16 %v2160, %v2160
        %v2193 = vpack.c.b16 %v2161, %v2161
        %v2194 = vpack.c.b16 %v2162, %v2162
        %v2195 = vpack.c.b16 %v2163, %v2163
        %v2196 = vpack.c.b16 %v2164, %v2164
        %v2197 = vpack.c.b16 %v2165, %v2165
        %v2198 = vpack.c.b16 %v2166, %v2166
        %v2199 = vpack.c.b16 %v2167, %v2167
        %v2200 = vpack.c.b16 %v2168, %v2168
        %v2201 = vpack.c.b16 %v2169, %v2169
        %v2202 = vpack.c.b16 %v2170, %v2170
        %v2203 = vpack.c.b16 %v2171, %v2171
        %v2204 = vpack.c.b16 %v2172, %v2172
        %v2205 = vpack.c.b16 %v2173, %v2173
        %v2206 = vpack.c.b16 %v2174, %v2174
        %v2207 = vpack.c.b16 %v2175, %v2175
        %v2208 = vpack.c.b16 %v2176, %v2176
        %v2209 = vpack.c.b16 %v2177, %v2177
        %v2210 = vpack.c.b16 %v2178, %v2178
        %v2211 = vpack.c.b16 %v2179, %v2179
        %v2212 = vpack.c.b16 %v2180, %v2180
        %v2213 = vpack.c.b16 %v2181, %v2181
        %v2214 = vpack.c.b16 %v2182, %v2182
        %2247 = vst [vmem:[%s201 + $0x180] sm:$0xf] %v2183
        %2248 = vst [vmem:[%s201 + $0x184] sm:$0xf] %v2184
        %2249 = vst [vmem:[%s201 + $0x188] sm:$0xf] %v2185
        %2250 = vst [vmem:[%s201 + $0x18c] sm:$0xf] %v2186
        %2251 = vst [vmem:[%s201 + $0x190] sm:$0xf] %v2187
        %2252 = vst [vmem:[%s201 + $0x194] sm:$0xf] %v2188
        %2253 = vst [vmem:[%s201 + $0x198] sm:$0xf] %v2189
        %2254 = vst [vmem:[%s201 + $0x19c] sm:$0xf] %v2190
        %2255 = vst [vmem:[%s201 + $0x1a0] sm:$0xf] %v2191
        %2256 = vst [vmem:[%s201 + $0x1a4] sm:$0xf] %v2192
        %2257 = vst [vmem:[%s201 + $0x1a8] sm:$0xf] %v2193
        %2258 = vst [vmem:[%s201 + $0x1ac] sm:$0xf] %v2194
        %2259 = vst [vmem:[%s201 + $0x1b0] sm:$0xf] %v2195
        %2260 = vst [vmem:[%s201 + $0x1b4] sm:$0xf] %v2196
        %2261 = vst [vmem:[%s201 + $0x1b8] sm:$0xf] %v2197
        %2262 = vst [vmem:[%s201 + $0x1bc] sm:$0xf] %v2198
        %2263 = vst [vmem:[%s201 + $0x1c0] sm:$0xf] %v2199
        %2264 = vst [vmem:[%s201 + $0x1c4] sm:$0xf] %v2200
        %2265 = vst [vmem:[%s201 + $0x1c8] sm:$0xf] %v2201
        %2266 = vst [vmem:[%s201 + $0x1cc] sm:$0xf] %v2202
        %2267 = vst [vmem:[%s201 + $0x1d0] sm:$0xf] %v2203
        %2268 = vst [vmem:[%s201 + $0x1d4] sm:$0xf] %v2204
        %2269 = vst [vmem:[%s201 + $0x1d8] sm:$0xf] %v2205
        %2270 = vst [vmem:[%s201 + $0x1dc] sm:$0xf] %v2206
        %2271 = vst [vmem:[%s201 + $0x1e0] sm:$0xf] %v2207
        %2272 = vst [vmem:[%s201 + $0x1e4] sm:$0xf] %v2208
        %2273 = vst [vmem:[%s201 + $0x1e8] sm:$0xf] %v2209
        %2274 = vst [vmem:[%s201 + $0x1ec] sm:$0xf] %v2210
        %2275 = vst [vmem:[%s201 + $0x1f0] sm:$0xf] %v2211
        %2276 = vst [vmem:[%s201 + $0x1f4] sm:$0xf] %v2212
        %2277 = vst [vmem:[%s201 + $0x1f8] sm:$0xf] %v2213
        %2278 = vst [vmem:[%s201 + $0x1fc] sm:$0xf] %v2214
      $region40: #{_lambda_.12} parent=31 // pred_fallthru
        _
      %p2279 = scmp.lt.s32.totalorder %s18, 1
      %s2280 = scalar_select %p2279, %s18, 1
      %s2281 = smul.addr %s2280, 128
      %s2282 = smul.addr %s2281, 4
      %s2283 = scalar_lea.vmem %s3, %s2282
      // Predicated region
      $region41: #{_lambda_.12} parent=31 // pred_check
        %p2284 = pneg %p114
      $region42: #{_lambda_.12} parent=31 // pred_check_branch
        %2286 = sbr.rel (%p2284) target = $region44
      $region43: #{_lambda_.12} parent=31 // pred_region
        _
      $region44: #{_lambda_.12} parent=31 // pred_fallthru
        _
    $region32: #{_lambda_.12} parent=5 // pred_fallthru
      _
    %p2287 = scmp.le.s32.totalorder 2, %s9
    // Predicated region
    $region45: #{_lambda_.12} parent=5 // pred_check
      %p2288 = pneg %p2287
    $region46: #{_lambda_.12} parent=5 // pred_check_branch
      %2290 = sbr.rel (%p2288) target = $region48
    $region47: #{_lambda_.12} parent=5 // pred_region
      %s2291 = ssub.s32 %s9, 2
      // Predicated region
      $region49: #{_lambda_.12} parent=47 // pred_check
        %p2292 = pneg %p120
      $region50: #{_lambda_.12} parent=47 // pred_check_branch
        %2294 = sbr.rel (%p2292) target = $region52
      $region51: #{_lambda_.12} parent=47 // pred_region
        %p2295 = scmp.lt.s32.totalorder %s20, 1
        %s2296 = scalar_select %p2295, %s20, 1
        %s2297 = smul.addr %s2296, 128
        %s2298 = smul.addr %s2297, 4
        %s2299 = scalar_lea.vmem %s3, %s2298
      $region52: #{_lambda_.12} parent=47 // pred_fallthru
        _
    $region48: #{_lambda_.12} parent=5 // pred_fallthru
      _
  $region6: #{_lambda_.12} parent=0 // loop_footer
    %s13 = sadd.s32 1, %s9
  $region7: #{_lambda_.12} parent=0 // loop_footer_branch
    %8 = sbr.rel target = $region3
  $region8: #{_lambda_.12} parent=0 // loop_exit
    _

// kernel: _lambda_.13
$region0: #{_lambda_.13}
  #allocation0 [shape = 'u32[]', space=smem, size = 0x4, offset = 0x4, fixed_abs, tag = 'smem constant byte address 0x4 - core index']
  #allocation1 [shape = 'u32[144,128]{1,0:T(1,128)}', space=vmem, size = 0x12000, scoped, tag = 'internal scratch']
  %s0 = inlined_call_operand.vmem [shape: bf16[2,256,128], index: 0, kind: input, shape index: {}]
  %s1 = inlined_call_operand.vmem [shape: bf16[128,128], index: 1, kind: input, shape index: {}]
  %s2 = inlined_call_operand.vmem [shape: f32[1,128], index: 2, kind: input, shape index: {}]
  %s3 = inlined_call_operand.vmem [shape: bf16[2,256,128], index: 3, kind: output, shape index: {}]
  %s4 = sld [smem:[#allocation0]]
  $region45: #{_lambda_.13} parent=0
    _
  %s6 = ssub.s32 1, %s4
  %s7 = scalar_select 0, %s6, %s4
  loop: start=0, step=1, limit=4
  $region2: #{_lambda_.13} parent=0 // loop_pre_header
    _
  $region3: #{_lambda_.13} parent=0 // loop_header
    %s9 = sphi 0, %s13
    %p10 = scmp.ge.s32.totalorder %s9, 4
    %s16 = sphi 0, %s28
    %s17 = sphi 0, %s24
    %s18 = sphi 0, %s16
    %s19 = sphi 0, %s17
    %s20 = sphi 0, %s18
    %s21 = sphi 0, %s19
    %s33 = sphi 0, %s35
    %s36 = sphi 0, %s33
    %s37 = sphi 0, %s36
    %s53 = sphi 0, %s37
    %s57 = sphi 0, %s57
    %s59 = sphi 0, %s57
    %s60 = sphi 0, %s59
    %s74 = sphi 0, %s60
    %s78 = sphi 0, %s78
    %s80 = sphi 0, %s78
    %s81 = sphi 0, %s80
    %s95 = sphi 0, %s81
    %s101 = sphi 0, %s103
    %s104 = sphi 0, %s101
    %s105 = sphi 0, %s104
    %s121 = sphi 0, %s105
  $region4: #{_lambda_.13} parent=0 // loop_header_branch
    %12 = sbr.rel (%p10) target = $region8
  $region5: #{_lambda_.13} parent=0 // loop_body
    %s14 = ssub.s32 %s9, 1
    %s15 = ssub.s32 %s9, 2
    %s22 = sadd.s32 1, %s17
    %p23 = scmp.ge.s32.totalorder %s22, 1
    %s24 = scalar_select %p23, 0, %s22
    %s25 = sadd.s32 1, %s16
    %s26 = scalar_select %p23, %s25, %s16
    %p27 = scmp.ge.s32.totalorder %s26, 2
    %s28 = scalar_select %p27, 0, %s26
    %s29 = ssub.s32 %s16, %s28
    %s30 = ssub.s32 %s17, %s24
    %s31 = sor.u32 %s29, %s30
    %p32 = scmp.eq.s32.totalorder %s31, 0
    %s34 = sadd.s32 %s33, 1
    %s35 = scalar_select %p32, %s33, %s34
    %p38 = pneg %p32
    %p39 = scmp.eq.s32.totalorder %s9, 1
    %p40 = por %p38, %p39
    %p41 = scmp.ne.s32.totalorder %s33, %s36
    %p42 = scmp.eq.s32.totalorder %s9, 0
    %p43 = por %p41, %p42
    %p44 = scmp.ne.s32.totalorder %s33, %s36
    %p45 = scmp.eq.s32.totalorder %s14, 1
    %p46 = por %p44, %p45
    %p47 = scmp.ne.s32.totalorder %s36, %s37
    %p48 = scmp.eq.s32.totalorder %s14, 0
    %p49 = por %p47, %p48
    %p50 = scmp.ne.s32.totalorder %s36, %s37
    %p51 = scmp.eq.s32.totalorder %s15, 1
    %p52 = por %p50, %p51
    %p54 = scmp.ne.s32.totalorder %s37, %s53
    %p55 = scmp.eq.s32.totalorder %s15, 0
    %p56 = por %p54, %p55
    %s58 = sadd.s32 %s57, 1
    %p61 = scmp.eq.s32.totalorder %s9, 1
    %p62 = scmp.ne.s32.totalorder %s57, %s59
    %p63 = scmp.eq.s32.totalorder %s9, 0
    %p64 = por %p62, %p63
    %p65 = scmp.ne.s32.totalorder %s57, %s59
    %p66 = scmp.eq.s32.totalorder %s14, 1
    %p67 = por %p65, %p66
    %p68 = scmp.ne.s32.totalorder %s59, %s60
    %p69 = scmp.eq.s32.totalorder %s14, 0
    %p70 = por %p68, %p69
    %p71 = scmp.ne.s32.totalorder %s59, %s60
    %p72 = scmp.eq.s32.totalorder %s15, 1
    %p73 = por %p71, %p72
    %p75 = scmp.ne.s32.totalorder %s60, %s74
    %p76 = scmp.eq.s32.totalorder %s15, 0
    %p77 = por %p75, %p76
    %s79 = sadd.s32 %s78, 1
    %p82 = scmp.eq.s32.totalorder %s9, 1
    %p83 = scmp.ne.s32.totalorder %s78, %s80
    %p84 = scmp.eq.s32.totalorder %s9, 0
    %p85 = por %p83, %p84
    %p86 = scmp.ne.s32.totalorder %s78, %s80
    %p87 = scmp.eq.s32.totalorder %s14, 1
    %p88 = por %p86, %p87
    %p89 = scmp.ne.s32.totalorder %s80, %s81
    %p90 = scmp.eq.s32.totalorder %s14, 0
    %p91 = por %p89, %p90
    %p92 = scmp.ne.s32.totalorder %s80, %s81
    %p93 = scmp.eq.s32.totalorder %s15, 1
    %p94 = por %p92, %p93
    %p96 = scmp.ne.s32.totalorder %s81, %s95
    %p97 = scmp.eq.s32.totalorder %s15, 0
    %p98 = por %p96, %p97
    %s99 = ssub.s32 %s16, %s28
    %p100 = scmp.eq.s32.totalorder %s99, 0
    %s102 = sadd.s32 %s101, 1
    %s103 = scalar_select %p100, %s101, %s102
    %p106 = pneg %p100
    %p107 = scmp.eq.s32.totalorder %s9, 1
    %p108 = por %p106, %p107
    %p109 = scmp.ne.s32.totalorder %s101, %s104
    %p110 = scmp.eq.s32.totalorder %s9, 0
    %p111 = por %p109, %p110
    %p112 = scmp.ne.s32.totalorder %s101, %s104
    %p113 = scmp.eq.s32.totalorder %s14, 1
    %p114 = por %p112, %p113
    %p115 = scmp.ne.s32.totalorder %s104, %s105
    %p116 = scmp.eq.s32.totalorder %s14, 0
    %p117 = por %p115, %p116
    %p118 = scmp.ne.s32.totalorder %s104, %s105
    %p119 = scmp.eq.s32.totalorder %s15, 1
    %p120 = por %p118, %p119
    %p122 = scmp.ne.s32.totalorder %s105, %s121
    %p123 = scmp.eq.s32.totalorder %s15, 0
    %p124 = por %p122, %p123
    %p125 = scmp.le.s32.totalorder 1, %s9
    %p126 = scmp.lt.s32.totalorder %s9, 3
    %p127 = pnand %p125, %p126
    %p128 = pneg %p127
    // Predicated region
    $region9: #{_lambda_.13} parent=5 // pred_check
      _
    $region10: #{_lambda_.13} parent=5 // pred_check_branch
      %130 = sbr.rel (%p127) target = $region12
    $region11: #{_lambda_.13} parent=5 // pred_region
      %s131 = ssub.s32 %s9, 1
      // Predicated region
      $region13: #{_lambda_.13} parent=11 // pred_check
        %p132 = pneg %p70
      $region14: #{_lambda_.13} parent=11 // pred_check_branch
        %134 = sbr.rel (%p132) target = $region16
      $region15: #{_lambda_.13} parent=11 // pred_region
        _
      $region16: #{_lambda_.13} parent=11 // pred_fallthru
        _
      // Predicated region
      $region17: #{_lambda_.13} parent=11 // pred_check
        %p135 = pneg %p91
      $region18: #{_lambda_.13} parent=11 // pred_check_branch
        %137 = sbr.rel (%p135) target = $region20
      $region19: #{_lambda_.13} parent=11 // pred_region
        _
      $region20: #{_lambda_.13} parent=11 // pred_fallthru
        _
    $region12: #{_lambda_.13} parent=5 // pred_fallthru
      _
    %p138 = scmp.lt.s32.totalorder %s9, 2
    // Predicated region
    $region21: #{_lambda_.13} parent=5 // pred_check
      %p139 = pneg %p138
    $region22: #{_lambda_.13} parent=5 // pred_check_branch
      %141 = sbr.rel (%p139) target = $region24
    $region23: #{_lambda_.13} parent=5 // pred_region
      // Predicated region
      $region25: #{_lambda_.13} parent=23 // pred_check
        %p142 = pneg %p43
      $region26: #{_lambda_.13} parent=23 // pred_check_branch
        %144 = sbr.rel (%p142) target = $region28
      $region27: #{_lambda_.13} parent=23 // pred_region
        %s145 = smul.u32 32, %s17
        %p146 = scmp.lt.s32.totalorder %s16, 1
        %s147 = scalar_select %p146, %s16, 1
        %p148 = scmp.lt.s32.totalorder %s145, 31
        %s149 = scalar_select %p148, %s145, 31
        %s150 = smul.addr %s147, 32
        %s151 = sadd.s32 %s149, %s150
        %s152 = smul.addr %s151, 4
        %s153 = scalar_lea.vmem %s0, %s152
        %s154 = smul.u32 32, %s17
      $region28: #{_lambda_.13} parent=23 // pred_fallthru
        _
    $region24: #{_lambda_.13} parent=5 // pred_fallthru
      _
    %p155 = scmp.le.s32.totalorder 1, %s9
    %p156 = scmp.lt.s32.totalorder %s9, 3
    %p157 = pnand %p155, %p156
    %p158 = pneg %p157
    // Predicated region
    $region29: #{_lambda_.13} parent=5 // pred_check
      _
    $region30: #{_lambda_.13} parent=5 // pred_check_branch
      %160 = sbr.rel (%p157) target = $region32
    $region31: #{_lambda_.13} parent=5 // pred_region
      %s161 = ssub.s32 %s9, 1
      %s162 = smul.u32 32, %s19
      %p163 = scmp.lt.s32.totalorder %s18, 1
      %s164 = scalar_select %p163, %s18, 1
      %p165 = scmp.lt.s32.totalorder %s162, 31
      %s166 = scalar_select %p165, %s162, 31
      %s167 = smul.addr %s164, 32
      %s168 = sadd.s32 %s166, %s167
      %s169 = smul.addr %s168, 4
      %s170 = scalar_lea.vmem %s0, %s169
      %p171 = pneg %p49
      %p172 = pneg %p46
      %p173 = pneg %p70
      %p174 = pneg %p67
      %p175 = pneg %p91
      %p176 = pneg %p88
      %p177 = pneg %p117
      %p178 = pneg %p114
      %p179 = scmp.lt.s32.totalorder %s18, 1
      %s180 = scalar_select %p179, %s18, 1
      %s181 = smul.addr %s180, 32
      %s182 = smul.addr %s181, 4
      %s183 = scalar_lea.vmem %s3, %s182
      %s184 = smul.u32 32, %s19
      %p185 = scmp.lt.s32.totalorder %s18, 1
      %s186 = scalar_select %p185, %s18, 1
      %p187 = scmp.lt.s32.totalorder %s184, 31
      %s188 = scalar_select %p187, %s184, 31
      %s189 = smul.addr %s186, 32
      %s190 = sadd.s32 %s188, %s189
      %s191 = smul.addr %s190, 4
      %s192 = scalar_lea.vmem %s0, %s191
      %s193 = smul.u32 32, %s19
      %p194 = scmp.lt.s32.totalorder %s18, 1
      %s195 = scalar_select %p194, %s18, 1
      %s196 = smul.addr %s195, 32
      %s197 = smul.addr %s196, 4
      %s198 = scalar_lea.vmem %s3, %s197
      %v200 = vld [vmem:[%s192] sm:$0xf]
      %v201 = vld [vmem:[%s192 + $0x4] sm:$0xf]
      %v202 = vld [vmem:[%s192 + $0x8] sm:$0xf]
      %v203 = vld [vmem:[%s192 + $0xc] sm:$0xf]
      %v204 = vld [vmem:[%s192 + $0x10] sm:$0xf]
      %v205 = vld [vmem:[%s192 + $0x14] sm:$0xf]
      %v206 = vld [vmem:[%s192 + $0x18] sm:$0xf]
      %v207 = vld [vmem:[%s192 + $0x1c] sm:$0xf]
      %v208 = vld [vmem:[%s192 + $0x20] sm:$0xf]
      %v209 = vld [vmem:[%s192 + $0x24] sm:$0xf]
      %v210 = vld [vmem:[%s192 + $0x28] sm:$0xf]
      %v211 = vld [vmem:[%s192 + $0x2c] sm:$0xf]
      %v212 = vld [vmem:[%s192 + $0x30] sm:$0xf]
      %v213 = vld [vmem:[%s192 + $0x34] sm:$0xf]
      %v214 = vld [vmem:[%s192 + $0x38] sm:$0xf]
      %v215 = vld [vmem:[%s192 + $0x3c] sm:$0xf]
      %v216 = vld [vmem:[%s192 + $0x40] sm:$0xf]
      %v217 = vld [vmem:[%s192 + $0x44] sm:$0xf]
      %v218 = vld [vmem:[%s192 + $0x48] sm:$0xf]
      %v219 = vld [vmem:[%s192 + $0x4c] sm:$0xf]
      %v220 = vld [vmem:[%s192 + $0x50] sm:$0xf]
      %v221 = vld [vmem:[%s192 + $0x54] sm:$0xf]
      %v222 = vld [vmem:[%s192 + $0x58] sm:$0xf]
      %v223 = vld [vmem:[%s192 + $0x5c] sm:$0xf]
      %v224 = vld [vmem:[%s192 + $0x60] sm:$0xf]
      %v225 = vld [vmem:[%s192 + $0x64] sm:$0xf]
      %v226 = vld [vmem:[%s192 + $0x68] sm:$0xf]
      %v227 = vld [vmem:[%s192 + $0x6c] sm:$0xf]
      %v228 = vld [vmem:[%s192 + $0x70] sm:$0xf]
      %v229 = vld [vmem:[%s192 + $0x74] sm:$0xf]
      %v230 = vld [vmem:[%s192 + $0x78] sm:$0xf]
      %v231 = vld [vmem:[%s192 + $0x7c] sm:$0xf]
      %v232 = vld [vmem:[%s1] sm:$0xf]
      %v233 = vld [vmem:[%s1 + $0x4] sm:$0xf]
      %v234 = vld [vmem:[%s1 + $0x8] sm:$0xf]
      %v235 = vld [vmem:[%s1 + $0xc] sm:$0xf]
      %v236 = vld [vmem:[%s1 + $0x10] sm:$0xf]
      %v237 = vld [vmem:[%s1 + $0x14] sm:$0xf]
      %v238 = vld [vmem:[%s1 + $0x18] sm:$0xf]
      %v239 = vld [vmem:[%s1 + $0x1c] sm:$0xf]
      %v240 = vld [vmem:[%s1 + $0x20] sm:$0xf]
      %v241 = vld [vmem:[%s1 + $0x24] sm:$0xf]
      %v242 = vld [vmem:[%s1 + $0x28] sm:$0xf]
      %v243 = vld [vmem:[%s1 + $0x2c] sm:$0xf]
      %v244 = vld [vmem:[%s1 + $0x30] sm:$0xf]
      %v245 = vld [vmem:[%s1 + $0x34] sm:$0xf]
      %v246 = vld [vmem:[%s1 + $0x38] sm:$0xf]
      %v247 = vld [vmem:[%s1 + $0x3c] sm:$0xf]
      %v248 = vld [vmem:[%s2] sm:$0x1]
      %v250 = vlaneseq
      %v251 = vshrl.u32 %v250, 7
      %v252 = vsub.s32 0, %v251
      %v253 = vrot.slane %v248, %v252
      %v287 = vunpack.c.l.b16 %v200
      %v288 = vunpack.c.l.b16 %v201
      %v289 = vunpack.c.l.b16 %v202
      %v290 = vunpack.c.l.b16 %v203
      %v291 = vunpack.c.l.b16 %v204
      %v292 = vunpack.c.l.b16 %v205
      %v293 = vunpack.c.l.b16 %v206
      %v294 = vunpack.c.l.b16 %v207
      %v295 = vunpack.c.l.b16 %v208
      %v296 = vunpack.c.l.b16 %v209
      %v297 = vunpack.c.l.b16 %v210
      %v298 = vunpack.c.l.b16 %v211
      %v299 = vunpack.c.l.b16 %v212
      %v300 = vunpack.c.l.b16 %v213
      %v301 = vunpack.c.l.b16 %v214
      %v302 = vunpack.c.l.b16 %v215
      %v303 = vunpack.c.l.b16 %v216
      %v304 = vunpack.c.l.b16 %v217
      %v305 = vunpack.c.l.b16 %v218
      %v306 = vunpack.c.l.b16 %v219
      %v307 = vunpack.c.l.b16 %v220
      %v308 = vunpack.c.l.b16 %v221
      %v309 = vunpack.c.l.b16 %v222
      %v310 = vunpack.c.l.b16 %v223
      %v311 = vunpack.c.l.b16 %v224
      %v312 = vunpack.c.l.b16 %v225
      %v313 = vunpack.c.l.b16 %v226
      %v314 = vunpack.c.l.b16 %v227
      %v315 = vunpack.c.l.b16 %v228
      %v316 = vunpack.c.l.b16 %v229
      %v317 = vunpack.c.l.b16 %v230
      %v318 = vunpack.c.l.b16 %v231
      %v319 = vpack.c.b16 %v288, %v287
      %v320 = vpack.c.b16 %v290, %v289
      %v321 = vpack.c.b16 %v292, %v291
      %v322 = vpack.c.b16 %v294, %v293
      %v323 = vpack.c.b16 %v296, %v295
      %v324 = vpack.c.b16 %v298, %v297
      %v325 = vpack.c.b16 %v300, %v299
      %v326 = vpack.c.b16 %v302, %v301
      %v327 = vpack.c.b16 %v304, %v303
      %v328 = vpack.c.b16 %v306, %v305
      %v329 = vpack.c.b16 %v308, %v307
      %v330 = vpack.c.b16 %v310, %v309
      %v331 = vpack.c.b16 %v312, %v311
      %v332 = vpack.c.b16 %v314, %v313
      %v333 = vpack.c.b16 %v316, %v315
      %v334 = vpack.c.b16 %v318, %v317
      %v367 = vunpack.c.l.b16 %v232
      %v368 = vunpack.c.l.b16 %v233
      %v369 = vunpack.c.l.b16 %v234
      %v370 = vunpack.c.l.b16 %v235
      %v371 = vunpack.c.l.b16 %v236
      %v372 = vunpack.c.l.b16 %v237
      %v373 = vunpack.c.l.b16 %v238
      %v374 = vunpack.c.l.b16 %v239
      %v375 = vunpack.c.l.b16 %v240
      %v376 = vunpack.c.l.b16 %v241
      %v377 = vunpack.c.l.b16 %v242
      %v378 = vunpack.c.l.b16 %v243
      %v379 = vunpack.c.l.b16 %v244
      %v380 = vunpack.c.l.b16 %v245
      %v381 = vunpack.c.l.b16 %v246
      %v382 = vunpack.c.l.b16 %v247
      %v383 = vpack.c.b16 %v368, %v367
      %v384 = vpack.c.b16 %v370, %v369
      %v385 = vpack.c.b16 %v372, %v371
      %v386 = vpack.c.b16 %v374, %v373
      %v387 = vpack.c.b16 %v376, %v375
      %v388 = vpack.c.b16 %v378, %v377
      %v389 = vpack.c.b16 %v380, %v379
      %v390 = vpack.c.b16 %v382, %v381
      %399 = vmatprep.subr.bf16.mxu0 0
      %400 = vmatpush1.bf16.msra.mxu0 %v383
      %401 = vmatprep.subr.bf16.mxu0 0
      %402 = vmatpush1.bf16.msra.mxu0 %v384
      %403 = vmatprep.subr.bf16.mxu0 0
      %404 = vmatpush1.bf16.msra.mxu0 %v385
      %405 = vmatprep.subr.bf16.mxu0 0
      %406 = vmatpush1.bf16.msra.mxu0 %v386
      %407 = vmatprep.subr.bf16.mxu0 0
      %408 = vmatpush1.bf16.msra.mxu0 %v387
      %409 = vmatprep.subr.bf16.mxu0 0
      %410 = vmatpush1.bf16.msra.mxu0 %v388
      %411 = vmatprep.subr.bf16.mxu0 0
      %412 = vmatpush1.bf16.msra.mxu0 %v389
      %413 = vmatprep.subr.bf16.mxu0 0
      %414 = vmatpush1.bf16.msra.mxu0 %v390
      %415 = vmatprep.subr.bf16.mxu0 0
      %416 = vmatpush1.bf16.msra.mxu0 0
      %417 = vmatprep.subr.bf16.mxu0 0
      %418 = vmatpush1.bf16.msra.mxu0 0
      %419 = vmatprep.subr.bf16.mxu0 0
      %420 = vmatpush1.bf16.msra.mxu0 0
      %421 = vmatprep.subr.bf16.mxu0 0
      %422 = vmatpush1.bf16.msra.mxu0 0
      %423 = vmatprep.subr.bf16.mxu0 0
      %424 = vmatpush1.bf16.msra.mxu0 0
      %425 = vmatprep.subr.bf16.mxu0 0
      %426 = vmatpush1.bf16.msra.mxu0 0
      %427 = vmatprep.subr.bf16.mxu0 0
      %428 = vmatpush1.bf16.msra.mxu0 0
      %429 = vmatprep.subr.bf16.mxu0 0
      %430 = vmatpush1.bf16.msra.mxu0 0
      %431 = vmatprep.mubr.bf16.mxu0 0
      %432 = vmatmul.mubr.bf16.gmra.mrb[0].mxu0 %v319
      %v433 = vpop.f32.mrb[0].mxu0
      %v434 = vadd.f32 %v253, %v433
      %v435 = vpop.f32.mrb[0].mxu0
      %v436 = vpop.f32.mrb[0].mxu0
      %v437 = vadd.f32 %v253, %v436
      %v438 = vpop.f32.mrb[0].mxu0
      %439 = vmatprep.mubr.bf16.mxu0 0
      %440 = vmatmul.mubr.bf16.gmra.mrb[0].mxu0 %v320
      %v441 = vpop.f32.mrb[0].mxu0
      %v442 = vadd.f32 %v253, %v441
      %v443 = vpop.f32.mrb[0].mxu0
      %v444 = vpop.f32.mrb[0].mxu0
      %v445 = vadd.f32 %v253, %v444
      %v446 = vpop.f32.mrb[0].mxu0
      %447 = vmatprep.mubr.bf16.mxu0 0
      %448 = vmatmul.mubr.bf16.gmra.mrb[0].mxu0 %v321
      %v449 = vpop.f32.mrb[0].mxu0
      %v450 = vadd.f32 %v253, %v449
      %v451 = vpop.f32.mrb[0].mxu0
      %v452 = vpop.f32.mrb[0].mxu0
      %v453 = vadd.f32 %v253, %v452
      %v454 = vpop.f32.mrb[0].mxu0
      %455 = vmatprep.mubr.bf16.mxu0 0
      %456 = vmatmul.mubr.bf16.gmra.mrb[0].mxu0 %v322
      %v457 = vpop.f32.mrb[0].mxu0
      %v458 = vadd.f32 %v253, %v457
      %v459 = vpop.f32.mrb[0].mxu0
      %v460 = vpop.f32.mrb[0].mxu0
      %v461 = vadd.f32 %v253, %v460
      %v462 = vpop.f32.mrb[0].mxu0
      %463 = vmatprep.mubr.bf16.mxu0 0
      %464 = vmatmul.mubr.bf16.gmra.mrb[0].mxu0 %v323
      %v465 = vpop.f32.mrb[0].mxu0
      %v466 = vadd.f32 %v253, %v465
      %v467 = vpop.f32.mrb[0].mxu0
      %v468 = vpop.f32.mrb[0].mxu0
      %v469 = vadd.f32 %v253, %v468
      %v470 = vpop.f32.mrb[0].mxu0
      %471 = vmatprep.mubr.bf16.mxu0 0
      %472 = vmatmul.mubr.bf16.gmra.mrb[0].mxu0 %v324
      %v473 = vpop.f32.mrb[0].mxu0
      %v474 = vadd.f32 %v253, %v473
      %v475 = vpop.f32.mrb[0].mxu0
      %v476 = vpop.f32.mrb[0].mxu0
      %v477 = vadd.f32 %v253, %v476
      %v478 = vpop.f32.mrb[0].mxu0
      %479 = vmatprep.mubr.bf16.mxu0 0
      %480 = vmatmul.mubr.bf16.gmra.mrb[0].mxu0 %v325
      %v481 = vpop.f32.mrb[0].mxu0
      %v482 = vadd.f32 %v253, %v481
      %v483 = vpop.f32.mrb[0].mxu0
      %v484 = vpop.f32.mrb[0].mxu0
      %v485 = vadd.f32 %v253, %v484
      %v486 = vpop.f32.mrb[0].mxu0
      %487 = vmatprep.mubr.bf16.mxu0 0
      %488 = vmatmul.mubr.bf16.gmra.mrb[0].mxu0 %v326
      %v489 = vpop.f32.mrb[0].mxu0
      %v490 = vadd.f32 %v253, %v489
      %v491 = vpop.f32.mrb[0].mxu0
      %v492 = vpop.f32.mrb[0].mxu0
      %v493 = vadd.f32 %v253, %v492
      %v494 = vpop.f32.mrb[0].mxu0
      %495 = vmatprep.mubr.bf16.mxu0 0
      %496 = vmatmul.mubr.bf16.gmra.mrb[0].mxu0 %v327
      %v497 = vpop.f32.mrb[0].mxu0
      %v498 = vadd.f32 %v253, %v497
      %v499 = vpop.f32.mrb[0].mxu0
      %v500 = vpop.f32.mrb[0].mxu0
      %v501 = vadd.f32 %v253, %v500
      %v502 = vpop.f32.mrb[0].mxu0
      %503 = vmatprep.mubr.bf16.mxu0 0
      %504 = vmatmul.mubr.bf16.gmra.mrb[0].mxu0 %v328
      %v505 = vpop.f32.mrb[0].mxu0
      %v506 = vadd.f32 %v253, %v505
      %v507 = vpop.f32.mrb[0].mxu0
      %v508 = vpop.f32.mrb[0].mxu0
      %v509 = vadd.f32 %v253, %v508
      %v510 = vpop.f32.mrb[0].mxu0
      %511 = vmatprep.mubr.bf16.mxu0 0
      %512 = vmatmul.mubr.bf16.gmra.mrb[0].mxu0 %v329
      %v513 = vpop.f32.mrb[0].mxu0
      %v514 = vadd.f32 %v253, %v513
      %v515 = vpop.f32.mrb[0].mxu0
      %v516 = vpop.f32.mrb[0].mxu0
      %v517 = vadd.f32 %v253, %v516
      %v518 = vpop.f32.mrb[0].mxu0
      %519 = vmatprep.mubr.bf16.mxu0 0
      %520 = vmatmul.mubr.bf16.gmra.mrb[0].mxu0 %v330
      %v521 = vpop.f32.mrb[0].mxu0
      %v522 = vadd.f32 %v253, %v521
      %v523 = vpop.f32.mrb[0].mxu0
      %v524 = vpop.f32.mrb[0].mxu0
      %v525 = vadd.f32 %v253, %v524
      %v526 = vpop.f32.mrb[0].mxu0
      %527 = vmatprep.mubr.bf16.mxu0 0
      %528 = vmatmul.mubr.bf16.gmra.mrb[0].mxu0 %v331
      %v529 = vpop.f32.mrb[0].mxu0
      %v530 = vadd.f32 %v253, %v529
      %v531 = vpop.f32.mrb[0].mxu0
      %v532 = vpop.f32.mrb[0].mxu0
      %v533 = vadd.f32 %v253, %v532
      %v534 = vpop.f32.mrb[0].mxu0
      %535 = vmatprep.mubr.bf16.mxu0 0
      %536 = vmatmul.mubr.bf16.gmra.mrb[0].mxu0 %v332
      %v537 = vpop.f32.mrb[0].mxu0
      %v538 = vadd.f32 %v253, %v537
      %v539 = vpop.f32.mrb[0].mxu0
      %v540 = vpop.f32.mrb[0].mxu0
      %v541 = vadd.f32 %v253, %v540
      %v542 = vpop.f32.mrb[0].mxu0
      %543 = vmatprep.mubr.bf16.mxu0 0
      %544 = vmatmul.mubr.bf16.gmra.mrb[0].mxu0 %v333
      %v545 = vpop.f32.mrb[0].mxu0
      %v546 = vadd.f32 %v253, %v545
      %v547 = vpop.f32.mrb[0].mxu0
      %v548 = vpop.f32.mrb[0].mxu0
      %v549 = vadd.f32 %v253, %v548
      %v550 = vpop.f32.mrb[0].mxu0
      %551 = vmatprep.mubr.bf16.mxu0 0
      %552 = vmatmul.mubr.bf16.gmra.mrb[0].mxu0 %v334
      %v553 = vpop.f32.mrb[0].mxu0
      %v554 = vadd.f32 %v253, %v553
      %v555 = vpop.f32.mrb[0].mxu0
      %v556 = vpop.f32.mrb[0].mxu0
      %v557 = vadd.f32 %v253, %v556
      %v558 = vpop.f32.mrb[0].mxu0
      %559 = vdwg.mxu0
      %v560 = vadd.f32 %v434, %v437
      %v561 = vadd.f32 %v560, %v442
      %v562 = vadd.f32 %v561, %v445
      %v563 = vadd.f32 %v562, %v450
      %v564 = vadd.f32 %v563, %v453
      %v565 = vadd.f32 %v564, %v458
      %v566 = vadd.f32 %v565, %v461
      %v567 = vadd.f32 %v566, %v466
      %v568 = vadd.f32 %v567, %v469
      %v569 = vadd.f32 %v568, %v474
      %v570 = vadd.f32 %v569, %v477
      %v571 = vadd.f32 %v570, %v482
      %v572 = vadd.f32 %v571, %v485
      %v573 = vadd.f32 %v572, %v490
      %v574 = vadd.f32 %v573, %v493
      %v575 = vadd.f32 %v574, %v498
      %v576 = vadd.f32 %v575, %v501
      %v577 = vadd.f32 %v576, %v506
      %v578 = vadd.f32 %v577, %v509
      %v579 = vadd.f32 %v578, %v514
      %v580 = vadd.f32 %v579, %v517
      %v581 = vadd.f32 %v580, %v522
      %v582 = vadd.f32 %v581, %v525
      %v583 = vadd.f32 %v582, %v530
      %v584 = vadd.f32 %v583, %v533
      %v585 = vadd.f32 %v584, %v538
      %v586 = vadd.f32 %v585, %v541
      %v587 = vadd.f32 %v586, %v546
      %v588 = vadd.f32 %v587, %v549
      %v589 = vadd.f32 %v588, %v554
      %v590 = vadd.f32 %v589, %v557
      %v591 = vrot.slane %v590, 4
      %v592 = vadd.f32 %v590, %v591
      %v593 = vrot.slane %v592, 2
      %v594 = vadd.f32 %v592, %v593
      %v595 = vrot.slane %v594, 1
      %v596 = vadd.f32 %v594, %v595
      %v597 = vrcp.pop 256.0
      %v598 = vmul.f32 %v596, %v597
      %v599 = vsub.f32 %v434, %v598
      %v600 = vsub.f32 %v437, %v598
      %v601 = vsub.f32 %v442, %v598
      %v602 = vsub.f32 %v445, %v598
      %v603 = vsub.f32 %v450, %v598
      %v604 = vsub.f32 %v453, %v598
      %v605 = vsub.f32 %v458, %v598
      %v606 = vsub.f32 %v461, %v598
      %v607 = vsub.f32 %v466, %v598
      %v608 = vsub.f32 %v469, %v598
      %v609 = vsub.f32 %v474, %v598
      %v610 = vsub.f32 %v477, %v598
      %v611 = vsub.f32 %v482, %v598
      %v612 = vsub.f32 %v485, %v598
      %v613 = vsub.f32 %v490, %v598
      %v614 = vsub.f32 %v493, %v598
      %v615 = vsub.f32 %v498, %v598
      %v616 = vsub.f32 %v501, %v598
      %v617 = vsub.f32 %v506, %v598
      %v618 = vsub.f32 %v509, %v598
      %v619 = vsub.f32 %v514, %v598
      %v620 = vsub.f32 %v517, %v598
      %v621 = vsub.f32 %v522, %v598
      %v622 = vsub.f32 %v525, %v598
      %v623 = vsub.f32 %v530, %v598
      %v624 = vsub.f32 %v533, %v598
      %v625 = vsub.f32 %v538, %v598
      %v626 = vsub.f32 %v541, %v598
      %v627 = vsub.f32 %v546, %v598
      %v628 = vsub.f32 %v549, %v598
      %v629 = vsub.f32 %v554, %v598
      %v630 = vsub.f32 %v557, %v598
      %v631 = vmul.f32 %v599, %v599
      %v632 = vmul.f32 %v600, %v600
      %v633 = vmul.f32 %v601, %v601
      %v634 = vmul.f32 %v602, %v602
      %v635 = vmul.f32 %v603, %v603
      %v636 = vmul.f32 %v604, %v604
      %v637 = vmul.f32 %v605, %v605
      %v638 = vmul.f32 %v606, %v606
      %v639 = vmul.f32 %v607, %v607
      %v640 = vmul.f32 %v608, %v608
      %v641 = vmul.f32 %v609, %v609
      %v642 = vmul.f32 %v610, %v610
      %v643 = vmul.f32 %v611, %v611
      %v644 = vmul.f32 %v612, %v612
      %v645 = vmul.f32 %v613, %v613
      %v646 = vmul.f32 %v614, %v614
      %v647 = vmul.f32 %v615, %v615
      %v648 = vmul.f32 %v616, %v616
      %v649 = vmul.f32 %v617, %v617
      %v650 = vmul.f32 %v618, %v618
      %v651 = vmul.f32 %v619, %v619
      %v652 = vmul.f32 %v620, %v620
      %v653 = vmul.f32 %v621, %v621
      %v654 = vmul.f32 %v622, %v622
      %v655 = vmul.f32 %v623, %v623
      %v656 = vmul.f32 %v624, %v624
      %v657 = vmul.f32 %v625, %v625
      %v658 = vmul.f32 %v626, %v626
      %v659 = vmul.f32 %v627, %v627
      %v660 = vmul.f32 %v628, %v628
      %v661 = vmul.f32 %v629, %v629
      %v662 = vmul.f32 %v630, %v630
      %v663 = vadd.f32 %v631, %v632
      %v664 = vadd.f32 %v663, %v633
      %v665 = vadd.f32 %v664, %v634
      %v666 = vadd.f32 %v665, %v635
      %v667 = vadd.f32 %v666, %v636
      %v668 = vadd.f32 %v667, %v637
      %v669 = vadd.f32 %v668, %v638
      %v670 = vadd.f32 %v669, %v639
      %v671 = vadd.f32 %v670, %v640
      %v672 = vadd.f32 %v671, %v641
      %v673 = vadd.f32 %v672, %v642
      %v674 = vadd.f32 %v673, %v643
      %v675 = vadd.f32 %v674, %v644
      %v676 = vadd.f32 %v675, %v645
      %v677 = vadd.f32 %v676, %v646
      %v678 = vadd.f32 %v677, %v647
      %v679 = vadd.f32 %v678, %v648
      %v680 = vadd.f32 %v679, %v649
      %v681 = vadd.f32 %v680, %v650
      %v682 = vadd.f32 %v681, %v651
      %v683 = vadd.f32 %v682, %v652
      %v684 = vadd.f32 %v683, %v653
      %v685 = vadd.f32 %v684, %v654
      %v686 = vadd.f32 %v685, %v655
      %v687 = vadd.f32 %v686, %v656
      %v688 = vadd.f32 %v687, %v657
      %v689 = vadd.f32 %v688, %v658
      %v690 = vadd.f32 %v689, %v659
      %v691 = vadd.f32 %v690, %v660
      %v692 = vadd.f32 %v691, %v661
      %v693 = vadd.f32 %v692, %v662
      %v694 = vrot.slane %v693, 4
      %v695 = vadd.f32 %v693, %v694
      %v696 = vrot.slane %v695, 2
      %v697 = vadd.f32 %v695, %v696
      %v698 = vrot.slane %v697, 1
      %v699 = vadd.f32 %v697, %v698
      %v700 = vmul.f32 %v699, %v597
      %v701 = vadd.f32 %v700, 1e-05
      %v702 = vrsqrt.pop %v701
      %v703 = vmul.f32 %v599, %v702
      %v704 = vmul.f32 %v600, %v702
      %v705 = vmul.f32 %v601, %v702
      %v706 = vmul.f32 %v602, %v702
      %v707 = vmul.f32 %v603, %v702
      %v708 = vmul.f32 %v604, %v702
      %v709 = vmul.f32 %v605, %v702
      %v710 = vmul.f32 %v606, %v702
      %v711 = vmul.f32 %v607, %v702
      %v712 = vmul.f32 %v608, %v702
      %v713 = vmul.f32 %v609, %v702
      %v714 = vmul.f32 %v610, %v702
      %v715 = vmul.f32 %v611, %v702
      %v716 = vmul.f32 %v612, %v702
      %v717 = vmul.f32 %v613, %v702
      %v718 = vmul.f32 %v614, %v702
      %v719 = vmul.f32 %v615, %v702
      %v720 = vmul.f32 %v616, %v702
      %v721 = vmul.f32 %v617, %v702
      %v722 = vmul.f32 %v618, %v702
      %v723 = vmul.f32 %v619, %v702
      %v724 = vmul.f32 %v620, %v702
      %v725 = vmul.f32 %v621, %v702
      %v726 = vmul.f32 %v622, %v702
      %v727 = vmul.f32 %v623, %v702
      %v728 = vmul.f32 %v624, %v702
      %v729 = vmul.f32 %v625, %v702
      %v730 = vmul.f32 %v626, %v702
      %v731 = vmul.f32 %v627, %v702
      %v732 = vmul.f32 %v628, %v702
      %v733 = vmul.f32 %v629, %v702
      %v734 = vmul.f32 %v630, %v702
      %v735 = vmax.f32 %v703, 0.0
      %v736 = vmax.f32 %v704, 0.0
      %v737 = vmax.f32 %v705, 0.0
      %v738 = vmax.f32 %v706, 0.0
      %v739 = vmax.f32 %v707, 0.0
      %v740 = vmax.f32 %v708, 0.0
      %v741 = vmax.f32 %v709, 0.0
      %v742 = vmax.f32 %v710, 0.0
      %v743 = vmax.f32 %v711, 0.0
      %v744 = vmax.f32 %v712, 0.0
      %v745 = vmax.f32 %v713, 0.0
      %v746 = vmax.f32 %v714, 0.0
      %v747 = vmax.f32 %v715, 0.0
      %v748 = vmax.f32 %v716, 0.0
      %v749 = vmax.f32 %v717, 0.0
      %v750 = vmax.f32 %v718, 0.0
      %v751 = vmax.f32 %v719, 0.0
      %v752 = vmax.f32 %v720, 0.0
      %v753 = vmax.f32 %v721, 0.0
      %v754 = vmax.f32 %v722, 0.0
      %v755 = vmax.f32 %v723, 0.0
      %v756 = vmax.f32 %v724, 0.0
      %v757 = vmax.f32 %v725, 0.0
      %v758 = vmax.f32 %v726, 0.0
      %v759 = vmax.f32 %v727, 0.0
      %v760 = vmax.f32 %v728, 0.0
      %v761 = vmax.f32 %v729, 0.0
      %v762 = vmax.f32 %v730, 0.0
      %v763 = vmax.f32 %v731, 0.0
      %v764 = vmax.f32 %v732, 0.0
      %v765 = vmax.f32 %v733, 0.0
      %v766 = vmax.f32 %v734, 0.0
      %v767 = vpack.c.bf16 %v736, %v735
      %v768 = vpack.c.bf16 %v738, %v737
      %v769 = vpack.c.bf16 %v740, %v739
      %v770 = vpack.c.bf16 %v742, %v741
      %v771 = vpack.c.bf16 %v744, %v743
      %v772 = vpack.c.bf16 %v746, %v745
      %v773 = vpack.c.bf16 %v748, %v747
      %v774 = vpack.c.bf16 %v750, %v749
      %v775 = vpack.c.bf16 %v752, %v751
      %v776 = vpack.c.bf16 %v754, %v753
      %v777 = vpack.c.bf16 %v756, %v755
      %v778 = vpack.c.bf16 %v758, %v757
      %v779 = vpack.c.bf16 %v760, %v759
      %v780 = vpack.c.bf16 %v762, %v761
      %v781 = vpack.c.bf16 %v764, %v763
      %v782 = vpack.c.bf16 %v766, %v765
      %v799 = vunpack.c.l.b16 %v767
      %v800 = vunpack.c.h.b16 %v767
      %v801 = vunpack.c.l.b16 %v768
      %v802 = vunpack.c.h.b16 %v768
      %v803 = vunpack.c.l.b16 %v769
      %v804 = vunpack.c.h.b16 %v769
      %v805 = vunpack.c.l.b16 %v770
      %v806 = vunpack.c.h.b16 %v770
      %v807 = vunpack.c.l.b16 %v771
      %v808 = vunpack.c.h.b16 %v771
      %v809 = vunpack.c.l.b16 %v772
      %v810 = vunpack.c.h.b16 %v772
      %v811 = vunpack.c.l.b16 %v773
      %v812 = vunpack.c.h.b16 %v773
      %v813 = vunpack.c.l.b16 %v774
      %v814 = vunpack.c.h.b16 %v774
      %v815 = vunpack.c.l.b16 %v775
      %v816 = vunpack.c.h.b16 %v775
      %v817 = vunpack.c.l.b16 %v776
      %v818 = vunpack.c.h.b16 %v776
      %v819 = vunpack.c.l.b16 %v777
      %v820 = vunpack.c.h.b16 %v777
      %v821 = vunpack.c.l.b16 %v778
      %v822 = vunpack.c.h.b16 %v778
      %v823 = vunpack.c.l.b16 %v779
      %v824 = vunpack.c.h.b16 %v779
      %v825 = vunpack.c.l.b16 %v780
      %v826 = vunpack.c.h.b16 %v780
      %v827 = vunpack.c.l.b16 %v781
      %v828 = vunpack.c.h.b16 %v781
      %v829 = vunpack.c.l.b16 %v782
      %v830 = vunpack.c.h.b16 %v782
      %v831 = vpack.c.b16 %v799, %v799
      %v832 = vpack.c.b16 %v800, %v800
      %v833 = vpack.c.b16 %v801, %v801
      %v834 = vpack.c.b16 %v802, %v802
      %v835 = vpack.c.b16 %v803, %v803
      %v836 = vpack.c.b16 %v804, %v804
      %v837 = vpack.c.b16 %v805, %v805
      %v838 = vpack.c.b16 %v806, %v806
      %v839 = vpack.c.b16 %v807, %v807
      %v840 = vpack.c.b16 %v808, %v808
      %v841 = vpack.c.b16 %v809, %v809
      %v842 = vpack.c.b16 %v810, %v810
      %v843 = vpack.c.b16 %v811, %v811
      %v844 = vpack.c.b16 %v812, %v812
      %v845 = vpack.c.b16 %v813, %v813
      %v846 = vpack.c.b16 %v814, %v814
      %v847 = vpack.c.b16 %v815, %v815
      %v848 = vpack.c.b16 %v816, %v816
      %v849 = vpack.c.b16 %v817, %v817
      %v850 = vpack.c.b16 %v818, %v818
      %v851 = vpack.c.b16 %v819, %v819
      %v852 = vpack.c.b16 %v820, %v820
      %v853 = vpack.c.b16 %v821, %v821
      %v854 = vpack.c.b16 %v822, %v822
      %v855 = vpack.c.b16 %v823, %v823
      %v856 = vpack.c.b16 %v824, %v824
      %v857 = vpack.c.b16 %v825, %v825
      %v858 = vpack.c.b16 %v826, %v826
      %v859 = vpack.c.b16 %v827, %v827
      %v860 = vpack.c.b16 %v828, %v828
      %v861 = vpack.c.b16 %v829, %v829
      %v862 = vpack.c.b16 %v830, %v830
      %895 = vst [vmem:[%s198] sm:$0xf] %v831
      %896 = vst [vmem:[%s198 + $0x4] sm:$0xf] %v832
      %897 = vst [vmem:[%s198 + $0x8] sm:$0xf] %v833
      %898 = vst [vmem:[%s198 + $0xc] sm:$0xf] %v834
      %899 = vst [vmem:[%s198 + $0x10] sm:$0xf] %v835
      %900 = vst [vmem:[%s198 + $0x14] sm:$0xf] %v836
      %901 = vst [vmem:[%s198 + $0x18] sm:$0xf] %v837
      %902 = vst [vmem:[%s198 + $0x1c] sm:$0xf] %v838
      %903 = vst [vmem:[%s198 + $0x20] sm:$0xf] %v839
      %904 = vst [vmem:[%s198 + $0x24] sm:$0xf] %v840
      %905 = vst [vmem:[%s198 + $0x28] sm:$0xf] %v841
      %906 = vst [vmem:[%s198 + $0x2c] sm:$0xf] %v842
      %907 = vst [vmem:[%s198 + $0x30] sm:$0xf] %v843
      %908 = vst [vmem:[%s198 + $0x34] sm:$0xf] %v844
      %909 = vst [vmem:[%s198 + $0x38] sm:$0xf] %v845
      %910 = vst [vmem:[%s198 + $0x3c] sm:$0xf] %v846
      %911 = vst [vmem:[%s198 + $0x40] sm:$0xf] %v847
      %912 = vst [vmem:[%s198 + $0x44] sm:$0xf] %v848
      %913 = vst [vmem:[%s198 + $0x48] sm:$0xf] %v849
      %914 = vst [vmem:[%s198 + $0x4c] sm:$0xf] %v850
      %915 = vst [vmem:[%s198 + $0x50] sm:$0xf] %v851
      %916 = vst [vmem:[%s198 + $0x54] sm:$0xf] %v852
      %917 = vst [vmem:[%s198 + $0x58] sm:$0xf] %v853
      %918 = vst [vmem:[%s198 + $0x5c] sm:$0xf] %v854
      %919 = vst [vmem:[%s198 + $0x60] sm:$0xf] %v855
      %920 = vst [vmem:[%s198 + $0x64] sm:$0xf] %v856
      %921 = vst [vmem:[%s198 + $0x68] sm:$0xf] %v857
      %922 = vst [vmem:[%s198 + $0x6c] sm:$0xf] %v858
      %923 = vst [vmem:[%s198 + $0x70] sm:$0xf] %v859
      %924 = vst [vmem:[%s198 + $0x74] sm:$0xf] %v860
      %925 = vst [vmem:[%s198 + $0x78] sm:$0xf] %v861
      %926 = vst [vmem:[%s198 + $0x7c] sm:$0xf] %v862
      %p927 = scmp.lt.s32.totalorder %s18, 1
      %s928 = scalar_select %p927, %s18, 1
      %s929 = smul.addr %s928, 32
      %s930 = smul.addr %s929, 4
      %s931 = scalar_lea.vmem %s3, %s930
      // Predicated region
      $region33: #{_lambda_.13} parent=31 // pred_check
        %p932 = pneg %p114
      $region34: #{_lambda_.13} parent=31 // pred_check_branch
        %934 = sbr.rel (%p932) target = $region36
      $region35: #{_lambda_.13} parent=31 // pred_region
        _
      $region36: #{_lambda_.13} parent=31 // pred_fallthru
        _
    $region32: #{_lambda_.13} parent=5 // pred_fallthru
      _
    %p935 = scmp.le.s32.totalorder 2, %s9
    // Predicated region
    $region37: #{_lambda_.13} parent=5 // pred_check
      %p936 = pneg %p935
    $region38: #{_lambda_.13} parent=5 // pred_check_branch
      %938 = sbr.rel (%p936) target = $region40
    $region39: #{_lambda_.13} parent=5 // pred_region
      %s939 = ssub.s32 %s9, 2
      // Predicated region
      $region41: #{_lambda_.13} parent=39 // pred_check
        %p940 = pneg %p120
      $region42: #{_lambda_.13} parent=39 // pred_check_branch
        %942 = sbr.rel (%p940) target = $region44
      $region43: #{_lambda_.13} parent=39 // pred_region
        %p943 = scmp.lt.s32.totalorder %s20, 1
        %s944 = scalar_select %p943, %s20, 1
        %s945 = smul.addr %s944, 32
        %s946 = smul.addr %s945, 4
        %s947 = scalar_lea.vmem %s3, %s946
      $region44: #{_lambda_.13} parent=39 // pred_fallthru
        _
    $region40: #{_lambda_.13} parent=5 // pred_fallthru
      _
  $region6: #{_lambda_.13} parent=0 // loop_footer
    %s13 = sadd.s32 1, %s9
  $region7: #{_lambda_.13} parent=0 // loop_footer_branch
    %8 = sbr.rel target = $region3
  $region8: #{_lambda_.13} parent=0 // loop_exit
    _

// kernel: _lambda_.14
$region0: #{_lambda_.14}
  #allocation0 [shape = 'u32[]', space=smem, size = 0x4, offset = 0x4, fixed_abs, tag = 'smem constant byte address 0x4 - core index']
  #allocation1 [shape = 'u32[144,128]{1,0:T(1,128)}', space=vmem, size = 0x12000, scoped, tag = 'internal scratch']
  %s0 = inlined_call_operand.vmem [shape: bf16[2,64,128], index: 0, kind: input, shape index: {}]
  %s1 = inlined_call_operand.vmem [shape: bf16[128,128], index: 1, kind: input, shape index: {}]
  %s2 = inlined_call_operand.vmem [shape: f32[1,128], index: 2, kind: input, shape index: {}]
  %s3 = inlined_call_operand.vmem [shape: bf16[2,64,128], index: 3, kind: output, shape index: {}]
  %s4 = sld [smem:[#allocation0]]
  $region45: #{_lambda_.14} parent=0
    _
  %s6 = ssub.s32 1, %s4
  %s7 = scalar_select 0, %s6, %s4
  loop: start=0, step=1, limit=4
  $region2: #{_lambda_.14} parent=0 // loop_pre_header
    _
  $region3: #{_lambda_.14} parent=0 // loop_header
    %s9 = sphi 0, %s13
    %p10 = scmp.ge.s32.totalorder %s9, 4
    %s16 = sphi 0, %s28
    %s17 = sphi 0, %s24
    %s18 = sphi 0, %s16
    %s19 = sphi 0, %s17
    %s20 = sphi 0, %s18
    %s21 = sphi 0, %s19
    %s33 = sphi 0, %s35
    %s36 = sphi 0, %s33
    %s37 = sphi 0, %s36
    %s53 = sphi 0, %s37
    %s57 = sphi 0, %s57
    %s59 = sphi 0, %s57
    %s60 = sphi 0, %s59
    %s74 = sphi 0, %s60
    %s78 = sphi 0, %s78
    %s80 = sphi 0, %s78
    %s81 = sphi 0, %s80
    %s95 = sphi 0, %s81
    %s101 = sphi 0, %s103
    %s104 = sphi 0, %s101
    %s105 = sphi 0, %s104
    %s121 = sphi 0, %s105
  $region4: #{_lambda_.14} parent=0 // loop_header_branch
    %12 = sbr.rel (%p10) target = $region8
  $region5: #{_lambda_.14} parent=0 // loop_body
    %s14 = ssub.s32 %s9, 1
    %s15 = ssub.s32 %s9, 2
    %s22 = sadd.s32 1, %s17
    %p23 = scmp.ge.s32.totalorder %s22, 1
    %s24 = scalar_select %p23, 0, %s22
    %s25 = sadd.s32 1, %s16
    %s26 = scalar_select %p23, %s25, %s16
    %p27 = scmp.ge.s32.totalorder %s26, 2
    %s28 = scalar_select %p27, 0, %s26
    %s29 = ssub.s32 %s16, %s28
    %s30 = ssub.s32 %s17, %s24
    %s31 = sor.u32 %s29, %s30
    %p32 = scmp.eq.s32.totalorder %s31, 0
    %s34 = sadd.s32 %s33, 1
    %s35 = scalar_select %p32, %s33, %s34
    %p38 = pneg %p32
    %p39 = scmp.eq.s32.totalorder %s9, 1
    %p40 = por %p38, %p39
    %p41 = scmp.ne.s32.totalorder %s33, %s36
    %p42 = scmp.eq.s32.totalorder %s9, 0
    %p43 = por %p41, %p42
    %p44 = scmp.ne.s32.totalorder %s33, %s36
    %p45 = scmp.eq.s32.totalorder %s14, 1
    %p46 = por %p44, %p45
    %p47 = scmp.ne.s32.totalorder %s36, %s37
    %p48 = scmp.eq.s32.totalorder %s14, 0
    %p49 = por %p47, %p48
    %p50 = scmp.ne.s32.totalorder %s36, %s37
    %p51 = scmp.eq.s32.totalorder %s15, 1
    %p52 = por %p50, %p51
    %p54 = scmp.ne.s32.totalorder %s37, %s53
    %p55 = scmp.eq.s32.totalorder %s15, 0
    %p56 = por %p54, %p55
    %s58 = sadd.s32 %s57, 1
    %p61 = scmp.eq.s32.totalorder %s9, 1
    %p62 = scmp.ne.s32.totalorder %s57, %s59
    %p63 = scmp.eq.s32.totalorder %s9, 0
    %p64 = por %p62, %p63
    %p65 = scmp.ne.s32.totalorder %s57, %s59
    %p66 = scmp.eq.s32.totalorder %s14, 1
    %p67 = por %p65, %p66
    %p68 = scmp.ne.s32.totalorder %s59, %s60
    %p69 = scmp.eq.s32.totalorder %s14, 0
    %p70 = por %p68, %p69
    %p71 = scmp.ne.s32.totalorder %s59, %s60
    %p72 = scmp.eq.s32.totalorder %s15, 1
    %p73 = por %p71, %p72
    %p75 = scmp.ne.s32.totalorder %s60, %s74
    %p76 = scmp.eq.s32.totalorder %s15, 0
    %p77 = por %p75, %p76
    %s79 = sadd.s32 %s78, 1
    %p82 = scmp.eq.s32.totalorder %s9, 1
    %p83 = scmp.ne.s32.totalorder %s78, %s80
    %p84 = scmp.eq.s32.totalorder %s9, 0
    %p85 = por %p83, %p84
    %p86 = scmp.ne.s32.totalorder %s78, %s80
    %p87 = scmp.eq.s32.totalorder %s14, 1
    %p88 = por %p86, %p87
    %p89 = scmp.ne.s32.totalorder %s80, %s81
    %p90 = scmp.eq.s32.totalorder %s14, 0
    %p91 = por %p89, %p90
    %p92 = scmp.ne.s32.totalorder %s80, %s81
    %p93 = scmp.eq.s32.totalorder %s15, 1
    %p94 = por %p92, %p93
    %p96 = scmp.ne.s32.totalorder %s81, %s95
    %p97 = scmp.eq.s32.totalorder %s15, 0
    %p98 = por %p96, %p97
    %s99 = ssub.s32 %s16, %s28
    %p100 = scmp.eq.s32.totalorder %s99, 0
    %s102 = sadd.s32 %s101, 1
    %s103 = scalar_select %p100, %s101, %s102
    %p106 = pneg %p100
    %p107 = scmp.eq.s32.totalorder %s9, 1
    %p108 = por %p106, %p107
    %p109 = scmp.ne.s32.totalorder %s101, %s104
    %p110 = scmp.eq.s32.totalorder %s9, 0
    %p111 = por %p109, %p110
    %p112 = scmp.ne.s32.totalorder %s101, %s104
    %p113 = scmp.eq.s32.totalorder %s14, 1
    %p114 = por %p112, %p113
    %p115 = scmp.ne.s32.totalorder %s104, %s105
    %p116 = scmp.eq.s32.totalorder %s14, 0
    %p117 = por %p115, %p116
    %p118 = scmp.ne.s32.totalorder %s104, %s105
    %p119 = scmp.eq.s32.totalorder %s15, 1
    %p120 = por %p118, %p119
    %p122 = scmp.ne.s32.totalorder %s105, %s121
    %p123 = scmp.eq.s32.totalorder %s15, 0
    %p124 = por %p122, %p123
    %p125 = scmp.le.s32.totalorder 1, %s9
    %p126 = scmp.lt.s32.totalorder %s9, 3
    %p127 = pnand %p125, %p126
    %p128 = pneg %p127
    // Predicated region
    $region9: #{_lambda_.14} parent=5 // pred_check
      _
    $region10: #{_lambda_.14} parent=5 // pred_check_branch
      %130 = sbr.rel (%p127) target = $region12
    $region11: #{_lambda_.14} parent=5 // pred_region
      %s131 = ssub.s32 %s9, 1
      // Predicated region
      $region13: #{_lambda_.14} parent=11 // pred_check
        %p132 = pneg %p70
      $region14: #{_lambda_.14} parent=11 // pred_check_branch
        %134 = sbr.rel (%p132) target = $region16
      $region15: #{_lambda_.14} parent=11 // pred_region
        _
      $region16: #{_lambda_.14} parent=11 // pred_fallthru
        _
      // Predicated region
      $region17: #{_lambda_.14} parent=11 // pred_check
        %p135 = pneg %p91
      $region18: #{_lambda_.14} parent=11 // pred_check_branch
        %137 = sbr.rel (%p135) target = $region20
      $region19: #{_lambda_.14} parent=11 // pred_region
        _
      $region20: #{_lambda_.14} parent=11 // pred_fallthru
        _
    $region12: #{_lambda_.14} parent=5 // pred_fallthru
      _
    %p138 = scmp.lt.s32.totalorder %s9, 2
    // Predicated region
    $region21: #{_lambda_.14} parent=5 // pred_check
      %p139 = pneg %p138
    $region22: #{_lambda_.14} parent=5 // pred_check_branch
      %141 = sbr.rel (%p139) target = $region24
    $region23: #{_lambda_.14} parent=5 // pred_region
      // Predicated region
      $region25: #{_lambda_.14} parent=23 // pred_check
        %p142 = pneg %p43
      $region26: #{_lambda_.14} parent=23 // pred_check_branch
        %144 = sbr.rel (%p142) target = $region28
      $region27: #{_lambda_.14} parent=23 // pred_region
        %s145 = smul.u32 8, %s17
        %p146 = scmp.lt.s32.totalorder %s16, 1
        %s147 = scalar_select %p146, %s16, 1
        %p148 = scmp.lt.s32.totalorder %s145, 7
        %s149 = scalar_select %p148, %s145, 7
        %s150 = smul.addr %s147, 8
        %s151 = sadd.s32 %s149, %s150
        %s152 = smul.addr %s151, 4
        %s153 = scalar_lea.vmem %s0, %s152
        %s154 = smul.u32 8, %s17
      $region28: #{_lambda_.14} parent=23 // pred_fallthru
        _
    $region24: #{_lambda_.14} parent=5 // pred_fallthru
      _
    %p155 = scmp.le.s32.totalorder 1, %s9
    %p156 = scmp.lt.s32.totalorder %s9, 3
    %p157 = pnand %p155, %p156
    %p158 = pneg %p157
    // Predicated region
    $region29: #{_lambda_.14} parent=5 // pred_check
      _
    $region30: #{_lambda_.14} parent=5 // pred_check_branch
      %160 = sbr.rel (%p157) target = $region32
    $region31: #{_lambda_.14} parent=5 // pred_region
      %s161 = ssub.s32 %s9, 1
      %s162 = smul.u32 8, %s19
      %p163 = scmp.lt.s32.totalorder %s18, 1
      %s164 = scalar_select %p163, %s18, 1
      %p165 = scmp.lt.s32.totalorder %s162, 7
      %s166 = scalar_select %p165, %s162, 7
      %s167 = smul.addr %s164, 8
      %s168 = sadd.s32 %s166, %s167
      %s169 = smul.addr %s168, 4
      %s170 = scalar_lea.vmem %s0, %s169
      %p171 = pneg %p49
      %p172 = pneg %p46
      %p173 = pneg %p70
      %p174 = pneg %p67
      %p175 = pneg %p91
      %p176 = pneg %p88
      %p177 = pneg %p117
      %p178 = pneg %p114
      %p179 = scmp.lt.s32.totalorder %s18, 1
      %s180 = scalar_select %p179, %s18, 1
      %s181 = smul.addr %s180, 8
      %s182 = smul.addr %s181, 4
      %s183 = scalar_lea.vmem %s3, %s182
      %s184 = smul.u32 8, %s19
      %p185 = scmp.lt.s32.totalorder %s18, 1
      %s186 = scalar_select %p185, %s18, 1
      %p187 = scmp.lt.s32.totalorder %s184, 7
      %s188 = scalar_select %p187, %s184, 7
      %s189 = smul.addr %s186, 8
      %s190 = sadd.s32 %s188, %s189
      %s191 = smul.addr %s190, 4
      %s192 = scalar_lea.vmem %s0, %s191
      %s193 = smul.u32 8, %s19
      %p194 = scmp.lt.s32.totalorder %s18, 1
      %s195 = scalar_select %p194, %s18, 1
      %s196 = smul.addr %s195, 8
      %s197 = smul.addr %s196, 4
      %s198 = scalar_lea.vmem %s3, %s197
      %v200 = vld [vmem:[%s192] sm:$0xf]
      %v201 = vld [vmem:[%s192 + $0x4] sm:$0xf]
      %v202 = vld [vmem:[%s192 + $0x8] sm:$0xf]
      %v203 = vld [vmem:[%s192 + $0xc] sm:$0xf]
      %v204 = vld [vmem:[%s192 + $0x10] sm:$0xf]
      %v205 = vld [vmem:[%s192 + $0x14] sm:$0xf]
      %v206 = vld [vmem:[%s192 + $0x18] sm:$0xf]
      %v207 = vld [vmem:[%s192 + $0x1c] sm:$0xf]
      %v208 = vld [vmem:[%s1] sm:$0xf]
      %v209 = vld [vmem:[%s1 + $0x4] sm:$0xf]
      %v210 = vld [vmem:[%s1 + $0x8] sm:$0xf]
      %v211 = vld [vmem:[%s1 + $0xc] sm:$0xf]
      %v212 = vld [vmem:[%s1 + $0x10] sm:$0xf]
      %v213 = vld [vmem:[%s1 + $0x14] sm:$0xf]
      %v214 = vld [vmem:[%s1 + $0x18] sm:$0xf]
      %v215 = vld [vmem:[%s1 + $0x1c] sm:$0xf]
      %v216 = vld [vmem:[%s1 + $0x20] sm:$0xf]
      %v217 = vld [vmem:[%s1 + $0x24] sm:$0xf]
      %v218 = vld [vmem:[%s1 + $0x28] sm:$0xf]
      %v219 = vld [vmem:[%s1 + $0x2c] sm:$0xf]
      %v220 = vld [vmem:[%s1 + $0x30] sm:$0xf]
      %v221 = vld [vmem:[%s1 + $0x34] sm:$0xf]
      %v222 = vld [vmem:[%s1 + $0x38] sm:$0xf]
      %v223 = vld [vmem:[%s1 + $0x3c] sm:$0xf]
      %v224 = vld [vmem:[%s2] sm:$0x1]
      %v226 = vlaneseq
      %v227 = vshrl.u32 %v226, 7
      %v228 = vsub.s32 0, %v227
      %v229 = vrot.slane %v224, %v228
      %v239 = vunpack.c.l.b16 %v200
      %v240 = vunpack.c.l.b16 %v201
      %v241 = vunpack.c.l.b16 %v202
      %v242 = vunpack.c.l.b16 %v203
      %v243 = vunpack.c.l.b16 %v204
      %v244 = vunpack.c.l.b16 %v205
      %v245 = vunpack.c.l.b16 %v206
      %v246 = vunpack.c.l.b16 %v207
      %v247 = vpack.c.b16 %v240, %v239
      %v248 = vpack.c.b16 %v242, %v241
      %v249 = vpack.c.b16 %v244, %v243
      %v250 = vpack.c.b16 %v246, %v245
      %v271 = vunpack.c.l.b16 %v208
      %v272 = vunpack.c.l.b16 %v209
      %v273 = vunpack.c.l.b16 %v210
      %v274 = vunpack.c.l.b16 %v211
      %v275 = vunpack.c.l.b16 %v212
      %v276 = vunpack.c.l.b16 %v213
      %v277 = vunpack.c.l.b16 %v214
      %v278 = vunpack.c.l.b16 %v215
      %v279 = vunpack.c.l.b16 %v216
      %v280 = vunpack.c.l.b16 %v217
      %v281 = vunpack.c.l.b16 %v218
      %v282 = vunpack.c.l.b16 %v219
      %v283 = vunpack.c.l.b16 %v220
      %v284 = vunpack.c.l.b16 %v221
      %v285 = vunpack.c.l.b16 %v222
      %v286 = vunpack.c.l.b16 %v223
      %v287 = vpack.c.b16 %v272, %v271
      %v288 = vpack.c.b16 %v274, %v273
      %v289 = vpack.c.b16 %v276, %v275
      %v290 = vpack.c.b16 %v278, %v277
      %v291 = vpack.c.b16 %v280, %v279
      %v292 = vpack.c.b16 %v282, %v281
      %v293 = vpack.c.b16 %v284, %v283
      %v294 = vpack.c.b16 %v286, %v285
      %303 = vmatprep.subr.bf16.mxu0 0
      %304 = vmatpush1.bf16.msra.mxu0 %v287
      %305 = vmatprep.subr.bf16.mxu0 0
      %306 = vmatpush1.bf16.msra.mxu0 %v288
      %307 = vmatprep.subr.bf16.mxu0 0
      %308 = vmatpush1.bf16.msra.mxu0 %v289
      %309 = vmatprep.subr.bf16.mxu0 0
      %310 = vmatpush1.bf16.msra.mxu0 %v290
      %311 = vmatprep.subr.bf16.mxu0 0
      %312 = vmatpush1.bf16.msra.mxu0 %v291
      %313 = vmatprep.subr.bf16.mxu0 0
      %314 = vmatpush1.bf16.msra.mxu0 %v292
      %315 = vmatprep.subr.bf16.mxu0 0
      %316 = vmatpush1.bf16.msra.mxu0 %v293
      %317 = vmatprep.subr.bf16.mxu0 0
      %318 = vmatpush1.bf16.msra.mxu0 %v294
      %319 = vmatprep.subr.bf16.mxu0 0
      %320 = vmatpush1.bf16.msra.mxu0 0
      %321 = vmatprep.subr.bf16.mxu0 0
      %322 = vmatpush1.bf16.msra.mxu0 0
      %323 = vmatprep.subr.bf16.mxu0 0
      %324 = vmatpush1.bf16.msra.mxu0 0
      %325 = vmatprep.subr.bf16.mxu0 0
      %326 = vmatpush1.bf16.msra.mxu0 0
      %327 = vmatprep.subr.bf16.mxu0 0
      %328 = vmatpush1.bf16.msra.mxu0 0
      %329 = vmatprep.subr.bf16.mxu0 0
      %330 = vmatpush1.bf16.msra.mxu0 0
      %331 = vmatprep.subr.bf16.mxu0 0
      %332 = vmatpush1.bf16.msra.mxu0 0
      %333 = vmatprep.subr.bf16.mxu0 0
      %334 = vmatpush1.bf16.msra.mxu0 0
      %335 = vmatprep.mubr.bf16.mxu0 0
      %336 = vmatmul.mubr.bf16.gmra.mrb[0].mxu0 %v247
      %v337 = vpop.f32.mrb[0].mxu0
      %v338 = vadd.f32 %v229, %v337
      %v339 = vpop.f32.mrb[0].mxu0
      %v340 = vpop.f32.mrb[0].mxu0
      %v341 = vadd.f32 %v229, %v340
      %v342 = vpop.f32.mrb[0].mxu0
      %343 = vmatprep.mubr.bf16.mxu0 0
      %344 = vmatmul.mubr.bf16.gmra.mrb[0].mxu0 %v248
      %v345 = vpop.f32.mrb[0].mxu0
      %v346 = vadd.f32 %v229, %v345
      %v347 = vpop.f32.mrb[0].mxu0
      %v348 = vpop.f32.mrb[0].mxu0
      %v349 = vadd.f32 %v229, %v348
      %v350 = vpop.f32.mrb[0].mxu0
      %351 = vmatprep.mubr.bf16.mxu0 0
      %352 = vmatmul.mubr.bf16.gmra.mrb[0].mxu0 %v249
      %v353 = vpop.f32.mrb[0].mxu0
      %v354 = vadd.f32 %v229, %v353
      %v355 = vpop.f32.mrb[0].mxu0
      %v356 = vpop.f32.mrb[0].mxu0
      %v357 = vadd.f32 %v229, %v356
      %v358 = vpop.f32.mrb[0].mxu0
      %359 = vmatprep.mubr.bf16.mxu0 0
      %360 = vmatmul.mubr.bf16.gmra.mrb[0].mxu0 %v250
      %v361 = vpop.f32.mrb[0].mxu0
      %v362 = vadd.f32 %v229, %v361
      %v363 = vpop.f32.mrb[0].mxu0
      %v364 = vpop.f32.mrb[0].mxu0
      %v365 = vadd.f32 %v229, %v364
      %v366 = vpop.f32.mrb[0].mxu0
      %367 = vdwg.mxu0
      %v368 = vadd.f32 %v338, %v341
      %v369 = vadd.f32 %v368, %v346
      %v370 = vadd.f32 %v369, %v349
      %v371 = vadd.f32 %v370, %v354
      %v372 = vadd.f32 %v371, %v357
      %v373 = vadd.f32 %v372, %v362
      %v374 = vadd.f32 %v373, %v365
      %v375 = vrot.slane %v374, 4
      %v376 = vadd.f32 %v374, %v375
      %v377 = vrot.slane %v376, 2
      %v378 = vadd.f32 %v376, %v377
      %v379 = vrot.slane %v378, 1
      %v380 = vadd.f32 %v378, %v379
      %v381 = vrcp.pop 64.0
      %v382 = vmul.f32 %v380, %v381
      %v383 = vsub.f32 %v338, %v382
      %v384 = vsub.f32 %v341, %v382
      %v385 = vsub.f32 %v346, %v382
      %v386 = vsub.f32 %v349, %v382
      %v387 = vsub.f32 %v354, %v382
      %v388 = vsub.f32 %v357, %v382
      %v389 = vsub.f32 %v362, %v382
      %v390 = vsub.f32 %v365, %v382
      %v391 = vmul.f32 %v383, %v383
      %v392 = vmul.f32 %v384, %v384
      %v393 = vmul.f32 %v385, %v385
      %v394 = vmul.f32 %v386, %v386
      %v395 = vmul.f32 %v387, %v387
      %v396 = vmul.f32 %v388, %v388
      %v397 = vmul.f32 %v389, %v389
      %v398 = vmul.f32 %v390, %v390
      %v399 = vadd.f32 %v391, %v392
      %v400 = vadd.f32 %v399, %v393
      %v401 = vadd.f32 %v400, %v394
      %v402 = vadd.f32 %v401, %v395
      %v403 = vadd.f32 %v402, %v396
      %v404 = vadd.f32 %v403, %v397
      %v405 = vadd.f32 %v404, %v398
      %v406 = vrot.slane %v405, 4
      %v407 = vadd.f32 %v405, %v406
      %v408 = vrot.slane %v407, 2
      %v409 = vadd.f32 %v407, %v408
      %v410 = vrot.slane %v409, 1
      %v411 = vadd.f32 %v409, %v410
      %v412 = vmul.f32 %v411, %v381
      %v413 = vadd.f32 %v412, 1e-05
      %v414 = vrsqrt.pop %v413
      %v415 = vmul.f32 %v383, %v414
      %v416 = vmul.f32 %v384, %v414
      %v417 = vmul.f32 %v385, %v414
      %v418 = vmul.f32 %v386, %v414
      %v419 = vmul.f32 %v387, %v414
      %v420 = vmul.f32 %v388, %v414
      %v421 = vmul.f32 %v389, %v414
      %v422 = vmul.f32 %v390, %v414
      %v423 = vmax.f32 %v415, 0.0
      %v424 = vmax.f32 %v416, 0.0
      %v425 = vmax.f32 %v417, 0.0
      %v426 = vmax.f32 %v418, 0.0
      %v427 = vmax.f32 %v419, 0.0
      %v428 = vmax.f32 %v420, 0.0
      %v429 = vmax.f32 %v421, 0.0
      %v430 = vmax.f32 %v422, 0.0
      %v431 = vpack.c.bf16 %v424, %v423
      %v432 = vpack.c.bf16 %v426, %v425
      %v433 = vpack.c.bf16 %v428, %v427
      %v434 = vpack.c.bf16 %v430, %v429
      %v439 = vunpack.c.l.b16 %v431
      %v440 = vunpack.c.h.b16 %v431
      %v441 = vunpack.c.l.b16 %v432
      %v442 = vunpack.c.h.b16 %v432
      %v443 = vunpack.c.l.b16 %v433
      %v444 = vunpack.c.h.b16 %v433
      %v445 = vunpack.c.l.b16 %v434
      %v446 = vunpack.c.h.b16 %v434
      %v447 = vpack.c.b16 %v439, %v439
      %v448 = vpack.c.b16 %v440, %v440
      %v449 = vpack.c.b16 %v441, %v441
      %v450 = vpack.c.b16 %v442, %v442
      %v451 = vpack.c.b16 %v443, %v443
      %v452 = vpack.c.b16 %v444, %v444
      %v453 = vpack.c.b16 %v445, %v445
      %v454 = vpack.c.b16 %v446, %v446
      %463 = vst [vmem:[%s198] sm:$0xf] %v447
      %464 = vst [vmem:[%s198 + $0x4] sm:$0xf] %v448
      %465 = vst [vmem:[%s198 + $0x8] sm:$0xf] %v449
      %466 = vst [vmem:[%s198 + $0xc] sm:$0xf] %v450
      %467 = vst [vmem:[%s198 + $0x10] sm:$0xf] %v451
      %468 = vst [vmem:[%s198 + $0x14] sm:$0xf] %v452
      %469 = vst [vmem:[%s198 + $0x18] sm:$0xf] %v453
      %470 = vst [vmem:[%s198 + $0x1c] sm:$0xf] %v454
      %p471 = scmp.lt.s32.totalorder %s18, 1
      %s472 = scalar_select %p471, %s18, 1
      %s473 = smul.addr %s472, 8
      %s474 = smul.addr %s473, 4
      %s475 = scalar_lea.vmem %s3, %s474
      // Predicated region
      $region33: #{_lambda_.14} parent=31 // pred_check
        %p476 = pneg %p114
      $region34: #{_lambda_.14} parent=31 // pred_check_branch
        %478 = sbr.rel (%p476) target = $region36
      $region35: #{_lambda_.14} parent=31 // pred_region
        _
      $region36: #{_lambda_.14} parent=31 // pred_fallthru
        _
    $region32: #{_lambda_.14} parent=5 // pred_fallthru
      _
    %p479 = scmp.le.s32.totalorder 2, %s9
    // Predicated region
    $region37: #{_lambda_.14} parent=5 // pred_check
      %p480 = pneg %p479
    $region38: #{_lambda_.14} parent=5 // pred_check_branch
      %482 = sbr.rel (%p480) target = $region40
    $region39: #{_lambda_.14} parent=5 // pred_region
      %s483 = ssub.s32 %s9, 2
      // Predicated region
      $region41: #{_lambda_.14} parent=39 // pred_check
        %p484 = pneg %p120
      $region42: #{_lambda_.14} parent=39 // pred_check_branch
        %486 = sbr.rel (%p484) target = $region44
      $region43: #{_lambda_.14} parent=39 // pred_region
        %p487 = scmp.lt.s32.totalorder %s20, 1
        %s488 = scalar_select %p487, %s20, 1
        %s489 = smul.addr %s488, 8
        %s490 = smul.addr %s489, 4
        %s491 = scalar_lea.vmem %s3, %s490
      $region44: #{_lambda_.14} parent=39 // pred_fallthru
        _
    $region40: #{_lambda_.14} parent=5 // pred_fallthru
      _
  $region6: #{_lambda_.14} parent=0 // loop_footer
    %s13 = sadd.s32 1, %s9
  $region7: #{_lambda_.14} parent=0 // loop_footer_branch
    %8 = sbr.rel target = $region3
  $region8: #{_lambda_.14} parent=0 // loop_exit
    _

// kernel: _lambda_.15
$region0: #{_lambda_.15}
  #allocation0 [shape = 'u32[]', space=smem, size = 0x4, offset = 0x4, fixed_abs, tag = 'smem constant byte address 0x4 - core index']
  #allocation1 [shape = 'u32[144,128]{1,0:T(1,128)}', space=vmem, size = 0x12000, scoped, tag = 'internal scratch']
  %s0 = inlined_call_operand.vmem [shape: bf16[2,16,256], index: 0, kind: input, shape index: {}]
  %s1 = inlined_call_operand.vmem [shape: bf16[256,128], index: 1, kind: input, shape index: {}]
  %s2 = inlined_call_operand.vmem [shape: f32[1,128], index: 2, kind: input, shape index: {}]
  %s3 = inlined_call_operand.vmem [shape: bf16[2,16,128], index: 3, kind: output, shape index: {}]
  %s4 = sld [smem:[#allocation0]]
  $region45: #{_lambda_.15} parent=0
    _
  %s6 = ssub.s32 1, %s4
  %s7 = scalar_select 0, %s6, %s4
  loop: start=0, step=1, limit=4
  $region2: #{_lambda_.15} parent=0 // loop_pre_header
    _
  $region3: #{_lambda_.15} parent=0 // loop_header
    %s9 = sphi 0, %s13
    %p10 = scmp.ge.s32.totalorder %s9, 4
    %s16 = sphi 0, %s28
    %s17 = sphi 0, %s24
    %s18 = sphi 0, %s16
    %s19 = sphi 0, %s17
    %s20 = sphi 0, %s18
    %s21 = sphi 0, %s19
    %s33 = sphi 0, %s35
    %s36 = sphi 0, %s33
    %s37 = sphi 0, %s36
    %s53 = sphi 0, %s37
    %s57 = sphi 0, %s57
    %s59 = sphi 0, %s57
    %s60 = sphi 0, %s59
    %s74 = sphi 0, %s60
    %s78 = sphi 0, %s78
    %s80 = sphi 0, %s78
    %s81 = sphi 0, %s80
    %s95 = sphi 0, %s81
    %s101 = sphi 0, %s103
    %s104 = sphi 0, %s101
    %s105 = sphi 0, %s104
    %s121 = sphi 0, %s105
  $region4: #{_lambda_.15} parent=0 // loop_header_branch
    %12 = sbr.rel (%p10) target = $region8
  $region5: #{_lambda_.15} parent=0 // loop_body
    %s14 = ssub.s32 %s9, 1
    %s15 = ssub.s32 %s9, 2
    %s22 = sadd.s32 1, %s17
    %p23 = scmp.ge.s32.totalorder %s22, 1
    %s24 = scalar_select %p23, 0, %s22
    %s25 = sadd.s32 1, %s16
    %s26 = scalar_select %p23, %s25, %s16
    %p27 = scmp.ge.s32.totalorder %s26, 2
    %s28 = scalar_select %p27, 0, %s26
    %s29 = ssub.s32 %s16, %s28
    %s30 = ssub.s32 %s17, %s24
    %s31 = sor.u32 %s29, %s30
    %p32 = scmp.eq.s32.totalorder %s31, 0
    %s34 = sadd.s32 %s33, 1
    %s35 = scalar_select %p32, %s33, %s34
    %p38 = pneg %p32
    %p39 = scmp.eq.s32.totalorder %s9, 1
    %p40 = por %p38, %p39
    %p41 = scmp.ne.s32.totalorder %s33, %s36
    %p42 = scmp.eq.s32.totalorder %s9, 0
    %p43 = por %p41, %p42
    %p44 = scmp.ne.s32.totalorder %s33, %s36
    %p45 = scmp.eq.s32.totalorder %s14, 1
    %p46 = por %p44, %p45
    %p47 = scmp.ne.s32.totalorder %s36, %s37
    %p48 = scmp.eq.s32.totalorder %s14, 0
    %p49 = por %p47, %p48
    %p50 = scmp.ne.s32.totalorder %s36, %s37
    %p51 = scmp.eq.s32.totalorder %s15, 1
    %p52 = por %p50, %p51
    %p54 = scmp.ne.s32.totalorder %s37, %s53
    %p55 = scmp.eq.s32.totalorder %s15, 0
    %p56 = por %p54, %p55
    %s58 = sadd.s32 %s57, 1
    %p61 = scmp.eq.s32.totalorder %s9, 1
    %p62 = scmp.ne.s32.totalorder %s57, %s59
    %p63 = scmp.eq.s32.totalorder %s9, 0
    %p64 = por %p62, %p63
    %p65 = scmp.ne.s32.totalorder %s57, %s59
    %p66 = scmp.eq.s32.totalorder %s14, 1
    %p67 = por %p65, %p66
    %p68 = scmp.ne.s32.totalorder %s59, %s60
    %p69 = scmp.eq.s32.totalorder %s14, 0
    %p70 = por %p68, %p69
    %p71 = scmp.ne.s32.totalorder %s59, %s60
    %p72 = scmp.eq.s32.totalorder %s15, 1
    %p73 = por %p71, %p72
    %p75 = scmp.ne.s32.totalorder %s60, %s74
    %p76 = scmp.eq.s32.totalorder %s15, 0
    %p77 = por %p75, %p76
    %s79 = sadd.s32 %s78, 1
    %p82 = scmp.eq.s32.totalorder %s9, 1
    %p83 = scmp.ne.s32.totalorder %s78, %s80
    %p84 = scmp.eq.s32.totalorder %s9, 0
    %p85 = por %p83, %p84
    %p86 = scmp.ne.s32.totalorder %s78, %s80
    %p87 = scmp.eq.s32.totalorder %s14, 1
    %p88 = por %p86, %p87
    %p89 = scmp.ne.s32.totalorder %s80, %s81
    %p90 = scmp.eq.s32.totalorder %s14, 0
    %p91 = por %p89, %p90
    %p92 = scmp.ne.s32.totalorder %s80, %s81
    %p93 = scmp.eq.s32.totalorder %s15, 1
    %p94 = por %p92, %p93
    %p96 = scmp.ne.s32.totalorder %s81, %s95
    %p97 = scmp.eq.s32.totalorder %s15, 0
    %p98 = por %p96, %p97
    %s99 = ssub.s32 %s16, %s28
    %p100 = scmp.eq.s32.totalorder %s99, 0
    %s102 = sadd.s32 %s101, 1
    %s103 = scalar_select %p100, %s101, %s102
    %p106 = pneg %p100
    %p107 = scmp.eq.s32.totalorder %s9, 1
    %p108 = por %p106, %p107
    %p109 = scmp.ne.s32.totalorder %s101, %s104
    %p110 = scmp.eq.s32.totalorder %s9, 0
    %p111 = por %p109, %p110
    %p112 = scmp.ne.s32.totalorder %s101, %s104
    %p113 = scmp.eq.s32.totalorder %s14, 1
    %p114 = por %p112, %p113
    %p115 = scmp.ne.s32.totalorder %s104, %s105
    %p116 = scmp.eq.s32.totalorder %s14, 0
    %p117 = por %p115, %p116
    %p118 = scmp.ne.s32.totalorder %s104, %s105
    %p119 = scmp.eq.s32.totalorder %s15, 1
    %p120 = por %p118, %p119
    %p122 = scmp.ne.s32.totalorder %s105, %s121
    %p123 = scmp.eq.s32.totalorder %s15, 0
    %p124 = por %p122, %p123
    %p125 = scmp.le.s32.totalorder 1, %s9
    %p126 = scmp.lt.s32.totalorder %s9, 3
    %p127 = pnand %p125, %p126
    %p128 = pneg %p127
    // Predicated region
    $region9: #{_lambda_.15} parent=5 // pred_check
      _
    $region10: #{_lambda_.15} parent=5 // pred_check_branch
      %130 = sbr.rel (%p127) target = $region12
    $region11: #{_lambda_.15} parent=5 // pred_region
      %s131 = ssub.s32 %s9, 1
      // Predicated region
      $region13: #{_lambda_.15} parent=11 // pred_check
        %p132 = pneg %p70
      $region14: #{_lambda_.15} parent=11 // pred_check_branch
        %134 = sbr.rel (%p132) target = $region16
      $region15: #{_lambda_.15} parent=11 // pred_region
        _
      $region16: #{_lambda_.15} parent=11 // pred_fallthru
        _
      // Predicated region
      $region17: #{_lambda_.15} parent=11 // pred_check
        %p135 = pneg %p91
      $region18: #{_lambda_.15} parent=11 // pred_check_branch
        %137 = sbr.rel (%p135) target = $region20
      $region19: #{_lambda_.15} parent=11 // pred_region
        _
      $region20: #{_lambda_.15} parent=11 // pred_fallthru
        _
    $region12: #{_lambda_.15} parent=5 // pred_fallthru
      _
    %p138 = scmp.lt.s32.totalorder %s9, 2
    // Predicated region
    $region21: #{_lambda_.15} parent=5 // pred_check
      %p139 = pneg %p138
    $region22: #{_lambda_.15} parent=5 // pred_check_branch
      %141 = sbr.rel (%p139) target = $region24
    $region23: #{_lambda_.15} parent=5 // pred_region
      // Predicated region
      $region25: #{_lambda_.15} parent=23 // pred_check
        %p142 = pneg %p43
      $region26: #{_lambda_.15} parent=23 // pred_check_branch
        %144 = sbr.rel (%p142) target = $region28
      $region27: #{_lambda_.15} parent=23 // pred_region
        %s145 = smul.u32 2, %s17
        %p146 = scmp.lt.s32.totalorder %s16, 1
        %s147 = scalar_select %p146, %s16, 1
        %p148 = scmp.lt.s32.totalorder %s145, 1
        %s149 = scalar_select %p148, %s145, 1
        %s150 = smul.addr %s149, 2
        %s151 = smul.addr %s147, 4
        %s152 = sadd.s32 %s150, %s151
        %s153 = smul.addr %s152, 4
        %s154 = scalar_lea.vmem %s0, %s153
        %s155 = smul.u32 2, %s17
      $region28: #{_lambda_.15} parent=23 // pred_fallthru
        _
    $region24: #{_lambda_.15} parent=5 // pred_fallthru
      _
    %p156 = scmp.le.s32.totalorder 1, %s9
    %p157 = scmp.lt.s32.totalorder %s9, 3
    %p158 = pnand %p156, %p157
    %p159 = pneg %p158
    // Predicated region
    $region29: #{_lambda_.15} parent=5 // pred_check
      _
    $region30: #{_lambda_.15} parent=5 // pred_check_branch
      %161 = sbr.rel (%p158) target = $region32
    $region31: #{_lambda_.15} parent=5 // pred_region
      %s162 = ssub.s32 %s9, 1
      %s163 = smul.u32 2, %s19
      %p164 = scmp.lt.s32.totalorder %s18, 1
      %s165 = scalar_select %p164, %s18, 1
      %p166 = scmp.lt.s32.totalorder %s163, 1
      %s167 = scalar_select %p166, %s163, 1
      %s168 = smul.addr %s167, 2
      %s169 = smul.addr %s165, 4
      %s170 = sadd.s32 %s168, %s169
      %s171 = smul.addr %s170, 4
      %s172 = scalar_lea.vmem %s0, %s171
      %p173 = pneg %p49
      %p174 = pneg %p46
      %p175 = pneg %p70
      %p176 = pneg %p67
      %p177 = pneg %p91
      %p178 = pneg %p88
      %p179 = pneg %p117
      %p180 = pneg %p114
      %p181 = scmp.lt.s32.totalorder %s18, 1
      %s182 = scalar_select %p181, %s18, 1
      %s183 = smul.addr %s182, 2
      %s184 = smul.addr %s183, 4
      %s185 = scalar_lea.vmem %s3, %s184
      %s186 = smul.u32 2, %s19
      %p187 = scmp.lt.s32.totalorder %s18, 1
      %s188 = scalar_select %p187, %s18, 1
      %p189 = scmp.lt.s32.totalorder %s186, 1
      %s190 = scalar_select %p189, %s186, 1
      %s191 = smul.addr %s190, 2
      %s192 = smul.addr %s188, 4
      %s193 = sadd.s32 %s191, %s192
      %s194 = smul.addr %s193, 4
      %s195 = scalar_lea.vmem %s0, %s194
      %s196 = smul.u32 2, %s19
      %p197 = scmp.lt.s32.totalorder %s18, 1
      %s198 = scalar_select %p197, %s18, 1
      %s199 = smul.addr %s198, 2
      %s200 = smul.addr %s199, 4
      %s201 = scalar_lea.vmem %s3, %s200
      %v203 = vld [vmem:[%s195] sm:$0xff]
      %v204 = vld [vmem:[%s195 + $0x8] sm:$0xff]
      %v205 = vld [vmem:[%s1] sm:$0xf]
      %v206 = vld [vmem:[%s1 + $0x4] sm:$0xf]
      %v207 = vld [vmem:[%s1 + $0x8] sm:$0xf]
      %v208 = vld [vmem:[%s1 + $0xc] sm:$0xf]
      %v209 = vld [vmem:[%s1 + $0x10] sm:$0xf]
      %v210 = vld [vmem:[%s1 + $0x14] sm:$0xf]
      %v211 = vld [vmem:[%s1 + $0x18] sm:$0xf]
      %v212 = vld [vmem:[%s1 + $0x1c] sm:$0xf]
      %v213 = vld [vmem:[%s1 + $0x20] sm:$0xf]
      %v214 = vld [vmem:[%s1 + $0x24] sm:$0xf]
      %v215 = vld [vmem:[%s1 + $0x28] sm:$0xf]
      %v216 = vld [vmem:[%s1 + $0x2c] sm:$0xf]
      %v217 = vld [vmem:[%s1 + $0x30] sm:$0xf]
      %v218 = vld [vmem:[%s1 + $0x34] sm:$0xf]
      %v219 = vld [vmem:[%s1 + $0x38] sm:$0xf]
      %v220 = vld [vmem:[%s1 + $0x3c] sm:$0xf]
      %v221 = vld [vmem:[%s1 + $0x40] sm:$0xf]
      %v222 = vld [vmem:[%s1 + $0x44] sm:$0xf]
      %v223 = vld [vmem:[%s1 + $0x48] sm:$0xf]
      %v224 = vld [vmem:[%s1 + $0x4c] sm:$0xf]
      %v225 = vld [vmem:[%s1 + $0x50] sm:$0xf]
      %v226 = vld [vmem:[%s1 + $0x54] sm:$0xf]
      %v227 = vld [vmem:[%s1 + $0x58] sm:$0xf]
      %v228 = vld [vmem:[%s1 + $0x5c] sm:$0xf]
      %v229 = vld [vmem:[%s1 + $0x60] sm:$0xf]
      %v230 = vld [vmem:[%s1 + $0x64] sm:$0xf]
      %v231 = vld [vmem:[%s1 + $0x68] sm:$0xf]
      %v232 = vld [vmem:[%s1 + $0x6c] sm:$0xf]
      %v233 = vld [vmem:[%s1 + $0x70] sm:$0xf]
      %v234 = vld [vmem:[%s1 + $0x74] sm:$0xf]
      %v235 = vld [vmem:[%s1 + $0x78] sm:$0xf]
      %v236 = vld [vmem:[%s1 + $0x7c] sm:$0xf]
      %v237 = vld [vmem:[%s2] sm:$0x1]
      %v239 = vlaneseq
      %v240 = vshrl.u32 %v239, 7
      %v241 = vsub.s32 0, %v240
      %v242 = vrot.slane %v237, %v241
      %v246 = vunpack.c.l.b16 %v203
      %v247 = vunpack.c.h.b16 %v203
      %v248 = vunpack.c.l.b16 %v204
      %v249 = vunpack.c.h.b16 %v204
      %v250 = vpack.c.b16 %v248, %v246
      %v251 = vpack.c.b16 %v249, %v247
      %v286 = vunpack.c.l.b16 %v205
      %v287 = vunpack.c.l.b16 %v206
      %v288 = vunpack.c.l.b16 %v207
      %v289 = vunpack.c.l.b16 %v208
      %v290 = vunpack.c.l.b16 %v209
      %v291 = vunpack.c.l.b16 %v210
      %v292 = vunpack.c.l.b16 %v211
      %v293 = vunpack.c.l.b16 %v212
      %v294 = vunpack.c.l.b16 %v213
      %v295 = vunpack.c.l.b16 %v214
      %v296 = vunpack.c.l.b16 %v215
      %v297 = vunpack.c.l.b16 %v216
      %v298 = vunpack.c.l.b16 %v217
      %v299 = vunpack.c.l.b16 %v218
      %v300 = vunpack.c.l.b16 %v219
      %v301 = vunpack.c.l.b16 %v220
      %v302 = vunpack.c.l.b16 %v221
      %v303 = vunpack.c.l.b16 %v222
      %v304 = vunpack.c.l.b16 %v223
      %v305 = vunpack.c.l.b16 %v224
      %v306 = vunpack.c.l.b16 %v225
      %v307 = vunpack.c.l.b16 %v226
      %v308 = vunpack.c.l.b16 %v227
      %v309 = vunpack.c.l.b16 %v228
      %v310 = vunpack.c.l.b16 %v229
      %v311 = vunpack.c.l.b16 %v230
      %v312 = vunpack.c.l.b16 %v231
      %v313 = vunpack.c.l.b16 %v232
      %v314 = vunpack.c.l.b16 %v233
      %v315 = vunpack.c.l.b16 %v234
      %v316 = vunpack.c.l.b16 %v235
      %v317 = vunpack.c.l.b16 %v236
      %v318 = vpack.c.b16 %v287, %v286
      %v319 = vpack.c.b16 %v289, %v288
      %v320 = vpack.c.b16 %v291, %v290
      %v321 = vpack.c.b16 %v293, %v292
      %v322 = vpack.c.b16 %v295, %v294
      %v323 = vpack.c.b16 %v297, %v296
      %v324 = vpack.c.b16 %v299, %v298
      %v325 = vpack.c.b16 %v301, %v300
      %v326 = vpack.c.b16 %v303, %v302
      %v327 = vpack.c.b16 %v305, %v304
      %v328 = vpack.c.b16 %v307, %v306
      %v329 = vpack.c.b16 %v309, %v308
      %v330 = vpack.c.b16 %v311, %v310
      %v331 = vpack.c.b16 %v313, %v312
      %v332 = vpack.c.b16 %v315, %v314
      %v333 = vpack.c.b16 %v317, %v316
      %350 = vmatprep.subr.bf16.mxu0 0
      %351 = vmatpush1.bf16.msra.mxu0 %v318
      %352 = vmatprep.subr.bf16.mxu0 0
      %353 = vmatpush1.bf16.msra.mxu0 %v319
      %354 = vmatprep.subr.bf16.mxu0 0
      %355 = vmatpush1.bf16.msra.mxu0 %v320
      %356 = vmatprep.subr.bf16.mxu0 0
      %357 = vmatpush1.bf16.msra.mxu0 %v321
      %358 = vmatprep.subr.bf16.mxu0 0
      %359 = vmatpush1.bf16.msra.mxu0 %v322
      %360 = vmatprep.subr.bf16.mxu0 0
      %361 = vmatpush1.bf16.msra.mxu0 %v323
      %362 = vmatprep.subr.bf16.mxu0 0
      %363 = vmatpush1.bf16.msra.mxu0 %v324
      %364 = vmatprep.subr.bf16.mxu0 0
      %365 = vmatpush1.bf16.msra.mxu0 %v325
      %366 = vmatprep.subr.bf16.mxu0 0
      %367 = vmatpush1.bf16.msra.mxu0 %v326
      %368 = vmatprep.subr.bf16.mxu0 0
      %369 = vmatpush1.bf16.msra.mxu0 %v327
      %370 = vmatprep.subr.bf16.mxu0 0
      %371 = vmatpush1.bf16.msra.mxu0 %v328
      %372 = vmatprep.subr.bf16.mxu0 0
      %373 = vmatpush1.bf16.msra.mxu0 %v329
      %374 = vmatprep.subr.bf16.mxu0 0
      %375 = vmatpush1.bf16.msra.mxu0 %v330
      %376 = vmatprep.subr.bf16.mxu0 0
      %377 = vmatpush1.bf16.msra.mxu0 %v331
      %378 = vmatprep.subr.bf16.mxu0 0
      %379 = vmatpush1.bf16.msra.mxu0 %v332
      %380 = vmatprep.subr.bf16.mxu0 0
      %381 = vmatpush1.bf16.msra.mxu0 %v333
      %382 = vmatprep.mubr.bf16.mxu0 %v251
      %383 = vmatmul.mubr.bf16.gmra.mrb[0].mxu0 %v250
      %v384 = vpop.f32.mrb[0].mxu0
      %v385 = vadd.f32 %v242, %v384
      %v386 = vpop.f32.mrb[0].mxu0
      %v387 = vpop.f32.mrb[0].mxu0
      %v388 = vadd.f32 %v242, %v387
      %v389 = vpop.f32.mrb[0].mxu0
      %390 = vdwg.mxu0
      %v391 = vadd.f32 %v385, %v388
      %v392 = vrot.slane %v391, 4
      %v393 = vadd.f32 %v391, %v392
      %v394 = vrot.slane %v393, 2
      %v395 = vadd.f32 %v393, %v394
      %v396 = vrot.slane %v395, 1
      %v397 = vadd.f32 %v395, %v396
      %v398 = vrcp.pop 16.0
      %v399 = vmul.f32 %v397, %v398
      %v400 = vsub.f32 %v385, %v399
      %v401 = vsub.f32 %v388, %v399
      %v402 = vmul.f32 %v400, %v400
      %v403 = vmul.f32 %v401, %v401
      %v404 = vadd.f32 %v402, %v403
      %v405 = vrot.slane %v404, 4
      %v406 = vadd.f32 %v404, %v405
      %v407 = vrot.slane %v406, 2
      %v408 = vadd.f32 %v406, %v407
      %v409 = vrot.slane %v408, 1
      %v410 = vadd.f32 %v408, %v409
      %v411 = vmul.f32 %v410, %v398
      %v412 = vadd.f32 %v411, 1e-05
      %v413 = vrsqrt.pop %v412
      %v414 = vmul.f32 %v400, %v413
      %v415 = vmul.f32 %v401, %v413
      %v416 = vmax.f32 %v414, 0.0
      %v417 = vmax.f32 %v415, 0.0
      %v418 = vpack.c.bf16 %v417, %v416
      %v420 = vunpack.c.l.b16 %v418
      %v421 = vunpack.c.h.b16 %v418
      %v422 = vpack.c.b16 %v420, %v420
      %v423 = vpack.c.b16 %v421, %v421
      %426 = vst [vmem:[%s201] sm:$0xf] %v422
      %427 = vst [vmem:[%s201 + $0x4] sm:$0xf] %v423
      %p428 = scmp.lt.s32.totalorder %s18, 1
      %s429 = scalar_select %p428, %s18, 1
      %s430 = smul.addr %s429, 2
      %s431 = smul.addr %s430, 4
      %s432 = scalar_lea.vmem %s3, %s431
      // Predicated region
      $region33: #{_lambda_.15} parent=31 // pred_check
        %p433 = pneg %p114
      $region34: #{_lambda_.15} parent=31 // pred_check_branch
        %435 = sbr.rel (%p433) target = $region36
      $region35: #{_lambda_.15} parent=31 // pred_region
        _
      $region36: #{_lambda_.15} parent=31 // pred_fallthru
        _
    $region32: #{_lambda_.15} parent=5 // pred_fallthru
      _
    %p436 = scmp.le.s32.totalorder 2, %s9
    // Predicated region
    $region37: #{_lambda_.15} parent=5 // pred_check
      %p437 = pneg %p436
    $region38: #{_lambda_.15} parent=5 // pred_check_branch
      %439 = sbr.rel (%p437) target = $region40
    $region39: #{_lambda_.15} parent=5 // pred_region
      %s440 = ssub.s32 %s9, 2
      // Predicated region
      $region41: #{_lambda_.15} parent=39 // pred_check
        %p441 = pneg %p120
      $region42: #{_lambda_.15} parent=39 // pred_check_branch
        %443 = sbr.rel (%p441) target = $region44
      $region43: #{_lambda_.15} parent=39 // pred_region
        %p444 = scmp.lt.s32.totalorder %s20, 1
        %s445 = scalar_select %p444, %s20, 1
        %s446 = smul.addr %s445, 2
        %s447 = smul.addr %s446, 4
        %s448 = scalar_lea.vmem %s3, %s447
      $region44: #{_lambda_.15} parent=39 // pred_fallthru
        _
    $region40: #{_lambda_.15} parent=5 // pred_fallthru
      _
  $region6: #{_lambda_.15} parent=0 // loop_footer
    %s13 = sadd.s32 1, %s9
  $region7: #{_lambda_.15} parent=0 // loop_footer_branch
    %8 = sbr.rel target = $region3
  $region8: #{_lambda_.15} parent=0 // loop_exit
    _

// kernel: _lambda_.17
$region0: #{_lambda_.17}
  #allocation0 [shape = 'u32[]', space=smem, size = 0x4, offset = 0x4, fixed_abs, tag = 'smem constant byte address 0x4 - core index']
  #allocation1 [shape = 'u32[144,128]{1,0:T(1,128)}', space=vmem, size = 0x12000, scoped, tag = 'internal scratch']
  %s0 = inlined_call_operand.vmem [shape: bf16[2,16,256], index: 0, kind: input, shape index: {}]
  %s1 = inlined_call_operand.vmem [shape: bf16[256,128], index: 1, kind: input, shape index: {}]
  %s2 = inlined_call_operand.vmem [shape: f32[1,128], index: 2, kind: input, shape index: {}]
  %s3 = inlined_call_operand.vmem [shape: bf16[2,16,128], index: 3, kind: input, shape index: {}]
  %s4 = inlined_call_operand.vmem [shape: bf16[2,16,128], index: 4, kind: output, shape index: {}]
  %s5 = sld [smem:[#allocation0]]
  $region49: #{_lambda_.17} parent=0
    _
  %s7 = ssub.s32 1, %s5
  %s8 = scalar_select 0, %s7, %s5
  loop: start=0, step=1, limit=4
  $region2: #{_lambda_.17} parent=0 // loop_pre_header
    _
  $region3: #{_lambda_.17} parent=0 // loop_header
    %s10 = sphi 0, %s14
    %p11 = scmp.ge.s32.totalorder %s10, 4
    %s17 = sphi 0, %s29
    %s18 = sphi 0, %s25
    %s19 = sphi 0, %s17
    %s20 = sphi 0, %s18
    %s21 = sphi 0, %s19
    %s22 = sphi 0, %s20
    %s34 = sphi 0, %s36
    %s37 = sphi 0, %s34
    %s38 = sphi 0, %s37
    %s54 = sphi 0, %s38
    %s58 = sphi 0, %s58
    %s60 = sphi 0, %s58
    %s61 = sphi 0, %s60
    %s75 = sphi 0, %s61
    %s79 = sphi 0, %s79
    %s81 = sphi 0, %s79
    %s82 = sphi 0, %s81
    %s96 = sphi 0, %s82
    %s102 = sphi 0, %s104
    %s105 = sphi 0, %s102
    %s106 = sphi 0, %s105
    %s122 = sphi 0, %s106
    %s128 = sphi 0, %s130
    %s131 = sphi 0, %s128
    %s132 = sphi 0, %s131
    %s148 = sphi 0, %s132
  $region4: #{_lambda_.17} parent=0 // loop_header_branch
    %13 = sbr.rel (%p11) target = $region8
  $region5: #{_lambda_.17} parent=0 // loop_body
    %s15 = ssub.s32 %s10, 1
    %s16 = ssub.s32 %s10, 2
    %s23 = sadd.s32 1, %s18
    %p24 = scmp.ge.s32.totalorder %s23, 1
    %s25 = scalar_select %p24, 0, %s23
    %s26 = sadd.s32 1, %s17
    %s27 = scalar_select %p24, %s26, %s17
    %p28 = scmp.ge.s32.totalorder %s27, 2
    %s29 = scalar_select %p28, 0, %s27
    %s30 = ssub.s32 %s17, %s29
    %s31 = ssub.s32 %s18, %s25
    %s32 = sor.u32 %s30, %s31
    %p33 = scmp.eq.s32.totalorder %s32, 0
    %s35 = sadd.s32 %s34, 1
    %s36 = scalar_select %p33, %s34, %s35
    %p39 = pneg %p33
    %p40 = scmp.eq.s32.totalorder %s10, 1
    %p41 = por %p39, %p40
    %p42 = scmp.ne.s32.totalorder %s34, %s37
    %p43 = scmp.eq.s32.totalorder %s10, 0
    %p44 = por %p42, %p43
    %p45 = scmp.ne.s32.totalorder %s34, %s37
    %p46 = scmp.eq.s32.totalorder %s15, 1
    %p47 = por %p45, %p46
    %p48 = scmp.ne.s32.totalorder %s37, %s38
    %p49 = scmp.eq.s32.totalorder %s15, 0
    %p50 = por %p48, %p49
    %p51 = scmp.ne.s32.totalorder %s37, %s38
    %p52 = scmp.eq.s32.totalorder %s16, 1
    %p53 = por %p51, %p52
    %p55 = scmp.ne.s32.totalorder %s38, %s54
    %p56 = scmp.eq.s32.totalorder %s16, 0
    %p57 = por %p55, %p56
    %s59 = sadd.s32 %s58, 1
    %p62 = scmp.eq.s32.totalorder %s10, 1
    %p63 = scmp.ne.s32.totalorder %s58, %s60
    %p64 = scmp.eq.s32.totalorder %s10, 0
    %p65 = por %p63, %p64
    %p66 = scmp.ne.s32.totalorder %s58, %s60
    %p67 = scmp.eq.s32.totalorder %s15, 1
    %p68 = por %p66, %p67
    %p69 = scmp.ne.s32.totalorder %s60, %s61
    %p70 = scmp.eq.s32.totalorder %s15, 0
    %p71 = por %p69, %p70
    %p72 = scmp.ne.s32.totalorder %s60, %s61
    %p73 = scmp.eq.s32.totalorder %s16, 1
    %p74 = por %p72, %p73
    %p76 = scmp.ne.s32.totalorder %s61, %s75
    %p77 = scmp.eq.s32.totalorder %s16, 0
    %p78 = por %p76, %p77
    %s80 = sadd.s32 %s79, 1
    %p83 = scmp.eq.s32.totalorder %s10, 1
    %p84 = scmp.ne.s32.totalorder %s79, %s81
    %p85 = scmp.eq.s32.totalorder %s10, 0
    %p86 = por %p84, %p85
    %p87 = scmp.ne.s32.totalorder %s79, %s81
    %p88 = scmp.eq.s32.totalorder %s15, 1
    %p89 = por %p87, %p88
    %p90 = scmp.ne.s32.totalorder %s81, %s82
    %p91 = scmp.eq.s32.totalorder %s15, 0
    %p92 = por %p90, %p91
    %p93 = scmp.ne.s32.totalorder %s81, %s82
    %p94 = scmp.eq.s32.totalorder %s16, 1
    %p95 = por %p93, %p94
    %p97 = scmp.ne.s32.totalorder %s82, %s96
    %p98 = scmp.eq.s32.totalorder %s16, 0
    %p99 = por %p97, %p98
    %s100 = ssub.s32 %s17, %s29
    %p101 = scmp.eq.s32.totalorder %s100, 0
    %s103 = sadd.s32 %s102, 1
    %s104 = scalar_select %p101, %s102, %s103
    %p107 = pneg %p101
    %p108 = scmp.eq.s32.totalorder %s10, 1
    %p109 = por %p107, %p108
    %p110 = scmp.ne.s32.totalorder %s102, %s105
    %p111 = scmp.eq.s32.totalorder %s10, 0
    %p112 = por %p110, %p111
    %p113 = scmp.ne.s32.totalorder %s102, %s105
    %p114 = scmp.eq.s32.totalorder %s15, 1
    %p115 = por %p113, %p114
    %p116 = scmp.ne.s32.totalorder %s105, %s106
    %p117 = scmp.eq.s32.totalorder %s15, 0
    %p118 = por %p116, %p117
    %p119 = scmp.ne.s32.totalorder %s105, %s106
    %p120 = scmp.eq.s32.totalorder %s16, 1
    %p121 = por %p119, %p120
    %p123 = scmp.ne.s32.totalorder %s106, %s122
    %p124 = scmp.eq.s32.totalorder %s16, 0
    %p125 = por %p123, %p124
    %s126 = ssub.s32 %s17, %s29
    %p127 = scmp.eq.s32.totalorder %s126, 0
    %s129 = sadd.s32 %s128, 1
    %s130 = scalar_select %p127, %s128, %s129
    %p133 = pneg %p127
    %p134 = scmp.eq.s32.totalorder %s10, 1
    %p135 = por %p133, %p134
    %p136 = scmp.ne.s32.totalorder %s128, %s131
    %p137 = scmp.eq.s32.totalorder %s10, 0
    %p138 = por %p136, %p137
    %p139 = scmp.ne.s32.totalorder %s128, %s131
    %p140 = scmp.eq.s32.totalorder %s15, 1
    %p141 = por %p139, %p140
    %p142 = scmp.ne.s32.totalorder %s131, %s132
    %p143 = scmp.eq.s32.totalorder %s15, 0
    %p144 = por %p142, %p143
    %p145 = scmp.ne.s32.totalorder %s131, %s132
    %p146 = scmp.eq.s32.totalorder %s16, 1
    %p147 = por %p145, %p146
    %p149 = scmp.ne.s32.totalorder %s132, %s148
    %p150 = scmp.eq.s32.totalorder %s16, 0
    %p151 = por %p149, %p150
    %p152 = scmp.le.s32.totalorder 1, %s10
    %p153 = scmp.lt.s32.totalorder %s10, 3
    %p154 = pnand %p152, %p153
    %p155 = pneg %p154
    // Predicated region
    $region9: #{_lambda_.17} parent=5 // pred_check
      _
    $region10: #{_lambda_.17} parent=5 // pred_check_branch
      %157 = sbr.rel (%p154) target = $region12
    $region11: #{_lambda_.17} parent=5 // pred_region
      %s158 = ssub.s32 %s10, 1
      // Predicated region
      $region13: #{_lambda_.17} parent=11 // pred_check
        %p159 = pneg %p71
      $region14: #{_lambda_.17} parent=11 // pred_check_branch
        %161 = sbr.rel (%p159) target = $region16
      $region15: #{_lambda_.17} parent=11 // pred_region
        _
      $region16: #{_lambda_.17} parent=11 // pred_fallthru
        _
      // Predicated region
      $region17: #{_lambda_.17} parent=11 // pred_check
        %p162 = pneg %p92
      $region18: #{_lambda_.17} parent=11 // pred_check_branch
        %164 = sbr.rel (%p162) target = $region20
      $region19: #{_lambda_.17} parent=11 // pred_region
        _
      $region20: #{_lambda_.17} parent=11 // pred_fallthru
        _
    $region12: #{_lambda_.17} parent=5 // pred_fallthru
      _
    %p165 = scmp.lt.s32.totalorder %s10, 2
    // Predicated region
    $region21: #{_lambda_.17} parent=5 // pred_check
      %p166 = pneg %p165
    $region22: #{_lambda_.17} parent=5 // pred_check_branch
      %168 = sbr.rel (%p166) target = $region24
    $region23: #{_lambda_.17} parent=5 // pred_region
      // Predicated region
      $region25: #{_lambda_.17} parent=23 // pred_check
        %p169 = pneg %p44
      $region26: #{_lambda_.17} parent=23 // pred_check_branch
        %171 = sbr.rel (%p169) target = $region28
      $region27: #{_lambda_.17} parent=23 // pred_region
        %s172 = smul.u32 2, %s18
        %p173 = scmp.lt.s32.totalorder %s17, 1
        %s174 = scalar_select %p173, %s17, 1
        %p175 = scmp.lt.s32.totalorder %s172, 1
        %s176 = scalar_select %p175, %s172, 1
        %s177 = smul.addr %s176, 2
        %s178 = smul.addr %s174, 4
        %s179 = sadd.s32 %s177, %s178
        %s180 = smul.addr %s179, 4
        %s181 = scalar_lea.vmem %s0, %s180
        %s182 = smul.u32 2, %s18
      $region28: #{_lambda_.17} parent=23 // pred_fallthru
        _
      // Predicated region
      $region29: #{_lambda_.17} parent=23 // pred_check
        %p183 = pneg %p112
      $region30: #{_lambda_.17} parent=23 // pred_check_branch
        %185 = sbr.rel (%p183) target = $region32
      $region31: #{_lambda_.17} parent=23 // pred_region
        %p186 = scmp.lt.s32.totalorder %s17, 1
        %s187 = scalar_select %p186, %s17, 1
        %s188 = smul.addr %s187, 2
        %s189 = smul.addr %s188, 4
        %s190 = scalar_lea.vmem %s3, %s189
      $region32: #{_lambda_.17} parent=23 // pred_fallthru
        _
    $region24: #{_lambda_.17} parent=5 // pred_fallthru
      _
    %p191 = scmp.le.s32.totalorder 1, %s10
    %p192 = scmp.lt.s32.totalorder %s10, 3
    %p193 = pnand %p191, %p192
    %p194 = pneg %p193
    // Predicated region
    $region33: #{_lambda_.17} parent=5 // pred_check
      _
    $region34: #{_lambda_.17} parent=5 // pred_check_branch
      %196 = sbr.rel (%p193) target = $region36
    $region35: #{_lambda_.17} parent=5 // pred_region
      %s197 = ssub.s32 %s10, 1
      %s198 = smul.u32 2, %s20
      %p199 = scmp.lt.s32.totalorder %s19, 1
      %s200 = scalar_select %p199, %s19, 1
      %p201 = scmp.lt.s32.totalorder %s198, 1
      %s202 = scalar_select %p201, %s198, 1
      %s203 = smul.addr %s202, 2
      %s204 = smul.addr %s200, 4
      %s205 = sadd.s32 %s203, %s204
      %s206 = smul.addr %s205, 4
      %s207 = scalar_lea.vmem %s0, %s206
      %p208 = pneg %p50
      %p209 = pneg %p47
      %p210 = pneg %p71
      %p211 = pneg %p68
      %p212 = pneg %p92
      %p213 = pneg %p89
      %p214 = scmp.lt.s32.totalorder %s19, 1
      %s215 = scalar_select %p214, %s19, 1
      %s216 = smul.addr %s215, 2
      %s217 = smul.addr %s216, 4
      %s218 = scalar_lea.vmem %s3, %s217
      %p219 = pneg %p118
      %p220 = pneg %p115
      %p221 = pneg %p144
      %p222 = pneg %p141
      %p223 = scmp.lt.s32.totalorder %s19, 1
      %s224 = scalar_select %p223, %s19, 1
      %s225 = smul.addr %s224, 2
      %s226 = smul.addr %s225, 4
      %s227 = scalar_lea.vmem %s4, %s226
      %s228 = smul.u32 2, %s20
      %p229 = scmp.lt.s32.totalorder %s19, 1
      %s230 = scalar_select %p229, %s19, 1
      %p231 = scmp.lt.s32.totalorder %s228, 1
      %s232 = scalar_select %p231, %s228, 1
      %s233 = smul.addr %s232, 2
      %s234 = smul.addr %s230, 4
      %s235 = sadd.s32 %s233, %s234
      %s236 = smul.addr %s235, 4
      %s237 = scalar_lea.vmem %s0, %s236
      %s238 = smul.u32 2, %s20
      %p239 = scmp.lt.s32.totalorder %s19, 1
      %s240 = scalar_select %p239, %s19, 1
      %s241 = smul.addr %s240, 2
      %s242 = smul.addr %s241, 4
      %s243 = scalar_lea.vmem %s3, %s242
      %p244 = scmp.lt.s32.totalorder %s19, 1
      %s245 = scalar_select %p244, %s19, 1
      %s246 = smul.addr %s245, 2
      %s247 = smul.addr %s246, 4
      %s248 = scalar_lea.vmem %s4, %s247
      %v250 = vld [vmem:[%s237] sm:$0xff]
      %v251 = vld [vmem:[%s237 + $0x8] sm:$0xff]
      %v252 = vld [vmem:[%s1] sm:$0xf]
      %v253 = vld [vmem:[%s1 + $0x4] sm:$0xf]
      %v254 = vld [vmem:[%s1 + $0x8] sm:$0xf]
      %v255 = vld [vmem:[%s1 + $0xc] sm:$0xf]
      %v256 = vld [vmem:[%s1 + $0x10] sm:$0xf]
      %v257 = vld [vmem:[%s1 + $0x14] sm:$0xf]
      %v258 = vld [vmem:[%s1 + $0x18] sm:$0xf]
      %v259 = vld [vmem:[%s1 + $0x1c] sm:$0xf]
      %v260 = vld [vmem:[%s1 + $0x20] sm:$0xf]
      %v261 = vld [vmem:[%s1 + $0x24] sm:$0xf]
      %v262 = vld [vmem:[%s1 + $0x28] sm:$0xf]
      %v263 = vld [vmem:[%s1 + $0x2c] sm:$0xf]
      %v264 = vld [vmem:[%s1 + $0x30] sm:$0xf]
      %v265 = vld [vmem:[%s1 + $0x34] sm:$0xf]
      %v266 = vld [vmem:[%s1 + $0x38] sm:$0xf]
      %v267 = vld [vmem:[%s1 + $0x3c] sm:$0xf]
      %v268 = vld [vmem:[%s1 + $0x40] sm:$0xf]
      %v269 = vld [vmem:[%s1 + $0x44] sm:$0xf]
      %v270 = vld [vmem:[%s1 + $0x48] sm:$0xf]
      %v271 = vld [vmem:[%s1 + $0x4c] sm:$0xf]
      %v272 = vld [vmem:[%s1 + $0x50] sm:$0xf]
      %v273 = vld [vmem:[%s1 + $0x54] sm:$0xf]
      %v274 = vld [vmem:[%s1 + $0x58] sm:$0xf]
      %v275 = vld [vmem:[%s1 + $0x5c] sm:$0xf]
      %v276 = vld [vmem:[%s1 + $0x60] sm:$0xf]
      %v277 = vld [vmem:[%s1 + $0x64] sm:$0xf]
      %v278 = vld [vmem:[%s1 + $0x68] sm:$0xf]
      %v279 = vld [vmem:[%s1 + $0x6c] sm:$0xf]
      %v280 = vld [vmem:[%s1 + $0x70] sm:$0xf]
      %v281 = vld [vmem:[%s1 + $0x74] sm:$0xf]
      %v282 = vld [vmem:[%s1 + $0x78] sm:$0xf]
      %v283 = vld [vmem:[%s1 + $0x7c] sm:$0xf]
      %v284 = vld [vmem:[%s2] sm:$0x1]
      %v286 = vlaneseq
      %v287 = vshrl.u32 %v286, 7
      %v288 = vsub.s32 0, %v287
      %v289 = vrot.slane %v284, %v288
      %v293 = vunpack.c.l.b16 %v250
      %v294 = vunpack.c.h.b16 %v250
      %v295 = vunpack.c.l.b16 %v251
      %v296 = vunpack.c.h.b16 %v251
      %v297 = vpack.c.b16 %v295, %v293
      %v298 = vpack.c.b16 %v296, %v294
      %v333 = vunpack.c.l.b16 %v252
      %v334 = vunpack.c.l.b16 %v253
      %v335 = vunpack.c.l.b16 %v254
      %v336 = vunpack.c.l.b16 %v255
      %v337 = vunpack.c.l.b16 %v256
      %v338 = vunpack.c.l.b16 %v257
      %v339 = vunpack.c.l.b16 %v258
      %v340 = vunpack.c.l.b16 %v259
      %v341 = vunpack.c.l.b16 %v260
      %v342 = vunpack.c.l.b16 %v261
      %v343 = vunpack.c.l.b16 %v262
      %v344 = vunpack.c.l.b16 %v263
      %v345 = vunpack.c.l.b16 %v264
      %v346 = vunpack.c.l.b16 %v265
      %v347 = vunpack.c.l.b16 %v266
      %v348 = vunpack.c.l.b16 %v267
      %v349 = vunpack.c.l.b16 %v268
      %v350 = vunpack.c.l.b16 %v269
      %v351 = vunpack.c.l.b16 %v270
      %v352 = vunpack.c.l.b16 %v271
      %v353 = vunpack.c.l.b16 %v272
      %v354 = vunpack.c.l.b16 %v273
      %v355 = vunpack.c.l.b16 %v274
      %v356 = vunpack.c.l.b16 %v275
      %v357 = vunpack.c.l.b16 %v276
      %v358 = vunpack.c.l.b16 %v277
      %v359 = vunpack.c.l.b16 %v278
      %v360 = vunpack.c.l.b16 %v279
      %v361 = vunpack.c.l.b16 %v280
      %v362 = vunpack.c.l.b16 %v281
      %v363 = vunpack.c.l.b16 %v282
      %v364 = vunpack.c.l.b16 %v283
      %v365 = vpack.c.b16 %v334, %v333
      %v366 = vpack.c.b16 %v336, %v335
      %v367 = vpack.c.b16 %v338, %v337
      %v368 = vpack.c.b16 %v340, %v339
      %v369 = vpack.c.b16 %v342, %v341
      %v370 = vpack.c.b16 %v344, %v343
      %v371 = vpack.c.b16 %v346, %v345
      %v372 = vpack.c.b16 %v348, %v347
      %v373 = vpack.c.b16 %v350, %v349
      %v374 = vpack.c.b16 %v352, %v351
      %v375 = vpack.c.b16 %v354, %v353
      %v376 = vpack.c.b16 %v356, %v355
      %v377 = vpack.c.b16 %v358, %v357
      %v378 = vpack.c.b16 %v360, %v359
      %v379 = vpack.c.b16 %v362, %v361
      %v380 = vpack.c.b16 %v364, %v363
      %397 = vmatprep.subr.bf16.mxu0 0
      %398 = vmatpush1.bf16.msra.mxu0 %v365
      %399 = vmatprep.subr.bf16.mxu0 0
      %400 = vmatpush1.bf16.msra.mxu0 %v366
      %401 = vmatprep.subr.bf16.mxu0 0
      %402 = vmatpush1.bf16.msra.mxu0 %v367
      %403 = vmatprep.subr.bf16.mxu0 0
      %404 = vmatpush1.bf16.msra.mxu0 %v368
      %405 = vmatprep.subr.bf16.mxu0 0
      %406 = vmatpush1.bf16.msra.mxu0 %v369
      %407 = vmatprep.subr.bf16.mxu0 0
      %408 = vmatpush1.bf16.msra.mxu0 %v370
      %409 = vmatprep.subr.bf16.mxu0 0
      %410 = vmatpush1.bf16.msra.mxu0 %v371
      %411 = vmatprep.subr.bf16.mxu0 0
      %412 = vmatpush1.bf16.msra.mxu0 %v372
      %413 = vmatprep.subr.bf16.mxu0 0
      %414 = vmatpush1.bf16.msra.mxu0 %v373
      %415 = vmatprep.subr.bf16.mxu0 0
      %416 = vmatpush1.bf16.msra.mxu0 %v374
      %417 = vmatprep.subr.bf16.mxu0 0
      %418 = vmatpush1.bf16.msra.mxu0 %v375
      %419 = vmatprep.subr.bf16.mxu0 0
      %420 = vmatpush1.bf16.msra.mxu0 %v376
      %421 = vmatprep.subr.bf16.mxu0 0
      %422 = vmatpush1.bf16.msra.mxu0 %v377
      %423 = vmatprep.subr.bf16.mxu0 0
      %424 = vmatpush1.bf16.msra.mxu0 %v378
      %425 = vmatprep.subr.bf16.mxu0 0
      %426 = vmatpush1.bf16.msra.mxu0 %v379
      %427 = vmatprep.subr.bf16.mxu0 0
      %428 = vmatpush1.bf16.msra.mxu0 %v380
      %429 = vmatprep.mubr.bf16.mxu0 %v298
      %430 = vmatmul.mubr.bf16.gmra.mrb[0].mxu0 %v297
      %v431 = vpop.f32.mrb[0].mxu0
      %v432 = vadd.f32 %v289, %v431
      %v433 = vpop.f32.mrb[0].mxu0
      %v434 = vpop.f32.mrb[0].mxu0
      %v435 = vadd.f32 %v289, %v434
      %v436 = vpop.f32.mrb[0].mxu0
      %437 = vdwg.mxu0
      %v438 = vadd.f32 %v432, %v435
      %v439 = vrot.slane %v438, 4
      %v440 = vadd.f32 %v438, %v439
      %v441 = vrot.slane %v440, 2
      %v442 = vadd.f32 %v440, %v441
      %v443 = vrot.slane %v442, 1
      %v444 = vadd.f32 %v442, %v443
      %v445 = vrcp.pop 16.0
      %v446 = vmul.f32 %v444, %v445
      %v447 = vsub.f32 %v432, %v446
      %v448 = vsub.f32 %v435, %v446
      %v449 = vmul.f32 %v447, %v447
      %v450 = vmul.f32 %v448, %v448
      %v451 = vadd.f32 %v449, %v450
      %v452 = vrot.slane %v451, 4
      %v453 = vadd.f32 %v451, %v452
      %v454 = vrot.slane %v453, 2
      %v455 = vadd.f32 %v453, %v454
      %v456 = vrot.slane %v455, 1
      %v457 = vadd.f32 %v455, %v456
      %v458 = vmul.f32 %v457, %v445
      %v459 = vadd.f32 %v458, 1e-05
      %v460 = vrsqrt.pop %v459
      %v461 = vmul.f32 %v447, %v460
      %v462 = vmul.f32 %v448, %v460
      %v463 = vld [vmem:[%s243] sm:$0xf]
      %v464 = vld [vmem:[%s243 + $0x4] sm:$0xf]
      %v465 = vunpack.c.l.bf16 %v463
      %v466 = vunpack.c.l.bf16 %v464
      %v467 = vadd.f32 %v461, %v465
      %v468 = vadd.f32 %v462, %v466
      %v469 = vpack.c.bf16 %v468, %v467
      %v471 = vunpack.c.l.b16 %v469
      %v472 = vunpack.c.h.b16 %v469
      %v473 = vpack.c.b16 %v471, %v471
      %v474 = vpack.c.b16 %v472, %v472
      %477 = vst [vmem:[%s248] sm:$0xf] %v473
      %478 = vst [vmem:[%s248 + $0x4] sm:$0xf] %v474
      %p479 = scmp.lt.s32.totalorder %s19, 1
      %s480 = scalar_select %p479, %s19, 1
      %s481 = smul.addr %s480, 2
      %s482 = smul.addr %s481, 4
      %s483 = scalar_lea.vmem %s4, %s482
      // Predicated region
      $region37: #{_lambda_.17} parent=35 // pred_check
        %p484 = pneg %p141
      $region38: #{_lambda_.17} parent=35 // pred_check_branch
        %486 = sbr.rel (%p484) target = $region40
      $region39: #{_lambda_.17} parent=35 // pred_region
        _
      $region40: #{_lambda_.17} parent=35 // pred_fallthru
        _
    $region36: #{_lambda_.17} parent=5 // pred_fallthru
      _
    %p487 = scmp.le.s32.totalorder 2, %s10
    // Predicated region
    $region41: #{_lambda_.17} parent=5 // pred_check
      %p488 = pneg %p487
    $region42: #{_lambda_.17} parent=5 // pred_check_branch
      %490 = sbr.rel (%p488) target = $region44
    $region43: #{_lambda_.17} parent=5 // pred_region
      %s491 = ssub.s32 %s10, 2
      // Predicated region
      $region45: #{_lambda_.17} parent=43 // pred_check
        %p492 = pneg %p147
      $region46: #{_lambda_.17} parent=43 // pred_check_branch
        %494 = sbr.rel (%p492) target = $region48
      $region47: #{_lambda_.17} parent=43 // pred_region
        %p495 = scmp.lt.s32.totalorder %s21, 1
        %s496 = scalar_select %p495, %s21, 1
        %s497 = smul.addr %s496, 2
        %s498 = smul.addr %s497, 4
        %s499 = scalar_lea.vmem %s4, %s498
      $region48: #{_lambda_.17} parent=43 // pred_fallthru
        _
    $region44: #{_lambda_.17} parent=5 // pred_fallthru
      _
  $region6: #{_lambda_.17} parent=0 // loop_footer
    %s14 = sadd.s32 1, %s10
  $region7: #{_lambda_.17} parent=0 // loop_footer_branch
    %9 = sbr.rel target = $region3
  $region8: #{_lambda_.17} parent=0 // loop_exit
    _

// kernel: _lambda_.20
$region0: #{_lambda_.20}
  #allocation0 [shape = 'u32[]', space=smem, size = 0x4, offset = 0x4, fixed_abs, tag = 'smem constant byte address 0x4 - core index']
  #allocation1 [shape = 'u32[144,128]{1,0:T(1,128)}', space=vmem, size = 0x12000, scoped, tag = 'internal scratch']
  %s0 = inlined_call_operand.vmem [shape: bf16[2,64,256], index: 0, kind: input, shape index: {}]
  %s1 = inlined_call_operand.vmem [shape: bf16[256,128], index: 1, kind: input, shape index: {}]
  %s2 = inlined_call_operand.vmem [shape: f32[1,128], index: 2, kind: input, shape index: {}]
  %s3 = inlined_call_operand.vmem [shape: bf16[2,64,128], index: 3, kind: output, shape index: {}]
  %s4 = sld [smem:[#allocation0]]
  $region45: #{_lambda_.20} parent=0
    _
  %s6 = ssub.s32 1, %s4
  %s7 = scalar_select 0, %s6, %s4
  loop: start=0, step=1, limit=4
  $region2: #{_lambda_.20} parent=0 // loop_pre_header
    _
  $region3: #{_lambda_.20} parent=0 // loop_header
    %s9 = sphi 0, %s13
    %p10 = scmp.ge.s32.totalorder %s9, 4
    %s16 = sphi 0, %s28
    %s17 = sphi 0, %s24
    %s18 = sphi 0, %s16
    %s19 = sphi 0, %s17
    %s20 = sphi 0, %s18
    %s21 = sphi 0, %s19
    %s33 = sphi 0, %s35
    %s36 = sphi 0, %s33
    %s37 = sphi 0, %s36
    %s53 = sphi 0, %s37
    %s57 = sphi 0, %s57
    %s59 = sphi 0, %s57
    %s60 = sphi 0, %s59
    %s74 = sphi 0, %s60
    %s78 = sphi 0, %s78
    %s80 = sphi 0, %s78
    %s81 = sphi 0, %s80
    %s95 = sphi 0, %s81
    %s101 = sphi 0, %s103
    %s104 = sphi 0, %s101
    %s105 = sphi 0, %s104
    %s121 = sphi 0, %s105
  $region4: #{_lambda_.20} parent=0 // loop_header_branch
    %12 = sbr.rel (%p10) target = $region8
  $region5: #{_lambda_.20} parent=0 // loop_body
    %s14 = ssub.s32 %s9, 1
    %s15 = ssub.s32 %s9, 2
    %s22 = sadd.s32 1, %s17
    %p23 = scmp.ge.s32.totalorder %s22, 1
    %s24 = scalar_select %p23, 0, %s22
    %s25 = sadd.s32 1, %s16
    %s26 = scalar_select %p23, %s25, %s16
    %p27 = scmp.ge.s32.totalorder %s26, 2
    %s28 = scalar_select %p27, 0, %s26
    %s29 = ssub.s32 %s16, %s28
    %s30 = ssub.s32 %s17, %s24
    %s31 = sor.u32 %s29, %s30
    %p32 = scmp.eq.s32.totalorder %s31, 0
    %s34 = sadd.s32 %s33, 1
    %s35 = scalar_select %p32, %s33, %s34
    %p38 = pneg %p32
    %p39 = scmp.eq.s32.totalorder %s9, 1
    %p40 = por %p38, %p39
    %p41 = scmp.ne.s32.totalorder %s33, %s36
    %p42 = scmp.eq.s32.totalorder %s9, 0
    %p43 = por %p41, %p42
    %p44 = scmp.ne.s32.totalorder %s33, %s36
    %p45 = scmp.eq.s32.totalorder %s14, 1
    %p46 = por %p44, %p45
    %p47 = scmp.ne.s32.totalorder %s36, %s37
    %p48 = scmp.eq.s32.totalorder %s14, 0
    %p49 = por %p47, %p48
    %p50 = scmp.ne.s32.totalorder %s36, %s37
    %p51 = scmp.eq.s32.totalorder %s15, 1
    %p52 = por %p50, %p51
    %p54 = scmp.ne.s32.totalorder %s37, %s53
    %p55 = scmp.eq.s32.totalorder %s15, 0
    %p56 = por %p54, %p55
    %s58 = sadd.s32 %s57, 1
    %p61 = scmp.eq.s32.totalorder %s9, 1
    %p62 = scmp.ne.s32.totalorder %s57, %s59
    %p63 = scmp.eq.s32.totalorder %s9, 0
    %p64 = por %p62, %p63
    %p65 = scmp.ne.s32.totalorder %s57, %s59
    %p66 = scmp.eq.s32.totalorder %s14, 1
    %p67 = por %p65, %p66
    %p68 = scmp.ne.s32.totalorder %s59, %s60
    %p69 = scmp.eq.s32.totalorder %s14, 0
    %p70 = por %p68, %p69
    %p71 = scmp.ne.s32.totalorder %s59, %s60
    %p72 = scmp.eq.s32.totalorder %s15, 1
    %p73 = por %p71, %p72
    %p75 = scmp.ne.s32.totalorder %s60, %s74
    %p76 = scmp.eq.s32.totalorder %s15, 0
    %p77 = por %p75, %p76
    %s79 = sadd.s32 %s78, 1
    %p82 = scmp.eq.s32.totalorder %s9, 1
    %p83 = scmp.ne.s32.totalorder %s78, %s80
    %p84 = scmp.eq.s32.totalorder %s9, 0
    %p85 = por %p83, %p84
    %p86 = scmp.ne.s32.totalorder %s78, %s80
    %p87 = scmp.eq.s32.totalorder %s14, 1
    %p88 = por %p86, %p87
    %p89 = scmp.ne.s32.totalorder %s80, %s81
    %p90 = scmp.eq.s32.totalorder %s14, 0
    %p91 = por %p89, %p90
    %p92 = scmp.ne.s32.totalorder %s80, %s81
    %p93 = scmp.eq.s32.totalorder %s15, 1
    %p94 = por %p92, %p93
    %p96 = scmp.ne.s32.totalorder %s81, %s95
    %p97 = scmp.eq.s32.totalorder %s15, 0
    %p98 = por %p96, %p97
    %s99 = ssub.s32 %s16, %s28
    %p100 = scmp.eq.s32.totalorder %s99, 0
    %s102 = sadd.s32 %s101, 1
    %s103 = scalar_select %p100, %s101, %s102
    %p106 = pneg %p100
    %p107 = scmp.eq.s32.totalorder %s9, 1
    %p108 = por %p106, %p107
    %p109 = scmp.ne.s32.totalorder %s101, %s104
    %p110 = scmp.eq.s32.totalorder %s9, 0
    %p111 = por %p109, %p110
    %p112 = scmp.ne.s32.totalorder %s101, %s104
    %p113 = scmp.eq.s32.totalorder %s14, 1
    %p114 = por %p112, %p113
    %p115 = scmp.ne.s32.totalorder %s104, %s105
    %p116 = scmp.eq.s32.totalorder %s14, 0
    %p117 = por %p115, %p116
    %p118 = scmp.ne.s32.totalorder %s104, %s105
    %p119 = scmp.eq.s32.totalorder %s15, 1
    %p120 = por %p118, %p119
    %p122 = scmp.ne.s32.totalorder %s105, %s121
    %p123 = scmp.eq.s32.totalorder %s15, 0
    %p124 = por %p122, %p123
    %p125 = scmp.le.s32.totalorder 1, %s9
    %p126 = scmp.lt.s32.totalorder %s9, 3
    %p127 = pnand %p125, %p126
    %p128 = pneg %p127
    // Predicated region
    $region9: #{_lambda_.20} parent=5 // pred_check
      _
    $region10: #{_lambda_.20} parent=5 // pred_check_branch
      %130 = sbr.rel (%p127) target = $region12
    $region11: #{_lambda_.20} parent=5 // pred_region
      %s131 = ssub.s32 %s9, 1
      // Predicated region
      $region13: #{_lambda_.20} parent=11 // pred_check
        %p132 = pneg %p70
      $region14: #{_lambda_.20} parent=11 // pred_check_branch
        %134 = sbr.rel (%p132) target = $region16
      $region15: #{_lambda_.20} parent=11 // pred_region
        _
      $region16: #{_lambda_.20} parent=11 // pred_fallthru
        _
      // Predicated region
      $region17: #{_lambda_.20} parent=11 // pred_check
        %p135 = pneg %p91
      $region18: #{_lambda_.20} parent=11 // pred_check_branch
        %137 = sbr.rel (%p135) target = $region20
      $region19: #{_lambda_.20} parent=11 // pred_region
        _
      $region20: #{_lambda_.20} parent=11 // pred_fallthru
        _
    $region12: #{_lambda_.20} parent=5 // pred_fallthru
      _
    %p138 = scmp.lt.s32.totalorder %s9, 2
    // Predicated region
    $region21: #{_lambda_.20} parent=5 // pred_check
      %p139 = pneg %p138
    $region22: #{_lambda_.20} parent=5 // pred_check_branch
      %141 = sbr.rel (%p139) target = $region24
    $region23: #{_lambda_.20} parent=5 // pred_region
      // Predicated region
      $region25: #{_lambda_.20} parent=23 // pred_check
        %p142 = pneg %p43
      $region26: #{_lambda_.20} parent=23 // pred_check_branch
        %144 = sbr.rel (%p142) target = $region28
      $region27: #{_lambda_.20} parent=23 // pred_region
        %s145 = smul.u32 8, %s17
        %p146 = scmp.lt.s32.totalorder %s16, 1
        %s147 = scalar_select %p146, %s16, 1
        %p148 = scmp.lt.s32.totalorder %s145, 7
        %s149 = scalar_select %p148, %s145, 7
        %s150 = smul.addr %s149, 2
        %s151 = smul.addr %s147, 16
        %s152 = sadd.s32 %s150, %s151
        %s153 = smul.addr %s152, 4
        %s154 = scalar_lea.vmem %s0, %s153
        %s155 = smul.u32 8, %s17
      $region28: #{_lambda_.20} parent=23 // pred_fallthru
        _
    $region24: #{_lambda_.20} parent=5 // pred_fallthru
      _
    %p156 = scmp.le.s32.totalorder 1, %s9
    %p157 = scmp.lt.s32.totalorder %s9, 3
    %p158 = pnand %p156, %p157
    %p159 = pneg %p158
    // Predicated region
    $region29: #{_lambda_.20} parent=5 // pred_check
      _
    $region30: #{_lambda_.20} parent=5 // pred_check_branch
      %161 = sbr.rel (%p158) target = $region32
    $region31: #{_lambda_.20} parent=5 // pred_region
      %s162 = ssub.s32 %s9, 1
      %s163 = smul.u32 8, %s19
      %p164 = scmp.lt.s32.totalorder %s18, 1
      %s165 = scalar_select %p164, %s18, 1
      %p166 = scmp.lt.s32.totalorder %s163, 7
      %s167 = scalar_select %p166, %s163, 7
      %s168 = smul.addr %s167, 2
      %s169 = smul.addr %s165, 16
      %s170 = sadd.s32 %s168, %s169
      %s171 = smul.addr %s170, 4
      %s172 = scalar_lea.vmem %s0, %s171
      %p173 = pneg %p49
      %p174 = pneg %p46
      %p175 = pneg %p70
      %p176 = pneg %p67
      %p177 = pneg %p91
      %p178 = pneg %p88
      %p179 = pneg %p117
      %p180 = pneg %p114
      %p181 = scmp.lt.s32.totalorder %s18, 1
      %s182 = scalar_select %p181, %s18, 1
      %s183 = smul.addr %s182, 8
      %s184 = smul.addr %s183, 4
      %s185 = scalar_lea.vmem %s3, %s184
      %s186 = smul.u32 8, %s19
      %p187 = scmp.lt.s32.totalorder %s18, 1
      %s188 = scalar_select %p187, %s18, 1
      %p189 = scmp.lt.s32.totalorder %s186, 7
      %s190 = scalar_select %p189, %s186, 7
      %s191 = smul.addr %s190, 2
      %s192 = smul.addr %s188, 16
      %s193 = sadd.s32 %s191, %s192
      %s194 = smul.addr %s193, 4
      %s195 = scalar_lea.vmem %s0, %s194
      %s196 = smul.u32 8, %s19
      %p197 = scmp.lt.s32.totalorder %s18, 1
      %s198 = scalar_select %p197, %s18, 1
      %s199 = smul.addr %s198, 8
      %s200 = smul.addr %s199, 4
      %s201 = scalar_lea.vmem %s3, %s200
      %v203 = vld [vmem:[%s195] sm:$0xff]
      %v204 = vld [vmem:[%s195 + $0x8] sm:$0xff]
      %v205 = vld [vmem:[%s195 + $0x10] sm:$0xff]
      %v206 = vld [vmem:[%s195 + $0x18] sm:$0xff]
      %v207 = vld [vmem:[%s195 + $0x20] sm:$0xff]
      %v208 = vld [vmem:[%s195 + $0x28] sm:$0xff]
      %v209 = vld [vmem:[%s195 + $0x30] sm:$0xff]
      %v210 = vld [vmem:[%s195 + $0x38] sm:$0xff]
      %v211 = vld [vmem:[%s1] sm:$0xf]
      %v212 = vld [vmem:[%s1 + $0x4] sm:$0xf]
      %v213 = vld [vmem:[%s1 + $0x8] sm:$0xf]
      %v214 = vld [vmem:[%s1 + $0xc] sm:$0xf]
      %v215 = vld [vmem:[%s1 + $0x10] sm:$0xf]
      %v216 = vld [vmem:[%s1 + $0x14] sm:$0xf]
      %v217 = vld [vmem:[%s1 + $0x18] sm:$0xf]
      %v218 = vld [vmem:[%s1 + $0x1c] sm:$0xf]
      %v219 = vld [vmem:[%s1 + $0x20] sm:$0xf]
      %v220 = vld [vmem:[%s1 + $0x24] sm:$0xf]
      %v221 = vld [vmem:[%s1 + $0x28] sm:$0xf]
      %v222 = vld [vmem:[%s1 + $0x2c] sm:$0xf]
      %v223 = vld [vmem:[%s1 + $0x30] sm:$0xf]
      %v224 = vld [vmem:[%s1 + $0x34] sm:$0xf]
      %v225 = vld [vmem:[%s1 + $0x38] sm:$0xf]
      %v226 = vld [vmem:[%s1 + $0x3c] sm:$0xf]
      %v227 = vld [vmem:[%s1 + $0x40] sm:$0xf]
      %v228 = vld [vmem:[%s1 + $0x44] sm:$0xf]
      %v229 = vld [vmem:[%s1 + $0x48] sm:$0xf]
      %v230 = vld [vmem:[%s1 + $0x4c] sm:$0xf]
      %v231 = vld [vmem:[%s1 + $0x50] sm:$0xf]
      %v232 = vld [vmem:[%s1 + $0x54] sm:$0xf]
      %v233 = vld [vmem:[%s1 + $0x58] sm:$0xf]
      %v234 = vld [vmem:[%s1 + $0x5c] sm:$0xf]
      %v235 = vld [vmem:[%s1 + $0x60] sm:$0xf]
      %v236 = vld [vmem:[%s1 + $0x64] sm:$0xf]
      %v237 = vld [vmem:[%s1 + $0x68] sm:$0xf]
      %v238 = vld [vmem:[%s1 + $0x6c] sm:$0xf]
      %v239 = vld [vmem:[%s1 + $0x70] sm:$0xf]
      %v240 = vld [vmem:[%s1 + $0x74] sm:$0xf]
      %v241 = vld [vmem:[%s1 + $0x78] sm:$0xf]
      %v242 = vld [vmem:[%s1 + $0x7c] sm:$0xf]
      %v243 = vld [vmem:[%s2] sm:$0x1]
      %v245 = vlaneseq
      %v246 = vshrl.u32 %v245, 7
      %v247 = vsub.s32 0, %v246
      %v248 = vrot.slane %v243, %v247
      %v258 = vunpack.c.l.b16 %v203
      %v259 = vunpack.c.h.b16 %v203
      %v260 = vunpack.c.l.b16 %v204
      %v261 = vunpack.c.h.b16 %v204
      %v262 = vunpack.c.l.b16 %v205
      %v263 = vunpack.c.h.b16 %v205
      %v264 = vunpack.c.l.b16 %v206
      %v265 = vunpack.c.h.b16 %v206
      %v266 = vunpack.c.l.b16 %v207
      %v267 = vunpack.c.h.b16 %v207
      %v268 = vunpack.c.l.b16 %v208
      %v269 = vunpack.c.h.b16 %v208
      %v270 = vunpack.c.l.b16 %v209
      %v271 = vunpack.c.h.b16 %v209
      %v272 = vunpack.c.l.b16 %v210
      %v273 = vunpack.c.h.b16 %v210
      %v274 = vpack.c.b16 %v260, %v258
      %v275 = vpack.c.b16 %v261, %v259
      %v276 = vpack.c.b16 %v264, %v262
      %v277 = vpack.c.b16 %v265, %v263
      %v278 = vpack.c.b16 %v268, %v266
      %v279 = vpack.c.b16 %v269, %v267
      %v280 = vpack.c.b16 %v272, %v270
      %v281 = vpack.c.b16 %v273, %v271
      %v322 = vunpack.c.l.b16 %v211
      %v323 = vunpack.c.l.b16 %v212
      %v324 = vunpack.c.l.b16 %v213
      %v325 = vunpack.c.l.b16 %v214
      %v326 = vunpack.c.l.b16 %v215
      %v327 = vunpack.c.l.b16 %v216
      %v328 = vunpack.c.l.b16 %v217
      %v329 = vunpack.c.l.b16 %v218
      %v330 = vunpack.c.l.b16 %v219
      %v331 = vunpack.c.l.b16 %v220
      %v332 = vunpack.c.l.b16 %v221
      %v333 = vunpack.c.l.b16 %v222
      %v334 = vunpack.c.l.b16 %v223
      %v335 = vunpack.c.l.b16 %v224
      %v336 = vunpack.c.l.b16 %v225
      %v337 = vunpack.c.l.b16 %v226
      %v338 = vunpack.c.l.b16 %v227
      %v339 = vunpack.c.l.b16 %v228
      %v340 = vunpack.c.l.b16 %v229
      %v341 = vunpack.c.l.b16 %v230
      %v342 = vunpack.c.l.b16 %v231
      %v343 = vunpack.c.l.b16 %v232
      %v344 = vunpack.c.l.b16 %v233
      %v345 = vunpack.c.l.b16 %v234
      %v346 = vunpack.c.l.b16 %v235
      %v347 = vunpack.c.l.b16 %v236
      %v348 = vunpack.c.l.b16 %v237
      %v349 = vunpack.c.l.b16 %v238
      %v350 = vunpack.c.l.b16 %v239
      %v351 = vunpack.c.l.b16 %v240
      %v352 = vunpack.c.l.b16 %v241
      %v353 = vunpack.c.l.b16 %v242
      %v354 = vpack.c.b16 %v323, %v322
      %v355 = vpack.c.b16 %v325, %v324
      %v356 = vpack.c.b16 %v327, %v326
      %v357 = vpack.c.b16 %v329, %v328
      %v358 = vpack.c.b16 %v331, %v330
      %v359 = vpack.c.b16 %v333, %v332
      %v360 = vpack.c.b16 %v335, %v334
      %v361 = vpack.c.b16 %v337, %v336
      %v362 = vpack.c.b16 %v339, %v338
      %v363 = vpack.c.b16 %v341, %v340
      %v364 = vpack.c.b16 %v343, %v342
      %v365 = vpack.c.b16 %v345, %v344
      %v366 = vpack.c.b16 %v347, %v346
      %v367 = vpack.c.b16 %v349, %v348
      %v368 = vpack.c.b16 %v351, %v350
      %v369 = vpack.c.b16 %v353, %v352
      %386 = vmatprep.subr.bf16.mxu0 0
      %387 = vmatpush1.bf16.msra.mxu0 %v354
      %388 = vmatprep.subr.bf16.mxu0 0
      %389 = vmatpush1.bf16.msra.mxu0 %v355
      %390 = vmatprep.subr.bf16.mxu0 0
      %391 = vmatpush1.bf16.msra.mxu0 %v356
      %392 = vmatprep.subr.bf16.mxu0 0
      %393 = vmatpush1.bf16.msra.mxu0 %v357
      %394 = vmatprep.subr.bf16.mxu0 0
      %395 = vmatpush1.bf16.msra.mxu0 %v358
      %396 = vmatprep.subr.bf16.mxu0 0
      %397 = vmatpush1.bf16.msra.mxu0 %v359
      %398 = vmatprep.subr.bf16.mxu0 0
      %399 = vmatpush1.bf16.msra.mxu0 %v360
      %400 = vmatprep.subr.bf16.mxu0 0
      %401 = vmatpush1.bf16.msra.mxu0 %v361
      %402 = vmatprep.subr.bf16.mxu0 0
      %403 = vmatpush1.bf16.msra.mxu0 %v362
      %404 = vmatprep.subr.bf16.mxu0 0
      %405 = vmatpush1.bf16.msra.mxu0 %v363
      %406 = vmatprep.subr.bf16.mxu0 0
      %407 = vmatpush1.bf16.msra.mxu0 %v364
      %408 = vmatprep.subr.bf16.mxu0 0
      %409 = vmatpush1.bf16.msra.mxu0 %v365
      %410 = vmatprep.subr.bf16.mxu0 0
      %411 = vmatpush1.bf16.msra.mxu0 %v366
      %412 = vmatprep.subr.bf16.mxu0 0
      %413 = vmatpush1.bf16.msra.mxu0 %v367
      %414 = vmatprep.subr.bf16.mxu0 0
      %415 = vmatpush1.bf16.msra.mxu0 %v368
      %416 = vmatprep.subr.bf16.mxu0 0
      %417 = vmatpush1.bf16.msra.mxu0 %v369
      %418 = vmatprep.mubr.bf16.mxu0 %v275
      %419 = vmatmul.mubr.bf16.gmra.mrb[0].mxu0 %v274
      %v420 = vpop.f32.mrb[0].mxu0
      %v421 = vadd.f32 %v248, %v420
      %v422 = vpop.f32.mrb[0].mxu0
      %v423 = vpop.f32.mrb[0].mxu0
      %v424 = vadd.f32 %v248, %v423
      %v425 = vpop.f32.mrb[0].mxu0
      %426 = vmatprep.mubr.bf16.mxu0 %v277
      %427 = vmatmul.mubr.bf16.gmra.mrb[0].mxu0 %v276
      %v428 = vpop.f32.mrb[0].mxu0
      %v429 = vadd.f32 %v248, %v428
      %v430 = vpop.f32.mrb[0].mxu0
      %v431 = vpop.f32.mrb[0].mxu0
      %v432 = vadd.f32 %v248, %v431
      %v433 = vpop.f32.mrb[0].mxu0
      %434 = vmatprep.mubr.bf16.mxu0 %v279
      %435 = vmatmul.mubr.bf16.gmra.mrb[0].mxu0 %v278
      %v436 = vpop.f32.mrb[0].mxu0
      %v437 = vadd.f32 %v248, %v436
      %v438 = vpop.f32.mrb[0].mxu0
      %v439 = vpop.f32.mrb[0].mxu0
      %v440 = vadd.f32 %v248, %v439
      %v441 = vpop.f32.mrb[0].mxu0
      %442 = vmatprep.mubr.bf16.mxu0 %v281
      %443 = vmatmul.mubr.bf16.gmra.mrb[0].mxu0 %v280
      %v444 = vpop.f32.mrb[0].mxu0
      %v445 = vadd.f32 %v248, %v444
      %v446 = vpop.f32.mrb[0].mxu0
      %v447 = vpop.f32.mrb[0].mxu0
      %v448 = vadd.f32 %v248, %v447
      %v449 = vpop.f32.mrb[0].mxu0
      %450 = vdwg.mxu0
      %v451 = vadd.f32 %v421, %v424
      %v452 = vadd.f32 %v451, %v429
      %v453 = vadd.f32 %v452, %v432
      %v454 = vadd.f32 %v453, %v437
      %v455 = vadd.f32 %v454, %v440
      %v456 = vadd.f32 %v455, %v445
      %v457 = vadd.f32 %v456, %v448
      %v458 = vrot.slane %v457, 4
      %v459 = vadd.f32 %v457, %v458
      %v460 = vrot.slane %v459, 2
      %v461 = vadd.f32 %v459, %v460
      %v462 = vrot.slane %v461, 1
      %v463 = vadd.f32 %v461, %v462
      %v464 = vrcp.pop 64.0
      %v465 = vmul.f32 %v463, %v464
      %v466 = vsub.f32 %v421, %v465
      %v467 = vsub.f32 %v424, %v465
      %v468 = vsub.f32 %v429, %v465
      %v469 = vsub.f32 %v432, %v465
      %v470 = vsub.f32 %v437, %v465
      %v471 = vsub.f32 %v440, %v465
      %v472 = vsub.f32 %v445, %v465
      %v473 = vsub.f32 %v448, %v465
      %v474 = vmul.f32 %v466, %v466
      %v475 = vmul.f32 %v467, %v467
      %v476 = vmul.f32 %v468, %v468
      %v477 = vmul.f32 %v469, %v469
      %v478 = vmul.f32 %v470, %v470
      %v479 = vmul.f32 %v471, %v471
      %v480 = vmul.f32 %v472, %v472
      %v481 = vmul.f32 %v473, %v473
      %v482 = vadd.f32 %v474, %v475
      %v483 = vadd.f32 %v482, %v476
      %v484 = vadd.f32 %v483, %v477
      %v485 = vadd.f32 %v484, %v478
      %v486 = vadd.f32 %v485, %v479
      %v487 = vadd.f32 %v486, %v480
      %v488 = vadd.f32 %v487, %v481
      %v489 = vrot.slane %v488, 4
      %v490 = vadd.f32 %v488, %v489
      %v491 = vrot.slane %v490, 2
      %v492 = vadd.f32 %v490, %v491
      %v493 = vrot.slane %v492, 1
      %v494 = vadd.f32 %v492, %v493
      %v495 = vmul.f32 %v494, %v464
      %v496 = vadd.f32 %v495, 1e-05
      %v497 = vrsqrt.pop %v496
      %v498 = vmul.f32 %v466, %v497
      %v499 = vmul.f32 %v467, %v497
      %v500 = vmul.f32 %v468, %v497
      %v501 = vmul.f32 %v469, %v497
      %v502 = vmul.f32 %v470, %v497
      %v503 = vmul.f32 %v471, %v497
      %v504 = vmul.f32 %v472, %v497
      %v505 = vmul.f32 %v473, %v497
      %v506 = vmax.f32 %v498, 0.0
      %v507 = vmax.f32 %v499, 0.0
      %v508 = vmax.f32 %v500, 0.0
      %v509 = vmax.f32 %v501, 0.0
      %v510 = vmax.f32 %v502, 0.0
      %v511 = vmax.f32 %v503, 0.0
      %v512 = vmax.f32 %v504, 0.0
      %v513 = vmax.f32 %v505, 0.0
      %v514 = vpack.c.bf16 %v507, %v506
      %v515 = vpack.c.bf16 %v509, %v508
      %v516 = vpack.c.bf16 %v511, %v510
      %v517 = vpack.c.bf16 %v513, %v512
      %v522 = vunpack.c.l.b16 %v514
      %v523 = vunpack.c.h.b16 %v514
      %v524 = vunpack.c.l.b16 %v515
      %v525 = vunpack.c.h.b16 %v515
      %v526 = vunpack.c.l.b16 %v516
      %v527 = vunpack.c.h.b16 %v516
      %v528 = vunpack.c.l.b16 %v517
      %v529 = vunpack.c.h.b16 %v517
      %v530 = vpack.c.b16 %v522, %v522
      %v531 = vpack.c.b16 %v523, %v523
      %v532 = vpack.c.b16 %v524, %v524
      %v533 = vpack.c.b16 %v525, %v525
      %v534 = vpack.c.b16 %v526, %v526
      %v535 = vpack.c.b16 %v527, %v527
      %v536 = vpack.c.b16 %v528, %v528
      %v537 = vpack.c.b16 %v529, %v529
      %546 = vst [vmem:[%s201] sm:$0xf] %v530
      %547 = vst [vmem:[%s201 + $0x4] sm:$0xf] %v531
      %548 = vst [vmem:[%s201 + $0x8] sm:$0xf] %v532
      %549 = vst [vmem:[%s201 + $0xc] sm:$0xf] %v533
      %550 = vst [vmem:[%s201 + $0x10] sm:$0xf] %v534
      %551 = vst [vmem:[%s201 + $0x14] sm:$0xf] %v535
      %552 = vst [vmem:[%s201 + $0x18] sm:$0xf] %v536
      %553 = vst [vmem:[%s201 + $0x1c] sm:$0xf] %v537
      %p554 = scmp.lt.s32.totalorder %s18, 1
      %s555 = scalar_select %p554, %s18, 1
      %s556 = smul.addr %s555, 8
      %s557 = smul.addr %s556, 4
      %s558 = scalar_lea.vmem %s3, %s557
      // Predicated region
      $region33: #{_lambda_.20} parent=31 // pred_check
        %p559 = pneg %p114
      $region34: #{_lambda_.20} parent=31 // pred_check_branch
        %561 = sbr.rel (%p559) target = $region36
      $region35: #{_lambda_.20} parent=31 // pred_region
        _
      $region36: #{_lambda_.20} parent=31 // pred_fallthru
        _
    $region32: #{_lambda_.20} parent=5 // pred_fallthru
      _
    %p562 = scmp.le.s32.totalorder 2, %s9
    // Predicated region
    $region37: #{_lambda_.20} parent=5 // pred_check
      %p563 = pneg %p562
    $region38: #{_lambda_.20} parent=5 // pred_check_branch
      %565 = sbr.rel (%p563) target = $region40
    $region39: #{_lambda_.20} parent=5 // pred_region
      %s566 = ssub.s32 %s9, 2
      // Predicated region
      $region41: #{_lambda_.20} parent=39 // pred_check
        %p567 = pneg %p120
      $region42: #{_lambda_.20} parent=39 // pred_check_branch
        %569 = sbr.rel (%p567) target = $region44
      $region43: #{_lambda_.20} parent=39 // pred_region
        %p570 = scmp.lt.s32.totalorder %s20, 1
        %s571 = scalar_select %p570, %s20, 1
        %s572 = smul.addr %s571, 8
        %s573 = smul.addr %s572, 4
        %s574 = scalar_lea.vmem %s3, %s573
      $region44: #{_lambda_.20} parent=39 // pred_fallthru
        _
    $region40: #{_lambda_.20} parent=5 // pred_fallthru
      _
  $region6: #{_lambda_.20} parent=0 // loop_footer
    %s13 = sadd.s32 1, %s9
  $region7: #{_lambda_.20} parent=0 // loop_footer_branch
    %8 = sbr.rel target = $region3
  $region8: #{_lambda_.20} parent=0 // loop_exit
    _

// kernel: _lambda_.21
$region0: #{_lambda_.21}
  #allocation0 [shape = 'u32[]', space=smem, size = 0x4, offset = 0x4, fixed_abs, tag = 'smem constant byte address 0x4 - core index']
  #allocation1 [shape = 'u32[144,128]{1,0:T(1,128)}', space=vmem, size = 0x12000, scoped, tag = 'internal scratch']
  %s0 = inlined_call_operand.vmem [shape: bf16[2,256,384], index: 0, kind: input, shape index: {}]
  %s1 = inlined_call_operand.vmem [shape: bf16[384,128], index: 1, kind: input, shape index: {}]
  %s2 = inlined_call_operand.vmem [shape: f32[1,128], index: 2, kind: input, shape index: {}]
  %s3 = inlined_call_operand.vmem [shape: bf16[2,256,128], index: 3, kind: output, shape index: {}]
  %s4 = sld [smem:[#allocation0]]
  $region45: #{_lambda_.21} parent=0
    _
  %s6 = ssub.s32 1, %s4
  %s7 = scalar_select 0, %s6, %s4
  loop: start=0, step=1, limit=4
  $region2: #{_lambda_.21} parent=0 // loop_pre_header
    _
  $region3: #{_lambda_.21} parent=0 // loop_header
    %s9 = sphi 0, %s13
    %p10 = scmp.ge.s32.totalorder %s9, 4
    %s16 = sphi 0, %s28
    %s17 = sphi 0, %s24
    %s18 = sphi 0, %s16
    %s19 = sphi 0, %s17
    %s20 = sphi 0, %s18
    %s21 = sphi 0, %s19
    %s33 = sphi 0, %s35
    %s36 = sphi 0, %s33
    %s37 = sphi 0, %s36
    %s53 = sphi 0, %s37
    %s57 = sphi 0, %s57
    %s59 = sphi 0, %s57
    %s60 = sphi 0, %s59
    %s74 = sphi 0, %s60
    %s78 = sphi 0, %s78
    %s80 = sphi 0, %s78
    %s81 = sphi 0, %s80
    %s95 = sphi 0, %s81
    %s101 = sphi 0, %s103
    %s104 = sphi 0, %s101
    %s105 = sphi 0, %s104
    %s121 = sphi 0, %s105
  $region4: #{_lambda_.21} parent=0 // loop_header_branch
    %12 = sbr.rel (%p10) target = $region8
  $region5: #{_lambda_.21} parent=0 // loop_body
    %s14 = ssub.s32 %s9, 1
    %s15 = ssub.s32 %s9, 2
    %s22 = sadd.s32 1, %s17
    %p23 = scmp.ge.s32.totalorder %s22, 1
    %s24 = scalar_select %p23, 0, %s22
    %s25 = sadd.s32 1, %s16
    %s26 = scalar_select %p23, %s25, %s16
    %p27 = scmp.ge.s32.totalorder %s26, 2
    %s28 = scalar_select %p27, 0, %s26
    %s29 = ssub.s32 %s16, %s28
    %s30 = ssub.s32 %s17, %s24
    %s31 = sor.u32 %s29, %s30
    %p32 = scmp.eq.s32.totalorder %s31, 0
    %s34 = sadd.s32 %s33, 1
    %s35 = scalar_select %p32, %s33, %s34
    %p38 = pneg %p32
    %p39 = scmp.eq.s32.totalorder %s9, 1
    %p40 = por %p38, %p39
    %p41 = scmp.ne.s32.totalorder %s33, %s36
    %p42 = scmp.eq.s32.totalorder %s9, 0
    %p43 = por %p41, %p42
    %p44 = scmp.ne.s32.totalorder %s33, %s36
    %p45 = scmp.eq.s32.totalorder %s14, 1
    %p46 = por %p44, %p45
    %p47 = scmp.ne.s32.totalorder %s36, %s37
    %p48 = scmp.eq.s32.totalorder %s14, 0
    %p49 = por %p47, %p48
    %p50 = scmp.ne.s32.totalorder %s36, %s37
    %p51 = scmp.eq.s32.totalorder %s15, 1
    %p52 = por %p50, %p51
    %p54 = scmp.ne.s32.totalorder %s37, %s53
    %p55 = scmp.eq.s32.totalorder %s15, 0
    %p56 = por %p54, %p55
    %s58 = sadd.s32 %s57, 1
    %p61 = scmp.eq.s32.totalorder %s9, 1
    %p62 = scmp.ne.s32.totalorder %s57, %s59
    %p63 = scmp.eq.s32.totalorder %s9, 0
    %p64 = por %p62, %p63
    %p65 = scmp.ne.s32.totalorder %s57, %s59
    %p66 = scmp.eq.s32.totalorder %s14, 1
    %p67 = por %p65, %p66
    %p68 = scmp.ne.s32.totalorder %s59, %s60
    %p69 = scmp.eq.s32.totalorder %s14, 0
    %p70 = por %p68, %p69
    %p71 = scmp.ne.s32.totalorder %s59, %s60
    %p72 = scmp.eq.s32.totalorder %s15, 1
    %p73 = por %p71, %p72
    %p75 = scmp.ne.s32.totalorder %s60, %s74
    %p76 = scmp.eq.s32.totalorder %s15, 0
    %p77 = por %p75, %p76
    %s79 = sadd.s32 %s78, 1
    %p82 = scmp.eq.s32.totalorder %s9, 1
    %p83 = scmp.ne.s32.totalorder %s78, %s80
    %p84 = scmp.eq.s32.totalorder %s9, 0
    %p85 = por %p83, %p84
    %p86 = scmp.ne.s32.totalorder %s78, %s80
    %p87 = scmp.eq.s32.totalorder %s14, 1
    %p88 = por %p86, %p87
    %p89 = scmp.ne.s32.totalorder %s80, %s81
    %p90 = scmp.eq.s32.totalorder %s14, 0
    %p91 = por %p89, %p90
    %p92 = scmp.ne.s32.totalorder %s80, %s81
    %p93 = scmp.eq.s32.totalorder %s15, 1
    %p94 = por %p92, %p93
    %p96 = scmp.ne.s32.totalorder %s81, %s95
    %p97 = scmp.eq.s32.totalorder %s15, 0
    %p98 = por %p96, %p97
    %s99 = ssub.s32 %s16, %s28
    %p100 = scmp.eq.s32.totalorder %s99, 0
    %s102 = sadd.s32 %s101, 1
    %s103 = scalar_select %p100, %s101, %s102
    %p106 = pneg %p100
    %p107 = scmp.eq.s32.totalorder %s9, 1
    %p108 = por %p106, %p107
    %p109 = scmp.ne.s32.totalorder %s101, %s104
    %p110 = scmp.eq.s32.totalorder %s9, 0
    %p111 = por %p109, %p110
    %p112 = scmp.ne.s32.totalorder %s101, %s104
    %p113 = scmp.eq.s32.totalorder %s14, 1
    %p114 = por %p112, %p113
    %p115 = scmp.ne.s32.totalorder %s104, %s105
    %p116 = scmp.eq.s32.totalorder %s14, 0
    %p117 = por %p115, %p116
    %p118 = scmp.ne.s32.totalorder %s104, %s105
    %p119 = scmp.eq.s32.totalorder %s15, 1
    %p120 = por %p118, %p119
    %p122 = scmp.ne.s32.totalorder %s105, %s121
    %p123 = scmp.eq.s32.totalorder %s15, 0
    %p124 = por %p122, %p123
    %p125 = scmp.le.s32.totalorder 1, %s9
    %p126 = scmp.lt.s32.totalorder %s9, 3
    %p127 = pnand %p125, %p126
    %p128 = pneg %p127
    // Predicated region
    $region9: #{_lambda_.21} parent=5 // pred_check
      _
    $region10: #{_lambda_.21} parent=5 // pred_check_branch
      %130 = sbr.rel (%p127) target = $region12
    $region11: #{_lambda_.21} parent=5 // pred_region
      %s131 = ssub.s32 %s9, 1
      // Predicated region
      $region13: #{_lambda_.21} parent=11 // pred_check
        %p132 = pneg %p70
      $region14: #{_lambda_.21} parent=11 // pred_check_branch
        %134 = sbr.rel (%p132) target = $region16
      $region15: #{_lambda_.21} parent=11 // pred_region
        _
      $region16: #{_lambda_.21} parent=11 // pred_fallthru
        _
      // Predicated region
      $region17: #{_lambda_.21} parent=11 // pred_check
        %p135 = pneg %p91
      $region18: #{_lambda_.21} parent=11 // pred_check_branch
        %137 = sbr.rel (%p135) target = $region20
      $region19: #{_lambda_.21} parent=11 // pred_region
        _
      $region20: #{_lambda_.21} parent=11 // pred_fallthru
        _
    $region12: #{_lambda_.21} parent=5 // pred_fallthru
      _
    %p138 = scmp.lt.s32.totalorder %s9, 2
    // Predicated region
    $region21: #{_lambda_.21} parent=5 // pred_check
      %p139 = pneg %p138
    $region22: #{_lambda_.21} parent=5 // pred_check_branch
      %141 = sbr.rel (%p139) target = $region24
    $region23: #{_lambda_.21} parent=5 // pred_region
      // Predicated region
      $region25: #{_lambda_.21} parent=23 // pred_check
        %p142 = pneg %p43
      $region26: #{_lambda_.21} parent=23 // pred_check_branch
        %144 = sbr.rel (%p142) target = $region28
      $region27: #{_lambda_.21} parent=23 // pred_region
        %s145 = smul.u32 32, %s17
        %p146 = scmp.lt.s32.totalorder %s16, 1
        %s147 = scalar_select %p146, %s16, 1
        %p148 = scmp.lt.s32.totalorder %s145, 31
        %s149 = scalar_select %p148, %s145, 31
        %s150 = smul.addr %s149, 3
        %s151 = smul.addr %s147, 96
        %s152 = sadd.s32 %s150, %s151
        %s153 = smul.addr %s152, 4
        %s154 = scalar_lea.vmem %s0, %s153
        %s155 = smul.u32 32, %s17
      $region28: #{_lambda_.21} parent=23 // pred_fallthru
        _
    $region24: #{_lambda_.21} parent=5 // pred_fallthru
      _
    %p156 = scmp.le.s32.totalorder 1, %s9
    %p157 = scmp.lt.s32.totalorder %s9, 3
    %p158 = pnand %p156, %p157
    %p159 = pneg %p158
    // Predicated region
    $region29: #{_lambda_.21} parent=5 // pred_check
      _
    $region30: #{_lambda_.21} parent=5 // pred_check_branch
      %161 = sbr.rel (%p158) target = $region32
    $region31: #{_lambda_.21} parent=5 // pred_region
      %s162 = ssub.s32 %s9, 1
      %s163 = smul.u32 32, %s19
      %p164 = scmp.lt.s32.totalorder %s18, 1
      %s165 = scalar_select %p164, %s18, 1
      %p166 = scmp.lt.s32.totalorder %s163, 31
      %s167 = scalar_select %p166, %s163, 31
      %s168 = smul.addr %s167, 3
      %s169 = smul.addr %s165, 96
      %s170 = sadd.s32 %s168, %s169
      %s171 = smul.addr %s170, 4
      %s172 = scalar_lea.vmem %s0, %s171
      %p173 = pneg %p49
      %p174 = pneg %p46
      %p175 = pneg %p70
      %p176 = pneg %p67
      %p177 = pneg %p91
      %p178 = pneg %p88
      %p179 = pneg %p117
      %p180 = pneg %p114
      %p181 = scmp.lt.s32.totalorder %s18, 1
      %s182 = scalar_select %p181, %s18, 1
      %s183 = smul.addr %s182, 32
      %s184 = smul.addr %s183, 4
      %s185 = scalar_lea.vmem %s3, %s184
      %s186 = smul.u32 32, %s19
      %p187 = scmp.lt.s32.totalorder %s18, 1
      %s188 = scalar_select %p187, %s18, 1
      %p189 = scmp.lt.s32.totalorder %s186, 31
      %s190 = scalar_select %p189, %s186, 31
      %s191 = smul.addr %s190, 3
      %s192 = smul.addr %s188, 96
      %s193 = sadd.s32 %s191, %s192
      %s194 = smul.addr %s193, 4
      %s195 = scalar_lea.vmem %s0, %s194
      %s196 = smul.u32 32, %s19
      %p197 = scmp.lt.s32.totalorder %s18, 1
      %s198 = scalar_select %p197, %s18, 1
      %s199 = smul.addr %s198, 32
      %s200 = smul.addr %s199, 4
      %s201 = scalar_lea.vmem %s3, %s200
      %v203 = vld [vmem:[%s195] sm:$0xff]
      %v204 = vld [vmem:[%s195 + $0x8] sm:$0xf]
      %v205 = vld [vmem:[%s195 + $0xc] sm:$0xff]
      %v206 = vld [vmem:[%s195 + $0x14] sm:$0xf]
      %v207 = vld [vmem:[%s195 + $0x18] sm:$0xff]
      %v208 = vld [vmem:[%s195 + $0x20] sm:$0xf]
      %v209 = vld [vmem:[%s195 + $0x24] sm:$0xff]
      %v210 = vld [vmem:[%s195 + $0x2c] sm:$0xf]
      %v211 = vld [vmem:[%s195 + $0x30] sm:$0xff]
      %v212 = vld [vmem:[%s195 + $0x38] sm:$0xf]
      %v213 = vld [vmem:[%s195 + $0x3c] sm:$0xff]
      %v214 = vld [vmem:[%s195 + $0x44] sm:$0xf]
      %v215 = vld [vmem:[%s195 + $0x48] sm:$0xff]
      %v216 = vld [vmem:[%s195 + $0x50] sm:$0xf]
      %v217 = vld [vmem:[%s195 + $0x54] sm:$0xff]
      %v218 = vld [vmem:[%s195 + $0x5c] sm:$0xf]
      %v219 = vld [vmem:[%s195 + $0x60] sm:$0xff]
      %v220 = vld [vmem:[%s195 + $0x68] sm:$0xf]
      %v221 = vld [vmem:[%s195 + $0x6c] sm:$0xff]
      %v222 = vld [vmem:[%s195 + $0x74] sm:$0xf]
      %v223 = vld [vmem:[%s195 + $0x78] sm:$0xff]
      %v224 = vld [vmem:[%s195 + $0x80] sm:$0xf]
      %v225 = vld [vmem:[%s195 + $0x84] sm:$0xff]
      %v226 = vld [vmem:[%s195 + $0x8c] sm:$0xf]
      %v227 = vld [vmem:[%s195 + $0x90] sm:$0xff]
      %v228 = vld [vmem:[%s195 + $0x98] sm:$0xf]
      %v229 = vld [vmem:[%s195 + $0x9c] sm:$0xff]
      %v230 = vld [vmem:[%s195 + $0xa4] sm:$0xf]
      %v231 = vld [vmem:[%s195 + $0xa8] sm:$0xff]
      %v232 = vld [vmem:[%s195 + $0xb0] sm:$0xf]
      %v233 = vld [vmem:[%s195 + $0xb4] sm:$0xff]
      %v234 = vld [vmem:[%s195 + $0xbc] sm:$0xf]
      %v235 = vld [vmem:[%s195 + $0xc0] sm:$0xff]
      %v236 = vld [vmem:[%s195 + $0xc8] sm:$0xf]
      %v237 = vld [vmem:[%s195 + $0xcc] sm:$0xff]
      %v238 = vld [vmem:[%s195 + $0xd4] sm:$0xf]
      %v239 = vld [vmem:[%s195 + $0xd8] sm:$0xff]
      %v240 = vld [vmem:[%s195 + $0xe0] sm:$0xf]
      %v241 = vld [vmem:[%s195 + $0xe4] sm:$0xff]
      %v242 = vld [vmem:[%s195 + $0xec] sm:$0xf]
      %v243 = vld [vmem:[%s195 + $0xf0] sm:$0xff]
      %v244 = vld [vmem:[%s195 + $0xf8] sm:$0xf]
      %v245 = vld [vmem:[%s195 + $0xfc] sm:$0xff]
      %v246 = vld [vmem:[%s195 + $0x104] sm:$0xf]
      %v247 = vld [vmem:[%s195 + $0x108] sm:$0xff]
      %v248 = vld [vmem:[%s195 + $0x110] sm:$0xf]
      %v249 = vld [vmem:[%s195 + $0x114] sm:$0xff]
      %v250 = vld [vmem:[%s195 + $0x11c] sm:$0xf]
      %v251 = vld [vmem:[%s195 + $0x120] sm:$0xff]
      %v252 = vld [vmem:[%s195 + $0x128] sm:$0xf]
      %v253 = vld [vmem:[%s195 + $0x12c] sm:$0xff]
      %v254 = vld [vmem:[%s195 + $0x134] sm:$0xf]
      %v255 = vld [vmem:[%s195 + $0x138] sm:$0xff]
      %v256 = vld [vmem:[%s195 + $0x140] sm:$0xf]
      %v257 = vld [vmem:[%s195 + $0x144] sm:$0xff]
      %v258 = vld [vmem:[%s195 + $0x14c] sm:$0xf]
      %v259 = vld [vmem:[%s195 + $0x150] sm:$0xff]
      %v260 = vld [vmem:[%s195 + $0x158] sm:$0xf]
      %v261 = vld [vmem:[%s195 + $0x15c] sm:$0xff]
      %v262 = vld [vmem:[%s195 + $0x164] sm:$0xf]
      %v263 = vld [vmem:[%s195 + $0x168] sm:$0xff]
      %v264 = vld [vmem:[%s195 + $0x170] sm:$0xf]
      %v265 = vld [vmem:[%s195 + $0x174] sm:$0xff]
      %v266 = vld [vmem:[%s195 + $0x17c] sm:$0xf]
      %v267 = vld [vmem:[%s1] sm:$0xf]
      %v268 = vld [vmem:[%s1 + $0x4] sm:$0xf]
      %v269 = vld [vmem:[%s1 + $0x8] sm:$0xf]
      %v270 = vld [vmem:[%s1 + $0xc] sm:$0xf]
      %v271 = vld [vmem:[%s1 + $0x10] sm:$0xf]
      %v272 = vld [vmem:[%s1 + $0x14] sm:$0xf]
      %v273 = vld [vmem:[%s1 + $0x18] sm:$0xf]
      %v274 = vld [vmem:[%s1 + $0x1c] sm:$0xf]
      %v275 = vld [vmem:[%s1 + $0x20] sm:$0xf]
      %v276 = vld [vmem:[%s1 + $0x24] sm:$0xf]
      %v277 = vld [vmem:[%s1 + $0x28] sm:$0xf]
      %v278 = vld [vmem:[%s1 + $0x2c] sm:$0xf]
      %v279 = vld [vmem:[%s1 + $0x30] sm:$0xf]
      %v280 = vld [vmem:[%s1 + $0x34] sm:$0xf]
      %v281 = vld [vmem:[%s1 + $0x38] sm:$0xf]
      %v282 = vld [vmem:[%s1 + $0x3c] sm:$0xf]
      %v283 = vld [vmem:[%s1 + $0x40] sm:$0xf]
      %v284 = vld [vmem:[%s1 + $0x44] sm:$0xf]
      %v285 = vld [vmem:[%s1 + $0x48] sm:$0xf]
      %v286 = vld [vmem:[%s1 + $0x4c] sm:$0xf]
      %v287 = vld [vmem:[%s1 + $0x50] sm:$0xf]
      %v288 = vld [vmem:[%s1 + $0x54] sm:$0xf]
      %v289 = vld [vmem:[%s1 + $0x58] sm:$0xf]
      %v290 = vld [vmem:[%s1 + $0x5c] sm:$0xf]
      %v291 = vld [vmem:[%s1 + $0x60] sm:$0xf]
      %v292 = vld [vmem:[%s1 + $0x64] sm:$0xf]
      %v293 = vld [vmem:[%s1 + $0x68] sm:$0xf]
      %v294 = vld [vmem:[%s1 + $0x6c] sm:$0xf]
      %v295 = vld [vmem:[%s1 + $0x70] sm:$0xf]
      %v296 = vld [vmem:[%s1 + $0x74] sm:$0xf]
      %v297 = vld [vmem:[%s1 + $0x78] sm:$0xf]
      %v298 = vld [vmem:[%s1 + $0x7c] sm:$0xf]
      %v299 = vld [vmem:[%s1 + $0x80] sm:$0xf]
      %v300 = vld [vmem:[%s1 + $0x84] sm:$0xf]
      %v301 = vld [vmem:[%s1 + $0x88] sm:$0xf]
      %v302 = vld [vmem:[%s1 + $0x8c] sm:$0xf]
      %v303 = vld [vmem:[%s1 + $0x90] sm:$0xf]
      %v304 = vld [vmem:[%s1 + $0x94] sm:$0xf]
      %v305 = vld [vmem:[%s1 + $0x98] sm:$0xf]
      %v306 = vld [vmem:[%s1 + $0x9c] sm:$0xf]
      %v307 = vld [vmem:[%s1 + $0xa0] sm:$0xf]
      %v308 = vld [vmem:[%s1 + $0xa4] sm:$0xf]
      %v309 = vld [vmem:[%s1 + $0xa8] sm:$0xf]
      %v310 = vld [vmem:[%s1 + $0xac] sm:$0xf]
      %v311 = vld [vmem:[%s1 + $0xb0] sm:$0xf]
      %v312 = vld [vmem:[%s1 + $0xb4] sm:$0xf]
      %v313 = vld [vmem:[%s1 + $0xb8] sm:$0xf]
      %v314 = vld [vmem:[%s1 + $0xbc] sm:$0xf]
      %v315 = vld [vmem:[%s2] sm:$0x1]
      %v317 = vlaneseq
      %v318 = vshrl.u32 %v317, 7
      %v319 = vsub.s32 0, %v318
      %v320 = vrot.slane %v315, %v319
      %v386 = vunpack.c.l.b16 %v203
      %v387 = vunpack.c.h.b16 %v203
      %v388 = vunpack.c.l.b16 %v204
      %v389 = vunpack.c.l.b16 %v205
      %v390 = vunpack.c.h.b16 %v205
      %v391 = vunpack.c.l.b16 %v206
      %v392 = vunpack.c.l.b16 %v207
      %v393 = vunpack.c.h.b16 %v207
      %v394 = vunpack.c.l.b16 %v208
      %v395 = vunpack.c.l.b16 %v209
      %v396 = vunpack.c.h.b16 %v209
      %v397 = vunpack.c.l.b16 %v210
      %v398 = vunpack.c.l.b16 %v211
      %v399 = vunpack.c.h.b16 %v211
      %v400 = vunpack.c.l.b16 %v212
      %v401 = vunpack.c.l.b16 %v213
      %v402 = vunpack.c.h.b16 %v213
      %v403 = vunpack.c.l.b16 %v214
      %v404 = vunpack.c.l.b16 %v215
      %v405 = vunpack.c.h.b16 %v215
      %v406 = vunpack.c.l.b16 %v216
      %v407 = vunpack.c.l.b16 %v217
      %v408 = vunpack.c.h.b16 %v217
      %v409 = vunpack.c.l.b16 %v218
      %v410 = vunpack.c.l.b16 %v219
      %v411 = vunpack.c.h.b16 %v219
      %v412 = vunpack.c.l.b16 %v220
      %v413 = vunpack.c.l.b16 %v221
      %v414 = vunpack.c.h.b16 %v221
      %v415 = vunpack.c.l.b16 %v222
      %v416 = vunpack.c.l.b16 %v223
      %v417 = vunpack.c.h.b16 %v223
      %v418 = vunpack.c.l.b16 %v224
      %v419 = vunpack.c.l.b16 %v225
      %v420 = vunpack.c.h.b16 %v225
      %v421 = vunpack.c.l.b16 %v226
      %v422 = vunpack.c.l.b16 %v227
      %v423 = vunpack.c.h.b16 %v227
      %v424 = vunpack.c.l.b16 %v228
      %v425 = vunpack.c.l.b16 %v229
      %v426 = vunpack.c.h.b16 %v229
      %v427 = vunpack.c.l.b16 %v230
      %v428 = vunpack.c.l.b16 %v231
      %v429 = vunpack.c.h.b16 %v231
      %v430 = vunpack.c.l.b16 %v232
      %v431 = vunpack.c.l.b16 %v233
      %v432 = vunpack.c.h.b16 %v233
      %v433 = vunpack.c.l.b16 %v234
      %v434 = vunpack.c.l.b16 %v235
      %v435 = vunpack.c.h.b16 %v235
      %v436 = vunpack.c.l.b16 %v236
      %v437 = vunpack.c.l.b16 %v237
      %v438 = vunpack.c.h.b16 %v237
      %v439 = vunpack.c.l.b16 %v238
      %v440 = vunpack.c.l.b16 %v239
      %v441 = vunpack.c.h.b16 %v239
      %v442 = vunpack.c.l.b16 %v240
      %v443 = vunpack.c.l.b16 %v241
      %v444 = vunpack.c.h.b16 %v241
      %v445 = vunpack.c.l.b16 %v242
      %v446 = vunpack.c.l.b16 %v243
      %v447 = vunpack.c.h.b16 %v243
      %v448 = vunpack.c.l.b16 %v244
      %v449 = vunpack.c.l.b16 %v245
      %v450 = vunpack.c.h.b16 %v245
      %v451 = vunpack.c.l.b16 %v246
      %v452 = vunpack.c.l.b16 %v247
      %v453 = vunpack.c.h.b16 %v247
      %v454 = vunpack.c.l.b16 %v248
      %v455 = vunpack.c.l.b16 %v249
      %v456 = vunpack.c.h.b16 %v249
      %v457 = vunpack.c.l.b16 %v250
      %v458 = vunpack.c.l.b16 %v251
      %v459 = vunpack.c.h.b16 %v251
      %v460 = vunpack.c.l.b16 %v252
      %v461 = vunpack.c.l.b16 %v253
      %v462 = vunpack.c.h.b16 %v253
      %v463 = vunpack.c.l.b16 %v254
      %v464 = vunpack.c.l.b16 %v255
      %v465 = vunpack.c.h.b16 %v255
      %v466 = vunpack.c.l.b16 %v256
      %v467 = vunpack.c.l.b16 %v257
      %v468 = vunpack.c.h.b16 %v257
      %v469 = vunpack.c.l.b16 %v258
      %v470 = vunpack.c.l.b16 %v259
      %v471 = vunpack.c.h.b16 %v259
      %v472 = vunpack.c.l.b16 %v260
      %v473 = vunpack.c.l.b16 %v261
      %v474 = vunpack.c.h.b16 %v261
      %v475 = vunpack.c.l.b16 %v262
      %v476 = vunpack.c.l.b16 %v263
      %v477 = vunpack.c.h.b16 %v263
      %v478 = vunpack.c.l.b16 %v264
      %v479 = vunpack.c.l.b16 %v265
      %v480 = vunpack.c.h.b16 %v265
      %v481 = vunpack.c.l.b16 %v266
      %v482 = vpack.c.b16 %v389, %v386
      %v483 = vpack.c.b16 %v390, %v387
      %v484 = vpack.c.b16 %v391, %v388
      %v485 = vpack.c.b16 %v395, %v392
      %v486 = vpack.c.b16 %v396, %v393
      %v487 = vpack.c.b16 %v397, %v394
      %v488 = vpack.c.b16 %v401, %v398
      %v489 = vpack.c.b16 %v402, %v399
      %v490 = vpack.c.b16 %v403, %v400
      %v491 = vpack.c.b16 %v407, %v404
      %v492 = vpack.c.b16 %v408, %v405
      %v493 = vpack.c.b16 %v409, %v406
      %v494 = vpack.c.b16 %v413, %v410
      %v495 = vpack.c.b16 %v414, %v411
      %v496 = vpack.c.b16 %v415, %v412
      %v497 = vpack.c.b16 %v419, %v416
      %v498 = vpack.c.b16 %v420, %v417
      %v499 = vpack.c.b16 %v421, %v418
      %v500 = vpack.c.b16 %v425, %v422
      %v501 = vpack.c.b16 %v426, %v423
      %v502 = vpack.c.b16 %v427, %v424
      %v503 = vpack.c.b16 %v431, %v428
      %v504 = vpack.c.b16 %v432, %v429
      %v505 = vpack.c.b16 %v433, %v430
      %v506 = vpack.c.b16 %v437, %v434
      %v507 = vpack.c.b16 %v438, %v435
      %v508 = vpack.c.b16 %v439, %v436
      %v509 = vpack.c.b16 %v443, %v440
      %v510 = vpack.c.b16 %v444, %v441
      %v511 = vpack.c.b16 %v445, %v442
      %v512 = vpack.c.b16 %v449, %v446
      %v513 = vpack.c.b16 %v450, %v447
      %v514 = vpack.c.b16 %v451, %v448
      %v515 = vpack.c.b16 %v455, %v452
      %v516 = vpack.c.b16 %v456, %v453
      %v517 = vpack.c.b16 %v457, %v454
      %v518 = vpack.c.b16 %v461, %v458
      %v519 = vpack.c.b16 %v462, %v459
      %v520 = vpack.c.b16 %v463, %v460
      %v521 = vpack.c.b16 %v467, %v464
      %v522 = vpack.c.b16 %v468, %v465
      %v523 = vpack.c.b16 %v469, %v466
      %v524 = vpack.c.b16 %v473, %v470
      %v525 = vpack.c.b16 %v474, %v471
      %v526 = vpack.c.b16 %v475, %v472
      %v527 = vpack.c.b16 %v479, %v476
      %v528 = vpack.c.b16 %v480, %v477
      %v529 = vpack.c.b16 %v481, %v478
      %v626 = vunpack.c.l.b16 %v267
      %v627 = vunpack.c.l.b16 %v268
      %v628 = vunpack.c.l.b16 %v269
      %v629 = vunpack.c.l.b16 %v270
      %v630 = vunpack.c.l.b16 %v271
      %v631 = vunpack.c.l.b16 %v272
      %v632 = vunpack.c.l.b16 %v273
      %v633 = vunpack.c.l.b16 %v274
      %v634 = vunpack.c.l.b16 %v275
      %v635 = vunpack.c.l.b16 %v276
      %v636 = vunpack.c.l.b16 %v277
      %v637 = vunpack.c.l.b16 %v278
      %v638 = vunpack.c.l.b16 %v279
      %v639 = vunpack.c.l.b16 %v280
      %v640 = vunpack.c.l.b16 %v281
      %v641 = vunpack.c.l.b16 %v282
      %v642 = vunpack.c.l.b16 %v283
      %v643 = vunpack.c.l.b16 %v284
      %v644 = vunpack.c.l.b16 %v285
      %v645 = vunpack.c.l.b16 %v286
      %v646 = vunpack.c.l.b16 %v287
      %v647 = vunpack.c.l.b16 %v288
      %v648 = vunpack.c.l.b16 %v289
      %v649 = vunpack.c.l.b16 %v290
      %v650 = vunpack.c.l.b16 %v291
      %v651 = vunpack.c.l.b16 %v292
      %v652 = vunpack.c.l.b16 %v293
      %v653 = vunpack.c.l.b16 %v294
      %v654 = vunpack.c.l.b16 %v295
      %v655 = vunpack.c.l.b16 %v296
      %v656 = vunpack.c.l.b16 %v297
      %v657 = vunpack.c.l.b16 %v298
      %v658 = vunpack.c.l.b16 %v299
      %v659 = vunpack.c.l.b16 %v300
      %v660 = vunpack.c.l.b16 %v301
      %v661 = vunpack.c.l.b16 %v302
      %v662 = vunpack.c.l.b16 %v303
      %v663 = vunpack.c.l.b16 %v304
      %v664 = vunpack.c.l.b16 %v305
      %v665 = vunpack.c.l.b16 %v306
      %v666 = vunpack.c.l.b16 %v307
      %v667 = vunpack.c.l.b16 %v308
      %v668 = vunpack.c.l.b16 %v309
      %v669 = vunpack.c.l.b16 %v310
      %v670 = vunpack.c.l.b16 %v311
      %v671 = vunpack.c.l.b16 %v312
      %v672 = vunpack.c.l.b16 %v313
      %v673 = vunpack.c.l.b16 %v314
      %v674 = vpack.c.b16 %v627, %v626
      %v675 = vpack.c.b16 %v629, %v628
      %v676 = vpack.c.b16 %v631, %v630
      %v677 = vpack.c.b16 %v633, %v632
      %v678 = vpack.c.b16 %v635, %v634
      %v679 = vpack.c.b16 %v637, %v636
      %v680 = vpack.c.b16 %v639, %v638
      %v681 = vpack.c.b16 %v641, %v640
      %v682 = vpack.c.b16 %v643, %v642
      %v683 = vpack.c.b16 %v645, %v644
      %v684 = vpack.c.b16 %v647, %v646
      %v685 = vpack.c.b16 %v649, %v648
      %v686 = vpack.c.b16 %v651, %v650
      %v687 = vpack.c.b16 %v653, %v652
      %v688 = vpack.c.b16 %v655, %v654
      %v689 = vpack.c.b16 %v657, %v656
      %v690 = vpack.c.b16 %v659, %v658
      %v691 = vpack.c.b16 %v661, %v660
      %v692 = vpack.c.b16 %v663, %v662
      %v693 = vpack.c.b16 %v665, %v664
      %v694 = vpack.c.b16 %v667, %v666
      %v695 = vpack.c.b16 %v669, %v668
      %v696 = vpack.c.b16 %v671, %v670
      %v697 = vpack.c.b16 %v673, %v672
      %722 = vmatprep.subr.bf16.mxu0 0
      %723 = vmatpush1.bf16.msra.mxu0 %v674
      %724 = vmatprep.subr.bf16.mxu0 0
      %725 = vmatpush1.bf16.msra.mxu0 %v675
      %726 = vmatprep.subr.bf16.mxu0 0
      %727 = vmatpush1.bf16.msra.mxu0 %v676
      %728 = vmatprep.subr.bf16.mxu0 0
      %729 = vmatpush1.bf16.msra.mxu0 %v677
      %730 = vmatprep.subr.bf16.mxu0 0
      %731 = vmatpush1.bf16.msra.mxu0 %v678
      %732 = vmatprep.subr.bf16.mxu0 0
      %733 = vmatpush1.bf16.msra.mxu0 %v679
      %734 = vmatprep.subr.bf16.mxu0 0
      %735 = vmatpush1.bf16.msra.mxu0 %v680
      %736 = vmatprep.subr.bf16.mxu0 0
      %737 = vmatpush1.bf16.msra.mxu0 %v681
      %738 = vmatprep.subr.bf16.mxu0 0
      %739 = vmatpush1.bf16.msra.mxu0 %v682
      %740 = vmatprep.subr.bf16.mxu0 0
      %741 = vmatpush1.bf16.msra.mxu0 %v683
      %742 = vmatprep.subr.bf16.mxu0 0
      %743 = vmatpush1.bf16.msra.mxu0 %v684
      %744 = vmatprep.subr.bf16.mxu0 0
      %745 = vmatpush1.bf16.msra.mxu0 %v685
      %746 = vmatprep.subr.bf16.mxu0 0
      %747 = vmatpush1.bf16.msra.mxu0 %v686
      %748 = vmatprep.subr.bf16.mxu0 0
      %749 = vmatpush1.bf16.msra.mxu0 %v687
      %750 = vmatprep.subr.bf16.mxu0 0
      %751 = vmatpush1.bf16.msra.mxu0 %v688
      %752 = vmatprep.subr.bf16.mxu0 0
      %753 = vmatpush1.bf16.msra.mxu0 %v689
      %754 = vmatprep.mubr.bf16.mxu0 %v483
      %755 = vmatmul.mubr.bf16.gmra.mrb[0].mxu0 %v482
      %v756 = vpop.f32.mrb[0].mxu0
      %v757 = vadd.f32 %v320, %v756
      %v758 = vpop.f32.mrb[0].mxu0
      %v759 = vpop.f32.mrb[0].mxu0
      %v760 = vadd.f32 %v320, %v759
      %v761 = vpop.f32.mrb[0].mxu0
      %762 = vmatprep.mubr.bf16.mxu0 %v486
      %763 = vmatmul.mubr.bf16.gmra.mrb[0].mxu0 %v485
      %v764 = vpop.f32.mrb[0].mxu0
      %v765 = vadd.f32 %v320, %v764
      %v766 = vpop.f32.mrb[0].mxu0
      %v767 = vpop.f32.mrb[0].mxu0
      %v768 = vadd.f32 %v320, %v767
      %v769 = vpop.f32.mrb[0].mxu0
      %770 = vmatprep.mubr.bf16.mxu0 %v489
      %771 = vmatmul.mubr.bf16.gmra.mrb[0].mxu0 %v488
      %v772 = vpop.f32.mrb[0].mxu0
      %v773 = vadd.f32 %v320, %v772
      %v774 = vpop.f32.mrb[0].mxu0
      %v775 = vpop.f32.mrb[0].mxu0
      %v776 = vadd.f32 %v320, %v775
      %v777 = vpop.f32.mrb[0].mxu0
      %778 = vmatprep.mubr.bf16.mxu0 %v492
      %779 = vmatmul.mubr.bf16.gmra.mrb[0].mxu0 %v491
      %v780 = vpop.f32.mrb[0].mxu0
      %v781 = vadd.f32 %v320, %v780
      %v782 = vpop.f32.mrb[0].mxu0
      %v783 = vpop.f32.mrb[0].mxu0
      %v784 = vadd.f32 %v320, %v783
      %v785 = vpop.f32.mrb[0].mxu0
      %786 = vmatprep.mubr.bf16.mxu0 %v495
      %787 = vmatmul.mubr.bf16.gmra.mrb[0].mxu0 %v494
      %v788 = vpop.f32.mrb[0].mxu0
      %v789 = vadd.f32 %v320, %v788
      %v790 = vpop.f32.mrb[0].mxu0
      %v791 = vpop.f32.mrb[0].mxu0
      %v792 = vadd.f32 %v320, %v791
      %v793 = vpop.f32.mrb[0].mxu0
      %794 = vmatprep.mubr.bf16.mxu0 %v498
      %795 = vmatmul.mubr.bf16.gmra.mrb[0].mxu0 %v497
      %v796 = vpop.f32.mrb[0].mxu0
      %v797 = vadd.f32 %v320, %v796
      %v798 = vpop.f32.mrb[0].mxu0
      %v799 = vpop.f32.mrb[0].mxu0
      %v800 = vadd.f32 %v320, %v799
      %v801 = vpop.f32.mrb[0].mxu0
      %802 = vmatprep.mubr.bf16.mxu0 %v501
      %803 = vmatmul.mubr.bf16.gmra.mrb[0].mxu0 %v500
      %v804 = vpop.f32.mrb[0].mxu0
      %v805 = vadd.f32 %v320, %v804
      %v806 = vpop.f32.mrb[0].mxu0
      %v807 = vpop.f32.mrb[0].mxu0
      %v808 = vadd.f32 %v320, %v807
      %v809 = vpop.f32.mrb[0].mxu0
      %810 = vmatprep.mubr.bf16.mxu0 %v504
      %811 = vmatmul.mubr.bf16.gmra.mrb[0].mxu0 %v503
      %v812 = vpop.f32.mrb[0].mxu0
      %v813 = vadd.f32 %v320, %v812
      %v814 = vpop.f32.mrb[0].mxu0
      %v815 = vpop.f32.mrb[0].mxu0
      %v816 = vadd.f32 %v320, %v815
      %v817 = vpop.f32.mrb[0].mxu0
      %818 = vmatprep.mubr.bf16.mxu0 %v507
      %819 = vmatmul.mubr.bf16.gmra.mrb[0].mxu0 %v506
      %v820 = vpop.f32.mrb[0].mxu0
      %v821 = vadd.f32 %v320, %v820
      %v822 = vpop.f32.mrb[0].mxu0
      %v823 = vpop.f32.mrb[0].mxu0
      %v824 = vadd.f32 %v320, %v823
      %v825 = vpop.f32.mrb[0].mxu0
      %826 = vmatprep.mubr.bf16.mxu0 %v510
      %827 = vmatmul.mubr.bf16.gmra.mrb[0].mxu0 %v509
      %v828 = vpop.f32.mrb[0].mxu0
      %v829 = vadd.f32 %v320, %v828
      %v830 = vpop.f32.mrb[0].mxu0
      %v831 = vpop.f32.mrb[0].mxu0
      %v832 = vadd.f32 %v320, %v831
      %v833 = vpop.f32.mrb[0].mxu0
      %834 = vmatprep.mubr.bf16.mxu0 %v513
      %835 = vmatmul.mubr.bf16.gmra.mrb[0].mxu0 %v512
      %v836 = vpop.f32.mrb[0].mxu0
      %v837 = vadd.f32 %v320, %v836
      %v838 = vpop.f32.mrb[0].mxu0
      %v839 = vpop.f32.mrb[0].mxu0
      %v840 = vadd.f32 %v320, %v839
      %v841 = vpop.f32.mrb[0].mxu0
      %842 = vmatprep.mubr.bf16.mxu0 %v516
      %843 = vmatmul.mubr.bf16.gmra.mrb[0].mxu0 %v515
      %v844 = vpop.f32.mrb[0].mxu0
      %v845 = vadd.f32 %v320, %v844
      %v846 = vpop.f32.mrb[0].mxu0
      %v847 = vpop.f32.mrb[0].mxu0
      %v848 = vadd.f32 %v320, %v847
      %v849 = vpop.f32.mrb[0].mxu0
      %850 = vmatprep.mubr.bf16.mxu0 %v519
      %851 = vmatmul.mubr.bf16.gmra.mrb[0].mxu0 %v518
      %v852 = vpop.f32.mrb[0].mxu0
      %v853 = vadd.f32 %v320, %v852
      %v854 = vpop.f32.mrb[0].mxu0
      %v855 = vpop.f32.mrb[0].mxu0
      %v856 = vadd.f32 %v320, %v855
      %v857 = vpop.f32.mrb[0].mxu0
      %858 = vmatprep.mubr.bf16.mxu0 %v522
      %859 = vmatmul.mubr.bf16.gmra.mrb[0].mxu0 %v521
      %v860 = vpop.f32.mrb[0].mxu0
      %v861 = vadd.f32 %v320, %v860
      %v862 = vpop.f32.mrb[0].mxu0
      %v863 = vpop.f32.mrb[0].mxu0
      %v864 = vadd.f32 %v320, %v863
      %v865 = vpop.f32.mrb[0].mxu0
      %866 = vmatprep.mubr.bf16.mxu0 %v525
      %867 = vmatmul.mubr.bf16.gmra.mrb[0].mxu0 %v524
      %v868 = vpop.f32.mrb[0].mxu0
      %v869 = vadd.f32 %v320, %v868
      %v870 = vpop.f32.mrb[0].mxu0
      %v871 = vpop.f32.mrb[0].mxu0
      %v872 = vadd.f32 %v320, %v871
      %v873 = vpop.f32.mrb[0].mxu0
      %874 = vmatprep.mubr.bf16.mxu0 %v528
      %875 = vmatmul.mubr.bf16.gmra.mrb[0].mxu0 %v527
      %v876 = vpop.f32.mrb[0].mxu0
      %v877 = vadd.f32 %v320, %v876
      %v878 = vpop.f32.mrb[0].mxu0
      %v879 = vpop.f32.mrb[0].mxu0
      %v880 = vadd.f32 %v320, %v879
      %v881 = vpop.f32.mrb[0].mxu0
      %882 = vdwg.mxu0
      %883 = vmatprep.subr.bf16.mxu0 0
      %884 = vmatpush1.bf16.msra.mxu0 %v690
      %885 = vmatprep.subr.bf16.mxu0 0
      %886 = vmatpush1.bf16.msra.mxu0 %v691
      %887 = vmatprep.subr.bf16.mxu0 0
      %888 = vmatpush1.bf16.msra.mxu0 %v692
      %889 = vmatprep.subr.bf16.mxu0 0
      %890 = vmatpush1.bf16.msra.mxu0 %v693
      %891 = vmatprep.subr.bf16.mxu0 0
      %892 = vmatpush1.bf16.msra.mxu0 %v694
      %893 = vmatprep.subr.bf16.mxu0 0
      %894 = vmatpush1.bf16.msra.mxu0 %v695
      %895 = vmatprep.subr.bf16.mxu0 0
      %896 = vmatpush1.bf16.msra.mxu0 %v696
      %897 = vmatprep.subr.bf16.mxu0 0
      %898 = vmatpush1.bf16.msra.mxu0 %v697
      %899 = vmatprep.subr.bf16.mxu0 0
      %900 = vmatpush1.bf16.msra.mxu0 0
      %901 = vmatprep.subr.bf16.mxu0 0
      %902 = vmatpush1.bf16.msra.mxu0 0
      %903 = vmatprep.subr.bf16.mxu0 0
      %904 = vmatpush1.bf16.msra.mxu0 0
      %905 = vmatprep.subr.bf16.mxu0 0
      %906 = vmatpush1.bf16.msra.mxu0 0
      %907 = vmatprep.subr.bf16.mxu0 0
      %908 = vmatpush1.bf16.msra.mxu0 0
      %909 = vmatprep.subr.bf16.mxu0 0
      %910 = vmatpush1.bf16.msra.mxu0 0
      %911 = vmatprep.subr.bf16.mxu0 0
      %912 = vmatpush1.bf16.msra.mxu0 0
      %913 = vmatprep.subr.bf16.mxu0 0
      %914 = vmatpush1.bf16.msra.mxu0 0
      %915 = vmatprep.mubr.bf16.mxu0 0
      %916 = vmatmul.mubr.bf16.gmra.mrb[0].mxu0 %v484
      %v917 = vpop.f32.mrb[0].mxu0
      %v918 = vadd.f32 %v757, %v917
      %v919 = vpop.f32.mrb[0].mxu0
      %v920 = vpop.f32.mrb[0].mxu0
      %v921 = vadd.f32 %v760, %v920
      %v922 = vpop.f32.mrb[0].mxu0
      %923 = vmatprep.mubr.bf16.mxu0 0
      %924 = vmatmul.mubr.bf16.gmra.mrb[0].mxu0 %v487
      %v925 = vpop.f32.mrb[0].mxu0
      %v926 = vadd.f32 %v765, %v925
      %v927 = vpop.f32.mrb[0].mxu0
      %v928 = vpop.f32.mrb[0].mxu0
      %v929 = vadd.f32 %v768, %v928
      %v930 = vpop.f32.mrb[0].mxu0
      %931 = vmatprep.mubr.bf16.mxu0 0
      %932 = vmatmul.mubr.bf16.gmra.mrb[0].mxu0 %v490
      %v933 = vpop.f32.mrb[0].mxu0
      %v934 = vadd.f32 %v773, %v933
      %v935 = vpop.f32.mrb[0].mxu0
      %v936 = vpop.f32.mrb[0].mxu0
      %v937 = vadd.f32 %v776, %v936
      %v938 = vpop.f32.mrb[0].mxu0
      %939 = vmatprep.mubr.bf16.mxu0 0
      %940 = vmatmul.mubr.bf16.gmra.mrb[0].mxu0 %v493
      %v941 = vpop.f32.mrb[0].mxu0
      %v942 = vadd.f32 %v781, %v941
      %v943 = vpop.f32.mrb[0].mxu0
      %v944 = vpop.f32.mrb[0].mxu0
      %v945 = vadd.f32 %v784, %v944
      %v946 = vpop.f32.mrb[0].mxu0
      %947 = vmatprep.mubr.bf16.mxu0 0
      %948 = vmatmul.mubr.bf16.gmra.mrb[0].mxu0 %v496
      %v949 = vpop.f32.mrb[0].mxu0
      %v950 = vadd.f32 %v789, %v949
      %v951 = vpop.f32.mrb[0].mxu0
      %v952 = vpop.f32.mrb[0].mxu0
      %v953 = vadd.f32 %v792, %v952
      %v954 = vpop.f32.mrb[0].mxu0
      %955 = vmatprep.mubr.bf16.mxu0 0
      %956 = vmatmul.mubr.bf16.gmra.mrb[0].mxu0 %v499
      %v957 = vpop.f32.mrb[0].mxu0
      %v958 = vadd.f32 %v797, %v957
      %v959 = vpop.f32.mrb[0].mxu0
      %v960 = vpop.f32.mrb[0].mxu0
      %v961 = vadd.f32 %v800, %v960
      %v962 = vpop.f32.mrb[0].mxu0
      %963 = vmatprep.mubr.bf16.mxu0 0
      %964 = vmatmul.mubr.bf16.gmra.mrb[0].mxu0 %v502
      %v965 = vpop.f32.mrb[0].mxu0
      %v966 = vadd.f32 %v805, %v965
      %v967 = vpop.f32.mrb[0].mxu0
      %v968 = vpop.f32.mrb[0].mxu0
      %v969 = vadd.f32 %v808, %v968
      %v970 = vpop.f32.mrb[0].mxu0
      %971 = vmatprep.mubr.bf16.mxu0 0
      %972 = vmatmul.mubr.bf16.gmra.mrb[0].mxu0 %v505
      %v973 = vpop.f32.mrb[0].mxu0
      %v974 = vadd.f32 %v813, %v973
      %v975 = vpop.f32.mrb[0].mxu0
      %v976 = vpop.f32.mrb[0].mxu0
      %v977 = vadd.f32 %v816, %v976
      %v978 = vpop.f32.mrb[0].mxu0
      %979 = vmatprep.mubr.bf16.mxu0 0
      %980 = vmatmul.mubr.bf16.gmra.mrb[0].mxu0 %v508
      %v981 = vpop.f32.mrb[0].mxu0
      %v982 = vadd.f32 %v821, %v981
      %v983 = vpop.f32.mrb[0].mxu0
      %v984 = vpop.f32.mrb[0].mxu0
      %v985 = vadd.f32 %v824, %v984
      %v986 = vpop.f32.mrb[0].mxu0
      %987 = vmatprep.mubr.bf16.mxu0 0
      %988 = vmatmul.mubr.bf16.gmra.mrb[0].mxu0 %v511
      %v989 = vpop.f32.mrb[0].mxu0
      %v990 = vadd.f32 %v829, %v989
      %v991 = vpop.f32.mrb[0].mxu0
      %v992 = vpop.f32.mrb[0].mxu0
      %v993 = vadd.f32 %v832, %v992
      %v994 = vpop.f32.mrb[0].mxu0
      %995 = vmatprep.mubr.bf16.mxu0 0
      %996 = vmatmul.mubr.bf16.gmra.mrb[0].mxu0 %v514
      %v997 = vpop.f32.mrb[0].mxu0
      %v998 = vadd.f32 %v837, %v997
      %v999 = vpop.f32.mrb[0].mxu0
      %v1000 = vpop.f32.mrb[0].mxu0
      %v1001 = vadd.f32 %v840, %v1000
      %v1002 = vpop.f32.mrb[0].mxu0
      %1003 = vmatprep.mubr.bf16.mxu0 0
      %1004 = vmatmul.mubr.bf16.gmra.mrb[0].mxu0 %v517
      %v1005 = vpop.f32.mrb[0].mxu0
      %v1006 = vadd.f32 %v845, %v1005
      %v1007 = vpop.f32.mrb[0].mxu0
      %v1008 = vpop.f32.mrb[0].mxu0
      %v1009 = vadd.f32 %v848, %v1008
      %v1010 = vpop.f32.mrb[0].mxu0
      %1011 = vmatprep.mubr.bf16.mxu0 0
      %1012 = vmatmul.mubr.bf16.gmra.mrb[0].mxu0 %v520
      %v1013 = vpop.f32.mrb[0].mxu0
      %v1014 = vadd.f32 %v853, %v1013
      %v1015 = vpop.f32.mrb[0].mxu0
      %v1016 = vpop.f32.mrb[0].mxu0
      %v1017 = vadd.f32 %v856, %v1016
      %v1018 = vpop.f32.mrb[0].mxu0
      %1019 = vmatprep.mubr.bf16.mxu0 0
      %1020 = vmatmul.mubr.bf16.gmra.mrb[0].mxu0 %v523
      %v1021 = vpop.f32.mrb[0].mxu0
      %v1022 = vadd.f32 %v861, %v1021
      %v1023 = vpop.f32.mrb[0].mxu0
      %v1024 = vpop.f32.mrb[0].mxu0
      %v1025 = vadd.f32 %v864, %v1024
      %v1026 = vpop.f32.mrb[0].mxu0
      %1027 = vmatprep.mubr.bf16.mxu0 0
      %1028 = vmatmul.mubr.bf16.gmra.mrb[0].mxu0 %v526
      %v1029 = vpop.f32.mrb[0].mxu0
      %v1030 = vadd.f32 %v869, %v1029
      %v1031 = vpop.f32.mrb[0].mxu0
      %v1032 = vpop.f32.mrb[0].mxu0
      %v1033 = vadd.f32 %v872, %v1032
      %v1034 = vpop.f32.mrb[0].mxu0
      %1035 = vmatprep.mubr.bf16.mxu0 0
      %1036 = vmatmul.mubr.bf16.gmra.mrb[0].mxu0 %v529
      %v1037 = vpop.f32.mrb[0].mxu0
      %v1038 = vadd.f32 %v877, %v1037
      %v1039 = vpop.f32.mrb[0].mxu0
      %v1040 = vpop.f32.mrb[0].mxu0
      %v1041 = vadd.f32 %v880, %v1040
      %v1042 = vpop.f32.mrb[0].mxu0
      %1043 = vdwg.mxu0
      %v1044 = vadd.f32 %v918, %v921
      %v1045 = vadd.f32 %v1044, %v926
      %v1046 = vadd.f32 %v1045, %v929
      %v1047 = vadd.f32 %v1046, %v934
      %v1048 = vadd.f32 %v1047, %v937
      %v1049 = vadd.f32 %v1048, %v942
      %v1050 = vadd.f32 %v1049, %v945
      %v1051 = vadd.f32 %v1050, %v950
      %v1052 = vadd.f32 %v1051, %v953
      %v1053 = vadd.f32 %v1052, %v958
      %v1054 = vadd.f32 %v1053, %v961
      %v1055 = vadd.f32 %v1054, %v966
      %v1056 = vadd.f32 %v1055, %v969
      %v1057 = vadd.f32 %v1056, %v974
      %v1058 = vadd.f32 %v1057, %v977
      %v1059 = vadd.f32 %v1058, %v982
      %v1060 = vadd.f32 %v1059, %v985
      %v1061 = vadd.f32 %v1060, %v990
      %v1062 = vadd.f32 %v1061, %v993
      %v1063 = vadd.f32 %v1062, %v998
      %v1064 = vadd.f32 %v1063, %v1001
      %v1065 = vadd.f32 %v1064, %v1006
      %v1066 = vadd.f32 %v1065, %v1009
      %v1067 = vadd.f32 %v1066, %v1014
      %v1068 = vadd.f32 %v1067, %v1017
      %v1069 = vadd.f32 %v1068, %v1022
      %v1070 = vadd.f32 %v1069, %v1025
      %v1071 = vadd.f32 %v1070, %v1030
      %v1072 = vadd.f32 %v1071, %v1033
      %v1073 = vadd.f32 %v1072, %v1038
      %v1074 = vadd.f32 %v1073, %v1041
      %v1075 = vrot.slane %v1074, 4
      %v1076 = vadd.f32 %v1074, %v1075
      %v1077 = vrot.slane %v1076, 2
      %v1078 = vadd.f32 %v1076, %v1077
      %v1079 = vrot.slane %v1078, 1
      %v1080 = vadd.f32 %v1078, %v1079
      %v1081 = vrcp.pop 256.0
      %v1082 = vmul.f32 %v1080, %v1081
      %v1083 = vsub.f32 %v918, %v1082
      %v1084 = vsub.f32 %v921, %v1082
      %v1085 = vsub.f32 %v926, %v1082
      %v1086 = vsub.f32 %v929, %v1082
      %v1087 = vsub.f32 %v934, %v1082
      %v1088 = vsub.f32 %v937, %v1082
      %v1089 = vsub.f32 %v942, %v1082
      %v1090 = vsub.f32 %v945, %v1082
      %v1091 = vsub.f32 %v950, %v1082
      %v1092 = vsub.f32 %v953, %v1082
      %v1093 = vsub.f32 %v958, %v1082
      %v1094 = vsub.f32 %v961, %v1082
      %v1095 = vsub.f32 %v966, %v1082
      %v1096 = vsub.f32 %v969, %v1082
      %v1097 = vsub.f32 %v974, %v1082
      %v1098 = vsub.f32 %v977, %v1082
      %v1099 = vsub.f32 %v982, %v1082
      %v1100 = vsub.f32 %v985, %v1082
      %v1101 = vsub.f32 %v990, %v1082
      %v1102 = vsub.f32 %v993, %v1082
      %v1103 = vsub.f32 %v998, %v1082
      %v1104 = vsub.f32 %v1001, %v1082
      %v1105 = vsub.f32 %v1006, %v1082
      %v1106 = vsub.f32 %v1009, %v1082
      %v1107 = vsub.f32 %v1014, %v1082
      %v1108 = vsub.f32 %v1017, %v1082
      %v1109 = vsub.f32 %v1022, %v1082
      %v1110 = vsub.f32 %v1025, %v1082
      %v1111 = vsub.f32 %v1030, %v1082
      %v1112 = vsub.f32 %v1033, %v1082
      %v1113 = vsub.f32 %v1038, %v1082
      %v1114 = vsub.f32 %v1041, %v1082
      %v1115 = vmul.f32 %v1083, %v1083
      %v1116 = vmul.f32 %v1084, %v1084
      %v1117 = vmul.f32 %v1085, %v1085
      %v1118 = vmul.f32 %v1086, %v1086
      %v1119 = vmul.f32 %v1087, %v1087
      %v1120 = vmul.f32 %v1088, %v1088
      %v1121 = vmul.f32 %v1089, %v1089
      %v1122 = vmul.f32 %v1090, %v1090
      %v1123 = vmul.f32 %v1091, %v1091
      %v1124 = vmul.f32 %v1092, %v1092
      %v1125 = vmul.f32 %v1093, %v1093
      %v1126 = vmul.f32 %v1094, %v1094
      %v1127 = vmul.f32 %v1095, %v1095
      %v1128 = vmul.f32 %v1096, %v1096
      %v1129 = vmul.f32 %v1097, %v1097
      %v1130 = vmul.f32 %v1098, %v1098
      %v1131 = vmul.f32 %v1099, %v1099
      %v1132 = vmul.f32 %v1100, %v1100
      %v1133 = vmul.f32 %v1101, %v1101
      %v1134 = vmul.f32 %v1102, %v1102
      %v1135 = vmul.f32 %v1103, %v1103
      %v1136 = vmul.f32 %v1104, %v1104
      %v1137 = vmul.f32 %v1105, %v1105
      %v1138 = vmul.f32 %v1106, %v1106
      %v1139 = vmul.f32 %v1107, %v1107
      %v1140 = vmul.f32 %v1108, %v1108
      %v1141 = vmul.f32 %v1109, %v1109
      %v1142 = vmul.f32 %v1110, %v1110
      %v1143 = vmul.f32 %v1111, %v1111
      %v1144 = vmul.f32 %v1112, %v1112
      %v1145 = vmul.f32 %v1113, %v1113
      %v1146 = vmul.f32 %v1114, %v1114
      %v1147 = vadd.f32 %v1115, %v1116
      %v1148 = vadd.f32 %v1147, %v1117
      %v1149 = vadd.f32 %v1148, %v1118
      %v1150 = vadd.f32 %v1149, %v1119
      %v1151 = vadd.f32 %v1150, %v1120
      %v1152 = vadd.f32 %v1151, %v1121
      %v1153 = vadd.f32 %v1152, %v1122
      %v1154 = vadd.f32 %v1153, %v1123
      %v1155 = vadd.f32 %v1154, %v1124
      %v1156 = vadd.f32 %v1155, %v1125
      %v1157 = vadd.f32 %v1156, %v1126
      %v1158 = vadd.f32 %v1157, %v1127
      %v1159 = vadd.f32 %v1158, %v1128
      %v1160 = vadd.f32 %v1159, %v1129
      %v1161 = vadd.f32 %v1160, %v1130
      %v1162 = vadd.f32 %v1161, %v1131
      %v1163 = vadd.f32 %v1162, %v1132
      %v1164 = vadd.f32 %v1163, %v1133
      %v1165 = vadd.f32 %v1164, %v1134
      %v1166 = vadd.f32 %v1165, %v1135
      %v1167 = vadd.f32 %v1166, %v1136
      %v1168 = vadd.f32 %v1167, %v1137
      %v1169 = vadd.f32 %v1168, %v1138
      %v1170 = vadd.f32 %v1169, %v1139
      %v1171 = vadd.f32 %v1170, %v1140
      %v1172 = vadd.f32 %v1171, %v1141
      %v1173 = vadd.f32 %v1172, %v1142
      %v1174 = vadd.f32 %v1173, %v1143
      %v1175 = vadd.f32 %v1174, %v1144
      %v1176 = vadd.f32 %v1175, %v1145
      %v1177 = vadd.f32 %v1176, %v1146
      %v1178 = vrot.slane %v1177, 4
      %v1179 = vadd.f32 %v1177, %v1178
      %v1180 = vrot.slane %v1179, 2
      %v1181 = vadd.f32 %v1179, %v1180
      %v1182 = vrot.slane %v1181, 1
      %v1183 = vadd.f32 %v1181, %v1182
      %v1184 = vmul.f32 %v1183, %v1081
      %v1185 = vadd.f32 %v1184, 1e-05
      %v1186 = vrsqrt.pop %v1185
      %v1187 = vmul.f32 %v1083, %v1186
      %v1188 = vmul.f32 %v1084, %v1186
      %v1189 = vmul.f32 %v1085, %v1186
      %v1190 = vmul.f32 %v1086, %v1186
      %v1191 = vmul.f32 %v1087, %v1186
      %v1192 = vmul.f32 %v1088, %v1186
      %v1193 = vmul.f32 %v1089, %v1186
      %v1194 = vmul.f32 %v1090, %v1186
      %v1195 = vmul.f32 %v1091, %v1186
      %v1196 = vmul.f32 %v1092, %v1186
      %v1197 = vmul.f32 %v1093, %v1186
      %v1198 = vmul.f32 %v1094, %v1186
      %v1199 = vmul.f32 %v1095, %v1186
      %v1200 = vmul.f32 %v1096, %v1186
      %v1201 = vmul.f32 %v1097, %v1186
      %v1202 = vmul.f32 %v1098, %v1186
      %v1203 = vmul.f32 %v1099, %v1186
      %v1204 = vmul.f32 %v1100, %v1186
      %v1205 = vmul.f32 %v1101, %v1186
      %v1206 = vmul.f32 %v1102, %v1186
      %v1207 = vmul.f32 %v1103, %v1186
      %v1208 = vmul.f32 %v1104, %v1186
      %v1209 = vmul.f32 %v1105, %v1186
      %v1210 = vmul.f32 %v1106, %v1186
      %v1211 = vmul.f32 %v1107, %v1186
      %v1212 = vmul.f32 %v1108, %v1186
      %v1213 = vmul.f32 %v1109, %v1186
      %v1214 = vmul.f32 %v1110, %v1186
      %v1215 = vmul.f32 %v1111, %v1186
      %v1216 = vmul.f32 %v1112, %v1186
      %v1217 = vmul.f32 %v1113, %v1186
      %v1218 = vmul.f32 %v1114, %v1186
      %v1219 = vmax.f32 %v1187, 0.0
      %v1220 = vmax.f32 %v1188, 0.0
      %v1221 = vmax.f32 %v1189, 0.0
      %v1222 = vmax.f32 %v1190, 0.0
      %v1223 = vmax.f32 %v1191, 0.0
      %v1224 = vmax.f32 %v1192, 0.0
      %v1225 = vmax.f32 %v1193, 0.0
      %v1226 = vmax.f32 %v1194, 0.0
      %v1227 = vmax.f32 %v1195, 0.0
      %v1228 = vmax.f32 %v1196, 0.0
      %v1229 = vmax.f32 %v1197, 0.0
      %v1230 = vmax.f32 %v1198, 0.0
      %v1231 = vmax.f32 %v1199, 0.0
      %v1232 = vmax.f32 %v1200, 0.0
      %v1233 = vmax.f32 %v1201, 0.0
      %v1234 = vmax.f32 %v1202, 0.0
      %v1235 = vmax.f32 %v1203, 0.0
      %v1236 = vmax.f32 %v1204, 0.0
      %v1237 = vmax.f32 %v1205, 0.0
      %v1238 = vmax.f32 %v1206, 0.0
      %v1239 = vmax.f32 %v1207, 0.0
      %v1240 = vmax.f32 %v1208, 0.0
      %v1241 = vmax.f32 %v1209, 0.0
      %v1242 = vmax.f32 %v1210, 0.0
      %v1243 = vmax.f32 %v1211, 0.0
      %v1244 = vmax.f32 %v1212, 0.0
      %v1245 = vmax.f32 %v1213, 0.0
      %v1246 = vmax.f32 %v1214, 0.0
      %v1247 = vmax.f32 %v1215, 0.0
      %v1248 = vmax.f32 %v1216, 0.0
      %v1249 = vmax.f32 %v1217, 0.0
      %v1250 = vmax.f32 %v1218, 0.0
      %v1251 = vpack.c.bf16 %v1220, %v1219
      %v1252 = vpack.c.bf16 %v1222, %v1221
      %v1253 = vpack.c.bf16 %v1224, %v1223
      %v1254 = vpack.c.bf16 %v1226, %v1225
      %v1255 = vpack.c.bf16 %v1228, %v1227
      %v1256 = vpack.c.bf16 %v1230, %v1229
      %v1257 = vpack.c.bf16 %v1232, %v1231
      %v1258 = vpack.c.bf16 %v1234, %v1233
      %v1259 = vpack.c.bf16 %v1236, %v1235
      %v1260 = vpack.c.bf16 %v1238, %v1237
      %v1261 = vpack.c.bf16 %v1240, %v1239
      %v1262 = vpack.c.bf16 %v1242, %v1241
      %v1263 = vpack.c.bf16 %v1244, %v1243
      %v1264 = vpack.c.bf16 %v1246, %v1245
      %v1265 = vpack.c.bf16 %v1248, %v1247
      %v1266 = vpack.c.bf16 %v1250, %v1249
      %v1283 = vunpack.c.l.b16 %v1251
      %v1284 = vunpack.c.h.b16 %v1251
      %v1285 = vunpack.c.l.b16 %v1252
      %v1286 = vunpack.c.h.b16 %v1252
      %v1287 = vunpack.c.l.b16 %v1253
      %v1288 = vunpack.c.h.b16 %v1253
      %v1289 = vunpack.c.l.b16 %v1254
      %v1290 = vunpack.c.h.b16 %v1254
      %v1291 = vunpack.c.l.b16 %v1255
      %v1292 = vunpack.c.h.b16 %v1255
      %v1293 = vunpack.c.l.b16 %v1256
      %v1294 = vunpack.c.h.b16 %v1256
      %v1295 = vunpack.c.l.b16 %v1257
      %v1296 = vunpack.c.h.b16 %v1257
      %v1297 = vunpack.c.l.b16 %v1258
      %v1298 = vunpack.c.h.b16 %v1258
      %v1299 = vunpack.c.l.b16 %v1259
      %v1300 = vunpack.c.h.b16 %v1259
      %v1301 = vunpack.c.l.b16 %v1260
      %v1302 = vunpack.c.h.b16 %v1260
      %v1303 = vunpack.c.l.b16 %v1261
      %v1304 = vunpack.c.h.b16 %v1261
      %v1305 = vunpack.c.l.b16 %v1262
      %v1306 = vunpack.c.h.b16 %v1262
      %v1307 = vunpack.c.l.b16 %v1263
      %v1308 = vunpack.c.h.b16 %v1263
      %v1309 = vunpack.c.l.b16 %v1264
      %v1310 = vunpack.c.h.b16 %v1264
      %v1311 = vunpack.c.l.b16 %v1265
      %v1312 = vunpack.c.h.b16 %v1265
      %v1313 = vunpack.c.l.b16 %v1266
      %v1314 = vunpack.c.h.b16 %v1266
      %v1315 = vpack.c.b16 %v1283, %v1283
      %v1316 = vpack.c.b16 %v1284, %v1284
      %v1317 = vpack.c.b16 %v1285, %v1285
      %v1318 = vpack.c.b16 %v1286, %v1286
      %v1319 = vpack.c.b16 %v1287, %v1287
      %v1320 = vpack.c.b16 %v1288, %v1288
      %v1321 = vpack.c.b16 %v1289, %v1289
      %v1322 = vpack.c.b16 %v1290, %v1290
      %v1323 = vpack.c.b16 %v1291, %v1291
      %v1324 = vpack.c.b16 %v1292, %v1292
      %v1325 = vpack.c.b16 %v1293, %v1293
      %v1326 = vpack.c.b16 %v1294, %v1294
      %v1327 = vpack.c.b16 %v1295, %v1295
      %v1328 = vpack.c.b16 %v1296, %v1296
      %v1329 = vpack.c.b16 %v1297, %v1297
      %v1330 = vpack.c.b16 %v1298, %v1298
      %v1331 = vpack.c.b16 %v1299, %v1299
      %v1332 = vpack.c.b16 %v1300, %v1300
      %v1333 = vpack.c.b16 %v1301, %v1301
      %v1334 = vpack.c.b16 %v1302, %v1302
      %v1335 = vpack.c.b16 %v1303, %v1303
      %v1336 = vpack.c.b16 %v1304, %v1304
      %v1337 = vpack.c.b16 %v1305, %v1305
      %v1338 = vpack.c.b16 %v1306, %v1306
      %v1339 = vpack.c.b16 %v1307, %v1307
      %v1340 = vpack.c.b16 %v1308, %v1308
      %v1341 = vpack.c.b16 %v1309, %v1309
      %v1342 = vpack.c.b16 %v1310, %v1310
      %v1343 = vpack.c.b16 %v1311, %v1311
      %v1344 = vpack.c.b16 %v1312, %v1312
      %v1345 = vpack.c.b16 %v1313, %v1313
      %v1346 = vpack.c.b16 %v1314, %v1314
      %1379 = vst [vmem:[%s201] sm:$0xf] %v1315
      %1380 = vst [vmem:[%s201 + $0x4] sm:$0xf] %v1316
      %1381 = vst [vmem:[%s201 + $0x8] sm:$0xf] %v1317
      %1382 = vst [vmem:[%s201 + $0xc] sm:$0xf] %v1318
      %1383 = vst [vmem:[%s201 + $0x10] sm:$0xf] %v1319
      %1384 = vst [vmem:[%s201 + $0x14] sm:$0xf] %v1320
      %1385 = vst [vmem:[%s201 + $0x18] sm:$0xf] %v1321
      %1386 = vst [vmem:[%s201 + $0x1c] sm:$0xf] %v1322
      %1387 = vst [vmem:[%s201 + $0x20] sm:$0xf] %v1323
      %1388 = vst [vmem:[%s201 + $0x24] sm:$0xf] %v1324
      %1389 = vst [vmem:[%s201 + $0x28] sm:$0xf] %v1325
      %1390 = vst [vmem:[%s201 + $0x2c] sm:$0xf] %v1326
      %1391 = vst [vmem:[%s201 + $0x30] sm:$0xf] %v1327
      %1392 = vst [vmem:[%s201 + $0x34] sm:$0xf] %v1328
      %1393 = vst [vmem:[%s201 + $0x38] sm:$0xf] %v1329
      %1394 = vst [vmem:[%s201 + $0x3c] sm:$0xf] %v1330
      %1395 = vst [vmem:[%s201 + $0x40] sm:$0xf] %v1331
      %1396 = vst [vmem:[%s201 + $0x44] sm:$0xf] %v1332
      %1397 = vst [vmem:[%s201 + $0x48] sm:$0xf] %v1333
      %1398 = vst [vmem:[%s201 + $0x4c] sm:$0xf] %v1334
      %1399 = vst [vmem:[%s201 + $0x50] sm:$0xf] %v1335
      %1400 = vst [vmem:[%s201 + $0x54] sm:$0xf] %v1336
      %1401 = vst [vmem:[%s201 + $0x58] sm:$0xf] %v1337
      %1402 = vst [vmem:[%s201 + $0x5c] sm:$0xf] %v1338
      %1403 = vst [vmem:[%s201 + $0x60] sm:$0xf] %v1339
      %1404 = vst [vmem:[%s201 + $0x64] sm:$0xf] %v1340
      %1405 = vst [vmem:[%s201 + $0x68] sm:$0xf] %v1341
      %1406 = vst [vmem:[%s201 + $0x6c] sm:$0xf] %v1342
      %1407 = vst [vmem:[%s201 + $0x70] sm:$0xf] %v1343
      %1408 = vst [vmem:[%s201 + $0x74] sm:$0xf] %v1344
      %1409 = vst [vmem:[%s201 + $0x78] sm:$0xf] %v1345
      %1410 = vst [vmem:[%s201 + $0x7c] sm:$0xf] %v1346
      %p1411 = scmp.lt.s32.totalorder %s18, 1
      %s1412 = scalar_select %p1411, %s18, 1
      %s1413 = smul.addr %s1412, 32
      %s1414 = smul.addr %s1413, 4
      %s1415 = scalar_lea.vmem %s3, %s1414
      // Predicated region
      $region33: #{_lambda_.21} parent=31 // pred_check
        %p1416 = pneg %p114
      $region34: #{_lambda_.21} parent=31 // pred_check_branch
        %1418 = sbr.rel (%p1416) target = $region36
      $region35: #{_lambda_.21} parent=31 // pred_region
        _
      $region36: #{_lambda_.21} parent=31 // pred_fallthru
        _
    $region32: #{_lambda_.21} parent=5 // pred_fallthru
      _
    %p1419 = scmp.le.s32.totalorder 2, %s9
    // Predicated region
    $region37: #{_lambda_.21} parent=5 // pred_check
      %p1420 = pneg %p1419
    $region38: #{_lambda_.21} parent=5 // pred_check_branch
      %1422 = sbr.rel (%p1420) target = $region40
    $region39: #{_lambda_.21} parent=5 // pred_region
      %s1423 = ssub.s32 %s9, 2
      // Predicated region
      $region41: #{_lambda_.21} parent=39 // pred_check
        %p1424 = pneg %p120
      $region42: #{_lambda_.21} parent=39 // pred_check_branch
        %1426 = sbr.rel (%p1424) target = $region44
      $region43: #{_lambda_.21} parent=39 // pred_region
        %p1427 = scmp.lt.s32.totalorder %s20, 1
        %s1428 = scalar_select %p1427, %s20, 1
        %s1429 = smul.addr %s1428, 32
        %s1430 = smul.addr %s1429, 4
        %s1431 = scalar_lea.vmem %s3, %s1430
      $region44: #{_lambda_.21} parent=39 // pred_fallthru
        _
    $region40: #{_lambda_.21} parent=5 // pred_fallthru
      _
  $region6: #{_lambda_.21} parent=0 // loop_footer
    %s13 = sadd.s32 1, %s9
  $region7: #{_lambda_.21} parent=0 // loop_footer_branch
    %8 = sbr.rel target = $region3
  $region8: #{_lambda_.21} parent=0 // loop_exit
    _

// kernel: _lambda_.23
$region0: #{_lambda_.23}
  #allocation0 [shape = 'u32[]', space=smem, size = 0x4, offset = 0x4, fixed_abs, tag = 'smem constant byte address 0x4 - core index']
  #allocation1 [shape = 'u32[144,128]{1,0:T(1,128)}', space=vmem, size = 0x12000, scoped, tag = 'internal scratch']
  %s0 = inlined_call_operand.vmem [shape: bf16[2,1024,512], index: 0, kind: input, shape index: {}]
  %s1 = inlined_call_operand.vmem [shape: bf16[512,128], index: 1, kind: input, shape index: {}]
  %s2 = inlined_call_operand.vmem [shape: f32[1,128], index: 2, kind: input, shape index: {}]
  %s3 = inlined_call_operand.vmem [shape: bf16[2,1024,128], index: 3, kind: output, shape index: {}]
  %s4 = sld [smem:[#allocation0]]
  $region45: #{_lambda_.23} parent=0
    _
  %s6 = ssub.s32 1, %s4
  %s7 = scalar_select 0, %s6, %s4
  loop: start=0, step=1, limit=10
  $region2: #{_lambda_.23} parent=0 // loop_pre_header
    _
  $region3: #{_lambda_.23} parent=0 // loop_header
    %s9 = sphi 0, %s13
    %p10 = scmp.ge.s32.totalorder %s9, 10
    %s16 = sphi 0, %s28
    %s17 = sphi 0, %s24
    %s18 = sphi 0, %s16
    %s19 = sphi 0, %s17
    %s20 = sphi 0, %s18
    %s21 = sphi 0, %s19
    %s33 = sphi 0, %s35
    %s36 = sphi 0, %s33
    %s37 = sphi 0, %s36
    %s53 = sphi 0, %s37
    %s57 = sphi 0, %s57
    %s59 = sphi 0, %s57
    %s60 = sphi 0, %s59
    %s74 = sphi 0, %s60
    %s78 = sphi 0, %s78
    %s80 = sphi 0, %s78
    %s81 = sphi 0, %s80
    %s95 = sphi 0, %s81
    %s101 = sphi 0, %s103
    %s104 = sphi 0, %s101
    %s105 = sphi 0, %s104
    %s121 = sphi 0, %s105
  $region4: #{_lambda_.23} parent=0 // loop_header_branch
    %12 = sbr.rel (%p10) target = $region8
  $region5: #{_lambda_.23} parent=0 // loop_body
    %s14 = ssub.s32 %s9, 1
    %s15 = ssub.s32 %s9, 2
    %s22 = sadd.s32 1, %s17
    %p23 = scmp.ge.s32.totalorder %s22, 4
    %s24 = scalar_select %p23, 0, %s22
    %s25 = sadd.s32 1, %s16
    %s26 = scalar_select %p23, %s25, %s16
    %p27 = scmp.ge.s32.totalorder %s26, 2
    %s28 = scalar_select %p27, 0, %s26
    %s29 = ssub.s32 %s16, %s28
    %s30 = ssub.s32 %s17, %s24
    %s31 = sor.u32 %s29, %s30
    %p32 = scmp.eq.s32.totalorder %s31, 0
    %s34 = sadd.s32 %s33, 1
    %s35 = scalar_select %p32, %s33, %s34
    %p38 = pneg %p32
    %p39 = scmp.eq.s32.totalorder %s9, 7
    %p40 = por %p38, %p39
    %p41 = scmp.ne.s32.totalorder %s33, %s36
    %p42 = scmp.eq.s32.totalorder %s9, 0
    %p43 = por %p41, %p42
    %p44 = scmp.ne.s32.totalorder %s33, %s36
    %p45 = scmp.eq.s32.totalorder %s14, 7
    %p46 = por %p44, %p45
    %p47 = scmp.ne.s32.totalorder %s36, %s37
    %p48 = scmp.eq.s32.totalorder %s14, 0
    %p49 = por %p47, %p48
    %p50 = scmp.ne.s32.totalorder %s36, %s37
    %p51 = scmp.eq.s32.totalorder %s15, 7
    %p52 = por %p50, %p51
    %p54 = scmp.ne.s32.totalorder %s37, %s53
    %p55 = scmp.eq.s32.totalorder %s15, 0
    %p56 = por %p54, %p55
    %s58 = sadd.s32 %s57, 1
    %p61 = scmp.eq.s32.totalorder %s9, 7
    %p62 = scmp.ne.s32.totalorder %s57, %s59
    %p63 = scmp.eq.s32.totalorder %s9, 0
    %p64 = por %p62, %p63
    %p65 = scmp.ne.s32.totalorder %s57, %s59
    %p66 = scmp.eq.s32.totalorder %s14, 7
    %p67 = por %p65, %p66
    %p68 = scmp.ne.s32.totalorder %s59, %s60
    %p69 = scmp.eq.s32.totalorder %s14, 0
    %p70 = por %p68, %p69
    %p71 = scmp.ne.s32.totalorder %s59, %s60
    %p72 = scmp.eq.s32.totalorder %s15, 7
    %p73 = por %p71, %p72
    %p75 = scmp.ne.s32.totalorder %s60, %s74
    %p76 = scmp.eq.s32.totalorder %s15, 0
    %p77 = por %p75, %p76
    %s79 = sadd.s32 %s78, 1
    %p82 = scmp.eq.s32.totalorder %s9, 7
    %p83 = scmp.ne.s32.totalorder %s78, %s80
    %p84 = scmp.eq.s32.totalorder %s9, 0
    %p85 = por %p83, %p84
    %p86 = scmp.ne.s32.totalorder %s78, %s80
    %p87 = scmp.eq.s32.totalorder %s14, 7
    %p88 = por %p86, %p87
    %p89 = scmp.ne.s32.totalorder %s80, %s81
    %p90 = scmp.eq.s32.totalorder %s14, 0
    %p91 = por %p89, %p90
    %p92 = scmp.ne.s32.totalorder %s80, %s81
    %p93 = scmp.eq.s32.totalorder %s15, 7
    %p94 = por %p92, %p93
    %p96 = scmp.ne.s32.totalorder %s81, %s95
    %p97 = scmp.eq.s32.totalorder %s15, 0
    %p98 = por %p96, %p97
    %s99 = ssub.s32 %s16, %s28
    %p100 = scmp.eq.s32.totalorder %s99, 0
    %s102 = sadd.s32 %s101, 1
    %s103 = scalar_select %p100, %s101, %s102
    %p106 = pneg %p100
    %p107 = scmp.eq.s32.totalorder %s9, 7
    %p108 = por %p106, %p107
    %p109 = scmp.ne.s32.totalorder %s101, %s104
    %p110 = scmp.eq.s32.totalorder %s9, 0
    %p111 = por %p109, %p110
    %p112 = scmp.ne.s32.totalorder %s101, %s104
    %p113 = scmp.eq.s32.totalorder %s14, 7
    %p114 = por %p112, %p113
    %p115 = scmp.ne.s32.totalorder %s104, %s105
    %p116 = scmp.eq.s32.totalorder %s14, 0
    %p117 = por %p115, %p116
    %p118 = scmp.ne.s32.totalorder %s104, %s105
    %p119 = scmp.eq.s32.totalorder %s15, 7
    %p120 = por %p118, %p119
    %p122 = scmp.ne.s32.totalorder %s105, %s121
    %p123 = scmp.eq.s32.totalorder %s15, 0
    %p124 = por %p122, %p123
    %p125 = scmp.le.s32.totalorder 1, %s9
    %p126 = scmp.lt.s32.totalorder %s9, 9
    %p127 = pnand %p125, %p126
    %p128 = pneg %p127
    // Predicated region
    $region9: #{_lambda_.23} parent=5 // pred_check
      _
    $region10: #{_lambda_.23} parent=5 // pred_check_branch
      %130 = sbr.rel (%p127) target = $region12
    $region11: #{_lambda_.23} parent=5 // pred_region
      %s131 = ssub.s32 %s9, 1
      // Predicated region
      $region13: #{_lambda_.23} parent=11 // pred_check
        %p132 = pneg %p70
      $region14: #{_lambda_.23} parent=11 // pred_check_branch
        %134 = sbr.rel (%p132) target = $region16
      $region15: #{_lambda_.23} parent=11 // pred_region
        _
      $region16: #{_lambda_.23} parent=11 // pred_fallthru
        _
      // Predicated region
      $region17: #{_lambda_.23} parent=11 // pred_check
        %p135 = pneg %p91
      $region18: #{_lambda_.23} parent=11 // pred_check_branch
        %137 = sbr.rel (%p135) target = $region20
      $region19: #{_lambda_.23} parent=11 // pred_region
        _
      $region20: #{_lambda_.23} parent=11 // pred_fallthru
        _
    $region12: #{_lambda_.23} parent=5 // pred_fallthru
      _
    %p138 = scmp.lt.s32.totalorder %s9, 8
    // Predicated region
    $region21: #{_lambda_.23} parent=5 // pred_check
      %p139 = pneg %p138
    $region22: #{_lambda_.23} parent=5 // pred_check_branch
      %141 = sbr.rel (%p139) target = $region24
    $region23: #{_lambda_.23} parent=5 // pred_region
      // Predicated region
      $region25: #{_lambda_.23} parent=23 // pred_check
        %p142 = pneg %p43
      $region26: #{_lambda_.23} parent=23 // pred_check_branch
        %144 = sbr.rel (%p142) target = $region28
      $region27: #{_lambda_.23} parent=23 // pred_region
        %s145 = smul.u32 32, %s17
        %p146 = scmp.lt.s32.totalorder %s16, 1
        %s147 = scalar_select %p146, %s16, 1
        %p148 = scmp.lt.s32.totalorder %s145, 127
        %s149 = scalar_select %p148, %s145, 127
        %s150 = smul.addr %s149, 4
        %s151 = smul.addr %s147, 512
        %s152 = sadd.s32 %s150, %s151
        %s153 = smul.addr %s152, 4
        %s154 = scalar_lea.vmem %s0, %s153
        %s155 = smul.u32 32, %s17
      $region28: #{_lambda_.23} parent=23 // pred_fallthru
        _
    $region24: #{_lambda_.23} parent=5 // pred_fallthru
      _
    %p156 = scmp.le.s32.totalorder 1, %s9
    %p157 = scmp.lt.s32.totalorder %s9, 9
    %p158 = pnand %p156, %p157
    %p159 = pneg %p158
    // Predicated region
    $region29: #{_lambda_.23} parent=5 // pred_check
      _
    $region30: #{_lambda_.23} parent=5 // pred_check_branch
      %161 = sbr.rel (%p158) target = $region32
    $region31: #{_lambda_.23} parent=5 // pred_region
      %s162 = ssub.s32 %s9, 1
      %s163 = smul.u32 32, %s19
      %p164 = scmp.lt.s32.totalorder %s18, 1
      %s165 = scalar_select %p164, %s18, 1
      %p166 = scmp.lt.s32.totalorder %s163, 127
      %s167 = scalar_select %p166, %s163, 127
      %s168 = smul.addr %s167, 4
      %s169 = smul.addr %s165, 512
      %s170 = sadd.s32 %s168, %s169
      %s171 = smul.addr %s170, 4
      %s172 = scalar_lea.vmem %s0, %s171
      %p173 = pneg %p49
      %p174 = pneg %p46
      %p175 = pneg %p70
      %p176 = pneg %p67
      %p177 = pneg %p91
      %p178 = pneg %p88
      %p179 = pneg %p117
      %p180 = pneg %p114
      %p181 = scmp.lt.s32.totalorder %s18, 1
      %s182 = scalar_select %p181, %s18, 1
      %s183 = smul.addr %s182, 128
      %s184 = smul.addr %s183, 4
      %s185 = scalar_lea.vmem %s3, %s184
      %s186 = smul.u32 32, %s19
      %p187 = scmp.lt.s32.totalorder %s18, 1
      %s188 = scalar_select %p187, %s18, 1
      %p189 = scmp.lt.s32.totalorder %s186, 127
      %s190 = scalar_select %p189, %s186, 127
      %s191 = smul.addr %s190, 4
      %s192 = smul.addr %s188, 512
      %s193 = sadd.s32 %s191, %s192
      %s194 = smul.addr %s193, 4
      %s195 = scalar_lea.vmem %s0, %s194
      %s196 = smul.u32 32, %s19
      %p197 = scmp.lt.s32.totalorder %s18, 1
      %s198 = scalar_select %p197, %s18, 1
      %s199 = smul.addr %s198, 128
      %s200 = smul.addr %s199, 4
      %s201 = scalar_lea.vmem %s3, %s200
      %s203 = smul.u32 %s19, 256
      %v204 = vld [vmem:[%s195] sm:$0xff]
      %v205 = vld [vmem:[%s195 + $0x8] sm:$0xff]
      %v206 = vld [vmem:[%s195 + $0x10] sm:$0xff]
      %v207 = vld [vmem:[%s195 + $0x18] sm:$0xff]
      %v208 = vld [vmem:[%s195 + $0x20] sm:$0xff]
      %v209 = vld [vmem:[%s195 + $0x28] sm:$0xff]
      %v210 = vld [vmem:[%s195 + $0x30] sm:$0xff]
      %v211 = vld [vmem:[%s195 + $0x38] sm:$0xff]
      %v212 = vld [vmem:[%s195 + $0x40] sm:$0xff]
      %v213 = vld [vmem:[%s195 + $0x48] sm:$0xff]
      %v214 = vld [vmem:[%s195 + $0x50] sm:$0xff]
      %v215 = vld [vmem:[%s195 + $0x58] sm:$0xff]
      %v216 = vld [vmem:[%s195 + $0x60] sm:$0xff]
      %v217 = vld [vmem:[%s195 + $0x68] sm:$0xff]
      %v218 = vld [vmem:[%s195 + $0x70] sm:$0xff]
      %v219 = vld [vmem:[%s195 + $0x78] sm:$0xff]
      %v220 = vld [vmem:[%s195 + $0x80] sm:$0xff]
      %v221 = vld [vmem:[%s195 + $0x88] sm:$0xff]
      %v222 = vld [vmem:[%s195 + $0x90] sm:$0xff]
      %v223 = vld [vmem:[%s195 + $0x98] sm:$0xff]
      %v224 = vld [vmem:[%s195 + $0xa0] sm:$0xff]
      %v225 = vld [vmem:[%s195 + $0xa8] sm:$0xff]
      %v226 = vld [vmem:[%s195 + $0xb0] sm:$0xff]
      %v227 = vld [vmem:[%s195 + $0xb8] sm:$0xff]
      %v228 = vld [vmem:[%s195 + $0xc0] sm:$0xff]
      %v229 = vld [vmem:[%s195 + $0xc8] sm:$0xff]
      %v230 = vld [vmem:[%s195 + $0xd0] sm:$0xff]
      %v231 = vld [vmem:[%s195 + $0xd8] sm:$0xff]
      %v232 = vld [vmem:[%s195 + $0xe0] sm:$0xff]
      %v233 = vld [vmem:[%s195 + $0xe8] sm:$0xff]
      %v234 = vld [vmem:[%s195 + $0xf0] sm:$0xff]
      %v235 = vld [vmem:[%s195 + $0xf8] sm:$0xff]
      %v236 = vld [vmem:[%s195 + $0x100] sm:$0xff]
      %v237 = vld [vmem:[%s195 + $0x108] sm:$0xff]
      %v238 = vld [vmem:[%s195 + $0x110] sm:$0xff]
      %v239 = vld [vmem:[%s195 + $0x118] sm:$0xff]
      %v240 = vld [vmem:[%s195 + $0x120] sm:$0xff]
      %v241 = vld [vmem:[%s195 + $0x128] sm:$0xff]
      %v242 = vld [vmem:[%s195 + $0x130] sm:$0xff]
      %v243 = vld [vmem:[%s195 + $0x138] sm:$0xff]
      %v244 = vld [vmem:[%s195 + $0x140] sm:$0xff]
      %v245 = vld [vmem:[%s195 + $0x148] sm:$0xff]
      %v246 = vld [vmem:[%s195 + $0x150] sm:$0xff]
      %v247 = vld [vmem:[%s195 + $0x158] sm:$0xff]
      %v248 = vld [vmem:[%s195 + $0x160] sm:$0xff]
      %v249 = vld [vmem:[%s195 + $0x168] sm:$0xff]
      %v250 = vld [vmem:[%s195 + $0x170] sm:$0xff]
      %v251 = vld [vmem:[%s195 + $0x178] sm:$0xff]
      %v252 = vld [vmem:[%s195 + $0x180] sm:$0xff]
      %v253 = vld [vmem:[%s195 + $0x188] sm:$0xff]
      %v254 = vld [vmem:[%s195 + $0x190] sm:$0xff]
      %v255 = vld [vmem:[%s195 + $0x198] sm:$0xff]
      %v256 = vld [vmem:[%s195 + $0x1a0] sm:$0xff]
      %v257 = vld [vmem:[%s195 + $0x1a8] sm:$0xff]
      %v258 = vld [vmem:[%s195 + $0x1b0] sm:$0xff]
      %v259 = vld [vmem:[%s195 + $0x1b8] sm:$0xff]
      %v260 = vld [vmem:[%s195 + $0x1c0] sm:$0xff]
      %v261 = vld [vmem:[%s195 + $0x1c8] sm:$0xff]
      %v262 = vld [vmem:[%s195 + $0x1d0] sm:$0xff]
      %v263 = vld [vmem:[%s195 + $0x1d8] sm:$0xff]
      %v264 = vld [vmem:[%s195 + $0x1e0] sm:$0xff]
      %v265 = vld [vmem:[%s195 + $0x1e8] sm:$0xff]
      %v266 = vld [vmem:[%s195 + $0x1f0] sm:$0xff]
      %v267 = vld [vmem:[%s195 + $0x1f8] sm:$0xff]
      %v268 = vld [vmem:[%s1] sm:$0xf]
      %v269 = vld [vmem:[%s1 + $0x4] sm:$0xf]
      %v270 = vld [vmem:[%s1 + $0x8] sm:$0xf]
      %v271 = vld [vmem:[%s1 + $0xc] sm:$0xf]
      %v272 = vld [vmem:[%s1 + $0x10] sm:$0xf]
      %v273 = vld [vmem:[%s1 + $0x14] sm:$0xf]
      %v274 = vld [vmem:[%s1 + $0x18] sm:$0xf]
      %v275 = vld [vmem:[%s1 + $0x1c] sm:$0xf]
      %v276 = vld [vmem:[%s1 + $0x20] sm:$0xf]
      %v277 = vld [vmem:[%s1 + $0x24] sm:$0xf]
      %v278 = vld [vmem:[%s1 + $0x28] sm:$0xf]
      %v279 = vld [vmem:[%s1 + $0x2c] sm:$0xf]
      %v280 = vld [vmem:[%s1 + $0x30] sm:$0xf]
      %v281 = vld [vmem:[%s1 + $0x34] sm:$0xf]
      %v282 = vld [vmem:[%s1 + $0x38] sm:$0xf]
      %v283 = vld [vmem:[%s1 + $0x3c] sm:$0xf]
      %v284 = vld [vmem:[%s1 + $0x40] sm:$0xf]
      %v285 = vld [vmem:[%s1 + $0x44] sm:$0xf]
      %v286 = vld [vmem:[%s1 + $0x48] sm:$0xf]
      %v287 = vld [vmem:[%s1 + $0x4c] sm:$0xf]
      %v288 = vld [vmem:[%s1 + $0x50] sm:$0xf]
      %v289 = vld [vmem:[%s1 + $0x54] sm:$0xf]
      %v290 = vld [vmem:[%s1 + $0x58] sm:$0xf]
      %v291 = vld [vmem:[%s1 + $0x5c] sm:$0xf]
      %v292 = vld [vmem:[%s1 + $0x60] sm:$0xf]
      %v293 = vld [vmem:[%s1 + $0x64] sm:$0xf]
      %v294 = vld [vmem:[%s1 + $0x68] sm:$0xf]
      %v295 = vld [vmem:[%s1 + $0x6c] sm:$0xf]
      %v296 = vld [vmem:[%s1 + $0x70] sm:$0xf]
      %v297 = vld [vmem:[%s1 + $0x74] sm:$0xf]
      %v298 = vld [vmem:[%s1 + $0x78] sm:$0xf]
      %v299 = vld [vmem:[%s1 + $0x7c] sm:$0xf]
      %v300 = vld [vmem:[%s1 + $0x80] sm:$0xf]
      %v301 = vld [vmem:[%s1 + $0x84] sm:$0xf]
      %v302 = vld [vmem:[%s1 + $0x88] sm:$0xf]
      %v303 = vld [vmem:[%s1 + $0x8c] sm:$0xf]
      %v304 = vld [vmem:[%s1 + $0x90] sm:$0xf]
      %v305 = vld [vmem:[%s1 + $0x94] sm:$0xf]
      %v306 = vld [vmem:[%s1 + $0x98] sm:$0xf]
      %v307 = vld [vmem:[%s1 + $0x9c] sm:$0xf]
      %v308 = vld [vmem:[%s1 + $0xa0] sm:$0xf]
      %v309 = vld [vmem:[%s1 + $0xa4] sm:$0xf]
      %v310 = vld [vmem:[%s1 + $0xa8] sm:$0xf]
      %v311 = vld [vmem:[%s1 + $0xac] sm:$0xf]
      %v312 = vld [vmem:[%s1 + $0xb0] sm:$0xf]
      %v313 = vld [vmem:[%s1 + $0xb4] sm:$0xf]
      %v314 = vld [vmem:[%s1 + $0xb8] sm:$0xf]
      %v315 = vld [vmem:[%s1 + $0xbc] sm:$0xf]
      %v316 = vld [vmem:[%s1 + $0xc0] sm:$0xf]
      %v317 = vld [vmem:[%s1 + $0xc4] sm:$0xf]
      %v318 = vld [vmem:[%s1 + $0xc8] sm:$0xf]
      %v319 = vld [vmem:[%s1 + $0xcc] sm:$0xf]
      %v320 = vld [vmem:[%s1 + $0xd0] sm:$0xf]
      %v321 = vld [vmem:[%s1 + $0xd4] sm:$0xf]
      %v322 = vld [vmem:[%s1 + $0xd8] sm:$0xf]
      %v323 = vld [vmem:[%s1 + $0xdc] sm:$0xf]
      %v324 = vld [vmem:[%s1 + $0xe0] sm:$0xf]
      %v325 = vld [vmem:[%s1 + $0xe4] sm:$0xf]
      %v326 = vld [vmem:[%s1 + $0xe8] sm:$0xf]
      %v327 = vld [vmem:[%s1 + $0xec] sm:$0xf]
      %v328 = vld [vmem:[%s1 + $0xf0] sm:$0xf]
      %v329 = vld [vmem:[%s1 + $0xf4] sm:$0xf]
      %v330 = vld [vmem:[%s1 + $0xf8] sm:$0xf]
      %v331 = vld [vmem:[%s1 + $0xfc] sm:$0xf]
      %v332 = vld [vmem:[%s2] sm:$0x1]
      %v334 = vlaneseq
      %v335 = vshrl.u32 %v334, 7
      %v336 = vsub.s32 0, %v335
      %v337 = vrot.slane %v332, %v336
      %v403 = vunpack.c.l.b16 %v204
      %v404 = vunpack.c.h.b16 %v204
      %v405 = vunpack.c.l.b16 %v205
      %v406 = vunpack.c.h.b16 %v205
      %v407 = vunpack.c.l.b16 %v206
      %v408 = vunpack.c.h.b16 %v206
      %v409 = vunpack.c.l.b16 %v207
      %v410 = vunpack.c.h.b16 %v207
      %v411 = vunpack.c.l.b16 %v208
      %v412 = vunpack.c.h.b16 %v208
      %v413 = vunpack.c.l.b16 %v209
      %v414 = vunpack.c.h.b16 %v209
      %v415 = vunpack.c.l.b16 %v210
      %v416 = vunpack.c.h.b16 %v210
      %v417 = vunpack.c.l.b16 %v211
      %v418 = vunpack.c.h.b16 %v211
      %v419 = vunpack.c.l.b16 %v212
      %v420 = vunpack.c.h.b16 %v212
      %v421 = vunpack.c.l.b16 %v213
      %v422 = vunpack.c.h.b16 %v213
      %v423 = vunpack.c.l.b16 %v214
      %v424 = vunpack.c.h.b16 %v214
      %v425 = vunpack.c.l.b16 %v215
      %v426 = vunpack.c.h.b16 %v215
      %v427 = vunpack.c.l.b16 %v216
      %v428 = vunpack.c.h.b16 %v216
      %v429 = vunpack.c.l.b16 %v217
      %v430 = vunpack.c.h.b16 %v217
      %v431 = vunpack.c.l.b16 %v218
      %v432 = vunpack.c.h.b16 %v218
      %v433 = vunpack.c.l.b16 %v219
      %v434 = vunpack.c.h.b16 %v219
      %v435 = vunpack.c.l.b16 %v220
      %v436 = vunpack.c.h.b16 %v220
      %v437 = vunpack.c.l.b16 %v221
      %v438 = vunpack.c.h.b16 %v221
      %v439 = vunpack.c.l.b16 %v222
      %v440 = vunpack.c.h.b16 %v222
      %v441 = vunpack.c.l.b16 %v223
      %v442 = vunpack.c.h.b16 %v223
      %v443 = vunpack.c.l.b16 %v224
      %v444 = vunpack.c.h.b16 %v224
      %v445 = vunpack.c.l.b16 %v225
      %v446 = vunpack.c.h.b16 %v225
      %v447 = vunpack.c.l.b16 %v226
      %v448 = vunpack.c.h.b16 %v226
      %v449 = vunpack.c.l.b16 %v227
      %v450 = vunpack.c.h.b16 %v227
      %v451 = vunpack.c.l.b16 %v228
      %v452 = vunpack.c.h.b16 %v228
      %v453 = vunpack.c.l.b16 %v229
      %v454 = vunpack.c.h.b16 %v229
      %v455 = vunpack.c.l.b16 %v230
      %v456 = vunpack.c.h.b16 %v230
      %v457 = vunpack.c.l.b16 %v231
      %v458 = vunpack.c.h.b16 %v231
      %v459 = vunpack.c.l.b16 %v232
      %v460 = vunpack.c.h.b16 %v232
      %v461 = vunpack.c.l.b16 %v233
      %v462 = vunpack.c.h.b16 %v233
      %v463 = vunpack.c.l.b16 %v234
      %v464 = vunpack.c.h.b16 %v234
      %v465 = vunpack.c.l.b16 %v235
      %v466 = vunpack.c.h.b16 %v235
      %v467 = vunpack.c.l.b16 %v236
      %v468 = vunpack.c.h.b16 %v236
      %v469 = vunpack.c.l.b16 %v237
      %v470 = vunpack.c.h.b16 %v237
      %v471 = vunpack.c.l.b16 %v238
      %v472 = vunpack.c.h.b16 %v238
      %v473 = vunpack.c.l.b16 %v239
      %v474 = vunpack.c.h.b16 %v239
      %v475 = vunpack.c.l.b16 %v240
      %v476 = vunpack.c.h.b16 %v240
      %v477 = vunpack.c.l.b16 %v241
      %v478 = vunpack.c.h.b16 %v241
      %v479 = vunpack.c.l.b16 %v242
      %v480 = vunpack.c.h.b16 %v242
      %v481 = vunpack.c.l.b16 %v243
      %v482 = vunpack.c.h.b16 %v243
      %v483 = vunpack.c.l.b16 %v244
      %v484 = vunpack.c.h.b16 %v244
      %v485 = vunpack.c.l.b16 %v245
      %v486 = vunpack.c.h.b16 %v245
      %v487 = vunpack.c.l.b16 %v246
      %v488 = vunpack.c.h.b16 %v246
      %v489 = vunpack.c.l.b16 %v247
      %v490 = vunpack.c.h.b16 %v247
      %v491 = vunpack.c.l.b16 %v248
      %v492 = vunpack.c.h.b16 %v248
      %v493 = vunpack.c.l.b16 %v249
      %v494 = vunpack.c.h.b16 %v249
      %v495 = vunpack.c.l.b16 %v250
      %v496 = vunpack.c.h.b16 %v250
      %v497 = vunpack.c.l.b16 %v251
      %v498 = vunpack.c.h.b16 %v251
      %v499 = vunpack.c.l.b16 %v252
      %v500 = vunpack.c.h.b16 %v252
      %v501 = vunpack.c.l.b16 %v253
      %v502 = vunpack.c.h.b16 %v253
      %v503 = vunpack.c.l.b16 %v254
      %v504 = vunpack.c.h.b16 %v254
      %v505 = vunpack.c.l.b16 %v255
      %v506 = vunpack.c.h.b16 %v255
      %v507 = vunpack.c.l.b16 %v256
      %v508 = vunpack.c.h.b16 %v256
      %v509 = vunpack.c.l.b16 %v257
      %v510 = vunpack.c.h.b16 %v257
      %v511 = vunpack.c.l.b16 %v258
      %v512 = vunpack.c.h.b16 %v258
      %v513 = vunpack.c.l.b16 %v259
      %v514 = vunpack.c.h.b16 %v259
      %v515 = vunpack.c.l.b16 %v260
      %v516 = vunpack.c.h.b16 %v260
      %v517 = vunpack.c.l.b16 %v261
      %v518 = vunpack.c.h.b16 %v261
      %v519 = vunpack.c.l.b16 %v262
      %v520 = vunpack.c.h.b16 %v262
      %v521 = vunpack.c.l.b16 %v263
      %v522 = vunpack.c.h.b16 %v263
      %v523 = vunpack.c.l.b16 %v264
      %v524 = vunpack.c.h.b16 %v264
      %v525 = vunpack.c.l.b16 %v265
      %v526 = vunpack.c.h.b16 %v265
      %v527 = vunpack.c.l.b16 %v266
      %v528 = vunpack.c.h.b16 %v266
      %v529 = vunpack.c.l.b16 %v267
      %v530 = vunpack.c.h.b16 %v267
      %v531 = vpack.c.b16 %v407, %v403
      %v532 = vpack.c.b16 %v408, %v404
      %v533 = vpack.c.b16 %v409, %v405
      %v534 = vpack.c.b16 %v410, %v406
      %v535 = vpack.c.b16 %v415, %v411
      %v536 = vpack.c.b16 %v416, %v412
      %v537 = vpack.c.b16 %v417, %v413
      %v538 = vpack.c.b16 %v418, %v414
      %v539 = vpack.c.b16 %v423, %v419
      %v540 = vpack.c.b16 %v424, %v420
      %v541 = vpack.c.b16 %v425, %v421
      %v542 = vpack.c.b16 %v426, %v422
      %v543 = vpack.c.b16 %v431, %v427
      %v544 = vpack.c.b16 %v432, %v428
      %v545 = vpack.c.b16 %v433, %v429
      %v546 = vpack.c.b16 %v434, %v430
      %v547 = vpack.c.b16 %v439, %v435
      %v548 = vpack.c.b16 %v440, %v436
      %v549 = vpack.c.b16 %v441, %v437
      %v550 = vpack.c.b16 %v442, %v438
      %v551 = vpack.c.b16 %v447, %v443
      %v552 = vpack.c.b16 %v448, %v444
      %v553 = vpack.c.b16 %v449, %v445
      %v554 = vpack.c.b16 %v450, %v446
      %v555 = vpack.c.b16 %v455, %v451
      %v556 = vpack.c.b16 %v456, %v452
      %v557 = vpack.c.b16 %v457, %v453
      %v558 = vpack.c.b16 %v458, %v454
      %v559 = vpack.c.b16 %v463, %v459
      %v560 = vpack.c.b16 %v464, %v460
      %v561 = vpack.c.b16 %v465, %v461
      %v562 = vpack.c.b16 %v466, %v462
      %v563 = vpack.c.b16 %v471, %v467
      %v564 = vpack.c.b16 %v472, %v468
      %v565 = vpack.c.b16 %v473, %v469
      %v566 = vpack.c.b16 %v474, %v470
      %v567 = vpack.c.b16 %v479, %v475
      %v568 = vpack.c.b16 %v480, %v476
      %v569 = vpack.c.b16 %v481, %v477
      %v570 = vpack.c.b16 %v482, %v478
      %v571 = vpack.c.b16 %v487, %v483
      %v572 = vpack.c.b16 %v488, %v484
      %v573 = vpack.c.b16 %v489, %v485
      %v574 = vpack.c.b16 %v490, %v486
      %v575 = vpack.c.b16 %v495, %v491
      %v576 = vpack.c.b16 %v496, %v492
      %v577 = vpack.c.b16 %v497, %v493
      %v578 = vpack.c.b16 %v498, %v494
      %v579 = vpack.c.b16 %v503, %v499
      %v580 = vpack.c.b16 %v504, %v500
      %v581 = vpack.c.b16 %v505, %v501
      %v582 = vpack.c.b16 %v506, %v502
      %v583 = vpack.c.b16 %v511, %v507
      %v584 = vpack.c.b16 %v512, %v508
      %v585 = vpack.c.b16 %v513, %v509
      %v586 = vpack.c.b16 %v514, %v510
      %v587 = vpack.c.b16 %v519, %v515
      %v588 = vpack.c.b16 %v520, %v516
      %v589 = vpack.c.b16 %v521, %v517
      %v590 = vpack.c.b16 %v522, %v518
      %v591 = vpack.c.b16 %v527, %v523
      %v592 = vpack.c.b16 %v528, %v524
      %v593 = vpack.c.b16 %v529, %v525
      %v594 = vpack.c.b16 %v530, %v526
      %v723 = vunpack.c.l.b16 %v268
      %v724 = vunpack.c.l.b16 %v269
      %v725 = vunpack.c.l.b16 %v270
      %v726 = vunpack.c.l.b16 %v271
      %v727 = vunpack.c.l.b16 %v272
      %v728 = vunpack.c.l.b16 %v273
      %v729 = vunpack.c.l.b16 %v274
      %v730 = vunpack.c.l.b16 %v275
      %v731 = vunpack.c.l.b16 %v276
      %v732 = vunpack.c.l.b16 %v277
      %v733 = vunpack.c.l.b16 %v278
      %v734 = vunpack.c.l.b16 %v279
      %v735 = vunpack.c.l.b16 %v280
      %v736 = vunpack.c.l.b16 %v281
      %v737 = vunpack.c.l.b16 %v282
      %v738 = vunpack.c.l.b16 %v283
      %v739 = vunpack.c.l.b16 %v284
      %v740 = vunpack.c.l.b16 %v285
      %v741 = vunpack.c.l.b16 %v286
      %v742 = vunpack.c.l.b16 %v287
      %v743 = vunpack.c.l.b16 %v288
      %v744 = vunpack.c.l.b16 %v289
      %v745 = vunpack.c.l.b16 %v290
      %v746 = vunpack.c.l.b16 %v291
      %v747 = vunpack.c.l.b16 %v292
      %v748 = vunpack.c.l.b16 %v293
      %v749 = vunpack.c.l.b16 %v294
      %v750 = vunpack.c.l.b16 %v295
      %v751 = vunpack.c.l.b16 %v296
      %v752 = vunpack.c.l.b16 %v297
      %v753 = vunpack.c.l.b16 %v298
      %v754 = vunpack.c.l.b16 %v299
      %v755 = vunpack.c.l.b16 %v300
      %v756 = vunpack.c.l.b16 %v301
      %v757 = vunpack.c.l.b16 %v302
      %v758 = vunpack.c.l.b16 %v303
      %v759 = vunpack.c.l.b16 %v304
      %v760 = vunpack.c.l.b16 %v305
      %v761 = vunpack.c.l.b16 %v306
      %v762 = vunpack.c.l.b16 %v307
      %v763 = vunpack.c.l.b16 %v308
      %v764 = vunpack.c.l.b16 %v309
      %v765 = vunpack.c.l.b16 %v310
      %v766 = vunpack.c.l.b16 %v311
      %v767 = vunpack.c.l.b16 %v312
      %v768 = vunpack.c.l.b16 %v313
      %v769 = vunpack.c.l.b16 %v314
      %v770 = vunpack.c.l.b16 %v315
      %v771 = vunpack.c.l.b16 %v316
      %v772 = vunpack.c.l.b16 %v317
      %v773 = vunpack.c.l.b16 %v318
      %v774 = vunpack.c.l.b16 %v319
      %v775 = vunpack.c.l.b16 %v320
      %v776 = vunpack.c.l.b16 %v321
      %v777 = vunpack.c.l.b16 %v322
      %v778 = vunpack.c.l.b16 %v323
      %v779 = vunpack.c.l.b16 %v324
      %v780 = vunpack.c.l.b16 %v325
      %v781 = vunpack.c.l.b16 %v326
      %v782 = vunpack.c.l.b16 %v327
      %v783 = vunpack.c.l.b16 %v328
      %v784 = vunpack.c.l.b16 %v329
      %v785 = vunpack.c.l.b16 %v330
      %v786 = vunpack.c.l.b16 %v331
      %v787 = vpack.c.b16 %v724, %v723
      %v788 = vpack.c.b16 %v726, %v725
      %v789 = vpack.c.b16 %v728, %v727
      %v790 = vpack.c.b16 %v730, %v729
      %v791 = vpack.c.b16 %v732, %v731
      %v792 = vpack.c.b16 %v734, %v733
      %v793 = vpack.c.b16 %v736, %v735
      %v794 = vpack.c.b16 %v738, %v737
      %v795 = vpack.c.b16 %v740, %v739
      %v796 = vpack.c.b16 %v742, %v741
      %v797 = vpack.c.b16 %v744, %v743
      %v798 = vpack.c.b16 %v746, %v745
      %v799 = vpack.c.b16 %v748, %v747
      %v800 = vpack.c.b16 %v750, %v749
      %v801 = vpack.c.b16 %v752, %v751
      %v802 = vpack.c.b16 %v754, %v753
      %v803 = vpack.c.b16 %v756, %v755
      %v804 = vpack.c.b16 %v758, %v757
      %v805 = vpack.c.b16 %v760, %v759
      %v806 = vpack.c.b16 %v762, %v761
      %v807 = vpack.c.b16 %v764, %v763
      %v808 = vpack.c.b16 %v766, %v765
      %v809 = vpack.c.b16 %v768, %v767
      %v810 = vpack.c.b16 %v770, %v769
      %v811 = vpack.c.b16 %v772, %v771
      %v812 = vpack.c.b16 %v774, %v773
      %v813 = vpack.c.b16 %v776, %v775
      %v814 = vpack.c.b16 %v778, %v777
      %v815 = vpack.c.b16 %v780, %v779
      %v816 = vpack.c.b16 %v782, %v781
      %v817 = vpack.c.b16 %v784, %v783
      %v818 = vpack.c.b16 %v786, %v785
      %851 = vmatprep.subr.bf16.mxu0 0
      %852 = vmatpush1.bf16.msra.mxu0 %v787
      %853 = vmatprep.subr.bf16.mxu0 0
      %854 = vmatpush1.bf16.msra.mxu0 %v788
      %855 = vmatprep.subr.bf16.mxu0 0
      %856 = vmatpush1.bf16.msra.mxu0 %v789
      %857 = vmatprep.subr.bf16.mxu0 0
      %858 = vmatpush1.bf16.msra.mxu0 %v790
      %859 = vmatprep.subr.bf16.mxu0 0
      %860 = vmatpush1.bf16.msra.mxu0 %v791
      %861 = vmatprep.subr.bf16.mxu0 0
      %862 = vmatpush1.bf16.msra.mxu0 %v792
      %863 = vmatprep.subr.bf16.mxu0 0
      %864 = vmatpush1.bf16.msra.mxu0 %v793
      %865 = vmatprep.subr.bf16.mxu0 0
      %866 = vmatpush1.bf16.msra.mxu0 %v794
      %867 = vmatprep.subr.bf16.mxu0 0
      %868 = vmatpush1.bf16.msra.mxu0 %v795
      %869 = vmatprep.subr.bf16.mxu0 0
      %870 = vmatpush1.bf16.msra.mxu0 %v796
      %871 = vmatprep.subr.bf16.mxu0 0
      %872 = vmatpush1.bf16.msra.mxu0 %v797
      %873 = vmatprep.subr.bf16.mxu0 0
      %874 = vmatpush1.bf16.msra.mxu0 %v798
      %875 = vmatprep.subr.bf16.mxu0 0
      %876 = vmatpush1.bf16.msra.mxu0 %v799
      %877 = vmatprep.subr.bf16.mxu0 0
      %878 = vmatpush1.bf16.msra.mxu0 %v800
      %879 = vmatprep.subr.bf16.mxu0 0
      %880 = vmatpush1.bf16.msra.mxu0 %v801
      %881 = vmatprep.subr.bf16.mxu0 0
      %882 = vmatpush1.bf16.msra.mxu0 %v802
      %883 = vmatprep.mubr.bf16.mxu0 %v532
      %884 = vmatmul.mubr.bf16.gmra.mrb[0].mxu0 %v531
      %v885 = vpop.f32.mrb[0].mxu0
      %v886 = vadd.f32 %v337, %v885
      %v887 = vpop.f32.mrb[0].mxu0
      %v888 = vpop.f32.mrb[0].mxu0
      %v889 = vadd.f32 %v337, %v888
      %v890 = vpop.f32.mrb[0].mxu0
      %891 = vmatprep.mubr.bf16.mxu0 %v536
      %892 = vmatmul.mubr.bf16.gmra.mrb[0].mxu0 %v535
      %v893 = vpop.f32.mrb[0].mxu0
      %v894 = vadd.f32 %v337, %v893
      %v895 = vpop.f32.mrb[0].mxu0
      %v896 = vpop.f32.mrb[0].mxu0
      %v897 = vadd.f32 %v337, %v896
      %v898 = vpop.f32.mrb[0].mxu0
      %899 = vmatprep.mubr.bf16.mxu0 %v540
      %900 = vmatmul.mubr.bf16.gmra.mrb[0].mxu0 %v539
      %v901 = vpop.f32.mrb[0].mxu0
      %v902 = vadd.f32 %v337, %v901
      %v903 = vpop.f32.mrb[0].mxu0
      %v904 = vpop.f32.mrb[0].mxu0
      %v905 = vadd.f32 %v337, %v904
      %v906 = vpop.f32.mrb[0].mxu0
      %907 = vmatprep.mubr.bf16.mxu0 %v544
      %908 = vmatmul.mubr.bf16.gmra.mrb[0].mxu0 %v543
      %v909 = vpop.f32.mrb[0].mxu0
      %v910 = vadd.f32 %v337, %v909
      %v911 = vpop.f32.mrb[0].mxu0
      %v912 = vpop.f32.mrb[0].mxu0
      %v913 = vadd.f32 %v337, %v912
      %v914 = vpop.f32.mrb[0].mxu0
      %915 = vmatprep.mubr.bf16.mxu0 %v548
      %916 = vmatmul.mubr.bf16.gmra.mrb[0].mxu0 %v547
      %v917 = vpop.f32.mrb[0].mxu0
      %v918 = vadd.f32 %v337, %v917
      %v919 = vpop.f32.mrb[0].mxu0
      %v920 = vpop.f32.mrb[0].mxu0
      %v921 = vadd.f32 %v337, %v920
      %v922 = vpop.f32.mrb[0].mxu0
      %923 = vmatprep.mubr.bf16.mxu0 %v552
      %924 = vmatmul.mubr.bf16.gmra.mrb[0].mxu0 %v551
      %v925 = vpop.f32.mrb[0].mxu0
      %v926 = vadd.f32 %v337, %v925
      %v927 = vpop.f32.mrb[0].mxu0
      %v928 = vpop.f32.mrb[0].mxu0
      %v929 = vadd.f32 %v337, %v928
      %v930 = vpop.f32.mrb[0].mxu0
      %931 = vmatprep.mubr.bf16.mxu0 %v556
      %932 = vmatmul.mubr.bf16.gmra.mrb[0].mxu0 %v555
      %v933 = vpop.f32.mrb[0].mxu0
      %v934 = vadd.f32 %v337, %v933
      %v935 = vpop.f32.mrb[0].mxu0
      %v936 = vpop.f32.mrb[0].mxu0
      %v937 = vadd.f32 %v337, %v936
      %v938 = vpop.f32.mrb[0].mxu0
      %939 = vmatprep.mubr.bf16.mxu0 %v560
      %940 = vmatmul.mubr.bf16.gmra.mrb[0].mxu0 %v559
      %v941 = vpop.f32.mrb[0].mxu0
      %v942 = vadd.f32 %v337, %v941
      %v943 = vpop.f32.mrb[0].mxu0
      %v944 = vpop.f32.mrb[0].mxu0
      %v945 = vadd.f32 %v337, %v944
      %v946 = vpop.f32.mrb[0].mxu0
      %947 = vmatprep.mubr.bf16.mxu0 %v564
      %948 = vmatmul.mubr.bf16.gmra.mrb[0].mxu0 %v563
      %v949 = vpop.f32.mrb[0].mxu0
      %v950 = vadd.f32 %v337, %v949
      %v951 = vpop.f32.mrb[0].mxu0
      %v952 = vpop.f32.mrb[0].mxu0
      %v953 = vadd.f32 %v337, %v952
      %v954 = vpop.f32.mrb[0].mxu0
      %955 = vmatprep.mubr.bf16.mxu0 %v568
      %956 = vmatmul.mubr.bf16.gmra.mrb[0].mxu0 %v567
      %v957 = vpop.f32.mrb[0].mxu0
      %v958 = vadd.f32 %v337, %v957
      %v959 = vpop.f32.mrb[0].mxu0
      %v960 = vpop.f32.mrb[0].mxu0
      %v961 = vadd.f32 %v337, %v960
      %v962 = vpop.f32.mrb[0].mxu0
      %963 = vmatprep.mubr.bf16.mxu0 %v572
      %964 = vmatmul.mubr.bf16.gmra.mrb[0].mxu0 %v571
      %v965 = vpop.f32.mrb[0].mxu0
      %v966 = vadd.f32 %v337, %v965
      %v967 = vpop.f32.mrb[0].mxu0
      %v968 = vpop.f32.mrb[0].mxu0
      %v969 = vadd.f32 %v337, %v968
      %v970 = vpop.f32.mrb[0].mxu0
      %971 = vmatprep.mubr.bf16.mxu0 %v576
      %972 = vmatmul.mubr.bf16.gmra.mrb[0].mxu0 %v575
      %v973 = vpop.f32.mrb[0].mxu0
      %v974 = vadd.f32 %v337, %v973
      %v975 = vpop.f32.mrb[0].mxu0
      %v976 = vpop.f32.mrb[0].mxu0
      %v977 = vadd.f32 %v337, %v976
      %v978 = vpop.f32.mrb[0].mxu0
      %979 = vmatprep.mubr.bf16.mxu0 %v580
      %980 = vmatmul.mubr.bf16.gmra.mrb[0].mxu0 %v579
      %v981 = vpop.f32.mrb[0].mxu0
      %v982 = vadd.f32 %v337, %v981
      %v983 = vpop.f32.mrb[0].mxu0
      %v984 = vpop.f32.mrb[0].mxu0
      %v985 = vadd.f32 %v337, %v984
      %v986 = vpop.f32.mrb[0].mxu0
      %987 = vmatprep.mubr.bf16.mxu0 %v584
      %988 = vmatmul.mubr.bf16.gmra.mrb[0].mxu0 %v583
      %v989 = vpop.f32.mrb[0].mxu0
      %v990 = vadd.f32 %v337, %v989
      %v991 = vpop.f32.mrb[0].mxu0
      %v992 = vpop.f32.mrb[0].mxu0
      %v993 = vadd.f32 %v337, %v992
      %v994 = vpop.f32.mrb[0].mxu0
      %995 = vmatprep.mubr.bf16.mxu0 %v588
      %996 = vmatmul.mubr.bf16.gmra.mrb[0].mxu0 %v587
      %v997 = vpop.f32.mrb[0].mxu0
      %v998 = vadd.f32 %v337, %v997
      %v999 = vpop.f32.mrb[0].mxu0
      %v1000 = vpop.f32.mrb[0].mxu0
      %v1001 = vadd.f32 %v337, %v1000
      %v1002 = vpop.f32.mrb[0].mxu0
      %1003 = vmatprep.mubr.bf16.mxu0 %v592
      %1004 = vmatmul.mubr.bf16.gmra.mrb[0].mxu0 %v591
      %v1005 = vpop.f32.mrb[0].mxu0
      %v1006 = vadd.f32 %v337, %v1005
      %v1007 = vpop.f32.mrb[0].mxu0
      %v1008 = vpop.f32.mrb[0].mxu0
      %v1009 = vadd.f32 %v337, %v1008
      %v1010 = vpop.f32.mrb[0].mxu0
      %1011 = vdwg.mxu0
      %1012 = vmatprep.subr.bf16.mxu0 0
      %1013 = vmatpush1.bf16.msra.mxu0 %v803
      %1014 = vmatprep.subr.bf16.mxu0 0
      %1015 = vmatpush1.bf16.msra.mxu0 %v804
      %1016 = vmatprep.subr.bf16.mxu0 0
      %1017 = vmatpush1.bf16.msra.mxu0 %v805
      %1018 = vmatprep.subr.bf16.mxu0 0
      %1019 = vmatpush1.bf16.msra.mxu0 %v806
      %1020 = vmatprep.subr.bf16.mxu0 0
      %1021 = vmatpush1.bf16.msra.mxu0 %v807
      %1022 = vmatprep.subr.bf16.mxu0 0
      %1023 = vmatpush1.bf16.msra.mxu0 %v808
      %1024 = vmatprep.subr.bf16.mxu0 0
      %1025 = vmatpush1.bf16.msra.mxu0 %v809
      %1026 = vmatprep.subr.bf16.mxu0 0
      %1027 = vmatpush1.bf16.msra.mxu0 %v810
      %1028 = vmatprep.subr.bf16.mxu0 0
      %1029 = vmatpush1.bf16.msra.mxu0 %v811
      %1030 = vmatprep.subr.bf16.mxu0 0
      %1031 = vmatpush1.bf16.msra.mxu0 %v812
      %1032 = vmatprep.subr.bf16.mxu0 0
      %1033 = vmatpush1.bf16.msra.mxu0 %v813
      %1034 = vmatprep.subr.bf16.mxu0 0
      %1035 = vmatpush1.bf16.msra.mxu0 %v814
      %1036 = vmatprep.subr.bf16.mxu0 0
      %1037 = vmatpush1.bf16.msra.mxu0 %v815
      %1038 = vmatprep.subr.bf16.mxu0 0
      %1039 = vmatpush1.bf16.msra.mxu0 %v816
      %1040 = vmatprep.subr.bf16.mxu0 0
      %1041 = vmatpush1.bf16.msra.mxu0 %v817
      %1042 = vmatprep.subr.bf16.mxu0 0
      %1043 = vmatpush1.bf16.msra.mxu0 %v818
      %1044 = vmatprep.mubr.bf16.mxu0 %v534
      %1045 = vmatmul.mubr.bf16.gmra.mrb[0].mxu0 %v533
      %v1046 = vpop.f32.mrb[0].mxu0
      %v1047 = vadd.f32 %v886, %v1046
      %v1048 = vpop.f32.mrb[0].mxu0
      %v1049 = vpop.f32.mrb[0].mxu0
      %v1050 = vadd.f32 %v889, %v1049
      %v1051 = vpop.f32.mrb[0].mxu0
      %1052 = vmatprep.mubr.bf16.mxu0 %v538
      %1053 = vmatmul.mubr.bf16.gmra.mrb[0].mxu0 %v537
      %v1054 = vpop.f32.mrb[0].mxu0
      %v1055 = vadd.f32 %v894, %v1054
      %v1056 = vpop.f32.mrb[0].mxu0
      %v1057 = vpop.f32.mrb[0].mxu0
      %v1058 = vadd.f32 %v897, %v1057
      %v1059 = vpop.f32.mrb[0].mxu0
      %1060 = vmatprep.mubr.bf16.mxu0 %v542
      %1061 = vmatmul.mubr.bf16.gmra.mrb[0].mxu0 %v541
      %v1062 = vpop.f32.mrb[0].mxu0
      %v1063 = vadd.f32 %v902, %v1062
      %v1064 = vpop.f32.mrb[0].mxu0
      %v1065 = vpop.f32.mrb[0].mxu0
      %v1066 = vadd.f32 %v905, %v1065
      %v1067 = vpop.f32.mrb[0].mxu0
      %1068 = vmatprep.mubr.bf16.mxu0 %v546
      %1069 = vmatmul.mubr.bf16.gmra.mrb[0].mxu0 %v545
      %v1070 = vpop.f32.mrb[0].mxu0
      %v1071 = vadd.f32 %v910, %v1070
      %v1072 = vpop.f32.mrb[0].mxu0
      %v1073 = vpop.f32.mrb[0].mxu0
      %v1074 = vadd.f32 %v913, %v1073
      %v1075 = vpop.f32.mrb[0].mxu0
      %1076 = vmatprep.mubr.bf16.mxu0 %v550
      %1077 = vmatmul.mubr.bf16.gmra.mrb[0].mxu0 %v549
      %v1078 = vpop.f32.mrb[0].mxu0
      %v1079 = vadd.f32 %v918, %v1078
      %v1080 = vpop.f32.mrb[0].mxu0
      %v1081 = vpop.f32.mrb[0].mxu0
      %v1082 = vadd.f32 %v921, %v1081
      %v1083 = vpop.f32.mrb[0].mxu0
      %1084 = vmatprep.mubr.bf16.mxu0 %v554
      %1085 = vmatmul.mubr.bf16.gmra.mrb[0].mxu0 %v553
      %v1086 = vpop.f32.mrb[0].mxu0
      %v1087 = vadd.f32 %v926, %v1086
      %v1088 = vpop.f32.mrb[0].mxu0
      %v1089 = vpop.f32.mrb[0].mxu0
      %v1090 = vadd.f32 %v929, %v1089
      %v1091 = vpop.f32.mrb[0].mxu0
      %1092 = vmatprep.mubr.bf16.mxu0 %v558
      %1093 = vmatmul.mubr.bf16.gmra.mrb[0].mxu0 %v557
      %v1094 = vpop.f32.mrb[0].mxu0
      %v1095 = vadd.f32 %v934, %v1094
      %v1096 = vpop.f32.mrb[0].mxu0
      %v1097 = vpop.f32.mrb[0].mxu0
      %v1098 = vadd.f32 %v937, %v1097
      %v1099 = vpop.f32.mrb[0].mxu0
      %1100 = vmatprep.mubr.bf16.mxu0 %v562
      %1101 = vmatmul.mubr.bf16.gmra.mrb[0].mxu0 %v561
      %v1102 = vpop.f32.mrb[0].mxu0
      %v1103 = vadd.f32 %v942, %v1102
      %v1104 = vpop.f32.mrb[0].mxu0
      %v1105 = vpop.f32.mrb[0].mxu0
      %v1106 = vadd.f32 %v945, %v1105
      %v1107 = vpop.f32.mrb[0].mxu0
      %1108 = vmatprep.mubr.bf16.mxu0 %v566
      %1109 = vmatmul.mubr.bf16.gmra.mrb[0].mxu0 %v565
      %v1110 = vpop.f32.mrb[0].mxu0
      %v1111 = vadd.f32 %v950, %v1110
      %v1112 = vpop.f32.mrb[0].mxu0
      %v1113 = vpop.f32.mrb[0].mxu0
      %v1114 = vadd.f32 %v953, %v1113
      %v1115 = vpop.f32.mrb[0].mxu0
      %1116 = vmatprep.mubr.bf16.mxu0 %v570
      %1117 = vmatmul.mubr.bf16.gmra.mrb[0].mxu0 %v569
      %v1118 = vpop.f32.mrb[0].mxu0
      %v1119 = vadd.f32 %v958, %v1118
      %v1120 = vpop.f32.mrb[0].mxu0
      %v1121 = vpop.f32.mrb[0].mxu0
      %v1122 = vadd.f32 %v961, %v1121
      %v1123 = vpop.f32.mrb[0].mxu0
      %1124 = vmatprep.mubr.bf16.mxu0 %v574
      %1125 = vmatmul.mubr.bf16.gmra.mrb[0].mxu0 %v573
      %v1126 = vpop.f32.mrb[0].mxu0
      %v1127 = vadd.f32 %v966, %v1126
      %v1128 = vpop.f32.mrb[0].mxu0
      %v1129 = vpop.f32.mrb[0].mxu0
      %v1130 = vadd.f32 %v969, %v1129
      %v1131 = vpop.f32.mrb[0].mxu0
      %1132 = vmatprep.mubr.bf16.mxu0 %v578
      %1133 = vmatmul.mubr.bf16.gmra.mrb[0].mxu0 %v577
      %v1134 = vpop.f32.mrb[0].mxu0
      %v1135 = vadd.f32 %v974, %v1134
      %v1136 = vpop.f32.mrb[0].mxu0
      %v1137 = vpop.f32.mrb[0].mxu0
      %v1138 = vadd.f32 %v977, %v1137
      %v1139 = vpop.f32.mrb[0].mxu0
      %1140 = vmatprep.mubr.bf16.mxu0 %v582
      %1141 = vmatmul.mubr.bf16.gmra.mrb[0].mxu0 %v581
      %v1142 = vpop.f32.mrb[0].mxu0
      %v1143 = vadd.f32 %v982, %v1142
      %v1144 = vpop.f32.mrb[0].mxu0
      %v1145 = vpop.f32.mrb[0].mxu0
      %v1146 = vadd.f32 %v985, %v1145
      %v1147 = vpop.f32.mrb[0].mxu0
      %1148 = vmatprep.mubr.bf16.mxu0 %v586
      %1149 = vmatmul.mubr.bf16.gmra.mrb[0].mxu0 %v585
      %v1150 = vpop.f32.mrb[0].mxu0
      %v1151 = vadd.f32 %v990, %v1150
      %v1152 = vpop.f32.mrb[0].mxu0
      %v1153 = vpop.f32.mrb[0].mxu0
      %v1154 = vadd.f32 %v993, %v1153
      %v1155 = vpop.f32.mrb[0].mxu0
      %1156 = vmatprep.mubr.bf16.mxu0 %v590
      %1157 = vmatmul.mubr.bf16.gmra.mrb[0].mxu0 %v589
      %v1158 = vpop.f32.mrb[0].mxu0
      %v1159 = vadd.f32 %v998, %v1158
      %v1160 = vpop.f32.mrb[0].mxu0
      %v1161 = vpop.f32.mrb[0].mxu0
      %v1162 = vadd.f32 %v1001, %v1161
      %v1163 = vpop.f32.mrb[0].mxu0
      %1164 = vmatprep.mubr.bf16.mxu0 %v594
      %1165 = vmatmul.mubr.bf16.gmra.mrb[0].mxu0 %v593
      %v1166 = vpop.f32.mrb[0].mxu0
      %v1167 = vadd.f32 %v1006, %v1166
      %v1168 = vpop.f32.mrb[0].mxu0
      %v1169 = vpop.f32.mrb[0].mxu0
      %v1170 = vadd.f32 %v1009, %v1169
      %v1171 = vpop.f32.mrb[0].mxu0
      %1172 = vdwg.mxu0
      %v1173 = vtanh.pop %v1047
      %v1174 = vtanh.pop %v1050
      %v1175 = vtanh.pop %v1055
      %v1176 = vtanh.pop %v1058
      %v1177 = vtanh.pop %v1063
      %v1178 = vtanh.pop %v1066
      %v1179 = vtanh.pop %v1071
      %v1180 = vtanh.pop %v1074
      %v1181 = vtanh.pop %v1079
      %v1182 = vtanh.pop %v1082
      %v1183 = vtanh.pop %v1087
      %v1184 = vtanh.pop %v1090
      %v1185 = vtanh.pop %v1095
      %v1186 = vtanh.pop %v1098
      %v1187 = vtanh.pop %v1103
      %v1188 = vtanh.pop %v1106
      %v1189 = vtanh.pop %v1111
      %v1190 = vtanh.pop %v1114
      %v1191 = vtanh.pop %v1119
      %v1192 = vtanh.pop %v1122
      %v1193 = vtanh.pop %v1127
      %v1194 = vtanh.pop %v1130
      %v1195 = vtanh.pop %v1135
      %v1196 = vtanh.pop %v1138
      %v1197 = vtanh.pop %v1143
      %v1198 = vtanh.pop %v1146
      %v1199 = vtanh.pop %v1151
      %v1200 = vtanh.pop %v1154
      %v1201 = vtanh.pop %v1159
      %v1202 = vtanh.pop %v1162
      %v1203 = vtanh.pop %v1167
      %v1204 = vtanh.pop %v1170
      %v1205 = vpack.c.bf16 %v1174, %v1173
      %v1206 = vpack.c.bf16 %v1176, %v1175
      %v1207 = vpack.c.bf16 %v1178, %v1177
      %v1208 = vpack.c.bf16 %v1180, %v1179
      %v1209 = vpack.c.bf16 %v1182, %v1181
      %v1210 = vpack.c.bf16 %v1184, %v1183
      %v1211 = vpack.c.bf16 %v1186, %v1185
      %v1212 = vpack.c.bf16 %v1188, %v1187
      %v1213 = vpack.c.bf16 %v1190, %v1189
      %v1214 = vpack.c.bf16 %v1192, %v1191
      %v1215 = vpack.c.bf16 %v1194, %v1193
      %v1216 = vpack.c.bf16 %v1196, %v1195
      %v1217 = vpack.c.bf16 %v1198, %v1197
      %v1218 = vpack.c.bf16 %v1200, %v1199
      %v1219 = vpack.c.bf16 %v1202, %v1201
      %v1220 = vpack.c.bf16 %v1204, %v1203
      %v1237 = vunpack.c.l.b16 %v1205
      %v1238 = vunpack.c.h.b16 %v1205
      %v1239 = vunpack.c.l.b16 %v1206
      %v1240 = vunpack.c.h.b16 %v1206
      %v1241 = vunpack.c.l.b16 %v1207
      %v1242 = vunpack.c.h.b16 %v1207
      %v1243 = vunpack.c.l.b16 %v1208
      %v1244 = vunpack.c.h.b16 %v1208
      %v1245 = vunpack.c.l.b16 %v1209
      %v1246 = vunpack.c.h.b16 %v1209
      %v1247 = vunpack.c.l.b16 %v1210
      %v1248 = vunpack.c.h.b16 %v1210
      %v1249 = vunpack.c.l.b16 %v1211
      %v1250 = vunpack.c.h.b16 %v1211
      %v1251 = vunpack.c.l.b16 %v1212
      %v1252 = vunpack.c.h.b16 %v1212
      %v1253 = vunpack.c.l.b16 %v1213
      %v1254 = vunpack.c.h.b16 %v1213
      %v1255 = vunpack.c.l.b16 %v1214
      %v1256 = vunpack.c.h.b16 %v1214
      %v1257 = vunpack.c.l.b16 %v1215
      %v1258 = vunpack.c.h.b16 %v1215
      %v1259 = vunpack.c.l.b16 %v1216
      %v1260 = vunpack.c.h.b16 %v1216
      %v1261 = vunpack.c.l.b16 %v1217
      %v1262 = vunpack.c.h.b16 %v1217
      %v1263 = vunpack.c.l.b16 %v1218
      %v1264 = vunpack.c.h.b16 %v1218
      %v1265 = vunpack.c.l.b16 %v1219
      %v1266 = vunpack.c.h.b16 %v1219
      %v1267 = vunpack.c.l.b16 %v1220
      %v1268 = vunpack.c.h.b16 %v1220
      %v1269 = vpack.c.b16 %v1237, %v1237
      %v1270 = vpack.c.b16 %v1238, %v1238
      %v1271 = vpack.c.b16 %v1239, %v1239
      %v1272 = vpack.c.b16 %v1240, %v1240
      %v1273 = vpack.c.b16 %v1241, %v1241
      %v1274 = vpack.c.b16 %v1242, %v1242
      %v1275 = vpack.c.b16 %v1243, %v1243
      %v1276 = vpack.c.b16 %v1244, %v1244
      %v1277 = vpack.c.b16 %v1245, %v1245
      %v1278 = vpack.c.b16 %v1246, %v1246
      %v1279 = vpack.c.b16 %v1247, %v1247
      %v1280 = vpack.c.b16 %v1248, %v1248
      %v1281 = vpack.c.b16 %v1249, %v1249
      %v1282 = vpack.c.b16 %v1250, %v1250
      %v1283 = vpack.c.b16 %v1251, %v1251
      %v1284 = vpack.c.b16 %v1252, %v1252
      %v1285 = vpack.c.b16 %v1253, %v1253
      %v1286 = vpack.c.b16 %v1254, %v1254
      %v1287 = vpack.c.b16 %v1255, %v1255
      %v1288 = vpack.c.b16 %v1256, %v1256
      %v1289 = vpack.c.b16 %v1257, %v1257
      %v1290 = vpack.c.b16 %v1258, %v1258
      %v1291 = vpack.c.b16 %v1259, %v1259
      %v1292 = vpack.c.b16 %v1260, %v1260
      %v1293 = vpack.c.b16 %v1261, %v1261
      %v1294 = vpack.c.b16 %v1262, %v1262
      %v1295 = vpack.c.b16 %v1263, %v1263
      %v1296 = vpack.c.b16 %v1264, %v1264
      %v1297 = vpack.c.b16 %v1265, %v1265
      %v1298 = vpack.c.b16 %v1266, %v1266
      %v1299 = vpack.c.b16 %v1267, %v1267
      %v1300 = vpack.c.b16 %v1268, %v1268
      %s1333 = sshra.s32 %s203, 3
      %s1334 = sand.u32 %s203, 7
      %s1335 = smul.addr %s1333, 4
      %s1336 = scalar_lea.vmem %s201, %s1335
      %1337 = vst [vmem:[%s1336] sm:$0xf] %v1269
      %1338 = vst [vmem:[%s1336 + $0x4] sm:$0xf] %v1270
      %1339 = vst [vmem:[%s1336 + $0x8] sm:$0xf] %v1271
      %1340 = vst [vmem:[%s1336 + $0xc] sm:$0xf] %v1272
      %1341 = vst [vmem:[%s1336 + $0x10] sm:$0xf] %v1273
      %1342 = vst [vmem:[%s1336 + $0x14] sm:$0xf] %v1274
      %1343 = vst [vmem:[%s1336 + $0x18] sm:$0xf] %v1275
      %1344 = vst [vmem:[%s1336 + $0x1c] sm:$0xf] %v1276
      %1345 = vst [vmem:[%s1336 + $0x20] sm:$0xf] %v1277
      %1346 = vst [vmem:[%s1336 + $0x24] sm:$0xf] %v1278
      %1347 = vst [vmem:[%s1336 + $0x28] sm:$0xf] %v1279
      %1348 = vst [vmem:[%s1336 + $0x2c] sm:$0xf] %v1280
      %1349 = vst [vmem:[%s1336 + $0x30] sm:$0xf] %v1281
      %1350 = vst [vmem:[%s1336 + $0x34] sm:$0xf] %v1282
      %1351 = vst [vmem:[%s1336 + $0x38] sm:$0xf] %v1283
      %1352 = vst [vmem:[%s1336 + $0x3c] sm:$0xf] %v1284
      %1353 = vst [vmem:[%s1336 + $0x40] sm:$0xf] %v1285
      %1354 = vst [vmem:[%s1336 + $0x44] sm:$0xf] %v1286
      %1355 = vst [vmem:[%s1336 + $0x48] sm:$0xf] %v1287
      %1356 = vst [vmem:[%s1336 + $0x4c] sm:$0xf] %v1288
      %1357 = vst [vmem:[%s1336 + $0x50] sm:$0xf] %v1289
      %1358 = vst [vmem:[%s1336 + $0x54] sm:$0xf] %v1290
      %1359 = vst [vmem:[%s1336 + $0x58] sm:$0xf] %v1291
      %1360 = vst [vmem:[%s1336 + $0x5c] sm:$0xf] %v1292
      %1361 = vst [vmem:[%s1336 + $0x60] sm:$0xf] %v1293
      %1362 = vst [vmem:[%s1336 + $0x64] sm:$0xf] %v1294
      %1363 = vst [vmem:[%s1336 + $0x68] sm:$0xf] %v1295
      %1364 = vst [vmem:[%s1336 + $0x6c] sm:$0xf] %v1296
      %1365 = vst [vmem:[%s1336 + $0x70] sm:$0xf] %v1297
      %1366 = vst [vmem:[%s1336 + $0x74] sm:$0xf] %v1298
      %1367 = vst [vmem:[%s1336 + $0x78] sm:$0xf] %v1299
      %1368 = vst [vmem:[%s1336 + $0x7c] sm:$0xf] %v1300
      %p1369 = scmp.lt.s32.totalorder %s18, 1
      %s1370 = scalar_select %p1369, %s18, 1
      %s1371 = smul.addr %s1370, 128
      %s1372 = smul.addr %s1371, 4
      %s1373 = scalar_lea.vmem %s3, %s1372
      // Predicated region
      $region33: #{_lambda_.23} parent=31 // pred_check
        %p1374 = pneg %p114
      $region34: #{_lambda_.23} parent=31 // pred_check_branch
        %1376 = sbr.rel (%p1374) target = $region36
      $region35: #{_lambda_.23} parent=31 // pred_region
        _
      $region36: #{_lambda_.23} parent=31 // pred_fallthru
        _
    $region32: #{_lambda_.23} parent=5 // pred_fallthru
      _
    %p1377 = scmp.le.s32.totalorder 2, %s9
    // Predicated region
    $region37: #{_lambda_.23} parent=5 // pred_check
      %p1378 = pneg %p1377
    $region38: #{_lambda_.23} parent=5 // pred_check_branch
      %1380 = sbr.rel (%p1378) target = $region40
    $region39: #{_lambda_.23} parent=5 // pred_region
      %s1381 = ssub.s32 %s9, 2
      // Predicated region
      $region41: #{_lambda_.23} parent=39 // pred_check
        %p1382 = pneg %p120
      $region42: #{_lambda_.23} parent=39 // pred_check_branch
        %1384 = sbr.rel (%p1382) target = $region44
      $region43: #{_lambda_.23} parent=39 // pred_region
        %p1385 = scmp.lt.s32.totalorder %s20, 1
        %s1386 = scalar_select %p1385, %s20, 1
        %s1387 = smul.addr %s1386, 128
        %s1388 = smul.addr %s1387, 4
        %s1389 = scalar_lea.vmem %s3, %s1388
      $region44: #{_lambda_.23} parent=39 // pred_fallthru
        _
    $region40: #{_lambda_.23} parent=5 // pred_fallthru
      _
  $region6: #{_lambda_.23} parent=0 // loop_footer
    %s13 = sadd.s32 1, %s9
  $region7: #{_lambda_.23} parent=0 // loop_footer_branch
    %8 = sbr.rel target = $region3
  $region8: #{_lambda_.23} parent=0 // loop_exit
    _

</llo_original>
